<compile_context>
chip_gen: v6e
topology: v6e:2x2x1
jax: 0.10.0
libtpu: 0.0.40
codegen_flags: <defaults>
</compile_context>

<pallas_src>
import functools

import jax
import jax.numpy as jnp
from jax.experimental import pallas as pl
from jax.experimental.pallas import tpu as pltpu

LANES = 128                      # channel padding target -> lane-dense stores
_VMEM_LIMIT = 32 * 1024 * 1024   # explicit scoped-VMEM budget (safe on v5e/v6e/v7x)


def _pad_last(x, target):
    pad = target - x.shape[-1]
    if pad == 0:
        return x
    cfg = [(0, 0)] * (x.ndim - 1) + [(0, pad)]
    return jnp.pad(x, cfg)


def _pick_tile(dim, candidates):
    for c in candidates:
        if dim % c == 0:
            return c
    return dim


# ---------------------------------------------------------------------------
# Conv3d(k=3, padding='same') + bias + ReLU  (channel-last, C_out padded to 128)
# ---------------------------------------------------------------------------
def _conv_kernel(x0_ref, x1_ref, x2_ref, w_ref, b_ref, o_ref, *, H, W):
    """One (n, d) output plane: out[h, w, :] = relu(b + sum_{27 taps} x_tap @ W_tap)."""
    cp_out = o_ref.shape[-1]
    cin = x0_ref.shape[-1]
    planes = (x0_ref, x1_ref, x2_ref)
    acc = jnp.zeros((H * W, cp_out), jnp.float32)      # register accumulator
    for kd in range(3):
        for kh in range(3):
            for kw in range(3):
                # (H, W, Cin) bf16 tap from the padded plane, static slice.
                tap = planes[kd][0, 0, kh:kh + H, kw:kw + W, :]
                lhs = tap.reshape(H * W, cin)
                acc = acc + jnp.dot(lhs, w_ref[kd, kh, kw],
                                    preferred_element_type=jnp.float32)
    out = jnp.maximum(acc + b_ref[...], 0.0)            # bias + ReLU in f32
    o_ref[0, 0] = out.reshape(H, W, cp_out).astype(o_ref.dtype)


def conv3d_same_relu(x_cl, w, b, *, cp_out=LANES):
    """x_cl: (N, D, H, W, Cin) bf16 channel-last.  w: torch layout
    (C_out, C_in, 3, 3, 3).  Returns (N, D, H, W, cp_out) bf16, C_out zero-padded."""
    N, D, H, W, Cin = x_cl.shape
    C_out, C_in_w = w.shape[0], w.shape[1]
    # (C_out, C_in, kd, kh, kw) -> (kd, kh, kw, C_in, C_out); zero-pad C_in to the
    # (possibly channel-padded) activation depth and C_out to 128 lanes.
    w_t = jnp.transpose(w, (2, 3, 4, 1, 0))
    w_t = jnp.pad(w_t, ((0, 0), (0, 0), (0, 0),
                        (0, Cin - C_in_w), (0, cp_out - C_out))).astype(jnp.bfloat16)
    b_p = _pad_last(b.reshape(1, -1), cp_out).astype(jnp.float32)
    # zero 'same' padding (k=3, stride=1) on the three spatial dims.
    xp = jnp.pad(x_cl, ((0, 0), (1, 1), (1, 1), (1, 1), (0, 0)))

    def shifted(kd):
        # block size 1 along the padded-D axis => block index == element offset,
        # so d + kd selects the kd-th of the three overlapping depth planes.
        return pl.BlockSpec((1, 1, H + 2, W + 2, Cin),
                            lambda n, d, kd=kd: (n, d + kd, 0, 0, 0))

    return pl.pallas_call(
        functools.partial(_conv_kernel, H=H, W=W),
        out_shape=jax.ShapeDtypeStruct((N, D, H, W, cp_out), jnp.bfloat16),
        grid=(N, D),
        in_specs=[
            shifted(0), shifted(1), shifted(2),     # 3 overlapping depth planes
            pl.BlockSpec((3, 3, 3, Cin, cp_out), lambda n, d: (0, 0, 0, 0, 0)),
            pl.BlockSpec((1, cp_out), lambda n, d: (0, 0)),
        ],
        out_specs=pl.BlockSpec((1, 1, H, W, cp_out), lambda n, d: (n, d, 0, 0, 0)),
        compiler_params=pltpu.CompilerParams(
            dimension_semantics=("parallel", "parallel"),
            vmem_limit_bytes=_VMEM_LIMIT),
    )(xp, xp, xp, w_t, b_p)


# ---------------------------------------------------------------------------
# MaxPool3d(kernel=2, stride=2), channel-last, lane-dense
# ---------------------------------------------------------------------------
def _pool_kernel(x_ref, o_ref):
    C = o_ref.shape[-1]
    m = None
    for dd in range(2):
        for hh in range(2):
            v = x_ref[0, dd, :, hh, :, :]            # (H2, W2, 2*C)
            m = v if m is None else jnp.maximum(m, v)
    # W-pair lives in the lane dim: compare the two aligned 128-lane halves.
    o_ref[0] = jnp.maximum(m[..., :C], m[..., C:])


def maxpool3d_2(y):
    """MaxPool3d(2) on channel-last (N, D, H, W, C) with C a multiple of 128."""
    N, D, H, W, C = y.shape
    D2, H2, W2 = D // 2, H // 2, W // 2
    # Free contiguous reshape: (N,D,H,W,C) -> (N*D2, 2, H2, 2, W2, 2*C).
    # D/H pairs are outer dims; the W pair is merged into the (lane) last dim.
    z = y.reshape(N * D2, 2, H2, 2, W2, 2 * C)
    out = pl.pallas_call(
        _pool_kernel,
        out_shape=jax.ShapeDtypeStruct((N * D2, H2, W2, C), y.dtype),
        grid=(N * D2,),
        in_specs=[pl.BlockSpec((1, 2, H2, 2, W2, 2 * C),
                               lambda i: (i, 0, 0, 0, 0, 0))],
        out_specs=pl.BlockSpec((1, H2, W2, C), lambda i: (i, 0, 0, 0)),
        compiler_params=pltpu.CompilerParams(
            dimension_semantics=("parallel",),
            vmem_limit_bytes=_VMEM_LIMIT),
    )(z)
    return out.reshape(N, D2, H2, W2, C)


# ---------------------------------------------------------------------------
# Tiled matmul + bias + activation (canonical K-accumulation pattern)
# ---------------------------------------------------------------------------
def _matmul_kernel(a_ref, b_ref, bias_ref, o_ref, acc_ref, *, act):
    @pl.when(pl.program_id(2) == 0)
    def _init():
        acc_ref[...] = jnp.zeros_like(acc_ref)

    acc_ref[...] += jnp.dot(a_ref[...], b_ref[...],
                            preferred_element_type=jnp.float32)

    @pl.when(pl.program_id(2) == pl.num_programs(2) - 1)
    def _finalize():
        r = acc_ref[...] + bias_ref[...]             # bias/act only on last K step
        if act == "relu":
            r = jnp.maximum(r, 0.0)
        elif act == "sigmoid":
            r = 1.0 / (1.0 + jnp.exp(-r))
        o_ref[...] = r.astype(o_ref.dtype)


def matmul_bias_act(a, w, b, act, out_dtype=jnp.float32):
    """act(a @ w + b).  a:(M,K), w:(K,N), b:(N,).  M%8==0, K%128==0, N%128==0."""
    M, K = a.shape
    K2, N = w.shape
    assert K == K2 and M % 8 == 0 and K % 128 == 0 and N % 128 == 0
    tm = _pick_tile(M, (256, 128, 64, 32, 16, 8))
    tn = _pick_tile(N, (256, 128))
    tk = _pick_tile(K, (512, 256, 128))
    grid = (M // tm, N // tn, K // tk)
    return pl.pallas_call(
        functools.partial(_matmul_kernel, act=act),
        out_shape=jax.ShapeDtypeStruct((M, N), out_dtype),
        grid_spec=pltpu.PrefetchScalarGridSpec(
            num_scalar_prefetch=0,
            grid=grid,
            in_specs=[
                pl.BlockSpec((tm, tk), lambda i, j, k: (i, k)),
                pl.BlockSpec((tk, tn), lambda i, j, k: (k, j)),
                pl.BlockSpec((1, tn), lambda i, j, k: (0, j)),
            ],
            out_specs=pl.BlockSpec((tm, tn), lambda i, j, k: (i, j)),
            scratch_shapes=[pltpu.VMEM((tm, tn), jnp.float32)]),
        compiler_params=pltpu.CompilerParams(
            dimension_semantics=("parallel", "parallel", "arbitrary"),
            vmem_limit_bytes=_VMEM_LIMIT),
    )(a.astype(jnp.bfloat16), w.astype(jnp.bfloat16),
      b.reshape(1, N).astype(jnp.float32))


# ---------------------------------------------------------------------------
# Full forward pass (matches EEG3DCNN.forward, eval mode)
# ---------------------------------------------------------------------------
def eeg3dcnn_forward(params, x):
    """x: (N, C, D, H, W) float32 (torch NCDHW).  Returns (N, 1) sigmoid probs."""
    N, C, D, H, W = x.shape
    # One-time layout change to channel-last; activations stay channel-last with
    # the channel dim padded so every kernel output is 128-lane dense.
    x_cl = jnp.transpose(x, (0, 2, 3, 4, 1)).astype(jnp.bfloat16)
    x_cl = _pad_last(x_cl, ((C + 7) // 8) * 8)                   # pad C to sublane mult

    a1 = conv3d_same_relu(x_cl, params["w1"], params["b1"])      # (N, D, H, W, 128)
    p1 = maxpool3d_2(a1)                                         # (N, D/2, H/2, W/2, 128)
    a2 = conv3d_same_relu(p1, params["w2"], params["b2"])        # (N, D/2, ..., 128)
    p2 = maxpool3d_2(a2)                                         # (N, D/4, H/4, W/4, 128)

    nf2 = params["w2"].shape[0]
    n_fc = params["fc1_w"].shape[0]
    _, D4, H4, W4, CP = p2.shape
    NF_P = ((n_fc + LANES - 1) // LANES) * LANES                 # padded fc1 width

    # Flatten channel-last.  fc1 weight columns are permuted (c,d,h,w)->(d,h,w,c)
    # and zero-padded over the padded channels, so no activation transpose/slice
    # is needed and the flatten matches torch's .view(N, -1) semantics.
    flat = p2.reshape(N, D4 * H4 * W4 * CP)
    Mp = ((N + 7) // 8) * 8
    flat = jnp.pad(flat, ((0, Mp - N), (0, 0)))                  # pad batch to sublanes

    w1 = params["fc1_w"].reshape(n_fc, nf2, D4, H4, W4)
    w1 = jnp.transpose(w1, (0, 2, 3, 4, 1))                      # (n_fc, D4, H4, W4, nf2)
    w1 = _pad_last(w1, CP).reshape(n_fc, D4 * H4 * W4 * CP)
    w1 = _pad_last(w1.T, NF_P)                                   # (K, NF_P)
    b1 = _pad_last(params["fc1_b"].reshape(1, -1), NF_P).reshape(-1)
    h = matmul_bias_act(flat, w1, b1, act="relu", out_dtype=jnp.bfloat16)   # (Mp, NF_P)

    # Dropout: eval-mode forward => identity (no-op at inference).
    w2 = jnp.pad(params["fc2_w"].T, ((0, NF_P - n_fc), (0, LANES - 1)))     # (NF_P, 128)
    b2 = _pad_last(params["fc2_b"].reshape(1, -1), LANES).reshape(-1)
    out = matmul_bias_act(h, w2, b2, act="sigmoid", out_dtype=jnp.float32)  # (Mp, 128)
    return out[:N, :1]


# ---------------------------------------------------------------------------
# Parameters, pure-JAX reference, and test harness
# ---------------------------------------------------------------------------
def init_params(key, input_shape, cfg):
    c_in, D, H, W = input_shape
    nf1, nf2, n_fc = cfg["n_filters_1"], cfg["n_filters_2"], cfg["n_fc"]
    flat_size = nf2 * (D // 4) * (H // 4) * (W // 4)
    ks = jax.random.split(key, 8)
    s = 0.1
    return {
        "w1": s * jax.random.normal(ks[0], (nf1, c_in, 3, 3, 3), jnp.float32),
        "b1": s * jax.random.normal(ks[1], (nf1,), jnp.float32),
        "w2": s * jax.random.normal(ks[2], (nf2, nf1, 3, 3, 3), jnp.float32),
        "b2": s * jax.random.normal(ks[3], (nf2,), jnp.float32),
        "fc1_w": s * jax.random.normal(ks[4], (n_fc, flat_size), jnp.float32),
        "fc1_b": s * jax.random.normal(ks[5], (n_fc,), jnp.float32),
        "fc2_w": s * jax.random.normal(ks[6], (1, n_fc), jnp.float32),
        "fc2_b": s * jax.random.normal(ks[7], (1,), jnp.float32),
    }


def reference_forward(params, x):
    """Pure-JAX (XLA) f32 reference with the torch module's semantics."""
    def conv(v, w, b):
        y = jax.lax.conv_general_dilated(
            v, w, window_strides=(1, 1, 1), padding="SAME",
            dimension_numbers=("NCDHW", "OIDHW", "NCDHW"))
        return jax.nn.relu(y + b[None, :, None, None, None])

    def pool(v):
        return jax.lax.reduce_window(
            v, -jnp.inf, jax.lax.max,
            window_dimensions=(1, 1, 2, 2, 2),
            window_strides=(1, 1, 2, 2, 2), padding="VALID")

    a = pool(conv(x, params["w1"], params["b1"]))
    a = pool(conv(a, params["w2"], params["b2"]))
    a = a.reshape(x.shape[0], -1)
    a = jax.nn.relu(a @ params["fc1_w"].T + params["fc1_b"])
    return jax.nn.sigmoid(a @ params["fc2_w"].T + params["fc2_b"])


if __name__ == "__main__":
    key = jax.random.PRNGKey(0)
    k_x, k_p = jax.random.split(key)

    input_shape = (4, 8, 8, 8)           # (channels, D, H, W)
    cfg = {"n_filters_1": 8, "n_filters_2": 16, "kernel_size": (3, 3, 3),
           "pool_size": (2, 2, 2), "dropout_rate": 0.5, "n_fc": 32}
    batch = 2

    x = jax.random.normal(k_x, (batch,) + input_shape, jnp.float32)
    params = init_params(k_p, input_shape, cfg)

    out = jax.block_until_ready(jax.jit(eeg3dcnn_forward)(params, x))

    assert out.shape == (batch, 1)
    assert bool(jnp.all(jnp.isfinite(out)))
    assert bool(jnp.all((out >= 0.0) & (out <= 1.0)))

    ref = reference_forward(params, x)
    err = float(jnp.max(jnp.abs(out - ref)))
    assert err < 5e-2, f"max abs error vs reference too large: {err}"

    print("KERNEL_OK")
</pallas_src>

<mosaic_0001>
module attributes {stable_mosaic.version = 11 : i64} {
  func.func @_conv_kernel(%arg0: i32, %arg1: i32, %arg2: memref<1x1x10x10x8xbf16, #tpu.memory_space<vmem>>, %arg3: memref<1x1x10x10x8xbf16, #tpu.memory_space<vmem>>, %arg4: memref<1x1x10x10x8xbf16, #tpu.memory_space<vmem>>, %arg5: memref<3x3x3x8x128xbf16, #tpu.memory_space<vmem>>, %arg6: memref<1x128xf32, #tpu.memory_space<vmem>>, %arg7: memref<1x1x8x8x128xbf16, #tpu.memory_space<vmem>>) attributes {dimension_semantics = [#tpu.dimension_semantics<parallel>, #tpu.dimension_semantics<parallel>], iteration_bounds = array<i64: 2, 8>, scalar_prefetch = 0 : i64, scratch_operands = 0 : i64, tpu.core_type = #tpu.core_type<tc>, window_params = [{transform_indices = @transform_0, window_bounds = array<i64: 1, 1, 10, 10, 8>}, {transform_indices = @transform_1, window_bounds = array<i64: 1, 1, 10, 10, 8>}, {transform_indices = @transform_2, window_bounds = array<i64: 1, 1, 10, 10, 8>}, {pipeline_mode = #tpu.pipeline_mode<synchronous>, transform_indices = @transform_3, window_bounds = array<i64: 3, 3, 3, 8, 128>}, {pipeline_mode = #tpu.pipeline_mode<synchronous>, transform_indices = @transform_4, window_bounds = array<i64: 1, 128>}, {transform_indices = @transform_5, window_bounds = array<i64: 1, 1, 8, 8, 128>}]} {
    %cst = arith.constant 0.000000e+00 : f32
    %0 = vector.broadcast %cst : f32 to vector<64x128xf32>
    %c0 = arith.constant 0 : index
    %c0_0 = arith.constant 0 : index
    %c0_1 = arith.constant 0 : index
    %c0_2 = arith.constant 0 : index
    %c0_3 = arith.constant 0 : index
    %1 = vector.load %arg2[%c0, %c0_0, %c0_1, %c0_2, %c0_3] : memref<1x1x10x10x8xbf16, #tpu.memory_space<vmem>>, vector<1x1x8x8x8xbf16>
    %2 = vector.shape_cast %1 : vector<1x1x8x8x8xbf16> to vector<8x8x8xbf16>
    %3 = vector.shape_cast %2 : vector<8x8x8xbf16> to vector<64x8xbf16>
    %c0_4 = arith.constant 0 : index
    %c0_5 = arith.constant 0 : index
    %c0_6 = arith.constant 0 : index
    %c0_7 = arith.constant 0 : index
    %c0_8 = arith.constant 0 : index
    %4 = vector.load %arg5[%c0_4, %c0_5, %c0_6, %c0_7, %c0_8] : memref<3x3x3x8x128xbf16, #tpu.memory_space<vmem>>, vector<1x1x1x8x128xbf16>
    %5 = vector.shape_cast %4 : vector<1x1x1x8x128xbf16> to vector<8x128xbf16>
    %cst_9 = arith.constant dense<0.000000e+00> : vector<64x128xf32>
    %6 = tpu.matmul %3, %5, %cst_9 {dimension_numbers = #tpu.dot_dimension_numbers<[1], [0], [0], [1], [0, 0, 1, 1], [], []>} : vector<64x8xbf16>, vector<8x128xbf16>, vector<64x128xf32> -> vector<64x128xf32>
    %7 = arith.addf %0, %6 : vector<64x128xf32>
    %c0_10 = arith.constant 0 : index
    %c0_11 = arith.constant 0 : index
    %c0_12 = arith.constant 0 : index
    %c1 = arith.constant 1 : index
    %c0_13 = arith.constant 0 : index
    %8 = vector.load %arg2[%c0_10, %c0_11, %c0_12, %c1, %c0_13] : memref<1x1x10x10x8xbf16, #tpu.memory_space<vmem>>, vector<1x1x8x8x8xbf16>
    %9 = vector.shape_cast %8 : vector<1x1x8x8x8xbf16> to vector<8x8x8xbf16>
    %10 = vector.shape_cast %9 : vector<8x8x8xbf16> to vector<64x8xbf16>
    %c0_14 = arith.constant 0 : index
    %c0_15 = arith.constant 0 : index
    %c1_16 = arith.constant 1 : index
    %c0_17 = arith.constant 0 : index
    %c0_18 = arith.constant 0 : index
    %11 = vector.load %arg5[%c0_14, %c0_15, %c1_16, %c0_17, %c0_18] : memref<3x3x3x8x128xbf16, #tpu.memory_space<vmem>>, vector<1x1x1x8x128xbf16>
    %12 = vector.shape_cast %11 : vector<1x1x1x8x128xbf16> to vector<8x128xbf16>
    %cst_19 = arith.constant dense<0.000000e+00> : vector<64x128xf32>
    %13 = tpu.matmul %10, %12, %cst_19 {dimension_numbers = #tpu.dot_dimension_numbers<[1], [0], [0], [1], [0, 0, 1, 1], [], []>} : vector<64x8xbf16>, vector<8x128xbf16>, vector<64x128xf32> -> vector<64x128xf32>
    %14 = arith.addf %7, %13 : vector<64x128xf32>
    %c0_20 = arith.constant 0 : index
    %c0_21 = arith.constant 0 : index
    %c0_22 = arith.constant 0 : index
    %c2 = arith.constant 2 : index
    %c0_23 = arith.constant 0 : index
    %15 = vector.load %arg2[%c0_20, %c0_21, %c0_22, %c2, %c0_23] : memref<1x1x10x10x8xbf16, #tpu.memory_space<vmem>>, vector<1x1x8x8x8xbf16>
    %16 = vector.shape_cast %15 : vector<1x1x8x8x8xbf16> to vector<8x8x8xbf16>
    %17 = vector.shape_cast %16 : vector<8x8x8xbf16> to vector<64x8xbf16>
    %c0_24 = arith.constant 0 : index
    %c0_25 = arith.constant 0 : index
    %c2_26 = arith.constant 2 : index
    %c0_27 = arith.constant 0 : index
    %c0_28 = arith.constant 0 : index
    %18 = vector.load %arg5[%c0_24, %c0_25, %c2_26, %c0_27, %c0_28] : memref<3x3x3x8x128xbf16, #tpu.memory_space<vmem>>, vector<1x1x1x8x128xbf16>
    %19 = vector.shape_cast %18 : vector<1x1x1x8x128xbf16> to vector<8x128xbf16>
    %cst_29 = arith.constant dense<0.000000e+00> : vector<64x128xf32>
    %20 = tpu.matmul %17, %19, %cst_29 {dimension_numbers = #tpu.dot_dimension_numbers<[1], [0], [0], [1], [0, 0, 1, 1], [], []>} : vector<64x8xbf16>, vector<8x128xbf16>, vector<64x128xf32> -> vector<64x128xf32>
    %21 = arith.addf %14, %20 : vector<64x128xf32>
    %c0_30 = arith.constant 0 : index
    %c0_31 = arith.constant 0 : index
    %c1_32 = arith.constant 1 : index
    %c0_33 = arith.constant 0 : index
    %c0_34 = arith.constant 0 : index
    %22 = vector.load %arg2[%c0_30, %c0_31, %c1_32, %c0_33, %c0_34] : memref<1x1x10x10x8xbf16, #tpu.memory_space<vmem>>, vector<1x1x8x8x8xbf16>
    %23 = vector.shape_cast %22 : vector<1x1x8x8x8xbf16> to vector<8x8x8xbf16>
    %24 = vector.shape_cast %23 : vector<8x8x8xbf16> to vector<64x8xbf16>
    %c0_35 = arith.constant 0 : index
    %c1_36 = arith.constant 1 : index
    %c0_37 = arith.constant 0 : index
    %c0_38 = arith.constant 0 : index
    %c0_39 = arith.constant 0 : index
    %25 = vector.load %arg5[%c0_35, %c1_36, %c0_37, %c0_38, %c0_39] : memref<3x3x3x8x128xbf16, #tpu.memory_space<vmem>>, vector<1x1x1x8x128xbf16>
    %26 = vector.shape_cast %25 : vector<1x1x1x8x128xbf16> to vector<8x128xbf16>
    %cst_40 = arith.constant dense<0.000000e+00> : vector<64x128xf32>
    %27 = tpu.matmul %24, %26, %cst_40 {dimension_numbers = #tpu.dot_dimension_numbers<[1], [0], [0], [1], [0, 0, 1, 1], [], []>} : vector<64x8xbf16>, vector<8x128xbf16>, vector<64x128xf32> -> vector<64x128xf32>
    %28 = arith.addf %21, %27 : vector<64x128xf32>
    %c0_41 = arith.constant 0 : index
    %c0_42 = arith.constant 0 : index
    %c1_43 = arith.constant 1 : index
    %c1_44 = arith.constant 1 : index
    %c0_45 = arith.constant 0 : index
    %29 = vector.load %arg2[%c0_41, %c0_42, %c1_43, %c1_44, %c0_45] : memref<1x1x10x10x8xbf16, #tpu.memory_space<vmem>>, vector<1x1x8x8x8xbf16>
    %30 = vector.shape_cast %29 : vector<1x1x8x8x8xbf16> to vector<8x8x8xbf16>
    %31 = vector.shape_cast %30 : vector<8x8x8xbf16> to vector<64x8xbf16>
    %c0_46 = arith.constant 0 : index
    %c1_47 = arith.constant 1 : index
    %c1_48 = arith.constant 1 : index
    %c0_49 = arith.constant 0 : index
    %c0_50 = arith.constant 0 : index
    %32 = vector.load %arg5[%c0_46, %c1_47, %c1_48, %c0_49, %c0_50] : memref<3x3x3x8x128xbf16, #tpu.memory_space<vmem>>, vector<1x1x1x8x128xbf16>
    %33 = vector.shape_cast %32 : vector<1x1x1x8x128xbf16> to vector<8x128xbf16>
    %cst_51 = arith.constant dense<0.000000e+00> : vector<64x128xf32>
    %34 = tpu.matmul %31, %33, %cst_51 {dimension_numbers = #tpu.dot_dimension_numbers<[1], [0], [0], [1], [0, 0, 1, 1], [], []>} : vector<64x8xbf16>, vector<8x128xbf16>, vector<64x128xf32> -> vector<64x128xf32>
    %35 = arith.addf %28, %34 : vector<64x128xf32>
    %c0_52 = arith.constant 0 : index
    %c0_53 = arith.constant 0 : index
    %c1_54 = arith.constant 1 : index
    %c2_55 = arith.constant 2 : index
    %c0_56 = arith.constant 0 : index
    %36 = vector.load %arg2[%c0_52, %c0_53, %c1_54, %c2_55, %c0_56] : memref<1x1x10x10x8xbf16, #tpu.memory_space<vmem>>, vector<1x1x8x8x8xbf16>
    %37 = vector.shape_cast %36 : vector<1x1x8x8x8xbf16> to vector<8x8x8xbf16>
    %38 = vector.shape_cast %37 : vector<8x8x8xbf16> to vector<64x8xbf16>
    %c0_57 = arith.constant 0 : index
    %c1_58 = arith.constant 1 : index
    %c2_59 = arith.constant 2 : index
    %c0_60 = arith.constant 0 : index
    %c0_61 = arith.constant 0 : index
    %39 = vector.load %arg5[%c0_57, %c1_58, %c2_59, %c0_60, %c0_61] : memref<3x3x3x8x128xbf16, #tpu.memory_space<vmem>>, vector<1x1x1x8x128xbf16>
    %40 = vector.shape_cast %39 : vector<1x1x1x8x128xbf16> to vector<8x128xbf16>
    %cst_62 = arith.constant dense<0.000000e+00> : vector<64x128xf32>
    %41 = tpu.matmul %38, %40, %cst_62 {dimension_numbers = #tpu.dot_dimension_numbers<[1], [0], [0], [1], [0, 0, 1, 1], [], []>} : vector<64x8xbf16>, vector<8x128xbf16>, vector<64x128xf32> -> vector<64x128xf32>
    %42 = arith.addf %35, %41 : vector<64x128xf32>
    %c0_63 = arith.constant 0 : index
    %c0_64 = arith.constant 0 : index
    %c2_65 = arith.constant 2 : index
    %c0_66 = arith.constant 0 : index
    %c0_67 = arith.constant 0 : index
    %43 = vector.load %arg2[%c0_63, %c0_64, %c2_65, %c0_66, %c0_67] : memref<1x1x10x10x8xbf16, #tpu.memory_space<vmem>>, vector<1x1x8x8x8xbf16>
    %44 = vector.shape_cast %43 : vector<1x1x8x8x8xbf16> to vector<8x8x8xbf16>
    %45 = vector.shape_cast %44 : vector<8x8x8xbf16> to vector<64x8xbf16>
    %c0_68 = arith.constant 0 : index
    %c2_69 = arith.constant 2 : index
    %c0_70 = arith.constant 0 : index
    %c0_71 = arith.constant 0 : index
    %c0_72 = arith.constant 0 : index
    %46 = vector.load %arg5[%c0_68, %c2_69, %c0_70, %c0_71, %c0_72] : memref<3x3x3x8x128xbf16, #tpu.memory_space<vmem>>, vector<1x1x1x8x128xbf16>
    %47 = vector.shape_cast %46 : vector<1x1x1x8x128xbf16> to vector<8x128xbf16>
    %cst_73 = arith.constant dense<0.000000e+00> : vector<64x128xf32>
    %48 = tpu.matmul %45, %47, %cst_73 {dimension_numbers = #tpu.dot_dimension_numbers<[1], [0], [0], [1], [0, 0, 1, 1], [], []>} : vector<64x8xbf16>, vector<8x128xbf16>, vector<64x128xf32> -> vector<64x128xf32>
    %49 = arith.addf %42, %48 : vector<64x128xf32>
    %c0_74 = arith.constant 0 : index
    %c0_75 = arith.constant 0 : index
    %c2_76 = arith.constant 2 : index
    %c1_77 = arith.constant 1 : index
    %c0_78 = arith.constant 0 : index
    %50 = vector.load %arg2[%c0_74, %c0_75, %c2_76, %c1_77, %c0_78] : memref<1x1x10x10x8xbf16, #tpu.memory_space<vmem>>, vector<1x1x8x8x8xbf16>
    %51 = vector.shape_cast %50 : vector<1x1x8x8x8xbf16> to vector<8x8x8xbf16>
    %52 = vector.shape_cast %51 : vector<8x8x8xbf16> to vector<64x8xbf16>
    %c0_79 = arith.constant 0 : index
    %c2_80 = arith.constant 2 : index
    %c1_81 = arith.constant 1 : index
    %c0_82 = arith.constant 0 : index
    %c0_83 = arith.constant 0 : index
    %53 = vector.load %arg5[%c0_79, %c2_80, %c1_81, %c0_82, %c0_83] : memref<3x3x3x8x128xbf16, #tpu.memory_space<vmem>>, vector<1x1x1x8x128xbf16>
    %54 = vector.shape_cast %53 : vector<1x1x1x8x128xbf16> to vector<8x128xbf16>
    %cst_84 = arith.constant dense<0.000000e+00> : vector<64x128xf32>
    %55 = tpu.matmul %52, %54, %cst_84 {dimension_numbers = #tpu.dot_dimension_numbers<[1], [0], [0], [1], [0, 0, 1, 1], [], []>} : vector<64x8xbf16>, vector<8x128xbf16>, vector<64x128xf32> -> vector<64x128xf32>
    %56 = arith.addf %49, %55 : vector<64x128xf32>
    %c0_85 = arith.constant 0 : index
    %c0_86 = arith.constant 0 : index
    %c2_87 = arith.constant 2 : index
    %c2_88 = arith.constant 2 : index
    %c0_89 = arith.constant 0 : index
    %57 = vector.load %arg2[%c0_85, %c0_86, %c2_87, %c2_88, %c0_89] : memref<1x1x10x10x8xbf16, #tpu.memory_space<vmem>>, vector<1x1x8x8x8xbf16>
    %58 = vector.shape_cast %57 : vector<1x1x8x8x8xbf16> to vector<8x8x8xbf16>
    %59 = vector.shape_cast %58 : vector<8x8x8xbf16> to vector<64x8xbf16>
    %c0_90 = arith.constant 0 : index
    %c2_91 = arith.constant 2 : index
    %c2_92 = arith.constant 2 : index
    %c0_93 = arith.constant 0 : index
    %c0_94 = arith.constant 0 : index
    %60 = vector.load %arg5[%c0_90, %c2_91, %c2_92, %c0_93, %c0_94] : memref<3x3x3x8x128xbf16, #tpu.memory_space<vmem>>, vector<1x1x1x8x128xbf16>
    %61 = vector.shape_cast %60 : vector<1x1x1x8x128xbf16> to vector<8x128xbf16>
    %cst_95 = arith.constant dense<0.000000e+00> : vector<64x128xf32>
    %62 = tpu.matmul %59, %61, %cst_95 {dimension_numbers = #tpu.dot_dimension_numbers<[1], [0], [0], [1], [0, 0, 1, 1], [], []>} : vector<64x8xbf16>, vector<8x128xbf16>, vector<64x128xf32> -> vector<64x128xf32>
    %63 = arith.addf %56, %62 : vector<64x128xf32>
    %c0_96 = arith.constant 0 : index
    %c0_97 = arith.constant 0 : index
    %c0_98 = arith.constant 0 : index
    %c0_99 = arith.constant 0 : index
    %c0_100 = arith.constant 0 : index
    %64 = vector.load %arg3[%c0_96, %c0_97, %c0_98, %c0_99, %c0_100] : memref<1x1x10x10x8xbf16, #tpu.memory_space<vmem>>, vector<1x1x8x8x8xbf16>
    %65 = vector.shape_cast %64 : vector<1x1x8x8x8xbf16> to vector<8x8x8xbf16>
    %66 = vector.shape_cast %65 : vector<8x8x8xbf16> to vector<64x8xbf16>
    %c1_101 = arith.constant 1 : index
    %c0_102 = arith.constant 0 : index
    %c0_103 = arith.constant 0 : index
    %c0_104 = arith.constant 0 : index
    %c0_105 = arith.constant 0 : index
    %67 = vector.load %arg5[%c1_101, %c0_102, %c0_103, %c0_104, %c0_105] : memref<3x3x3x8x128xbf16, #tpu.memory_space<vmem>>, vector<1x1x1x8x128xbf16>
    %68 = vector.shape_cast %67 : vector<1x1x1x8x128xbf16> to vector<8x128xbf16>
    %cst_106 = arith.constant dense<0.000000e+00> : vector<64x128xf32>
    %69 = tpu.matmul %66, %68, %cst_106 {dimension_numbers = #tpu.dot_dimension_numbers<[1], [0], [0], [1], [0, 0, 1, 1], [], []>} : vector<64x8xbf16>, vector<8x128xbf16>, vector<64x128xf32> -> vector<64x128xf32>
    %70 = arith.addf %63, %69 : vector<64x128xf32>
    %c0_107 = arith.constant 0 : index
    %c0_108 = arith.constant 0 : index
    %c0_109 = arith.constant 0 : index
    %c1_110 = arith.constant 1 : index
    %c0_111 = arith.constant 0 : index
    %71 = vector.load %arg3[%c0_107, %c0_108, %c0_109, %c1_110, %c0_111] : memref<1x1x10x10x8xbf16, #tpu.memory_space<vmem>>, vector<1x1x8x8x8xbf16>
    %72 = vector.shape_cast %71 : vector<1x1x8x8x8xbf16> to vector<8x8x8xbf16>
    %73 = vector.shape_cast %72 : vector<8x8x8xbf16> to vector<64x8xbf16>
    %c1_112 = arith.constant 1 : index
    %c0_113 = arith.constant 0 : index
    %c1_114 = arith.constant 1 : index
    %c0_115 = arith.constant 0 : index
    %c0_116 = arith.constant 0 : index
    %74 = vector.load %arg5[%c1_112, %c0_113, %c1_114, %c0_115, %c0_116] : memref<3x3x3x8x128xbf16, #tpu.memory_space<vmem>>, vector<1x1x1x8x128xbf16>
    %75 = vector.shape_cast %74 : vector<1x1x1x8x128xbf16> to vector<8x128xbf16>
    %cst_117 = arith.constant dense<0.000000e+00> : vector<64x128xf32>
    %76 = tpu.matmul %73, %75, %cst_117 {dimension_numbers = #tpu.dot_dimension_numbers<[1], [0], [0], [1], [0, 0, 1, 1], [], []>} : vector<64x8xbf16>, vector<8x128xbf16>, vector<64x128xf32> -> vector<64x128xf32>
    %77 = arith.addf %70, %76 : vector<64x128xf32>
    %c0_118 = arith.constant 0 : index
    %c0_119 = arith.constant 0 : index
    %c0_120 = arith.constant 0 : index
    %c2_121 = arith.constant 2 : index
    %c0_122 = arith.constant 0 : index
    %78 = vector.load %arg3[%c0_118, %c0_119, %c0_120, %c2_121, %c0_122] : memref<1x1x10x10x8xbf16, #tpu.memory_space<vmem>>, vector<1x1x8x8x8xbf16>
    %79 = vector.shape_cast %78 : vector<1x1x8x8x8xbf16> to vector<8x8x8xbf16>
    %80 = vector.shape_cast %79 : vector<8x8x8xbf16> to vector<64x8xbf16>
    %c1_123 = arith.constant 1 : index
    %c0_124 = arith.constant 0 : index
    %c2_125 = arith.constant 2 : index
    %c0_126 = arith.constant 0 : index
    %c0_127 = arith.constant 0 : index
    %81 = vector.load %arg5[%c1_123, %c0_124, %c2_125, %c0_126, %c0_127] : memref<3x3x3x8x128xbf16, #tpu.memory_space<vmem>>, vector<1x1x1x8x128xbf16>
    %82 = vector.shape_cast %81 : vector<1x1x1x8x128xbf16> to vector<8x128xbf16>
    %cst_128 = arith.constant dense<0.000000e+00> : vector<64x128xf32>
    %83 = tpu.matmul %80, %82, %cst_128 {dimension_numbers = #tpu.dot_dimension_numbers<[1], [0], [0], [1], [0, 0, 1, 1], [], []>} : vector<64x8xbf16>, vector<8x128xbf16>, vector<64x128xf32> -> vector<64x128xf32>
    %84 = arith.addf %77, %83 : vector<64x128xf32>
    %c0_129 = arith.constant 0 : index
    %c0_130 = arith.constant 0 : index
    %c1_131 = arith.constant 1 : index
    %c0_132 = arith.constant 0 : index
    %c0_133 = arith.constant 0 : index
    %85 = vector.load %arg3[%c0_129, %c0_130, %c1_131, %c0_132, %c0_133] : memref<1x1x10x10x8xbf16, #tpu.memory_space<vmem>>, vector<1x1x8x8x8xbf16>
    %86 = vector.shape_cast %85 : vector<1x1x8x8x8xbf16> to vector<8x8x8xbf16>
    %87 = vector.shape_cast %86 : vector<8x8x8xbf16> to vector<64x8xbf16>
    %c1_134 = arith.constant 1 : index
    %c1_135 = arith.constant 1 : index
    %c0_136 = arith.constant 0 : index
    %c0_137 = arith.constant 0 : index
    %c0_138 = arith.constant 0 : index
    %88 = vector.load %arg5[%c1_134, %c1_135, %c0_136, %c0_137, %c0_138] : memref<3x3x3x8x128xbf16, #tpu.memory_space<vmem>>, vector<1x1x1x8x128xbf16>
    %89 = vector.shape_cast %88 : vector<1x1x1x8x128xbf16> to vector<8x128xbf16>
    %cst_139 = arith.constant dense<0.000000e+00> : vector<64x128xf32>
    %90 = tpu.matmul %87, %89, %cst_139 {dimension_numbers = #tpu.dot_dimension_numbers<[1], [0], [0], [1], [0, 0, 1, 1], [], []>} : vector<64x8xbf16>, vector<8x128xbf16>, vector<64x128xf32> -> vector<64x128xf32>
    %91 = arith.addf %84, %90 : vector<64x128xf32>
    %c0_140 = arith.constant 0 : index
    %c0_141 = arith.constant 0 : index
    %c1_142 = arith.constant 1 : index
    %c1_143 = arith.constant 1 : index
    %c0_144 = arith.constant 0 : index
    %92 = vector.load %arg3[%c0_140, %c0_141, %c1_142, %c1_143, %c0_144] : memref<1x1x10x10x8xbf16, #tpu.memory_space<vmem>>, vector<1x1x8x8x8xbf16>
    %93 = vector.shape_cast %92 : vector<1x1x8x8x8xbf16> to vector<8x8x8xbf16>
    %94 = vector.shape_cast %93 : vector<8x8x8xbf16> to vector<64x8xbf16>
    %c1_145 = arith.constant 1 : index
    %c1_146 = arith.constant 1 : index
    %c1_147 = arith.constant 1 : index
    %c0_148 = arith.constant 0 : index
    %c0_149 = arith.constant 0 : index
    %95 = vector.load %arg5[%c1_145, %c1_146, %c1_147, %c0_148, %c0_149] : memref<3x3x3x8x128xbf16, #tpu.memory_space<vmem>>, vector<1x1x1x8x128xbf16>
    %96 = vector.shape_cast %95 : vector<1x1x1x8x128xbf16> to vector<8x128xbf16>
    %cst_150 = arith.constant dense<0.000000e+00> : vector<64x128xf32>
    %97 = tpu.matmul %94, %96, %cst_150 {dimension_numbers = #tpu.dot_dimension_numbers<[1], [0], [0], [1], [0, 0, 1, 1], [], []>} : vector<64x8xbf16>, vector<8x128xbf16>, vector<64x128xf32> -> vector<64x128xf32>
    %98 = arith.addf %91, %97 : vector<64x128xf32>
    %c0_151 = arith.constant 0 : index
    %c0_152 = arith.constant 0 : index
    %c1_153 = arith.constant 1 : index
    %c2_154 = arith.constant 2 : index
    %c0_155 = arith.constant 0 : index
    %99 = vector.load %arg3[%c0_151, %c0_152, %c1_153, %c2_154, %c0_155] : memref<1x1x10x10x8xbf16, #tpu.memory_space<vmem>>, vector<1x1x8x8x8xbf16>
    %100 = vector.shape_cast %99 : vector<1x1x8x8x8xbf16> to vector<8x8x8xbf16>
    %101 = vector.shape_cast %100 : vector<8x8x8xbf16> to vector<64x8xbf16>
    %c1_156 = arith.constant 1 : index
    %c1_157 = arith.constant 1 : index
    %c2_158 = arith.constant 2 : index
    %c0_159 = arith.constant 0 : index
    %c0_160 = arith.constant 0 : index
    %102 = vector.load %arg5[%c1_156, %c1_157, %c2_158, %c0_159, %c0_160] : memref<3x3x3x8x128xbf16, #tpu.memory_space<vmem>>, vector<1x1x1x8x128xbf16>
    %103 = vector.shape_cast %102 : vector<1x1x1x8x128xbf16> to vector<8x128xbf16>
    %cst_161 = arith.constant dense<0.000000e+00> : vector<64x128xf32>
    %104 = tpu.matmul %101, %103, %cst_161 {dimension_numbers = #tpu.dot_dimension_numbers<[1], [0], [0], [1], [0, 0, 1, 1], [], []>} : vector<64x8xbf16>, vector<8x128xbf16>, vector<64x128xf32> -> vector<64x128xf32>
    %105 = arith.addf %98, %104 : vector<64x128xf32>
    %c0_162 = arith.constant 0 : index
    %c0_163 = arith.constant 0 : index
    %c2_164 = arith.constant 2 : index
    %c0_165 = arith.constant 0 : index
    %c0_166 = arith.constant 0 : index
    %106 = vector.load %arg3[%c0_162, %c0_163, %c2_164, %c0_165, %c0_166] : memref<1x1x10x10x8xbf16, #tpu.memory_space<vmem>>, vector<1x1x8x8x8xbf16>
    %107 = vector.shape_cast %106 : vector<1x1x8x8x8xbf16> to vector<8x8x8xbf16>
    %108 = vector.shape_cast %107 : vector<8x8x8xbf16> to vector<64x8xbf16>
    %c1_167 = arith.constant 1 : index
    %c2_168 = arith.constant 2 : index
    %c0_169 = arith.constant 0 : index
    %c0_170 = arith.constant 0 : index
    %c0_171 = arith.constant 0 : index
    %109 = vector.load %arg5[%c1_167, %c2_168, %c0_169, %c0_170, %c0_171] : memref<3x3x3x8x128xbf16, #tpu.memory_space<vmem>>, vector<1x1x1x8x128xbf16>
    %110 = vector.shape_cast %109 : vector<1x1x1x8x128xbf16> to vector<8x128xbf16>
    %cst_172 = arith.constant dense<0.000000e+00> : vector<64x128xf32>
    %111 = tpu.matmul %108, %110, %cst_172 {dimension_numbers = #tpu.dot_dimension_numbers<[1], [0], [0], [1], [0, 0, 1, 1], [], []>} : vector<64x8xbf16>, vector<8x128xbf16>, vector<64x128xf32> -> vector<64x128xf32>
    %112 = arith.addf %105, %111 : vector<64x128xf32>
    %c0_173 = arith.constant 0 : index
    %c0_174 = arith.constant 0 : index
    %c2_175 = arith.constant 2 : index
    %c1_176 = arith.constant 1 : index
    %c0_177 = arith.constant 0 : index
    %113 = vector.load %arg3[%c0_173, %c0_174, %c2_175, %c1_176, %c0_177] : memref<1x1x10x10x8xbf16, #tpu.memory_space<vmem>>, vector<1x1x8x8x8xbf16>
    %114 = vector.shape_cast %113 : vector<1x1x8x8x8xbf16> to vector<8x8x8xbf16>
    %115 = vector.shape_cast %114 : vector<8x8x8xbf16> to vector<64x8xbf16>
    %c1_178 = arith.constant 1 : index
    %c2_179 = arith.constant 2 : index
    %c1_180 = arith.constant 1 : index
    %c0_181 = arith.constant 0 : index
    %c0_182 = arith.constant 0 : index
    %116 = vector.load %arg5[%c1_178, %c2_179, %c1_180, %c0_181, %c0_182] : memref<3x3x3x8x128xbf16, #tpu.memory_space<vmem>>, vector<1x1x1x8x128xbf16>
    %117 = vector.shape_cast %116 : vector<1x1x1x8x128xbf16> to vector<8x128xbf16>
    %cst_183 = arith.constant dense<0.000000e+00> : vector<64x128xf32>
    %118 = tpu.matmul %115, %117, %cst_183 {dimension_numbers = #tpu.dot_dimension_numbers<[1], [0], [0], [1], [0, 0, 1, 1], [], []>} : vector<64x8xbf16>, vector<8x128xbf16>, vector<64x128xf32> -> vector<64x128xf32>
    %119 = arith.addf %112, %118 : vector<64x128xf32>
    %c0_184 = arith.constant 0 : index
    %c0_185 = arith.constant 0 : index
    %c2_186 = arith.constant 2 : index
    %c2_187 = arith.constant 2 : index
    %c0_188 = arith.constant 0 : index
    %120 = vector.load %arg3[%c0_184, %c0_185, %c2_186, %c2_187, %c0_188] : memref<1x1x10x10x8xbf16, #tpu.memory_space<vmem>>, vector<1x1x8x8x8xbf16>
    %121 = vector.shape_cast %120 : vector<1x1x8x8x8xbf16> to vector<8x8x8xbf16>
    %122 = vector.shape_cast %121 : vector<8x8x8xbf16> to vector<64x8xbf16>
    %c1_189 = arith.constant 1 : index
    %c2_190 = arith.constant 2 : index
    %c2_191 = arith.constant 2 : index
    %c0_192 = arith.constant 0 : index
    %c0_193 = arith.constant 0 : index
    %123 = vector.load %arg5[%c1_189, %c2_190, %c2_191, %c0_192, %c0_193] : memref<3x3x3x8x128xbf16, #tpu.memory_space<vmem>>, vector<1x1x1x8x128xbf16>
    %124 = vector.shape_cast %123 : vector<1x1x1x8x128xbf16> to vector<8x128xbf16>
    %cst_194 = arith.constant dense<0.000000e+00> : vector<64x128xf32>
    %125 = tpu.matmul %122, %124, %cst_194 {dimension_numbers = #tpu.dot_dimension_numbers<[1], [0], [0], [1], [0, 0, 1, 1], [], []>} : vector<64x8xbf16>, vector<8x128xbf16>, vector<64x128xf32> -> vector<64x128xf32>
    %126 = arith.addf %119, %125 : vector<64x128xf32>
    %c0_195 = arith.constant 0 : index
    %c0_196 = arith.constant 0 : index
    %c0_197 = arith.constant 0 : index
    %c0_198 = arith.constant 0 : index
    %c0_199 = arith.constant 0 : index
    %127 = vector.load %arg4[%c0_195, %c0_196, %c0_197, %c0_198, %c0_199] : memref<1x1x10x10x8xbf16, #tpu.memory_space<vmem>>, vector<1x1x8x8x8xbf16>
    %128 = vector.shape_cast %127 : vector<1x1x8x8x8xbf16> to vector<8x8x8xbf16>
    %129 = vector.shape_cast %128 : vector<8x8x8xbf16> to vector<64x8xbf16>
    %c2_200 = arith.constant 2 : index
    %c0_201 = arith.constant 0 : index
    %c0_202 = arith.constant 0 : index
    %c0_203 = arith.constant 0 : index
    %c0_204 = arith.constant 0 : index
    %130 = vector.load %arg5[%c2_200, %c0_201, %c0_202, %c0_203, %c0_204] : memref<3x3x3x8x128xbf16, #tpu.memory_space<vmem>>, vector<1x1x1x8x128xbf16>
    %131 = vector.shape_cast %130 : vector<1x1x1x8x128xbf16> to vector<8x128xbf16>
    %cst_205 = arith.constant dense<0.000000e+00> : vector<64x128xf32>
    %132 = tpu.matmul %129, %131, %cst_205 {dimension_numbers = #tpu.dot_dimension_numbers<[1], [0], [0], [1], [0, 0, 1, 1], [], []>} : vector<64x8xbf16>, vector<8x128xbf16>, vector<64x128xf32> -> vector<64x128xf32>
    %133 = arith.addf %126, %132 : vector<64x128xf32>
    %c0_206 = arith.constant 0 : index
    %c0_207 = arith.constant 0 : index
    %c0_208 = arith.constant 0 : index
    %c1_209 = arith.constant 1 : index
    %c0_210 = arith.constant 0 : index
    %134 = vector.load %arg4[%c0_206, %c0_207, %c0_208, %c1_209, %c0_210] : memref<1x1x10x10x8xbf16, #tpu.memory_space<vmem>>, vector<1x1x8x8x8xbf16>
    %135 = vector.shape_cast %134 : vector<1x1x8x8x8xbf16> to vector<8x8x8xbf16>
    %136 = vector.shape_cast %135 : vector<8x8x8xbf16> to vector<64x8xbf16>
    %c2_211 = arith.constant 2 : index
    %c0_212 = arith.constant 0 : index
    %c1_213 = arith.constant 1 : index
    %c0_214 = arith.constant 0 : index
    %c0_215 = arith.constant 0 : index
    %137 = vector.load %arg5[%c2_211, %c0_212, %c1_213, %c0_214, %c0_215] : memref<3x3x3x8x128xbf16, #tpu.memory_space<vmem>>, vector<1x1x1x8x128xbf16>
    %138 = vector.shape_cast %137 : vector<1x1x1x8x128xbf16> to vector<8x128xbf16>
    %cst_216 = arith.constant dense<0.000000e+00> : vector<64x128xf32>
    %139 = tpu.matmul %136, %138, %cst_216 {dimension_numbers = #tpu.dot_dimension_numbers<[1], [0], [0], [1], [0, 0, 1, 1], [], []>} : vector<64x8xbf16>, vector<8x128xbf16>, vector<64x128xf32> -> vector<64x128xf32>
    %140 = arith.addf %133, %139 : vector<64x128xf32>
    %c0_217 = arith.constant 0 : index
    %c0_218 = arith.constant 0 : index
    %c0_219 = arith.constant 0 : index
    %c2_220 = arith.constant 2 : index
    %c0_221 = arith.constant 0 : index
    %141 = vector.load %arg4[%c0_217, %c0_218, %c0_219, %c2_220, %c0_221] : memref<1x1x10x10x8xbf16, #tpu.memory_space<vmem>>, vector<1x1x8x8x8xbf16>
    %142 = vector.shape_cast %141 : vector<1x1x8x8x8xbf16> to vector<8x8x8xbf16>
    %143 = vector.shape_cast %142 : vector<8x8x8xbf16> to vector<64x8xbf16>
    %c2_222 = arith.constant 2 : index
    %c0_223 = arith.constant 0 : index
    %c2_224 = arith.constant 2 : index
    %c0_225 = arith.constant 0 : index
    %c0_226 = arith.constant 0 : index
    %144 = vector.load %arg5[%c2_222, %c0_223, %c2_224, %c0_225, %c0_226] : memref<3x3x3x8x128xbf16, #tpu.memory_space<vmem>>, vector<1x1x1x8x128xbf16>
    %145 = vector.shape_cast %144 : vector<1x1x1x8x128xbf16> to vector<8x128xbf16>
    %cst_227 = arith.constant dense<0.000000e+00> : vector<64x128xf32>
    %146 = tpu.matmul %143, %145, %cst_227 {dimension_numbers = #tpu.dot_dimension_numbers<[1], [0], [0], [1], [0, 0, 1, 1], [], []>} : vector<64x8xbf16>, vector<8x128xbf16>, vector<64x128xf32> -> vector<64x128xf32>
    %147 = arith.addf %140, %146 : vector<64x128xf32>
    %c0_228 = arith.constant 0 : index
    %c0_229 = arith.constant 0 : index
    %c1_230 = arith.constant 1 : index
    %c0_231 = arith.constant 0 : index
    %c0_232 = arith.constant 0 : index
    %148 = vector.load %arg4[%c0_228, %c0_229, %c1_230, %c0_231, %c0_232] : memref<1x1x10x10x8xbf16, #tpu.memory_space<vmem>>, vector<1x1x8x8x8xbf16>
    %149 = vector.shape_cast %148 : vector<1x1x8x8x8xbf16> to vector<8x8x8xbf16>
    %150 = vector.shape_cast %149 : vector<8x8x8xbf16> to vector<64x8xbf16>
    %c2_233 = arith.constant 2 : index
    %c1_234 = arith.constant 1 : index
    %c0_235 = arith.constant 0 : index
    %c0_236 = arith.constant 0 : index
    %c0_237 = arith.constant 0 : index
    %151 = vector.load %arg5[%c2_233, %c1_234, %c0_235, %c0_236, %c0_237] : memref<3x3x3x8x128xbf16, #tpu.memory_space<vmem>>, vector<1x1x1x8x128xbf16>
    %152 = vector.shape_cast %151 : vector<1x1x1x8x128xbf16> to vector<8x128xbf16>
    %cst_238 = arith.constant dense<0.000000e+00> : vector<64x128xf32>
    %153 = tpu.matmul %150, %152, %cst_238 {dimension_numbers = #tpu.dot_dimension_numbers<[1], [0], [0], [1], [0, 0, 1, 1], [], []>} : vector<64x8xbf16>, vector<8x128xbf16>, vector<64x128xf32> -> vector<64x128xf32>
    %154 = arith.addf %147, %153 : vector<64x128xf32>
    %c0_239 = arith.constant 0 : index
    %c0_240 = arith.constant 0 : index
    %c1_241 = arith.constant 1 : index
    %c1_242 = arith.constant 1 : index
    %c0_243 = arith.constant 0 : index
    %155 = vector.load %arg4[%c0_239, %c0_240, %c1_241, %c1_242, %c0_243] : memref<1x1x10x10x8xbf16, #tpu.memory_space<vmem>>, vector<1x1x8x8x8xbf16>
    %156 = vector.shape_cast %155 : vector<1x1x8x8x8xbf16> to vector<8x8x8xbf16>
    %157 = vector.shape_cast %156 : vector<8x8x8xbf16> to vector<64x8xbf16>
    %c2_244 = arith.constant 2 : index
    %c1_245 = arith.constant 1 : index
    %c1_246 = arith.constant 1 : index
    %c0_247 = arith.constant 0 : index
    %c0_248 = arith.constant 0 : index
    %158 = vector.load %arg5[%c2_244, %c1_245, %c1_246, %c0_247, %c0_248] : memref<3x3x3x8x128xbf16, #tpu.memory_space<vmem>>, vector<1x1x1x8x128xbf16>
    %159 = vector.shape_cast %158 : vector<1x1x1x8x128xbf16> to vector<8x128xbf16>
    %cst_249 = arith.constant dense<0.000000e+00> : vector<64x128xf32>
    %160 = tpu.matmul %157, %159, %cst_249 {dimension_numbers = #tpu.dot_dimension_numbers<[1], [0], [0], [1], [0, 0, 1, 1], [], []>} : vector<64x8xbf16>, vector<8x128xbf16>, vector<64x128xf32> -> vector<64x128xf32>
    %161 = arith.addf %154, %160 : vector<64x128xf32>
    %c0_250 = arith.constant 0 : index
    %c0_251 = arith.constant 0 : index
    %c1_252 = arith.constant 1 : index
    %c2_253 = arith.constant 2 : index
    %c0_254 = arith.constant 0 : index
    %162 = vector.load %arg4[%c0_250, %c0_251, %c1_252, %c2_253, %c0_254] : memref<1x1x10x10x8xbf16, #tpu.memory_space<vmem>>, vector<1x1x8x8x8xbf16>
    %163 = vector.shape_cast %162 : vector<1x1x8x8x8xbf16> to vector<8x8x8xbf16>
    %164 = vector.shape_cast %163 : vector<8x8x8xbf16> to vector<64x8xbf16>
    %c2_255 = arith.constant 2 : index
    %c1_256 = arith.constant 1 : index
    %c2_257 = arith.constant 2 : index
    %c0_258 = arith.constant 0 : index
    %c0_259 = arith.constant 0 : index
    %165 = vector.load %arg5[%c2_255, %c1_256, %c2_257, %c0_258, %c0_259] : memref<3x3x3x8x128xbf16, #tpu.memory_space<vmem>>, vector<1x1x1x8x128xbf16>
    %166 = vector.shape_cast %165 : vector<1x1x1x8x128xbf16> to vector<8x128xbf16>
    %cst_260 = arith.constant dense<0.000000e+00> : vector<64x128xf32>
    %167 = tpu.matmul %164, %166, %cst_260 {dimension_numbers = #tpu.dot_dimension_numbers<[1], [0], [0], [1], [0, 0, 1, 1], [], []>} : vector<64x8xbf16>, vector<8x128xbf16>, vector<64x128xf32> -> vector<64x128xf32>
    %168 = arith.addf %161, %167 : vector<64x128xf32>
    %c0_261 = arith.constant 0 : index
    %c0_262 = arith.constant 0 : index
    %c2_263 = arith.constant 2 : index
    %c0_264 = arith.constant 0 : index
    %c0_265 = arith.constant 0 : index
    %169 = vector.load %arg4[%c0_261, %c0_262, %c2_263, %c0_264, %c0_265] : memref<1x1x10x10x8xbf16, #tpu.memory_space<vmem>>, vector<1x1x8x8x8xbf16>
    %170 = vector.shape_cast %169 : vector<1x1x8x8x8xbf16> to vector<8x8x8xbf16>
    %171 = vector.shape_cast %170 : vector<8x8x8xbf16> to vector<64x8xbf16>
    %c2_266 = arith.constant 2 : index
    %c2_267 = arith.constant 2 : index
    %c0_268 = arith.constant 0 : index
    %c0_269 = arith.constant 0 : index
    %c0_270 = arith.constant 0 : index
    %172 = vector.load %arg5[%c2_266, %c2_267, %c0_268, %c0_269, %c0_270] : memref<3x3x3x8x128xbf16, #tpu.memory_space<vmem>>, vector<1x1x1x8x128xbf16>
    %173 = vector.shape_cast %172 : vector<1x1x1x8x128xbf16> to vector<8x128xbf16>
    %cst_271 = arith.constant dense<0.000000e+00> : vector<64x128xf32>
    %174 = tpu.matmul %171, %173, %cst_271 {dimension_numbers = #tpu.dot_dimension_numbers<[1], [0], [0], [1], [0, 0, 1, 1], [], []>} : vector<64x8xbf16>, vector<8x128xbf16>, vector<64x128xf32> -> vector<64x128xf32>
    %175 = arith.addf %168, %174 : vector<64x128xf32>
    %c0_272 = arith.constant 0 : index
    %c0_273 = arith.constant 0 : index
    %c2_274 = arith.constant 2 : index
    %c1_275 = arith.constant 1 : index
    %c0_276 = arith.constant 0 : index
    %176 = vector.load %arg4[%c0_272, %c0_273, %c2_274, %c1_275, %c0_276] : memref<1x1x10x10x8xbf16, #tpu.memory_space<vmem>>, vector<1x1x8x8x8xbf16>
    %177 = vector.shape_cast %176 : vector<1x1x8x8x8xbf16> to vector<8x8x8xbf16>
    %178 = vector.shape_cast %177 : vector<8x8x8xbf16> to vector<64x8xbf16>
    %c2_277 = arith.constant 2 : index
    %c2_278 = arith.constant 2 : index
    %c1_279 = arith.constant 1 : index
    %c0_280 = arith.constant 0 : index
    %c0_281 = arith.constant 0 : index
    %179 = vector.load %arg5[%c2_277, %c2_278, %c1_279, %c0_280, %c0_281] : memref<3x3x3x8x128xbf16, #tpu.memory_space<vmem>>, vector<1x1x1x8x128xbf16>
    %180 = vector.shape_cast %179 : vector<1x1x1x8x128xbf16> to vector<8x128xbf16>
    %cst_282 = arith.constant dense<0.000000e+00> : vector<64x128xf32>
    %181 = tpu.matmul %178, %180, %cst_282 {dimension_numbers = #tpu.dot_dimension_numbers<[1], [0], [0], [1], [0, 0, 1, 1], [], []>} : vector<64x8xbf16>, vector<8x128xbf16>, vector<64x128xf32> -> vector<64x128xf32>
    %182 = arith.addf %175, %181 : vector<64x128xf32>
    %c0_283 = arith.constant 0 : index
    %c0_284 = arith.constant 0 : index
    %c2_285 = arith.constant 2 : index
    %c2_286 = arith.constant 2 : index
    %c0_287 = arith.constant 0 : index
    %183 = vector.load %arg4[%c0_283, %c0_284, %c2_285, %c2_286, %c0_287] : memref<1x1x10x10x8xbf16, #tpu.memory_space<vmem>>, vector<1x1x8x8x8xbf16>
    %184 = vector.shape_cast %183 : vector<1x1x8x8x8xbf16> to vector<8x8x8xbf16>
    %185 = vector.shape_cast %184 : vector<8x8x8xbf16> to vector<64x8xbf16>
    %c2_288 = arith.constant 2 : index
    %c2_289 = arith.constant 2 : index
    %c2_290 = arith.constant 2 : index
    %c0_291 = arith.constant 0 : index
    %c0_292 = arith.constant 0 : index
    %186 = vector.load %arg5[%c2_288, %c2_289, %c2_290, %c0_291, %c0_292] : memref<3x3x3x8x128xbf16, #tpu.memory_space<vmem>>, vector<1x1x1x8x128xbf16>
    %187 = vector.shape_cast %186 : vector<1x1x1x8x128xbf16> to vector<8x128xbf16>
    %cst_293 = arith.constant dense<0.000000e+00> : vector<64x128xf32>
    %188 = tpu.matmul %185, %187, %cst_293 {dimension_numbers = #tpu.dot_dimension_numbers<[1], [0], [0], [1], [0, 0, 1, 1], [], []>} : vector<64x8xbf16>, vector<8x128xbf16>, vector<64x128xf32> -> vector<64x128xf32>
    %189 = arith.addf %182, %188 : vector<64x128xf32>
    %c0_294 = arith.constant 0 : index
    %c0_295 = arith.constant 0 : index
    %190 = vector.load %arg6[%c0_294, %c0_295] : memref<1x128xf32, #tpu.memory_space<vmem>>, vector<1x128xf32>
    %191 = vector.broadcast %190 : vector<1x128xf32> to vector<64x128xf32>
    %192 = arith.addf %189, %191 : vector<64x128xf32>
    %cst_296 = arith.constant 0.000000e+00 : f32
    %193 = vector.broadcast %cst_296 : f32 to vector<64x128xf32>
    %194 = arith.maximumf %192, %193 : vector<64x128xf32>
    %195 = vector.shape_cast %194 : vector<64x128xf32> to vector<8x8x128xf32>
    %196 = arith.truncf %195 : vector<8x8x128xf32> to vector<8x8x128xbf16>
    %c0_297 = arith.constant 0 : index
    %c0_298 = arith.constant 0 : index
    %c0_299 = arith.constant 0 : index
    %c0_300 = arith.constant 0 : index
    %c0_301 = arith.constant 0 : index
    %197 = vector.load %arg7[%c0_297, %c0_298, %c0_299, %c0_300, %c0_301] : memref<1x1x8x8x128xbf16, #tpu.memory_space<vmem>>, vector<1x1x8x8x128xbf16>
    %198 = vector.shape_cast %197 : vector<1x1x8x8x128xbf16> to vector<8x8x128xbf16>
    %199 = vector.shape_cast %196 : vector<8x8x128xbf16> to vector<1x1x8x8x128xbf16>
    tpu.vector_store %arg7[%c0_297, %c0_298, %c0_299, %c0_300, %c0_301], %199 {strides = array<i32>} : memref<1x1x8x8x128xbf16, #tpu.memory_space<vmem>>, vector<1x1x8x8x128xbf16>,
    return
  }
  func.func @transform_0(%arg0: i32, %arg1: i32) -> (i32, i32, i32, i32, i32) {
    %c0_i32 = arith.constant 0 : i32
    %0 = arith.addi %arg1, %c0_i32 : i32
    %c0_i32_0 = arith.constant 0 : i32
    %c0_i32_1 = arith.constant 0 : i32
    %c0_i32_2 = arith.constant 0 : i32
    %c0_i32_3 = arith.constant 0 : i32
    return %arg0, %0, %c0_i32_0, %c0_i32_1, %c0_i32_2 : i32, i32, i32, i32, i32
  }
  func.func @transform_1(%arg0: i32, %arg1: i32) -> (i32, i32, i32, i32, i32) {
    %c1_i32 = arith.constant 1 : i32
    %0 = arith.addi %arg1, %c1_i32 : i32
    %c0_i32 = arith.constant 0 : i32
    %c0_i32_0 = arith.constant 0 : i32
    %c0_i32_1 = arith.constant 0 : i32
    %c0_i32_2 = arith.constant 0 : i32
    return %arg0, %0, %c0_i32, %c0_i32_0, %c0_i32_1 : i32, i32, i32, i32, i32
  }
  func.func @transform_2(%arg0: i32, %arg1: i32) -> (i32, i32, i32, i32, i32) {
    %c2_i32 = arith.constant 2 : i32
    %0 = arith.addi %arg1, %c2_i32 : i32
    %c0_i32 = arith.constant 0 : i32
    %c0_i32_0 = arith.constant 0 : i32
    %c0_i32_1 = arith.constant 0 : i32
    %c0_i32_2 = arith.constant 0 : i32
    return %arg0, %0, %c0_i32, %c0_i32_0, %c0_i32_1 : i32, i32, i32, i32, i32
  }
  func.func @transform_3(%arg0: i32, %arg1: i32) -> (i32, i32, i32, i32, i32) {
    %c0_i32 = arith.constant 0 : i32
    %c0_i32_0 = arith.constant 0 : i32
    %c0_i32_1 = arith.constant 0 : i32
    %c0_i32_2 = arith.constant 0 : i32
    %c0_i32_3 = arith.constant 0 : i32
    %c0_i32_4 = arith.constant 0 : i32
    return %c0_i32, %c0_i32_0, %c0_i32_1, %c0_i32_2, %c0_i32_3 : i32, i32, i32, i32, i32
  }
  func.func @transform_4(%arg0: i32, %arg1: i32) -> (i32, i32) {
    %c0_i32 = arith.constant 0 : i32
    %c0_i32_0 = arith.constant 0 : i32
    %c0_i32_1 = arith.constant 0 : i32
    return %c0_i32, %c0_i32_0 : i32, i32
  }
  func.func @transform_5(%arg0: i32, %arg1: i32) -> (i32, i32, i32, i32, i32) {
    %c0_i32 = arith.constant 0 : i32
    %c0_i32_0 = arith.constant 0 : i32
    %c0_i32_1 = arith.constant 0 : i32
    %c0_i32_2 = arith.constant 0 : i32
    return %arg0, %arg1, %c0_i32, %c0_i32_0, %c0_i32_1 : i32, i32, i32, i32, i32
  }
}

module attributes {stable_mosaic.version = 11 : i64} {
  func.func @_pool_kernel(%arg0: i32, %arg1: memref<1x2x4x2x4x256xbf16, #tpu.memory_space<vmem>>, %arg2: memref<1x4x4x128xbf16, #tpu.memory_space<vmem>>) attributes {dimension_semantics = [#tpu.dimension_semantics<parallel>], iteration_bounds = array<i64: 8>, scalar_prefetch = 0 : i64, scratch_operands = 0 : i64, tpu.core_type = #tpu.core_type<tc>, window_params = [{transform_indices = @transform_0, window_bounds = array<i64: 1, 2, 4, 2, 4, 256>}, {transform_indices = @transform_1, window_bounds = array<i64: 1, 4, 4, 128>}]} {
    %c0 = arith.constant 0 : index
    %c0_0 = arith.constant 0 : index
    %c0_1 = arith.constant 0 : index
    %c0_2 = arith.constant 0 : index
    %c0_3 = arith.constant 0 : index
    %c0_4 = arith.constant 0 : index
    %0 = vector.load %arg1[%c0, %c0_0, %c0_1, %c0_2, %c0_3, %c0_4] : memref<1x2x4x2x4x256xbf16, #tpu.memory_space<vmem>>, vector<1x1x4x1x4x256xbf16>
    %1 = vector.shape_cast %0 : vector<1x1x4x1x4x256xbf16> to vector<4x4x256xbf16>
    %c0_5 = arith.constant 0 : index
    %c0_6 = arith.constant 0 : index
    %c0_7 = arith.constant 0 : index
    %c1 = arith.constant 1 : index
    %c0_8 = arith.constant 0 : index
    %c0_9 = arith.constant 0 : index
    %2 = vector.load %arg1[%c0_5, %c0_6, %c0_7, %c1, %c0_8, %c0_9] : memref<1x2x4x2x4x256xbf16, #tpu.memory_space<vmem>>, vector<1x1x4x1x4x256xbf16>
    %3 = vector.shape_cast %2 : vector<1x1x4x1x4x256xbf16> to vector<4x4x256xbf16>
    %4 = arith.maximumf %1, %3 : vector<4x4x256xbf16>
    %c0_10 = arith.constant 0 : index
    %c1_11 = arith.constant 1 : index
    %c0_12 = arith.constant 0 : index
    %c0_13 = arith.constant 0 : index
    %c0_14 = arith.constant 0 : index
    %c0_15 = arith.constant 0 : index
    %5 = vector.load %arg1[%c0_10, %c1_11, %c0_12, %c0_13, %c0_14, %c0_15] : memref<1x2x4x2x4x256xbf16, #tpu.memory_space<vmem>>, vector<1x1x4x1x4x256xbf16>
    %6 = vector.shape_cast %5 : vector<1x1x4x1x4x256xbf16> to vector<4x4x256xbf16>
    %7 = arith.maximumf %4, %6 : vector<4x4x256xbf16>
    %c0_16 = arith.constant 0 : index
    %c1_17 = arith.constant 1 : index
    %c0_18 = arith.constant 0 : index
    %c1_19 = arith.constant 1 : index
    %c0_20 = arith.constant 0 : index
    %c0_21 = arith.constant 0 : index
    %8 = vector.load %arg1[%c0_16, %c1_17, %c0_18, %c1_19, %c0_20, %c0_21] : memref<1x2x4x2x4x256xbf16, #tpu.memory_space<vmem>>, vector<1x1x4x1x4x256xbf16>
    %9 = vector.shape_cast %8 : vector<1x1x4x1x4x256xbf16> to vector<4x4x256xbf16>
    %10 = arith.maximumf %7, %9 : vector<4x4x256xbf16>
    %11 = vector.extract_strided_slice %10 {offsets = [0, 0, 0], sizes = [4, 4, 128], strides = [1, 1, 1]} : vector<4x4x256xbf16> to vector<4x4x128xbf16>
    %12 = vector.extract_strided_slice %10 {offsets = [0, 0, 128], sizes = [4, 4, 128], strides = [1, 1, 1]} : vector<4x4x256xbf16> to vector<4x4x128xbf16>
    %13 = arith.maximumf %11, %12 : vector<4x4x128xbf16>
    %c0_22 = arith.constant 0 : index
    %c0_23 = arith.constant 0 : index
    %c0_24 = arith.constant 0 : index
    %c0_25 = arith.constant 0 : index
    %14 = vector.load %arg2[%c0_22, %c0_23, %c0_24, %c0_25] : memref<1x4x4x128xbf16, #tpu.memory_space<vmem>>, vector<1x4x4x128xbf16>
    %15 = vector.shape_cast %14 : vector<1x4x4x128xbf16> to vector<4x4x128xbf16>
    %16 = vector.shape_cast %13 : vector<4x4x128xbf16> to vector<1x4x4x128xbf16>
    tpu.vector_store %arg2[%c0_22, %c0_23, %c0_24, %c0_25], %16 {strides = array<i32>} : memref<1x4x4x128xbf16, #tpu.memory_space<vmem>>, vector<1x4x4x128xbf16>,
    return
  }
  func.func @transform_0(%arg0: i32) -> (i32, i32, i32, i32, i32, i32) {
    %c0_i32 = arith.constant 0 : i32
    %c0_i32_0 = arith.constant 0 : i32
    %c0_i32_1 = arith.constant 0 : i32
    %c0_i32_2 = arith.constant 0 : i32
    %c0_i32_3 = arith.constant 0 : i32
    %c0_i32_4 = arith.constant 0 : i32
    return %arg0, %c0_i32, %c0_i32_0, %c0_i32_1, %c0_i32_2, %c0_i32_3 : i32, i32, i32, i32, i32, i32
  }
  func.func @transform_1(%arg0: i32) -> (i32, i32, i32, i32) {
    %c0_i32 = arith.constant 0 : i32
    %c0_i32_0 = arith.constant 0 : i32
    %c0_i32_1 = arith.constant 0 : i32
    %c0_i32_2 = arith.constant 0 : i32
    return %arg0, %c0_i32, %c0_i32_0, %c0_i32_1 : i32, i32, i32, i32
  }
}

module attributes {stable_mosaic.version = 11 : i64} {
  func.func @_conv_kernel(%arg0: i32, %arg1: i32, %arg2: memref<1x1x6x6x128xbf16, #tpu.memory_space<vmem>>, %arg3: memref<1x1x6x6x128xbf16, #tpu.memory_space<vmem>>, %arg4: memref<1x1x6x6x128xbf16, #tpu.memory_space<vmem>>, %arg5: memref<3x3x3x128x128xbf16, #tpu.memory_space<vmem>>, %arg6: memref<1x128xf32, #tpu.memory_space<vmem>>, %arg7: memref<1x1x4x4x128xbf16, #tpu.memory_space<vmem>>) attributes {dimension_semantics = [#tpu.dimension_semantics<parallel>, #tpu.dimension_semantics<parallel>], iteration_bounds = array<i64: 2, 4>, scalar_prefetch = 0 : i64, scratch_operands = 0 : i64, tpu.core_type = #tpu.core_type<tc>, window_params = [{transform_indices = @transform_0, window_bounds = array<i64: 1, 1, 6, 6, 128>}, {transform_indices = @transform_1, window_bounds = array<i64: 1, 1, 6, 6, 128>}, {transform_indices = @transform_2, window_bounds = array<i64: 1, 1, 6, 6, 128>}, {pipeline_mode = #tpu.pipeline_mode<synchronous>, transform_indices = @transform_3, window_bounds = array<i64: 3, 3, 3, 128, 128>}, {pipeline_mode = #tpu.pipeline_mode<synchronous>, transform_indices = @transform_4, window_bounds = array<i64: 1, 128>}, {transform_indices = @transform_5, window_bounds = array<i64: 1, 1, 4, 4, 128>}]} {
    %cst = arith.constant 0.000000e+00 : f32
    %0 = vector.broadcast %cst : f32 to vector<16x128xf32>
    %c0 = arith.constant 0 : index
    %c0_0 = arith.constant 0 : index
    %c0_1 = arith.constant 0 : index
    %c0_2 = arith.constant 0 : index
    %c0_3 = arith.constant 0 : index
    %1 = vector.load %arg2[%c0, %c0_0, %c0_1, %c0_2, %c0_3] : memref<1x1x6x6x128xbf16, #tpu.memory_space<vmem>>, vector<1x1x4x4x128xbf16>
    %2 = vector.shape_cast %1 : vector<1x1x4x4x128xbf16> to vector<4x4x128xbf16>
    %3 = vector.shape_cast %2 : vector<4x4x128xbf16> to vector<16x128xbf16>
    %c0_4 = arith.constant 0 : index
    %c0_5 = arith.constant 0 : index
    %c0_6 = arith.constant 0 : index
    %c0_7 = arith.constant 0 : index
    %c0_8 = arith.constant 0 : index
    %4 = vector.load %arg5[%c0_4, %c0_5, %c0_6, %c0_7, %c0_8] : memref<3x3x3x128x128xbf16, #tpu.memory_space<vmem>>, vector<1x1x1x128x128xbf16>
    %5 = vector.shape_cast %4 : vector<1x1x1x128x128xbf16> to vector<128x128xbf16>
    %cst_9 = arith.constant dense<0.000000e+00> : vector<16x128xf32>
    %6 = tpu.matmul %3, %5, %cst_9 {dimension_numbers = #tpu.dot_dimension_numbers<[1], [0], [0], [1], [0, 0, 1, 1], [], []>} : vector<16x128xbf16>, vector<128x128xbf16>, vector<16x128xf32> -> vector<16x128xf32>
    %7 = arith.addf %0, %6 : vector<16x128xf32>
    %c0_10 = arith.constant 0 : index
    %c0_11 = arith.constant 0 : index
    %c0_12 = arith.constant 0 : index
    %c1 = arith.constant 1 : index
    %c0_13 = arith.constant 0 : index
    %8 = vector.load %arg2[%c0_10, %c0_11, %c0_12, %c1, %c0_13] : memref<1x1x6x6x128xbf16, #tpu.memory_space<vmem>>, vector<1x1x4x4x128xbf16>
    %9 = vector.shape_cast %8 : vector<1x1x4x4x128xbf16> to vector<4x4x128xbf16>
    %10 = vector.shape_cast %9 : vector<4x4x128xbf16> to vector<16x128xbf16>
    %c0_14 = arith.constant 0 : index
    %c0_15 = arith.constant 0 : index
    %c1_16 = arith.constant 1 : index
    %c0_17 = arith.constant 0 : index
    %c0_18 = arith.constant 0 : index
    %11 = vector.load %arg5[%c0_14, %c0_15, %c1_16, %c0_17, %c0_18] : memref<3x3x3x128x128xbf16, #tpu.memory_space<vmem>>, vector<1x1x1x128x128xbf16>
    %12 = vector.shape_cast %11 : vector<1x1x1x128x128xbf16> to vector<128x128xbf16>
    %cst_19 = arith.constant dense<0.000000e+00> : vector<16x128xf32>
    %13 = tpu.matmul %10, %12, %cst_19 {dimension_numbers = #tpu.dot_dimension_numbers<[1], [0], [0], [1], [0, 0, 1, 1], [], []>} : vector<16x128xbf16>, vector<128x128xbf16>, vector<16x128xf32> -> vector<16x128xf32>
    %14 = arith.addf %7, %13 : vector<16x128xf32>
    %c0_20 = arith.constant 0 : index
    %c0_21 = arith.constant 0 : index
    %c0_22 = arith.constant 0 : index
    %c2 = arith.constant 2 : index
    %c0_23 = arith.constant 0 : index
    %15 = vector.load %arg2[%c0_20, %c0_21, %c0_22, %c2, %c0_23] : memref<1x1x6x6x128xbf16, #tpu.memory_space<vmem>>, vector<1x1x4x4x128xbf16>
    %16 = vector.shape_cast %15 : vector<1x1x4x4x128xbf16> to vector<4x4x128xbf16>
    %17 = vector.shape_cast %16 : vector<4x4x128xbf16> to vector<16x128xbf16>
    %c0_24 = arith.constant 0 : index
    %c0_25 = arith.constant 0 : index
    %c2_26 = arith.constant 2 : index
    %c0_27 = arith.constant 0 : index
    %c0_28 = arith.constant 0 : index
    %18 = vector.load %arg5[%c0_24, %c0_25, %c2_26, %c0_27, %c0_28] : memref<3x3x3x128x128xbf16, #tpu.memory_space<vmem>>, vector<1x1x1x128x128xbf16>
    %19 = vector.shape_cast %18 : vector<1x1x1x128x128xbf16> to vector<128x128xbf16>
    %cst_29 = arith.constant dense<0.000000e+00> : vector<16x128xf32>
    %20 = tpu.matmul %17, %19, %cst_29 {dimension_numbers = #tpu.dot_dimension_numbers<[1], [0], [0], [1], [0, 0, 1, 1], [], []>} : vector<16x128xbf16>, vector<128x128xbf16>, vector<16x128xf32> -> vector<16x128xf32>
    %21 = arith.addf %14, %20 : vector<16x128xf32>
    %c0_30 = arith.constant 0 : index
    %c0_31 = arith.constant 0 : index
    %c1_32 = arith.constant 1 : index
    %c0_33 = arith.constant 0 : index
    %c0_34 = arith.constant 0 : index
    %22 = vector.load %arg2[%c0_30, %c0_31, %c1_32, %c0_33, %c0_34] : memref<1x1x6x6x128xbf16, #tpu.memory_space<vmem>>, vector<1x1x4x4x128xbf16>
    %23 = vector.shape_cast %22 : vector<1x1x4x4x128xbf16> to vector<4x4x128xbf16>
    %24 = vector.shape_cast %23 : vector<4x4x128xbf16> to vector<16x128xbf16>
    %c0_35 = arith.constant 0 : index
    %c1_36 = arith.constant 1 : index
    %c0_37 = arith.constant 0 : index
    %c0_38 = arith.constant 0 : index
    %c0_39 = arith.constant 0 : index
    %25 = vector.load %arg5[%c0_35, %c1_36, %c0_37, %c0_38, %c0_39] : memref<3x3x3x128x128xbf16, #tpu.memory_space<vmem>>, vector<1x1x1x128x128xbf16>
    %26 = vector.shape_cast %25 : vector<1x1x1x128x128xbf16> to vector<128x128xbf16>
    %cst_40 = arith.constant dense<0.000000e+00> : vector<16x128xf32>
    %27 = tpu.matmul %24, %26, %cst_40 {dimension_numbers = #tpu.dot_dimension_numbers<[1], [0], [0], [1], [0, 0, 1, 1], [], []>} : vector<16x128xbf16>, vector<128x128xbf16>, vector<16x128xf32> -> vector<16x128xf32>
    %28 = arith.addf %21, %27 : vector<16x128xf32>
    %c0_41 = arith.constant 0 : index
    %c0_42 = arith.constant 0 : index
    %c1_43 = arith.constant 1 : index
    %c1_44 = arith.constant 1 : index
    %c0_45 = arith.constant 0 : index
    %29 = vector.load %arg2[%c0_41, %c0_42, %c1_43, %c1_44, %c0_45] : memref<1x1x6x6x128xbf16, #tpu.memory_space<vmem>>, vector<1x1x4x4x128xbf16>
    %30 = vector.shape_cast %29 : vector<1x1x4x4x128xbf16> to vector<4x4x128xbf16>
    %31 = vector.shape_cast %30 : vector<4x4x128xbf16> to vector<16x128xbf16>
    %c0_46 = arith.constant 0 : index
    %c1_47 = arith.constant 1 : index
    %c1_48 = arith.constant 1 : index
    %c0_49 = arith.constant 0 : index
    %c0_50 = arith.constant 0 : index
    %32 = vector.load %arg5[%c0_46, %c1_47, %c1_48, %c0_49, %c0_50] : memref<3x3x3x128x128xbf16, #tpu.memory_space<vmem>>, vector<1x1x1x128x128xbf16>
    %33 = vector.shape_cast %32 : vector<1x1x1x128x128xbf16> to vector<128x128xbf16>
    %cst_51 = arith.constant dense<0.000000e+00> : vector<16x128xf32>
    %34 = tpu.matmul %31, %33, %cst_51 {dimension_numbers = #tpu.dot_dimension_numbers<[1], [0], [0], [1], [0, 0, 1, 1], [], []>} : vector<16x128xbf16>, vector<128x128xbf16>, vector<16x128xf32> -> vector<16x128xf32>
    %35 = arith.addf %28, %34 : vector<16x128xf32>
    %c0_52 = arith.constant 0 : index
    %c0_53 = arith.constant 0 : index
    %c1_54 = arith.constant 1 : index
    %c2_55 = arith.constant 2 : index
    %c0_56 = arith.constant 0 : index
    %36 = vector.load %arg2[%c0_52, %c0_53, %c1_54, %c2_55, %c0_56] : memref<1x1x6x6x128xbf16, #tpu.memory_space<vmem>>, vector<1x1x4x4x128xbf16>
    %37 = vector.shape_cast %36 : vector<1x1x4x4x128xbf16> to vector<4x4x128xbf16>
    %38 = vector.shape_cast %37 : vector<4x4x128xbf16> to vector<16x128xbf16>
    %c0_57 = arith.constant 0 : index
    %c1_58 = arith.constant 1 : index
    %c2_59 = arith.constant 2 : index
    %c0_60 = arith.constant 0 : index
    %c0_61 = arith.constant 0 : index
    %39 = vector.load %arg5[%c0_57, %c1_58, %c2_59, %c0_60, %c0_61] : memref<3x3x3x128x128xbf16, #tpu.memory_space<vmem>>, vector<1x1x1x128x128xbf16>
    %40 = vector.shape_cast %39 : vector<1x1x1x128x128xbf16> to vector<128x128xbf16>
    %cst_62 = arith.constant dense<0.000000e+00> : vector<16x128xf32>
    %41 = tpu.matmul %38, %40, %cst_62 {dimension_numbers = #tpu.dot_dimension_numbers<[1], [0], [0], [1], [0, 0, 1, 1], [], []>} : vector<16x128xbf16>, vector<128x128xbf16>, vector<16x128xf32> -> vector<16x128xf32>
    %42 = arith.addf %35, %41 : vector<16x128xf32>
    %c0_63 = arith.constant 0 : index
    %c0_64 = arith.constant 0 : index
    %c2_65 = arith.constant 2 : index
    %c0_66 = arith.constant 0 : index
    %c0_67 = arith.constant 0 : index
    %43 = vector.load %arg2[%c0_63, %c0_64, %c2_65, %c0_66, %c0_67] : memref<1x1x6x6x128xbf16, #tpu.memory_space<vmem>>, vector<1x1x4x4x128xbf16>
    %44 = vector.shape_cast %43 : vector<1x1x4x4x128xbf16> to vector<4x4x128xbf16>
    %45 = vector.shape_cast %44 : vector<4x4x128xbf16> to vector<16x128xbf16>
    %c0_68 = arith.constant 0 : index
    %c2_69 = arith.constant 2 : index
    %c0_70 = arith.constant 0 : index
    %c0_71 = arith.constant 0 : index
    %c0_72 = arith.constant 0 : index
    %46 = vector.load %arg5[%c0_68, %c2_69, %c0_70, %c0_71, %c0_72] : memref<3x3x3x128x128xbf16, #tpu.memory_space<vmem>>, vector<1x1x1x128x128xbf16>
    %47 = vector.shape_cast %46 : vector<1x1x1x128x128xbf16> to vector<128x128xbf16>
    %cst_73 = arith.constant dense<0.000000e+00> : vector<16x128xf32>
    %48 = tpu.matmul %45, %47, %cst_73 {dimension_numbers = #tpu.dot_dimension_numbers<[1], [0], [0], [1], [0, 0, 1, 1], [], []>} : vector<16x128xbf16>, vector<128x128xbf16>, vector<16x128xf32> -> vector<16x128xf32>
    %49 = arith.addf %42, %48 : vector<16x128xf32>
    %c0_74 = arith.constant 0 : index
    %c0_75 = arith.constant 0 : index
    %c2_76 = arith.constant 2 : index
    %c1_77 = arith.constant 1 : index
    %c0_78 = arith.constant 0 : index
    %50 = vector.load %arg2[%c0_74, %c0_75, %c2_76, %c1_77, %c0_78] : memref<1x1x6x6x128xbf16, #tpu.memory_space<vmem>>, vector<1x1x4x4x128xbf16>
    %51 = vector.shape_cast %50 : vector<1x1x4x4x128xbf16> to vector<4x4x128xbf16>
    %52 = vector.shape_cast %51 : vector<4x4x128xbf16> to vector<16x128xbf16>
    %c0_79 = arith.constant 0 : index
    %c2_80 = arith.constant 2 : index
    %c1_81 = arith.constant 1 : index
    %c0_82 = arith.constant 0 : index
    %c0_83 = arith.constant 0 : index
    %53 = vector.load %arg5[%c0_79, %c2_80, %c1_81, %c0_82, %c0_83] : memref<3x3x3x128x128xbf16, #tpu.memory_space<vmem>>, vector<1x1x1x128x128xbf16>
    %54 = vector.shape_cast %53 : vector<1x1x1x128x128xbf16> to vector<128x128xbf16>
    %cst_84 = arith.constant dense<0.000000e+00> : vector<16x128xf32>
    %55 = tpu.matmul %52, %54, %cst_84 {dimension_numbers = #tpu.dot_dimension_numbers<[1], [0], [0], [1], [0, 0, 1, 1], [], []>} : vector<16x128xbf16>, vector<128x128xbf16>, vector<16x128xf32> -> vector<16x128xf32>
    %56 = arith.addf %49, %55 : vector<16x128xf32>
    %c0_85 = arith.constant 0 : index
    %c0_86 = arith.constant 0 : index
    %c2_87 = arith.constant 2 : index
    %c2_88 = arith.constant 2 : index
    %c0_89 = arith.constant 0 : index
    %57 = vector.load %arg2[%c0_85, %c0_86, %c2_87, %c2_88, %c0_89] : memref<1x1x6x6x128xbf16, #tpu.memory_space<vmem>>, vector<1x1x4x4x128xbf16>
    %58 = vector.shape_cast %57 : vector<1x1x4x4x128xbf16> to vector<4x4x128xbf16>
    %59 = vector.shape_cast %58 : vector<4x4x128xbf16> to vector<16x128xbf16>
    %c0_90 = arith.constant 0 : index
    %c2_91 = arith.constant 2 : index
    %c2_92 = arith.constant 2 : index
    %c0_93 = arith.constant 0 : index
    %c0_94 = arith.constant 0 : index
    %60 = vector.load %arg5[%c0_90, %c2_91, %c2_92, %c0_93, %c0_94] : memref<3x3x3x128x128xbf16, #tpu.memory_space<vmem>>, vector<1x1x1x128x128xbf16>
    %61 = vector.shape_cast %60 : vector<1x1x1x128x128xbf16> to vector<128x128xbf16>
    %cst_95 = arith.constant dense<0.000000e+00> : vector<16x128xf32>
    %62 = tpu.matmul %59, %61, %cst_95 {dimension_numbers = #tpu.dot_dimension_numbers<[1], [0], [0], [1], [0, 0, 1, 1], [], []>} : vector<16x128xbf16>, vector<128x128xbf16>, vector<16x128xf32> -> vector<16x128xf32>
    %63 = arith.addf %56, %62 : vector<16x128xf32>
    %c0_96 = arith.constant 0 : index
    %c0_97 = arith.constant 0 : index
    %c0_98 = arith.constant 0 : index
    %c0_99 = arith.constant 0 : index
    %c0_100 = arith.constant 0 : index
    %64 = vector.load %arg3[%c0_96, %c0_97, %c0_98, %c0_99, %c0_100] : memref<1x1x6x6x128xbf16, #tpu.memory_space<vmem>>, vector<1x1x4x4x128xbf16>
    %65 = vector.shape_cast %64 : vector<1x1x4x4x128xbf16> to vector<4x4x128xbf16>
    %66 = vector.shape_cast %65 : vector<4x4x128xbf16> to vector<16x128xbf16>
    %c1_101 = arith.constant 1 : index
    %c0_102 = arith.constant 0 : index
    %c0_103 = arith.constant 0 : index
    %c0_104 = arith.constant 0 : index
    %c0_105 = arith.constant 0 : index
    %67 = vector.load %arg5[%c1_101, %c0_102, %c0_103, %c0_104, %c0_105] : memref<3x3x3x128x128xbf16, #tpu.memory_space<vmem>>, vector<1x1x1x128x128xbf16>
    %68 = vector.shape_cast %67 : vector<1x1x1x128x128xbf16> to vector<128x128xbf16>
    %cst_106 = arith.constant dense<0.000000e+00> : vector<16x128xf32>
    %69 = tpu.matmul %66, %68, %cst_106 {dimension_numbers = #tpu.dot_dimension_numbers<[1], [0], [0], [1], [0, 0, 1, 1], [], []>} : vector<16x128xbf16>, vector<128x128xbf16>, vector<16x128xf32> -> vector<16x128xf32>
    %70 = arith.addf %63, %69 : vector<16x128xf32>
    %c0_107 = arith.constant 0 : index
    %c0_108 = arith.constant 0 : index
    %c0_109 = arith.constant 0 : index
    %c1_110 = arith.constant 1 : index
    %c0_111 = arith.constant 0 : index
    %71 = vector.load %arg3[%c0_107, %c0_108, %c0_109, %c1_110, %c0_111] : memref<1x1x6x6x128xbf16, #tpu.memory_space<vmem>>, vector<1x1x4x4x128xbf16>
    %72 = vector.shape_cast %71 : vector<1x1x4x4x128xbf16> to vector<4x4x128xbf16>
    %73 = vector.shape_cast %72 : vector<4x4x128xbf16> to vector<16x128xbf16>
    %c1_112 = arith.constant 1 : index
    %c0_113 = arith.constant 0 : index
    %c1_114 = arith.constant 1 : index
    %c0_115 = arith.constant 0 : index
    %c0_116 = arith.constant 0 : index
    %74 = vector.load %arg5[%c1_112, %c0_113, %c1_114, %c0_115, %c0_116] : memref<3x3x3x128x128xbf16, #tpu.memory_space<vmem>>, vector<1x1x1x128x128xbf16>
    %75 = vector.shape_cast %74 : vector<1x1x1x128x128xbf16> to vector<128x128xbf16>
    %cst_117 = arith.constant dense<0.000000e+00> : vector<16x128xf32>
    %76 = tpu.matmul %73, %75, %cst_117 {dimension_numbers = #tpu.dot_dimension_numbers<[1], [0], [0], [1], [0, 0, 1, 1], [], []>} : vector<16x128xbf16>, vector<128x128xbf16>, vector<16x128xf32> -> vector<16x128xf32>
    %77 = arith.addf %70, %76 : vector<16x128xf32>
    %c0_118 = arith.constant 0 : index
    %c0_119 = arith.constant 0 : index
    %c0_120 = arith.constant 0 : index
    %c2_121 = arith.constant 2 : index
    %c0_122 = arith.constant 0 : index
    %78 = vector.load %arg3[%c0_118, %c0_119, %c0_120, %c2_121, %c0_122] : memref<1x1x6x6x128xbf16, #tpu.memory_space<vmem>>, vector<1x1x4x4x128xbf16>
    %79 = vector.shape_cast %78 : vector<1x1x4x4x128xbf16> to vector<4x4x128xbf16>
    %80 = vector.shape_cast %79 : vector<4x4x128xbf16> to vector<16x128xbf16>
    %c1_123 = arith.constant 1 : index
    %c0_124 = arith.constant 0 : index
    %c2_125 = arith.constant 2 : index
    %c0_126 = arith.constant 0 : index
    %c0_127 = arith.constant 0 : index
    %81 = vector.load %arg5[%c1_123, %c0_124, %c2_125, %c0_126, %c0_127] : memref<3x3x3x128x128xbf16, #tpu.memory_space<vmem>>, vector<1x1x1x128x128xbf16>
    %82 = vector.shape_cast %81 : vector<1x1x1x128x128xbf16> to vector<128x128xbf16>
    %cst_128 = arith.constant dense<0.000000e+00> : vector<16x128xf32>
    %83 = tpu.matmul %80, %82, %cst_128 {dimension_numbers = #tpu.dot_dimension_numbers<[1], [0], [0], [1], [0, 0, 1, 1], [], []>} : vector<16x128xbf16>, vector<128x128xbf16>, vector<16x128xf32> -> vector<16x128xf32>
    %84 = arith.addf %77, %83 : vector<16x128xf32>
    %c0_129 = arith.constant 0 : index
    %c0_130 = arith.constant 0 : index
    %c1_131 = arith.constant 1 : index
    %c0_132 = arith.constant 0 : index
    %c0_133 = arith.constant 0 : index
    %85 = vector.load %arg3[%c0_129, %c0_130, %c1_131, %c0_132, %c0_133] : memref<1x1x6x6x128xbf16, #tpu.memory_space<vmem>>, vector<1x1x4x4x128xbf16>
    %86 = vector.shape_cast %85 : vector<1x1x4x4x128xbf16> to vector<4x4x128xbf16>
    %87 = vector.shape_cast %86 : vector<4x4x128xbf16> to vector<16x128xbf16>
    %c1_134 = arith.constant 1 : index
    %c1_135 = arith.constant 1 : index
    %c0_136 = arith.constant 0 : index
    %c0_137 = arith.constant 0 : index
    %c0_138 = arith.constant 0 : index
    %88 = vector.load %arg5[%c1_134, %c1_135, %c0_136, %c0_137, %c0_138] : memref<3x3x3x128x128xbf16, #tpu.memory_space<vmem>>, vector<1x1x1x128x128xbf16>
    %89 = vector.shape_cast %88 : vector<1x1x1x128x128xbf16> to vector<128x128xbf16>
    %cst_139 = arith.constant dense<0.000000e+00> : vector<16x128xf32>
    %90 = tpu.matmul %87, %89, %cst_139 {dimension_numbers = #tpu.dot_dimension_numbers<[1], [0], [0], [1], [0, 0, 1, 1], [], []>} : vector<16x128xbf16>, vector<128x128xbf16>, vector<16x128xf32> -> vector<16x128xf32>
    %91 = arith.addf %84, %90 : vector<16x128xf32>
    %c0_140 = arith.constant 0 : index
    %c0_141 = arith.constant 0 : index
    %c1_142 = arith.constant 1 : index
    %c1_143 = arith.constant 1 : index
    %c0_144 = arith.constant 0 : index
    %92 = vector.load %arg3[%c0_140, %c0_141, %c1_142, %c1_143, %c0_144] : memref<1x1x6x6x128xbf16, #tpu.memory_space<vmem>>, vector<1x1x4x4x128xbf16>
    %93 = vector.shape_cast %92 : vector<1x1x4x4x128xbf16> to vector<4x4x128xbf16>
    %94 = vector.shape_cast %93 : vector<4x4x128xbf16> to vector<16x128xbf16>
    %c1_145 = arith.constant 1 : index
    %c1_146 = arith.constant 1 : index
    %c1_147 = arith.constant 1 : index
    %c0_148 = arith.constant 0 : index
    %c0_149 = arith.constant 0 : index
    %95 = vector.load %arg5[%c1_145, %c1_146, %c1_147, %c0_148, %c0_149] : memref<3x3x3x128x128xbf16, #tpu.memory_space<vmem>>, vector<1x1x1x128x128xbf16>
    %96 = vector.shape_cast %95 : vector<1x1x1x128x128xbf16> to vector<128x128xbf16>
    %cst_150 = arith.constant dense<0.000000e+00> : vector<16x128xf32>
    %97 = tpu.matmul %94, %96, %cst_150 {dimension_numbers = #tpu.dot_dimension_numbers<[1], [0], [0], [1], [0, 0, 1, 1], [], []>} : vector<16x128xbf16>, vector<128x128xbf16>, vector<16x128xf32> -> vector<16x128xf32>
    %98 = arith.addf %91, %97 : vector<16x128xf32>
    %c0_151 = arith.constant 0 : index
    %c0_152 = arith.constant 0 : index
    %c1_153 = arith.constant 1 : index
    %c2_154 = arith.constant 2 : index
    %c0_155 = arith.constant 0 : index
    %99 = vector.load %arg3[%c0_151, %c0_152, %c1_153, %c2_154, %c0_155] : memref<1x1x6x6x128xbf16, #tpu.memory_space<vmem>>, vector<1x1x4x4x128xbf16>
    %100 = vector.shape_cast %99 : vector<1x1x4x4x128xbf16> to vector<4x4x128xbf16>
    %101 = vector.shape_cast %100 : vector<4x4x128xbf16> to vector<16x128xbf16>
    %c1_156 = arith.constant 1 : index
    %c1_157 = arith.constant 1 : index
    %c2_158 = arith.constant 2 : index
    %c0_159 = arith.constant 0 : index
    %c0_160 = arith.constant 0 : index
    %102 = vector.load %arg5[%c1_156, %c1_157, %c2_158, %c0_159, %c0_160] : memref<3x3x3x128x128xbf16, #tpu.memory_space<vmem>>, vector<1x1x1x128x128xbf16>
    %103 = vector.shape_cast %102 : vector<1x1x1x128x128xbf16> to vector<128x128xbf16>
    %cst_161 = arith.constant dense<0.000000e+00> : vector<16x128xf32>
    %104 = tpu.matmul %101, %103, %cst_161 {dimension_numbers = #tpu.dot_dimension_numbers<[1], [0], [0], [1], [0, 0, 1, 1], [], []>} : vector<16x128xbf16>, vector<128x128xbf16>, vector<16x128xf32> -> vector<16x128xf32>
    %105 = arith.addf %98, %104 : vector<16x128xf32>
    %c0_162 = arith.constant 0 : index
    %c0_163 = arith.constant 0 : index
    %c2_164 = arith.constant 2 : index
    %c0_165 = arith.constant 0 : index
    %c0_166 = arith.constant 0 : index
    %106 = vector.load %arg3[%c0_162, %c0_163, %c2_164, %c0_165, %c0_166] : memref<1x1x6x6x128xbf16, #tpu.memory_space<vmem>>, vector<1x1x4x4x128xbf16>
    %107 = vector.shape_cast %106 : vector<1x1x4x4x128xbf16> to vector<4x4x128xbf16>
    %108 = vector.shape_cast %107 : vector<4x4x128xbf16> to vector<16x128xbf16>
    %c1_167 = arith.constant 1 : index
    %c2_168 = arith.constant 2 : index
    %c0_169 = arith.constant 0 : index
    %c0_170 = arith.constant 0 : index
    %c0_171 = arith.constant 0 : index
    %109 = vector.load %arg5[%c1_167, %c2_168, %c0_169, %c0_170, %c0_171] : memref<3x3x3x128x128xbf16, #tpu.memory_space<vmem>>, vector<1x1x1x128x128xbf16>
    %110 = vector.shape_cast %109 : vector<1x1x1x128x128xbf16> to vector<128x128xbf16>
    %cst_172 = arith.constant dense<0.000000e+00> : vector<16x128xf32>
    %111 = tpu.matmul %108, %110, %cst_172 {dimension_numbers = #tpu.dot_dimension_numbers<[1], [0], [0], [1], [0, 0, 1, 1], [], []>} : vector<16x128xbf16>, vector<128x128xbf16>, vector<16x128xf32> -> vector<16x128xf32>
    %112 = arith.addf %105, %111 : vector<16x128xf32>
    %c0_173 = arith.constant 0 : index
    %c0_174 = arith.constant 0 : index
    %c2_175 = arith.constant 2 : index
    %c1_176 = arith.constant 1 : index
    %c0_177 = arith.constant 0 : index
    %113 = vector.load %arg3[%c0_173, %c0_174, %c2_175, %c1_176, %c0_177] : memref<1x1x6x6x128xbf16, #tpu.memory_space<vmem>>, vector<1x1x4x4x128xbf16>
    %114 = vector.shape_cast %113 : vector<1x1x4x4x128xbf16> to vector<4x4x128xbf16>
    %115 = vector.shape_cast %114 : vector<4x4x128xbf16> to vector<16x128xbf16>
    %c1_178 = arith.constant 1 : index
    %c2_179 = arith.constant 2 : index
    %c1_180 = arith.constant 1 : index
    %c0_181 = arith.constant 0 : index
    %c0_182 = arith.constant 0 : index
    %116 = vector.load %arg5[%c1_178, %c2_179, %c1_180, %c0_181, %c0_182] : memref<3x3x3x128x128xbf16, #tpu.memory_space<vmem>>, vector<1x1x1x128x128xbf16>
    %117 = vector.shape_cast %116 : vector<1x1x1x128x128xbf16> to vector<128x128xbf16>
    %cst_183 = arith.constant dense<0.000000e+00> : vector<16x128xf32>
    %118 = tpu.matmul %115, %117, %cst_183 {dimension_numbers = #tpu.dot_dimension_numbers<[1], [0], [0], [1], [0, 0, 1, 1], [], []>} : vector<16x128xbf16>, vector<128x128xbf16>, vector<16x128xf32> -> vector<16x128xf32>
    %119 = arith.addf %112, %118 : vector<16x128xf32>
    %c0_184 = arith.constant 0 : index
    %c0_185 = arith.constant 0 : index
    %c2_186 = arith.constant 2 : index
    %c2_187 = arith.constant 2 : index
    %c0_188 = arith.constant 0 : index
    %120 = vector.load %arg3[%c0_184, %c0_185, %c2_186, %c2_187, %c0_188] : memref<1x1x6x6x128xbf16, #tpu.memory_space<vmem>>, vector<1x1x4x4x128xbf16>
    %121 = vector.shape_cast %120 : vector<1x1x4x4x128xbf16> to vector<4x4x128xbf16>
    %122 = vector.shape_cast %121 : vector<4x4x128xbf16> to vector<16x128xbf16>
    %c1_189 = arith.constant 1 : index
    %c2_190 = arith.constant 2 : index
    %c2_191 = arith.constant 2 : index
    %c0_192 = arith.constant 0 : index
    %c0_193 = arith.constant 0 : index
    %123 = vector.load %arg5[%c1_189, %c2_190, %c2_191, %c0_192, %c0_193] : memref<3x3x3x128x128xbf16, #tpu.memory_space<vmem>>, vector<1x1x1x128x128xbf16>
    %124 = vector.shape_cast %123 : vector<1x1x1x128x128xbf16> to vector<128x128xbf16>
    %cst_194 = arith.constant dense<0.000000e+00> : vector<16x128xf32>
    %125 = tpu.matmul %122, %124, %cst_194 {dimension_numbers = #tpu.dot_dimension_numbers<[1], [0], [0], [1], [0, 0, 1, 1], [], []>} : vector<16x128xbf16>, vector<128x128xbf16>, vector<16x128xf32> -> vector<16x128xf32>
    %126 = arith.addf %119, %125 : vector<16x128xf32>
    %c0_195 = arith.constant 0 : index
    %c0_196 = arith.constant 0 : index
    %c0_197 = arith.constant 0 : index
    %c0_198 = arith.constant 0 : index
    %c0_199 = arith.constant 0 : index
    %127 = vector.load %arg4[%c0_195, %c0_196, %c0_197, %c0_198, %c0_199] : memref<1x1x6x6x128xbf16, #tpu.memory_space<vmem>>, vector<1x1x4x4x128xbf16>
    %128 = vector.shape_cast %127 : vector<1x1x4x4x128xbf16> to vector<4x4x128xbf16>
    %129 = vector.shape_cast %128 : vector<4x4x128xbf16> to vector<16x128xbf16>
    %c2_200 = arith.constant 2 : index
    %c0_201 = arith.constant 0 : index
    %c0_202 = arith.constant 0 : index
    %c0_203 = arith.constant 0 : index
    %c0_204 = arith.constant 0 : index
    %130 = vector.load %arg5[%c2_200, %c0_201, %c0_202, %c0_203, %c0_204] : memref<3x3x3x128x128xbf16, #tpu.memory_space<vmem>>, vector<1x1x1x128x128xbf16>
    %131 = vector.shape_cast %130 : vector<1x1x1x128x128xbf16> to vector<128x128xbf16>
    %cst_205 = arith.constant dense<0.000000e+00> : vector<16x128xf32>
    %132 = tpu.matmul %129, %131, %cst_205 {dimension_numbers = #tpu.dot_dimension_numbers<[1], [0], [0], [1], [0, 0, 1, 1], [], []>} : vector<16x128xbf16>, vector<128x128xbf16>, vector<16x128xf32> -> vector<16x128xf32>
    %133 = arith.addf %126, %132 : vector<16x128xf32>
    %c0_206 = arith.constant 0 : index
    %c0_207 = arith.constant 0 : index
    %c0_208 = arith.constant 0 : index
    %c1_209 = arith.constant 1 : index
    %c0_210 = arith.constant 0 : index
    %134 = vector.load %arg4[%c0_206, %c0_207, %c0_208, %c1_209, %c0_210] : memref<1x1x6x6x128xbf16, #tpu.memory_space<vmem>>, vector<1x1x4x4x128xbf16>
    %135 = vector.shape_cast %134 : vector<1x1x4x4x128xbf16> to vector<4x4x128xbf16>
    %136 = vector.shape_cast %135 : vector<4x4x128xbf16> to vector<16x128xbf16>
    %c2_211 = arith.constant 2 : index
    %c0_212 = arith.constant 0 : index
    %c1_213 = arith.constant 1 : index
    %c0_214 = arith.constant 0 : index
    %c0_215 = arith.constant 0 : index
    %137 = vector.load %arg5[%c2_211, %c0_212, %c1_213, %c0_214, %c0_215] : memref<3x3x3x128x128xbf16, #tpu.memory_space<vmem>>, vector<1x1x1x128x128xbf16>
    %138 = vector.shape_cast %137 : vector<1x1x1x128x128xbf16> to vector<128x128xbf16>
    %cst_216 = arith.constant dense<0.000000e+00> : vector<16x128xf32>
    %139 = tpu.matmul %136, %138, %cst_216 {dimension_numbers = #tpu.dot_dimension_numbers<[1], [0], [0], [1], [0, 0, 1, 1], [], []>} : vector<16x128xbf16>, vector<128x128xbf16>, vector<16x128xf32> -> vector<16x128xf32>
    %140 = arith.addf %133, %139 : vector<16x128xf32>
    %c0_217 = arith.constant 0 : index
    %c0_218 = arith.constant 0 : index
    %c0_219 = arith.constant 0 : index
    %c2_220 = arith.constant 2 : index
    %c0_221 = arith.constant 0 : index
    %141 = vector.load %arg4[%c0_217, %c0_218, %c0_219, %c2_220, %c0_221] : memref<1x1x6x6x128xbf16, #tpu.memory_space<vmem>>, vector<1x1x4x4x128xbf16>
    %142 = vector.shape_cast %141 : vector<1x1x4x4x128xbf16> to vector<4x4x128xbf16>
    %143 = vector.shape_cast %142 : vector<4x4x128xbf16> to vector<16x128xbf16>
    %c2_222 = arith.constant 2 : index
    %c0_223 = arith.constant 0 : index
    %c2_224 = arith.constant 2 : index
    %c0_225 = arith.constant 0 : index
    %c0_226 = arith.constant 0 : index
    %144 = vector.load %arg5[%c2_222, %c0_223, %c2_224, %c0_225, %c0_226] : memref<3x3x3x128x128xbf16, #tpu.memory_space<vmem>>, vector<1x1x1x128x128xbf16>
    %145 = vector.shape_cast %144 : vector<1x1x1x128x128xbf16> to vector<128x128xbf16>
    %cst_227 = arith.constant dense<0.000000e+00> : vector<16x128xf32>
    %146 = tpu.matmul %143, %145, %cst_227 {dimension_numbers = #tpu.dot_dimension_numbers<[1], [0], [0], [1], [0, 0, 1, 1], [], []>} : vector<16x128xbf16>, vector<128x128xbf16>, vector<16x128xf32> -> vector<16x128xf32>
    %147 = arith.addf %140, %146 : vector<16x128xf32>
    %c0_228 = arith.constant 0 : index
    %c0_229 = arith.constant 0 : index
    %c1_230 = arith.constant 1 : index
    %c0_231 = arith.constant 0 : index
    %c0_232 = arith.constant 0 : index
    %148 = vector.load %arg4[%c0_228, %c0_229, %c1_230, %c0_231, %c0_232] : memref<1x1x6x6x128xbf16, #tpu.memory_space<vmem>>, vector<1x1x4x4x128xbf16>
    %149 = vector.shape_cast %148 : vector<1x1x4x4x128xbf16> to vector<4x4x128xbf16>
    %150 = vector.shape_cast %149 : vector<4x4x128xbf16> to vector<16x128xbf16>
    %c2_233 = arith.constant 2 : index
    %c1_234 = arith.constant 1 : index
    %c0_235 = arith.constant 0 : index
    %c0_236 = arith.constant 0 : index
    %c0_237 = arith.constant 0 : index
    %151 = vector.load %arg5[%c2_233, %c1_234, %c0_235, %c0_236, %c0_237] : memref<3x3x3x128x128xbf16, #tpu.memory_space<vmem>>, vector<1x1x1x128x128xbf16>
    %152 = vector.shape_cast %151 : vector<1x1x1x128x128xbf16> to vector<128x128xbf16>
    %cst_238 = arith.constant dense<0.000000e+00> : vector<16x128xf32>
    %153 = tpu.matmul %150, %152, %cst_238 {dimension_numbers = #tpu.dot_dimension_numbers<[1], [0], [0], [1], [0, 0, 1, 1], [], []>} : vector<16x128xbf16>, vector<128x128xbf16>, vector<16x128xf32> -> vector<16x128xf32>
    %154 = arith.addf %147, %153 : vector<16x128xf32>
    %c0_239 = arith.constant 0 : index
    %c0_240 = arith.constant 0 : index
    %c1_241 = arith.constant 1 : index
    %c1_242 = arith.constant 1 : index
    %c0_243 = arith.constant 0 : index
    %155 = vector.load %arg4[%c0_239, %c0_240, %c1_241, %c1_242, %c0_243] : memref<1x1x6x6x128xbf16, #tpu.memory_space<vmem>>, vector<1x1x4x4x128xbf16>
    %156 = vector.shape_cast %155 : vector<1x1x4x4x128xbf16> to vector<4x4x128xbf16>
    %157 = vector.shape_cast %156 : vector<4x4x128xbf16> to vector<16x128xbf16>
    %c2_244 = arith.constant 2 : index
    %c1_245 = arith.constant 1 : index
    %c1_246 = arith.constant 1 : index
    %c0_247 = arith.constant 0 : index
    %c0_248 = arith.constant 0 : index
    %158 = vector.load %arg5[%c2_244, %c1_245, %c1_246, %c0_247, %c0_248] : memref<3x3x3x128x128xbf16, #tpu.memory_space<vmem>>, vector<1x1x1x128x128xbf16>
    %159 = vector.shape_cast %158 : vector<1x1x1x128x128xbf16> to vector<128x128xbf16>
    %cst_249 = arith.constant dense<0.000000e+00> : vector<16x128xf32>
    %160 = tpu.matmul %157, %159, %cst_249 {dimension_numbers = #tpu.dot_dimension_numbers<[1], [0], [0], [1], [0, 0, 1, 1], [], []>} : vector<16x128xbf16>, vector<128x128xbf16>, vector<16x128xf32> -> vector<16x128xf32>
    %161 = arith.addf %154, %160 : vector<16x128xf32>
    %c0_250 = arith.constant 0 : index
    %c0_251 = arith.constant 0 : index
    %c1_252 = arith.constant 1 : index
    %c2_253 = arith.constant 2 : index
    %c0_254 = arith.constant 0 : index
    %162 = vector.load %arg4[%c0_250, %c0_251, %c1_252, %c2_253, %c0_254] : memref<1x1x6x6x128xbf16, #tpu.memory_space<vmem>>, vector<1x1x4x4x128xbf16>
    %163 = vector.shape_cast %162 : vector<1x1x4x4x128xbf16> to vector<4x4x128xbf16>
    %164 = vector.shape_cast %163 : vector<4x4x128xbf16> to vector<16x128xbf16>
    %c2_255 = arith.constant 2 : index
    %c1_256 = arith.constant 1 : index
    %c2_257 = arith.constant 2 : index
    %c0_258 = arith.constant 0 : index
    %c0_259 = arith.constant 0 : index
    %165 = vector.load %arg5[%c2_255, %c1_256, %c2_257, %c0_258, %c0_259] : memref<3x3x3x128x128xbf16, #tpu.memory_space<vmem>>, vector<1x1x1x128x128xbf16>
    %166 = vector.shape_cast %165 : vector<1x1x1x128x128xbf16> to vector<128x128xbf16>
    %cst_260 = arith.constant dense<0.000000e+00> : vector<16x128xf32>
    %167 = tpu.matmul %164, %166, %cst_260 {dimension_numbers = #tpu.dot_dimension_numbers<[1], [0], [0], [1], [0, 0, 1, 1], [], []>} : vector<16x128xbf16>, vector<128x128xbf16>, vector<16x128xf32> -> vector<16x128xf32>
    %168 = arith.addf %161, %167 : vector<16x128xf32>
    %c0_261 = arith.constant 0 : index
    %c0_262 = arith.constant 0 : index
    %c2_263 = arith.constant 2 : index
    %c0_264 = arith.constant 0 : index
    %c0_265 = arith.constant 0 : index
    %169 = vector.load %arg4[%c0_261, %c0_262, %c2_263, %c0_264, %c0_265] : memref<1x1x6x6x128xbf16, #tpu.memory_space<vmem>>, vector<1x1x4x4x128xbf16>
    %170 = vector.shape_cast %169 : vector<1x1x4x4x128xbf16> to vector<4x4x128xbf16>
    %171 = vector.shape_cast %170 : vector<4x4x128xbf16> to vector<16x128xbf16>
    %c2_266 = arith.constant 2 : index
    %c2_267 = arith.constant 2 : index
    %c0_268 = arith.constant 0 : index
    %c0_269 = arith.constant 0 : index
    %c0_270 = arith.constant 0 : index
    %172 = vector.load %arg5[%c2_266, %c2_267, %c0_268, %c0_269, %c0_270] : memref<3x3x3x128x128xbf16, #tpu.memory_space<vmem>>, vector<1x1x1x128x128xbf16>
    %173 = vector.shape_cast %172 : vector<1x1x1x128x128xbf16> to vector<128x128xbf16>
    %cst_271 = arith.constant dense<0.000000e+00> : vector<16x128xf32>
    %174 = tpu.matmul %171, %173, %cst_271 {dimension_numbers = #tpu.dot_dimension_numbers<[1], [0], [0], [1], [0, 0, 1, 1], [], []>} : vector<16x128xbf16>, vector<128x128xbf16>, vector<16x128xf32> -> vector<16x128xf32>
    %175 = arith.addf %168, %174 : vector<16x128xf32>
    %c0_272 = arith.constant 0 : index
    %c0_273 = arith.constant 0 : index
    %c2_274 = arith.constant 2 : index
    %c1_275 = arith.constant 1 : index
    %c0_276 = arith.constant 0 : index
    %176 = vector.load %arg4[%c0_272, %c0_273, %c2_274, %c1_275, %c0_276] : memref<1x1x6x6x128xbf16, #tpu.memory_space<vmem>>, vector<1x1x4x4x128xbf16>
    %177 = vector.shape_cast %176 : vector<1x1x4x4x128xbf16> to vector<4x4x128xbf16>
    %178 = vector.shape_cast %177 : vector<4x4x128xbf16> to vector<16x128xbf16>
    %c2_277 = arith.constant 2 : index
    %c2_278 = arith.constant 2 : index
    %c1_279 = arith.constant 1 : index
    %c0_280 = arith.constant 0 : index
    %c0_281 = arith.constant 0 : index
    %179 = vector.load %arg5[%c2_277, %c2_278, %c1_279, %c0_280, %c0_281] : memref<3x3x3x128x128xbf16, #tpu.memory_space<vmem>>, vector<1x1x1x128x128xbf16>
    %180 = vector.shape_cast %179 : vector<1x1x1x128x128xbf16> to vector<128x128xbf16>
    %cst_282 = arith.constant dense<0.000000e+00> : vector<16x128xf32>
    %181 = tpu.matmul %178, %180, %cst_282 {dimension_numbers = #tpu.dot_dimension_numbers<[1], [0], [0], [1], [0, 0, 1, 1], [], []>} : vector<16x128xbf16>, vector<128x128xbf16>, vector<16x128xf32> -> vector<16x128xf32>
    %182 = arith.addf %175, %181 : vector<16x128xf32>
    %c0_283 = arith.constant 0 : index
    %c0_284 = arith.constant 0 : index
    %c2_285 = arith.constant 2 : index
    %c2_286 = arith.constant 2 : index
    %c0_287 = arith.constant 0 : index
    %183 = vector.load %arg4[%c0_283, %c0_284, %c2_285, %c2_286, %c0_287] : memref<1x1x6x6x128xbf16, #tpu.memory_space<vmem>>, vector<1x1x4x4x128xbf16>
    %184 = vector.shape_cast %183 : vector<1x1x4x4x128xbf16> to vector<4x4x128xbf16>
    %185 = vector.shape_cast %184 : vector<4x4x128xbf16> to vector<16x128xbf16>
    %c2_288 = arith.constant 2 : index
    %c2_289 = arith.constant 2 : index
    %c2_290 = arith.constant 2 : index
    %c0_291 = arith.constant 0 : index
    %c0_292 = arith.constant 0 : index
    %186 = vector.load %arg5[%c2_288, %c2_289, %c2_290, %c0_291, %c0_292] : memref<3x3x3x128x128xbf16, #tpu.memory_space<vmem>>, vector<1x1x1x128x128xbf16>
    %187 = vector.shape_cast %186 : vector<1x1x1x128x128xbf16> to vector<128x128xbf16>
    %cst_293 = arith.constant dense<0.000000e+00> : vector<16x128xf32>
    %188 = tpu.matmul %185, %187, %cst_293 {dimension_numbers = #tpu.dot_dimension_numbers<[1], [0], [0], [1], [0, 0, 1, 1], [], []>} : vector<16x128xbf16>, vector<128x128xbf16>, vector<16x128xf32> -> vector<16x128xf32>
    %189 = arith.addf %182, %188 : vector<16x128xf32>
    %c0_294 = arith.constant 0 : index
    %c0_295 = arith.constant 0 : index
    %190 = vector.load %arg6[%c0_294, %c0_295] : memref<1x128xf32, #tpu.memory_space<vmem>>, vector<1x128xf32>
    %191 = vector.broadcast %190 : vector<1x128xf32> to vector<16x128xf32>
    %192 = arith.addf %189, %191 : vector<16x128xf32>
    %cst_296 = arith.constant 0.000000e+00 : f32
    %193 = vector.broadcast %cst_296 : f32 to vector<16x128xf32>
    %194 = arith.maximumf %192, %193 : vector<16x128xf32>
    %195 = vector.shape_cast %194 : vector<16x128xf32> to vector<4x4x128xf32>
    %196 = arith.truncf %195 : vector<4x4x128xf32> to vector<4x4x128xbf16>
    %c0_297 = arith.constant 0 : index
    %c0_298 = arith.constant 0 : index
    %c0_299 = arith.constant 0 : index
    %c0_300 = arith.constant 0 : index
    %c0_301 = arith.constant 0 : index
    %197 = vector.load %arg7[%c0_297, %c0_298, %c0_299, %c0_300, %c0_301] : memref<1x1x4x4x128xbf16, #tpu.memory_space<vmem>>, vector<1x1x4x4x128xbf16>
    %198 = vector.shape_cast %197 : vector<1x1x4x4x128xbf16> to vector<4x4x128xbf16>
    %199 = vector.shape_cast %196 : vector<4x4x128xbf16> to vector<1x1x4x4x128xbf16>
    tpu.vector_store %arg7[%c0_297, %c0_298, %c0_299, %c0_300, %c0_301], %199 {strides = array<i32>} : memref<1x1x4x4x128xbf16, #tpu.memory_space<vmem>>, vector<1x1x4x4x128xbf16>,
    return
  }
  func.func @transform_0(%arg0: i32, %arg1: i32) -> (i32, i32, i32, i32, i32) {
    %c0_i32 = arith.constant 0 : i32
    %0 = arith.addi %arg1, %c0_i32 : i32
    %c0_i32_0 = arith.constant 0 : i32
    %c0_i32_1 = arith.constant 0 : i32
    %c0_i32_2 = arith.constant 0 : i32
    %c0_i32_3 = arith.constant 0 : i32
    return %arg0, %0, %c0_i32_0, %c0_i32_1, %c0_i32_2 : i32, i32, i32, i32, i32
  }
  func.func @transform_1(%arg0: i32, %arg1: i32) -> (i32, i32, i32, i32, i32) {
    %c1_i32 = arith.constant 1 : i32
    %0 = arith.addi %arg1, %c1_i32 : i32
    %c0_i32 = arith.constant 0 : i32
    %c0_i32_0 = arith.constant 0 : i32
    %c0_i32_1 = arith.constant 0 : i32
    %c0_i32_2 = arith.constant 0 : i32
    return %arg0, %0, %c0_i32, %c0_i32_0, %c0_i32_1 : i32, i32, i32, i32, i32
  }
  func.func @transform_2(%arg0: i32, %arg1: i32) -> (i32, i32, i32, i32, i32) {
    %c2_i32 = arith.constant 2 : i32
    %0 = arith.addi %arg1, %c2_i32 : i32
    %c0_i32 = arith.constant 0 : i32
    %c0_i32_0 = arith.constant 0 : i32
    %c0_i32_1 = arith.constant 0 : i32
    %c0_i32_2 = arith.constant 0 : i32
    return %arg0, %0, %c0_i32, %c0_i32_0, %c0_i32_1 : i32, i32, i32, i32, i32
  }
  func.func @transform_3(%arg0: i32, %arg1: i32) -> (i32, i32, i32, i32, i32) {
    %c0_i32 = arith.constant 0 : i32
    %c0_i32_0 = arith.constant 0 : i32
    %c0_i32_1 = arith.constant 0 : i32
    %c0_i32_2 = arith.constant 0 : i32
    %c0_i32_3 = arith.constant 0 : i32
    %c0_i32_4 = arith.constant 0 : i32
    return %c0_i32, %c0_i32_0, %c0_i32_1, %c0_i32_2, %c0_i32_3 : i32, i32, i32, i32, i32
  }
  func.func @transform_4(%arg0: i32, %arg1: i32) -> (i32, i32) {
    %c0_i32 = arith.constant 0 : i32
    %c0_i32_0 = arith.constant 0 : i32
    %c0_i32_1 = arith.constant 0 : i32
    return %c0_i32, %c0_i32_0 : i32, i32
  }
  func.func @transform_5(%arg0: i32, %arg1: i32) -> (i32, i32, i32, i32, i32) {
    %c0_i32 = arith.constant 0 : i32
    %c0_i32_0 = arith.constant 0 : i32
    %c0_i32_1 = arith.constant 0 : i32
    %c0_i32_2 = arith.constant 0 : i32
    return %arg0, %arg1, %c0_i32, %c0_i32_0, %c0_i32_1 : i32, i32, i32, i32, i32
  }
}

module attributes {stable_mosaic.version = 11 : i64} {
  func.func @_pool_kernel(%arg0: i32, %arg1: memref<1x2x2x2x2x256xbf16, #tpu.memory_space<vmem>>, %arg2: memref<1x2x2x128xbf16, #tpu.memory_space<vmem>>) attributes {dimension_semantics = [#tpu.dimension_semantics<parallel>], iteration_bounds = array<i64: 4>, scalar_prefetch = 0 : i64, scratch_operands = 0 : i64, tpu.core_type = #tpu.core_type<tc>, window_params = [{transform_indices = @transform_0, window_bounds = array<i64: 1, 2, 2, 2, 2, 256>}, {transform_indices = @transform_1, window_bounds = array<i64: 1, 2, 2, 128>}]} {
    %c0 = arith.constant 0 : index
    %c0_0 = arith.constant 0 : index
    %c0_1 = arith.constant 0 : index
    %c0_2 = arith.constant 0 : index
    %c0_3 = arith.constant 0 : index
    %c0_4 = arith.constant 0 : index
    %0 = vector.load %arg1[%c0, %c0_0, %c0_1, %c0_2, %c0_3, %c0_4] : memref<1x2x2x2x2x256xbf16, #tpu.memory_space<vmem>>, vector<1x1x2x1x2x256xbf16>
    %1 = vector.shape_cast %0 : vector<1x1x2x1x2x256xbf16> to vector<2x2x256xbf16>
    %c0_5 = arith.constant 0 : index
    %c0_6 = arith.constant 0 : index
    %c0_7 = arith.constant 0 : index
    %c1 = arith.constant 1 : index
    %c0_8 = arith.constant 0 : index
    %c0_9 = arith.constant 0 : index
    %2 = vector.load %arg1[%c0_5, %c0_6, %c0_7, %c1, %c0_8, %c0_9] : memref<1x2x2x2x2x256xbf16, #tpu.memory_space<vmem>>, vector<1x1x2x1x2x256xbf16>
    %3 = vector.shape_cast %2 : vector<1x1x2x1x2x256xbf16> to vector<2x2x256xbf16>
    %4 = arith.maximumf %1, %3 : vector<2x2x256xbf16>
    %c0_10 = arith.constant 0 : index
    %c1_11 = arith.constant 1 : index
    %c0_12 = arith.constant 0 : index
    %c0_13 = arith.constant 0 : index
    %c0_14 = arith.constant 0 : index
    %c0_15 = arith.constant 0 : index
    %5 = vector.load %arg1[%c0_10, %c1_11, %c0_12, %c0_13, %c0_14, %c0_15] : memref<1x2x2x2x2x256xbf16, #tpu.memory_space<vmem>>, vector<1x1x2x1x2x256xbf16>
    %6 = vector.shape_cast %5 : vector<1x1x2x1x2x256xbf16> to vector<2x2x256xbf16>
    %7 = arith.maximumf %4, %6 : vector<2x2x256xbf16>
    %c0_16 = arith.constant 0 : index
    %c1_17 = arith.constant 1 : index
    %c0_18 = arith.constant 0 : index
    %c1_19 = arith.constant 1 : index
    %c0_20 = arith.constant 0 : index
    %c0_21 = arith.constant 0 : index
    %8 = vector.load %arg1[%c0_16, %c1_17, %c0_18, %c1_19, %c0_20, %c0_21] : memref<1x2x2x2x2x256xbf16, #tpu.memory_space<vmem>>, vector<1x1x2x1x2x256xbf16>
    %9 = vector.shape_cast %8 : vector<1x1x2x1x2x256xbf16> to vector<2x2x256xbf16>
    %10 = arith.maximumf %7, %9 : vector<2x2x256xbf16>
    %11 = vector.extract_strided_slice %10 {offsets = [0, 0, 0], sizes = [2, 2, 128], strides = [1, 1, 1]} : vector<2x2x256xbf16> to vector<2x2x128xbf16>
    %12 = vector.extract_strided_slice %10 {offsets = [0, 0, 128], sizes = [2, 2, 128], strides = [1, 1, 1]} : vector<2x2x256xbf16> to vector<2x2x128xbf16>
    %13 = arith.maximumf %11, %12 : vector<2x2x128xbf16>
    %c0_22 = arith.constant 0 : index
    %c0_23 = arith.constant 0 : index
    %c0_24 = arith.constant 0 : index
    %c0_25 = arith.constant 0 : index
    %14 = vector.load %arg2[%c0_22, %c0_23, %c0_24, %c0_25] : memref<1x2x2x128xbf16, #tpu.memory_space<vmem>>, vector<1x2x2x128xbf16>
    %15 = vector.shape_cast %14 : vector<1x2x2x128xbf16> to vector<2x2x128xbf16>
    %16 = vector.shape_cast %13 : vector<2x2x128xbf16> to vector<1x2x2x128xbf16>
    tpu.vector_store %arg2[%c0_22, %c0_23, %c0_24, %c0_25], %16 {strides = array<i32>} : memref<1x2x2x128xbf16, #tpu.memory_space<vmem>>, vector<1x2x2x128xbf16>,
    return
  }
  func.func @transform_0(%arg0: i32) -> (i32, i32, i32, i32, i32, i32) {
    %c0_i32 = arith.constant 0 : i32
    %c0_i32_0 = arith.constant 0 : i32
    %c0_i32_1 = arith.constant 0 : i32
    %c0_i32_2 = arith.constant 0 : i32
    %c0_i32_3 = arith.constant 0 : i32
    %c0_i32_4 = arith.constant 0 : i32
    return %arg0, %c0_i32, %c0_i32_0, %c0_i32_1, %c0_i32_2, %c0_i32_3 : i32, i32, i32, i32, i32, i32
  }
  func.func @transform_1(%arg0: i32) -> (i32, i32, i32, i32) {
    %c0_i32 = arith.constant 0 : i32
    %c0_i32_0 = arith.constant 0 : i32
    %c0_i32_1 = arith.constant 0 : i32
    %c0_i32_2 = arith.constant 0 : i32
    return %arg0, %c0_i32, %c0_i32_0, %c0_i32_1 : i32, i32, i32, i32
  }
}

module attributes {stable_mosaic.version = 11 : i64} {
  func.func @_matmul_kernel(%arg0: i32, %arg1: i32, %arg2: i32, %arg3: memref<8x512xbf16, #tpu.memory_space<vmem>>, %arg4: memref<512x128xbf16, #tpu.memory_space<vmem>>, %arg5: memref<1x128xf32, #tpu.memory_space<vmem>>, %arg6: memref<8x128xbf16, #tpu.memory_space<vmem>>, %arg7: memref<8x128xf32, #tpu.memory_space<vmem>>) attributes {dimension_semantics = [#tpu.dimension_semantics<parallel>, #tpu.dimension_semantics<parallel>, #tpu.dimension_semantics<arbitrary>], iteration_bounds = array<i64: 1, 1, 2>, scalar_prefetch = 0 : i64, scratch_operands = 1 : i64, tpu.core_type = #tpu.core_type<tc>, window_params = [{transform_indices = @transform_0, window_bounds = array<i64: 8, 512>}, {transform_indices = @transform_1, window_bounds = array<i64: 512, 128>}, {transform_indices = @transform_2, window_bounds = array<i64: 1, 128>}, {transform_indices = @transform_3, window_bounds = array<i64: 8, 128>}]} {
    %c0_i32 = arith.constant 0 : i32
    %0 = arith.cmpi eq, %arg2, %c0_i32 : i32
    %1 = arith.extui %0 : i1 to i32
    %c0_i32_0 = arith.constant 0 : i32
    %2 = arith.cmpi ne, %1, %c0_i32_0 : i32
    scf.if %2 {
      %cst_9 = arith.constant 0.000000e+00 : f32
      %12 = vector.broadcast %cst_9 : f32 to vector<8x128xf32>
      %c0_10 = arith.constant 0 : index
      %c0_11 = arith.constant 0 : index
      %13 = vector.load %arg7[%c0_10, %c0_11] : memref<8x128xf32, #tpu.memory_space<vmem>>, vector<8x128xf32>
      tpu.vector_store %arg7[%c0_10, %c0_11], %12 {strides = array<i32>} : memref<8x128xf32, #tpu.memory_space<vmem>>, vector<8x128xf32>,
    } else {
    }
    %c0 = arith.constant 0 : index
    %c0_1 = arith.constant 0 : index
    %3 = vector.load %arg7[%c0, %c0_1] : memref<8x128xf32, #tpu.memory_space<vmem>>, vector<8x128xf32>
    %c0_2 = arith.constant 0 : index
    %c0_3 = arith.constant 0 : index
    %4 = vector.load %arg3[%c0_2, %c0_3] : memref<8x512xbf16, #tpu.memory_space<vmem>>, vector<8x512xbf16>
    %c0_4 = arith.constant 0 : index
    %c0_5 = arith.constant 0 : index
    %5 = vector.load %arg4[%c0_4, %c0_5] : memref<512x128xbf16, #tpu.memory_space<vmem>>, vector<512x128xbf16>
    %cst = arith.constant dense<0.000000e+00> : vector<8x128xf32>
    %6 = tpu.matmul %4, %5, %cst {dimension_numbers = #tpu.dot_dimension_numbers<[1], [0], [0], [1], [0, 0, 1, 1], [], []>} : vector<8x512xbf16>, vector<512x128xbf16>, vector<8x128xf32> -> vector<8x128xf32>
    %7 = arith.addf %3, %6 : vector<8x128xf32>
    %c0_6 = arith.constant 0 : index
    %c0_7 = arith.constant 0 : index
    %8 = vector.load %arg7[%c0_6, %c0_7] : memref<8x128xf32, #tpu.memory_space<vmem>>, vector<8x128xf32>
    tpu.vector_store %arg7[%c0_6, %c0_7], %7 {strides = array<i32>} : memref<8x128xf32, #tpu.memory_space<vmem>>, vector<8x128xf32>,
    %c1_i32 = arith.constant 1 : i32
    %9 = arith.cmpi eq, %arg2, %c1_i32 : i32
    %10 = arith.extui %9 : i1 to i32
    %c0_i32_8 = arith.constant 0 : i32
    %11 = arith.cmpi ne, %10, %c0_i32_8 : i32
    scf.if %11 {
      %c0_9 = arith.constant 0 : index
      %c0_10 = arith.constant 0 : index
      %12 = vector.load %arg7[%c0_9, %c0_10] : memref<8x128xf32, #tpu.memory_space<vmem>>, vector<8x128xf32>
      %c0_11 = arith.constant 0 : index
      %c0_12 = arith.constant 0 : index
      %13 = vector.load %arg5[%c0_11, %c0_12] : memref<1x128xf32, #tpu.memory_space<vmem>>, vector<1x128xf32>
      %14 = vector.broadcast %13 : vector<1x128xf32> to vector<8x128xf32>
      %15 = arith.addf %12, %14 : vector<8x128xf32>
      %cst_13 = arith.constant 0.000000e+00 : f32
      %16 = vector.broadcast %cst_13 : f32 to vector<8x128xf32>
      %17 = arith.maximumf %15, %16 : vector<8x128xf32>
      %18 = arith.truncf %17 : vector<8x128xf32> to vector<8x128xbf16>
      %c0_14 = arith.constant 0 : index
      %c0_15 = arith.constant 0 : index
      %19 = vector.load %arg6[%c0_14, %c0_15] : memref<8x128xbf16, #tpu.memory_space<vmem>>, vector<8x128xbf16>
      tpu.vector_store %arg6[%c0_14, %c0_15], %18 {strides = array<i32>} : memref<8x128xbf16, #tpu.memory_space<vmem>>, vector<8x128xbf16>,
    } else {
    }
    return
  }
  func.func @transform_0(%arg0: i32, %arg1: i32, %arg2: i32) -> (i32, i32) {
    %c0_i32 = arith.constant 0 : i32
    return %arg0, %arg2 : i32, i32
  }
  func.func @transform_1(%arg0: i32, %arg1: i32, %arg2: i32) -> (i32, i32) {
    %c0_i32 = arith.constant 0 : i32
    return %arg2, %arg1 : i32, i32
  }
  func.func @transform_2(%arg0: i32, %arg1: i32, %arg2: i32) -> (i32, i32) {
    %c0_i32 = arith.constant 0 : i32
    %c0_i32_0 = arith.constant 0 : i32
    return %c0_i32, %arg1 : i32, i32
  }
  func.func @transform_3(%arg0: i32, %arg1: i32, %arg2: i32) -> (i32, i32) {
    %c0_i32 = arith.constant 0 : i32
    return %arg0, %arg1 : i32, i32
  }
}

module attributes {stable_mosaic.version = 11 : i64} {
  func.func @_matmul_kernel(%arg0: i32, %arg1: i32, %arg2: i32, %arg3: memref<8x128xbf16, #tpu.memory_space<vmem>>, %arg4: memref<128x128xbf16, #tpu.memory_space<vmem>>, %arg5: memref<1x128xf32, #tpu.memory_space<vmem>>, %arg6: memref<8x128xf32, #tpu.memory_space<vmem>>, %arg7: memref<8x128xf32, #tpu.memory_space<vmem>>) attributes {dimension_semantics = [#tpu.dimension_semantics<parallel>, #tpu.dimension_semantics<parallel>, #tpu.dimension_semantics<arbitrary>], iteration_bounds = array<i64: 1, 1, 1>, scalar_prefetch = 0 : i64, scratch_operands = 1 : i64, tpu.core_type = #tpu.core_type<tc>, window_params = [{transform_indices = @transform_0, window_bounds = array<i64: 8, 128>}, {transform_indices = @transform_1, window_bounds = array<i64: 128, 128>}, {transform_indices = @transform_2, window_bounds = array<i64: 1, 128>}, {transform_indices = @transform_3, window_bounds = array<i64: 8, 128>}]} {
    %c0_i32 = arith.constant 0 : i32
    %0 = arith.cmpi eq, %arg2, %c0_i32 : i32
    %1 = arith.extui %0 : i1 to i32
    %c0_i32_0 = arith.constant 0 : i32
    %2 = arith.cmpi ne, %1, %c0_i32_0 : i32
    scf.if %2 {
      %cst_10 = arith.constant 0.000000e+00 : f32
      %12 = vector.broadcast %cst_10 : f32 to vector<8x128xf32>
      %c0_11 = arith.constant 0 : index
      %c0_12 = arith.constant 0 : index
      %13 = vector.load %arg7[%c0_11, %c0_12] : memref<8x128xf32, #tpu.memory_space<vmem>>, vector<8x128xf32>
      tpu.vector_store %arg7[%c0_11, %c0_12], %12 {strides = array<i32>} : memref<8x128xf32, #tpu.memory_space<vmem>>, vector<8x128xf32>,
    } else {
    }
    %c0 = arith.constant 0 : index
    %c0_1 = arith.constant 0 : index
    %3 = vector.load %arg7[%c0, %c0_1] : memref<8x128xf32, #tpu.memory_space<vmem>>, vector<8x128xf32>
    %c0_2 = arith.constant 0 : index
    %c0_3 = arith.constant 0 : index
    %4 = vector.load %arg3[%c0_2, %c0_3] : memref<8x128xbf16, #tpu.memory_space<vmem>>, vector<8x128xbf16>
    %c0_4 = arith.constant 0 : index
    %c0_5 = arith.constant 0 : index
    %5 = vector.load %arg4[%c0_4, %c0_5] : memref<128x128xbf16, #tpu.memory_space<vmem>>, vector<128x128xbf16>
    %cst = arith.constant dense<0.000000e+00> : vector<8x128xf32>
    %6 = tpu.matmul %4, %5, %cst {dimension_numbers = #tpu.dot_dimension_numbers<[1], [0], [0], [1], [0, 0, 1, 1], [], []>} : vector<8x128xbf16>, vector<128x128xbf16>, vector<8x128xf32> -> vector<8x128xf32>
    %7 = arith.addf %3, %6 : vector<8x128xf32>
    %c0_6 = arith.constant 0 : index
    %c0_7 = arith.constant 0 : index
    %8 = vector.load %arg7[%c0_6, %c0_7] : memref<8x128xf32, #tpu.memory_space<vmem>>, vector<8x128xf32>
    tpu.vector_store %arg7[%c0_6, %c0_7], %7 {strides = array<i32>} : memref<8x128xf32, #tpu.memory_space<vmem>>, vector<8x128xf32>,
    %c0_i32_8 = arith.constant 0 : i32
    %9 = arith.cmpi eq, %arg2, %c0_i32_8 : i32
    %10 = arith.extui %9 : i1 to i32
    %c0_i32_9 = arith.constant 0 : i32
    %11 = arith.cmpi ne, %10, %c0_i32_9 : i32
    scf.if %11 {
      %c0_10 = arith.constant 0 : index
      %c0_11 = arith.constant 0 : index
      %12 = vector.load %arg7[%c0_10, %c0_11] : memref<8x128xf32, #tpu.memory_space<vmem>>, vector<8x128xf32>
      %c0_12 = arith.constant 0 : index
      %c0_13 = arith.constant 0 : index
      %13 = vector.load %arg5[%c0_12, %c0_13] : memref<1x128xf32, #tpu.memory_space<vmem>>, vector<1x128xf32>
      %14 = vector.broadcast %13 : vector<1x128xf32> to vector<8x128xf32>
      %15 = arith.addf %12, %14 : vector<8x128xf32>
      %cst_14 = arith.constant 0.000000e+00 : f32
      %16 = vector.broadcast %cst_14 : f32 to vector<8x128xf32>
      %17 = arith.subf %16, %15 : vector<8x128xf32>
      %18 = math.exp %17 : vector<8x128xf32>
      %cst_15 = arith.constant 1.000000e+00 : f32
      %19 = vector.broadcast %cst_15 : f32 to vector<8x128xf32>
      %20 = arith.addf %19, %18 : vector<8x128xf32>
      %cst_16 = arith.constant 1.000000e+00 : f32
      %21 = vector.broadcast %cst_16 : f32 to vector<8x128xf32>
      %22 = arith.divf %21, %20 : vector<8x128xf32>
      %c0_17 = arith.constant 0 : index
      %c0_18 = arith.constant 0 : index
      %23 = vector.load %arg6[%c0_17, %c0_18] : memref<8x128xf32, #tpu.memory_space<vmem>>, vector<8x128xf32>
      tpu.vector_store %arg6[%c0_17, %c0_18], %22 {strides = array<i32>} : memref<8x128xf32, #tpu.memory_space<vmem>>, vector<8x128xf32>,
    } else {
    }
    return
  }
  func.func @transform_0(%arg0: i32, %arg1: i32, %arg2: i32) -> (i32, i32) {
    %c0_i32 = arith.constant 0 : i32
    return %arg0, %arg2 : i32, i32
  }
  func.func @transform_1(%arg0: i32, %arg1: i32, %arg2: i32) -> (i32, i32) {
    %c0_i32 = arith.constant 0 : i32
    return %arg2, %arg1 : i32, i32
  }
  func.func @transform_2(%arg0: i32, %arg1: i32, %arg2: i32) -> (i32, i32) {
    %c0_i32 = arith.constant 0 : i32
    %c0_i32_0 = arith.constant 0 : i32
    return %c0_i32, %arg1 : i32, i32
  }
  func.func @transform_3(%arg0: i32, %arg1: i32, %arg2: i32) -> (i32, i32) {
    %c0_i32 = arith.constant 0 : i32
    return %arg0, %arg1 : i32, i32
  }
}

</mosaic_0001>

<llo_original>
// kernel: eeg3dcnn_forward.7
$region0: #{eeg3dcnn_forward.7}
  #allocation0 [shape = 'u32[]', space=smem, size = 0x4, offset = 0x4, fixed_abs, tag = 'smem constant byte address 0x4 - core index']
  #allocation1 [shape = 'u32[144,128]{1,0:T(1,128)}', space=vmem, size = 0x12000, scoped, tag = 'internal scratch']
  %s0 = inlined_call_operand.vmem [shape: bf16[8,2,4,2,4,256], index: 0, kind: input, shape index: {}]
  %s1 = inlined_call_operand.vmem [shape: bf16[8,4,4,128], index: 1, kind: output, shape index: {}]
  %s2 = sld [smem:[#allocation0]]
  $region37: #{eeg3dcnn_forward.7} parent=0
    _
  %s4 = ssub.s32 1, %s2
  %s5 = scalar_select 0, %s4, %s2
  loop: start=0, step=1, limit=10
  $region2: #{eeg3dcnn_forward.7} parent=0 // loop_pre_header
    _
  $region3: #{eeg3dcnn_forward.7} parent=0 // loop_header
    %s7 = sphi 0, %s11
    %p8 = scmp.ge.s32.totalorder %s7, 10
    %s17 = sphi 0, %s19
    %s20 = sphi 0, %s17
    %s21 = sphi 0, %s20
    %s37 = sphi 0, %s21
    %s43 = sphi 0, %s45
    %s46 = sphi 0, %s43
    %s47 = sphi 0, %s46
    %s63 = sphi 0, %s47
  $region4: #{eeg3dcnn_forward.7} parent=0 // loop_header_branch
    %10 = sbr.rel (%p8) target = $region8
  $region5: #{eeg3dcnn_forward.7} parent=0 // loop_body
    %s12 = ssub.s32 %s7, 1
    %s13 = ssub.s32 %s7, 2
    %s14 = sadd.s32 %s7, 1
    %s15 = ssub.s32 %s7, %s14
    %p16 = scmp.eq.s32.totalorder %s15, 0
    %s18 = sadd.s32 %s17, 1
    %s19 = scalar_select %p16, %s17, %s18
    %p22 = pneg %p16
    %p23 = scmp.eq.s32.totalorder %s7, 7
    %p24 = por %p22, %p23
    %p25 = scmp.ne.s32.totalorder %s17, %s20
    %p26 = scmp.eq.s32.totalorder %s7, 0
    %p27 = por %p25, %p26
    %p28 = scmp.ne.s32.totalorder %s17, %s20
    %p29 = scmp.eq.s32.totalorder %s12, 7
    %p30 = por %p28, %p29
    %p31 = scmp.ne.s32.totalorder %s20, %s21
    %p32 = scmp.eq.s32.totalorder %s12, 0
    %p33 = por %p31, %p32
    %p34 = scmp.ne.s32.totalorder %s20, %s21
    %p35 = scmp.eq.s32.totalorder %s13, 7
    %p36 = por %p34, %p35
    %p38 = scmp.ne.s32.totalorder %s21, %s37
    %p39 = scmp.eq.s32.totalorder %s13, 0
    %p40 = por %p38, %p39
    %s41 = ssub.s32 %s7, %s14
    %p42 = scmp.eq.s32.totalorder %s41, 0
    %s44 = sadd.s32 %s43, 1
    %s45 = scalar_select %p42, %s43, %s44
    %p48 = pneg %p42
    %p49 = scmp.eq.s32.totalorder %s7, 7
    %p50 = por %p48, %p49
    %p51 = scmp.ne.s32.totalorder %s43, %s46
    %p52 = scmp.eq.s32.totalorder %s7, 0
    %p53 = por %p51, %p52
    %p54 = scmp.ne.s32.totalorder %s43, %s46
    %p55 = scmp.eq.s32.totalorder %s12, 7
    %p56 = por %p54, %p55
    %p57 = scmp.ne.s32.totalorder %s46, %s47
    %p58 = scmp.eq.s32.totalorder %s12, 0
    %p59 = por %p57, %p58
    %p60 = scmp.ne.s32.totalorder %s46, %s47
    %p61 = scmp.eq.s32.totalorder %s13, 7
    %p62 = por %p60, %p61
    %p64 = scmp.ne.s32.totalorder %s47, %s63
    %p65 = scmp.eq.s32.totalorder %s13, 0
    %p66 = por %p64, %p65
    %p67 = scmp.le.s32.totalorder 1, %s7
    %p68 = scmp.lt.s32.totalorder %s7, 9
    %p69 = pnand %p67, %p68
    %p70 = pneg %p69
    // Predicated region
    $region9: #{eeg3dcnn_forward.7} parent=5 // pred_check
      _
    $region10: #{eeg3dcnn_forward.7} parent=5 // pred_check_branch
      %72 = sbr.rel (%p69) target = $region12
    $region11: #{eeg3dcnn_forward.7} parent=5 // pred_region
      %s73 = ssub.s32 %s7, 1
    $region12: #{eeg3dcnn_forward.7} parent=5 // pred_fallthru
      _
    %p74 = scmp.lt.s32.totalorder %s7, 8
    // Predicated region
    $region13: #{eeg3dcnn_forward.7} parent=5 // pred_check
      %p75 = pneg %p74
    $region14: #{eeg3dcnn_forward.7} parent=5 // pred_check_branch
      %77 = sbr.rel (%p75) target = $region16
    $region15: #{eeg3dcnn_forward.7} parent=5 // pred_region
      // Predicated region
      $region17: #{eeg3dcnn_forward.7} parent=15 // pred_check
        %p78 = pneg %p27
      $region18: #{eeg3dcnn_forward.7} parent=15 // pred_check_branch
        %80 = sbr.rel (%p78) target = $region20
      $region19: #{eeg3dcnn_forward.7} parent=15 // pred_region
        %p81 = scmp.lt.s32.totalorder %s7, 7
        %s82 = scalar_select %p81, %s7, 7
        %s83 = smul.addr %s82, 32
        %s84 = smul.addr %s83, 2
        %s85 = scalar_lea.vmem %s0, %s84
      $region20: #{eeg3dcnn_forward.7} parent=15 // pred_fallthru
        _
    $region16: #{eeg3dcnn_forward.7} parent=5 // pred_fallthru
      _
    %p86 = scmp.le.s32.totalorder 1, %s7
    %p87 = scmp.lt.s32.totalorder %s7, 9
    %p88 = pnand %p86, %p87
    %p89 = pneg %p88
    // Predicated region
    $region21: #{eeg3dcnn_forward.7} parent=5 // pred_check
      _
    $region22: #{eeg3dcnn_forward.7} parent=5 // pred_check_branch
      %91 = sbr.rel (%p88) target = $region24
    $region23: #{eeg3dcnn_forward.7} parent=5 // pred_region
      %s92 = ssub.s32 %s7, 1
      %p93 = scmp.lt.s32.totalorder %s12, 7
      %s94 = scalar_select %p93, %s12, 7
      %s95 = smul.addr %s94, 32
      %s96 = smul.addr %s95, 2
      %s97 = scalar_lea.vmem %s0, %s96
      %p98 = pneg %p33
      %p99 = pneg %p30
      %p100 = pneg %p59
      %p101 = pneg %p56
      %p102 = scmp.lt.s32.totalorder %s12, 7
      %s103 = scalar_select %p102, %s12, 7
      %s104 = smul.addr %s103, 4
      %s105 = smul.addr %s104, 2
      %s106 = scalar_lea.vmem %s1, %s105
      %p107 = scmp.lt.s32.totalorder %s12, 7
      %s108 = scalar_select %p107, %s12, 7
      %s109 = smul.addr %s108, 32
      %s110 = smul.addr %s109, 2
      %s111 = scalar_lea.vmem %s0, %s110
      %p112 = scmp.lt.s32.totalorder %s12, 7
      %s113 = scalar_select %p112, %s12, 7
      %s114 = smul.addr %s113, 4
      %s115 = smul.addr %s114, 2
      %s116 = scalar_lea.vmem %s1, %s115
      %v117 = vld [vmem:[%s111] sm:$0xf]
      %v118 = vld [vmem:[%s111 + $0x8] sm:$0xf]
      %v119 = vld [vmem:[%s111 + $0x10] sm:$0xf]
      %v120 = vld [vmem:[%s111 + $0x18] sm:$0xf]
      %s121 = scalar_lea.vmem %s111, 4
      %v122 = vld [vmem:[%s121] sm:$0xf]
      %v123 = vld [vmem:[%s121 + $0x8] sm:$0xf]
      %v124 = vld [vmem:[%s121 + $0x10] sm:$0xf]
      %v125 = vld [vmem:[%s121 + $0x18] sm:$0xf]
      %v126 = vmax.bf16 %v117, %v122
      %v127 = vmax.bf16 %v118, %v123
      %v128 = vmax.bf16 %v119, %v124
      %v129 = vmax.bf16 %v120, %v125
      %s130 = scalar_lea.vmem %s111, 32
      %v131 = vld [vmem:[%s130] sm:$0xf]
      %v132 = vld [vmem:[%s130 + $0x8] sm:$0xf]
      %v133 = vld [vmem:[%s130 + $0x10] sm:$0xf]
      %v134 = vld [vmem:[%s130 + $0x18] sm:$0xf]
      %v135 = vmax.bf16 %v126, %v131
      %v136 = vmax.bf16 %v127, %v132
      %v137 = vmax.bf16 %v128, %v133
      %v138 = vmax.bf16 %v129, %v134
      %s139 = scalar_lea.vmem %s111, 36
      %v140 = vld [vmem:[%s139] sm:$0xf]
      %v141 = vld [vmem:[%s139 + $0x8] sm:$0xf]
      %v142 = vld [vmem:[%s139 + $0x10] sm:$0xf]
      %v143 = vld [vmem:[%s139 + $0x18] sm:$0xf]
      %v144 = vmax.bf16 %v135, %v140
      %v145 = vmax.bf16 %v136, %v141
      %v146 = vmax.bf16 %v137, %v142
      %v147 = vmax.bf16 %v138, %v143
      %v152 = vrot.slane %v144, 2
      %v153 = vrot.slane %v145, 2
      %v154 = vrot.slane %v146, 2
      %v155 = vrot.slane %v147, 2
      %v160 = vmax.bf16 %v144, %v152
      %v161 = vmax.bf16 %v145, %v153
      %v162 = vmax.bf16 %v146, %v154
      %v163 = vmax.bf16 %v147, %v155
      %164 = vst [vmem:[%s116] sm:$0x3] %v160
      %165 = vst [vmem:[%s116 + $0x2] sm:$0x3] %v161
      %166 = vst [vmem:[%s116 + $0x4] sm:$0x3] %v162
      %167 = vst [vmem:[%s116 + $0x6] sm:$0x3] %v163
      %p168 = scmp.lt.s32.totalorder %s12, 7
      %s169 = scalar_select %p168, %s12, 7
      %s170 = smul.addr %s169, 4
      %s171 = smul.addr %s170, 2
      %s172 = scalar_lea.vmem %s1, %s171
      // Predicated region
      $region25: #{eeg3dcnn_forward.7} parent=23 // pred_check
        %p173 = pneg %p56
      $region26: #{eeg3dcnn_forward.7} parent=23 // pred_check_branch
        %175 = sbr.rel (%p173) target = $region28
      $region27: #{eeg3dcnn_forward.7} parent=23 // pred_region
        _
      $region28: #{eeg3dcnn_forward.7} parent=23 // pred_fallthru
        _
    $region24: #{eeg3dcnn_forward.7} parent=5 // pred_fallthru
      _
    %p176 = scmp.le.s32.totalorder 2, %s7
    // Predicated region
    $region29: #{eeg3dcnn_forward.7} parent=5 // pred_check
      %p177 = pneg %p176
    $region30: #{eeg3dcnn_forward.7} parent=5 // pred_check_branch
      %179 = sbr.rel (%p177) target = $region32
    $region31: #{eeg3dcnn_forward.7} parent=5 // pred_region
      %s180 = ssub.s32 %s7, 2
      // Predicated region
      $region33: #{eeg3dcnn_forward.7} parent=31 // pred_check
        %p181 = pneg %p62
      $region34: #{eeg3dcnn_forward.7} parent=31 // pred_check_branch
        %183 = sbr.rel (%p181) target = $region36
      $region35: #{eeg3dcnn_forward.7} parent=31 // pred_region
        %p184 = scmp.lt.s32.totalorder %s13, 7
        %s185 = scalar_select %p184, %s13, 7
        %s186 = smul.addr %s185, 4
        %s187 = smul.addr %s186, 2
        %s188 = scalar_lea.vmem %s1, %s187
      $region36: #{eeg3dcnn_forward.7} parent=31 // pred_fallthru
        _
    $region32: #{eeg3dcnn_forward.7} parent=5 // pred_fallthru
      _
  $region6: #{eeg3dcnn_forward.7} parent=0 // loop_footer
    %s11 = sadd.s32 1, %s7
  $region7: #{eeg3dcnn_forward.7} parent=0 // loop_footer_branch
    %6 = sbr.rel target = $region3
  $region8: #{eeg3dcnn_forward.7} parent=0 // loop_exit
    _

// kernel: eeg3dcnn_forward.9
$region0: #{eeg3dcnn_forward.9}
  #allocation0 [shape = 'u32[]', space=smem, size = 0x4, offset = 0x4, fixed_abs, tag = 'smem constant byte address 0x4 - core index']
  #allocation1 [shape = 'u32[144,128]{1,0:T(1,128)}', space=vmem, size = 0x12000, scoped, tag = 'internal scratch']
  %s0 = inlined_call_operand.vmem [shape: bf16[4,2,2,2,2,256], index: 0, kind: input, shape index: {}]
  %s1 = inlined_call_operand.vmem [shape: bf16[4,2,2,128], index: 1, kind: output, shape index: {}]
  %s2 = sld [smem:[#allocation0]]
  $region37: #{eeg3dcnn_forward.9} parent=0
    _
  %s4 = ssub.s32 1, %s2
  %s5 = scalar_select 0, %s4, %s2
  loop: start=0, step=1, limit=6
  $region2: #{eeg3dcnn_forward.9} parent=0 // loop_pre_header
    _
  $region3: #{eeg3dcnn_forward.9} parent=0 // loop_header
    %s7 = sphi 0, %s11
    %p8 = scmp.ge.s32.totalorder %s7, 6
    %s17 = sphi 0, %s19
    %s20 = sphi 0, %s17
    %s21 = sphi 0, %s20
    %s37 = sphi 0, %s21
    %s43 = sphi 0, %s45
    %s46 = sphi 0, %s43
    %s47 = sphi 0, %s46
    %s63 = sphi 0, %s47
  $region4: #{eeg3dcnn_forward.9} parent=0 // loop_header_branch
    %10 = sbr.rel (%p8) target = $region8
  $region5: #{eeg3dcnn_forward.9} parent=0 // loop_body
    %s12 = ssub.s32 %s7, 1
    %s13 = ssub.s32 %s7, 2
    %s14 = sadd.s32 %s7, 1
    %s15 = ssub.s32 %s7, %s14
    %p16 = scmp.eq.s32.totalorder %s15, 0
    %s18 = sadd.s32 %s17, 1
    %s19 = scalar_select %p16, %s17, %s18
    %p22 = pneg %p16
    %p23 = scmp.eq.s32.totalorder %s7, 3
    %p24 = por %p22, %p23
    %p25 = scmp.ne.s32.totalorder %s17, %s20
    %p26 = scmp.eq.s32.totalorder %s7, 0
    %p27 = por %p25, %p26
    %p28 = scmp.ne.s32.totalorder %s17, %s20
    %p29 = scmp.eq.s32.totalorder %s12, 3
    %p30 = por %p28, %p29
    %p31 = scmp.ne.s32.totalorder %s20, %s21
    %p32 = scmp.eq.s32.totalorder %s12, 0
    %p33 = por %p31, %p32
    %p34 = scmp.ne.s32.totalorder %s20, %s21
    %p35 = scmp.eq.s32.totalorder %s13, 3
    %p36 = por %p34, %p35
    %p38 = scmp.ne.s32.totalorder %s21, %s37
    %p39 = scmp.eq.s32.totalorder %s13, 0
    %p40 = por %p38, %p39
    %s41 = ssub.s32 %s7, %s14
    %p42 = scmp.eq.s32.totalorder %s41, 0
    %s44 = sadd.s32 %s43, 1
    %s45 = scalar_select %p42, %s43, %s44
    %p48 = pneg %p42
    %p49 = scmp.eq.s32.totalorder %s7, 3
    %p50 = por %p48, %p49
    %p51 = scmp.ne.s32.totalorder %s43, %s46
    %p52 = scmp.eq.s32.totalorder %s7, 0
    %p53 = por %p51, %p52
    %p54 = scmp.ne.s32.totalorder %s43, %s46
    %p55 = scmp.eq.s32.totalorder %s12, 3
    %p56 = por %p54, %p55
    %p57 = scmp.ne.s32.totalorder %s46, %s47
    %p58 = scmp.eq.s32.totalorder %s12, 0
    %p59 = por %p57, %p58
    %p60 = scmp.ne.s32.totalorder %s46, %s47
    %p61 = scmp.eq.s32.totalorder %s13, 3
    %p62 = por %p60, %p61
    %p64 = scmp.ne.s32.totalorder %s47, %s63
    %p65 = scmp.eq.s32.totalorder %s13, 0
    %p66 = por %p64, %p65
    %p67 = scmp.le.s32.totalorder 1, %s7
    %p68 = scmp.lt.s32.totalorder %s7, 5
    %p69 = pnand %p67, %p68
    %p70 = pneg %p69
    // Predicated region
    $region9: #{eeg3dcnn_forward.9} parent=5 // pred_check
      _
    $region10: #{eeg3dcnn_forward.9} parent=5 // pred_check_branch
      %72 = sbr.rel (%p69) target = $region12
    $region11: #{eeg3dcnn_forward.9} parent=5 // pred_region
      %s73 = ssub.s32 %s7, 1
    $region12: #{eeg3dcnn_forward.9} parent=5 // pred_fallthru
      _
    %p74 = scmp.lt.s32.totalorder %s7, 4
    // Predicated region
    $region13: #{eeg3dcnn_forward.9} parent=5 // pred_check
      %p75 = pneg %p74
    $region14: #{eeg3dcnn_forward.9} parent=5 // pred_check_branch
      %77 = sbr.rel (%p75) target = $region16
    $region15: #{eeg3dcnn_forward.9} parent=5 // pred_region
      // Predicated region
      $region17: #{eeg3dcnn_forward.9} parent=15 // pred_check
        %p78 = pneg %p27
      $region18: #{eeg3dcnn_forward.9} parent=15 // pred_check_branch
        %80 = sbr.rel (%p78) target = $region20
      $region19: #{eeg3dcnn_forward.9} parent=15 // pred_region
        %p81 = scmp.lt.s32.totalorder %s7, 3
        %s82 = scalar_select %p81, %s7, 3
        %s83 = smul.addr %s82, 16
        %s84 = scalar_lea.vmem %s0, %s83
      $region20: #{eeg3dcnn_forward.9} parent=15 // pred_fallthru
        _
    $region16: #{eeg3dcnn_forward.9} parent=5 // pred_fallthru
      _
    %p85 = scmp.le.s32.totalorder 1, %s7
    %p86 = scmp.lt.s32.totalorder %s7, 5
    %p87 = pnand %p85, %p86
    %p88 = pneg %p87
    // Predicated region
    $region21: #{eeg3dcnn_forward.9} parent=5 // pred_check
      _
    $region22: #{eeg3dcnn_forward.9} parent=5 // pred_check_branch
      %90 = sbr.rel (%p87) target = $region24
    $region23: #{eeg3dcnn_forward.9} parent=5 // pred_region
      %s91 = ssub.s32 %s7, 1
      %p92 = scmp.lt.s32.totalorder %s12, 3
      %s93 = scalar_select %p92, %s12, 3
      %s94 = smul.addr %s93, 16
      %s95 = scalar_lea.vmem %s0, %s94
      %p96 = pneg %p33
      %p97 = pneg %p30
      %p98 = pneg %p59
      %p99 = pneg %p56
      %p100 = scmp.lt.s32.totalorder %s12, 3
      %s101 = scalar_select %p100, %s12, 3
      %s102 = smul.addr %s101, 2
      %s103 = scalar_lea.vmem %s1, %s102
      %p104 = scmp.lt.s32.totalorder %s12, 3
      %s105 = scalar_select %p104, %s12, 3
      %s106 = smul.addr %s105, 16
      %s107 = scalar_lea.vmem %s0, %s106
      %p108 = scmp.lt.s32.totalorder %s12, 3
      %s109 = scalar_select %p108, %s12, 3
      %s110 = smul.addr %s109, 2
      %s111 = scalar_lea.vmem %s1, %s110
      %v112 = vld [vmem:[%s107] sm:$0x3]
      %v113 = vld [vmem:[%s107 + $0x4] sm:$0x3]
      %s114 = scalar_lea.vmem %s107, 2
      %v115 = vld [vmem:[%s114] sm:$0x3]
      %v116 = vld [vmem:[%s114 + $0x4] sm:$0x3]
      %v117 = vmax.bf16 %v112, %v115
      %v118 = vmax.bf16 %v113, %v116
      %s119 = scalar_lea.vmem %s107, 8
      %v120 = vld [vmem:[%s119] sm:$0x3]
      %v121 = vld [vmem:[%s119 + $0x4] sm:$0x3]
      %v122 = vmax.bf16 %v117, %v120
      %v123 = vmax.bf16 %v118, %v121
      %s124 = scalar_lea.vmem %s107, 10
      %v125 = vld [vmem:[%s124] sm:$0x3]
      %v126 = vld [vmem:[%s124 + $0x4] sm:$0x3]
      %v127 = vmax.bf16 %v122, %v125
      %v128 = vmax.bf16 %v123, %v126
      %v131 = vrot.slane %v127, 1
      %v132 = vrot.slane %v128, 1
      %v135 = vmax.bf16 %v127, %v131
      %v136 = vmax.bf16 %v128, %v132
      %137 = vst [vmem:[%s111] sm:$0x1] %v135
      %138 = vst [vmem:[%s111 + $0x1] sm:$0x1] %v136
      %p139 = scmp.lt.s32.totalorder %s12, 3
      %s140 = scalar_select %p139, %s12, 3
      %s141 = smul.addr %s140, 2
      %s142 = scalar_lea.vmem %s1, %s141
      // Predicated region
      $region25: #{eeg3dcnn_forward.9} parent=23 // pred_check
        %p143 = pneg %p56
      $region26: #{eeg3dcnn_forward.9} parent=23 // pred_check_branch
        %145 = sbr.rel (%p143) target = $region28
      $region27: #{eeg3dcnn_forward.9} parent=23 // pred_region
        _
      $region28: #{eeg3dcnn_forward.9} parent=23 // pred_fallthru
        _
    $region24: #{eeg3dcnn_forward.9} parent=5 // pred_fallthru
      _
    %p146 = scmp.le.s32.totalorder 2, %s7
    // Predicated region
    $region29: #{eeg3dcnn_forward.9} parent=5 // pred_check
      %p147 = pneg %p146
    $region30: #{eeg3dcnn_forward.9} parent=5 // pred_check_branch
      %149 = sbr.rel (%p147) target = $region32
    $region31: #{eeg3dcnn_forward.9} parent=5 // pred_region
      %s150 = ssub.s32 %s7, 2
      // Predicated region
      $region33: #{eeg3dcnn_forward.9} parent=31 // pred_check
        %p151 = pneg %p62
      $region34: #{eeg3dcnn_forward.9} parent=31 // pred_check_branch
        %153 = sbr.rel (%p151) target = $region36
      $region35: #{eeg3dcnn_forward.9} parent=31 // pred_region
        %p154 = scmp.lt.s32.totalorder %s13, 3
        %s155 = scalar_select %p154, %s13, 3
        %s156 = smul.addr %s155, 2
        %s157 = scalar_lea.vmem %s1, %s156
      $region36: #{eeg3dcnn_forward.9} parent=31 // pred_fallthru
        _
    $region32: #{eeg3dcnn_forward.9} parent=5 // pred_fallthru
      _
  $region6: #{eeg3dcnn_forward.9} parent=0 // loop_footer
    %s11 = sadd.s32 1, %s7
  $region7: #{eeg3dcnn_forward.9} parent=0 // loop_footer_branch
    %6 = sbr.rel target = $region3
  $region8: #{eeg3dcnn_forward.9} parent=0 // loop_exit
    _

// kernel: eeg3dcnn_forward.6
$region0: #{eeg3dcnn_forward.6}
  #allocation0 [shape = 'u32[]', space=smem, size = 0x4, offset = 0x4, fixed_abs, tag = 'smem constant byte address 0x4 - core index']
  #allocation1 [shape = 'u32[144,128]{1,0:T(1,128)}', space=vmem, size = 0x12000, scoped, tag = 'internal scratch']
  %s0 = inlined_call_operand.vmem [shape: bf16[2,10,10,10,8], index: 0, kind: input, shape index: {}, may-alias: {0,1,2}]
  %s1 = inlined_call_operand.vmem [shape: bf16[2,10,10,10,8], index: 1, kind: input, shape index: {}, may-alias: {0,1,2}]
  %s2 = inlined_call_operand.vmem [shape: bf16[2,10,10,10,8], index: 2, kind: input, shape index: {}, may-alias: {0,1,2}]
  %s3 = inlined_call_operand.vmem [shape: bf16[3,3,3,8,128], index: 3, kind: input, shape index: {}]
  %s4 = inlined_call_operand.vmem [shape: f32[1,128], index: 4, kind: input, shape index: {}]
  %s5 = inlined_call_operand.vmem [shape: bf16[2,8,8,8,128], index: 5, kind: output, shape index: {}]
  %s6 = sld [smem:[#allocation0]]
  $region53: #{eeg3dcnn_forward.6} parent=0
    _
  %s8 = ssub.s32 1, %s6
  %s9 = scalar_select 0, %s8, %s6
  loop: start=0, step=1, limit=18
  $region2: #{eeg3dcnn_forward.6} parent=0 // loop_pre_header
    _
  $region3: #{eeg3dcnn_forward.6} parent=0 // loop_header
    %s11 = sphi 0, %s15
    %p12 = scmp.ge.s32.totalorder %s11, 18
    %s18 = sphi 0, %s30
    %s19 = sphi 0, %s26
    %s20 = sphi 0, %s18
    %s21 = sphi 0, %s19
    %s22 = sphi 0, %s20
    %s23 = sphi 0, %s21
    %s35 = sphi 0, %s37
    %s38 = sphi 0, %s35
    %s39 = sphi 0, %s38
    %s55 = sphi 0, %s39
    %s65 = sphi 0, %s67
    %s68 = sphi 0, %s65
    %s69 = sphi 0, %s68
    %s85 = sphi 0, %s69
    %s95 = sphi 0, %s97
    %s98 = sphi 0, %s95
    %s99 = sphi 0, %s98
    %s115 = sphi 0, %s99
    %s119 = sphi 0, %s119
    %s121 = sphi 0, %s119
    %s122 = sphi 0, %s121
    %s136 = sphi 0, %s122
    %s140 = sphi 0, %s140
    %s142 = sphi 0, %s140
    %s143 = sphi 0, %s142
    %s157 = sphi 0, %s143
    %s165 = sphi 0, %s167
    %s168 = sphi 0, %s165
    %s169 = sphi 0, %s168
    %s185 = sphi 0, %s169
  $region4: #{eeg3dcnn_forward.6} parent=0 // loop_header_branch
    %14 = sbr.rel (%p12) target = $region8
  $region5: #{eeg3dcnn_forward.6} parent=0 // loop_body
    %s16 = ssub.s32 %s11, 1
    %s17 = ssub.s32 %s11, 2
    %s24 = sadd.s32 1, %s19
    %p25 = scmp.ge.s32.totalorder %s24, 8
    %s26 = scalar_select %p25, 0, %s24
    %s27 = sadd.s32 1, %s18
    %s28 = scalar_select %p25, %s27, %s18
    %p29 = scmp.ge.s32.totalorder %s28, 2
    %s30 = scalar_select %p29, 0, %s28
    %s31 = ssub.s32 %s18, %s30
    %s32 = ssub.s32 %s19, %s26
    %s33 = sor.u32 %s31, %s32
    %p34 = scmp.eq.s32.totalorder %s33, 0
    %s36 = sadd.s32 %s35, 1
    %s37 = scalar_select %p34, %s35, %s36
    %p40 = pneg %p34
    %p41 = scmp.eq.s32.totalorder %s11, 15
    %p42 = por %p40, %p41
    %p43 = scmp.ne.s32.totalorder %s35, %s38
    %p44 = scmp.eq.s32.totalorder %s11, 0
    %p45 = por %p43, %p44
    %p46 = scmp.ne.s32.totalorder %s35, %s38
    %p47 = scmp.eq.s32.totalorder %s16, 15
    %p48 = por %p46, %p47
    %p49 = scmp.ne.s32.totalorder %s38, %s39
    %p50 = scmp.eq.s32.totalorder %s16, 0
    %p51 = por %p49, %p50
    %p52 = scmp.ne.s32.totalorder %s38, %s39
    %p53 = scmp.eq.s32.totalorder %s17, 15
    %p54 = por %p52, %p53
    %p56 = scmp.ne.s32.totalorder %s39, %s55
    %p57 = scmp.eq.s32.totalorder %s17, 0
    %p58 = por %p56, %p57
    %s59 = sadd.s32 %s19, 1
    %s60 = sadd.s32 %s26, 1
    %s61 = ssub.s32 %s18, %s30
    %s62 = ssub.s32 %s59, %s60
    %s63 = sor.u32 %s61, %s62
    %p64 = scmp.eq.s32.totalorder %s63, 0
    %s66 = sadd.s32 %s65, 1
    %s67 = scalar_select %p64, %s65, %s66
    %p70 = pneg %p64
    %p71 = scmp.eq.s32.totalorder %s11, 15
    %p72 = por %p70, %p71
    %p73 = scmp.ne.s32.totalorder %s65, %s68
    %p74 = scmp.eq.s32.totalorder %s11, 0
    %p75 = por %p73, %p74
    %p76 = scmp.ne.s32.totalorder %s65, %s68
    %p77 = scmp.eq.s32.totalorder %s16, 15
    %p78 = por %p76, %p77
    %p79 = scmp.ne.s32.totalorder %s68, %s69
    %p80 = scmp.eq.s32.totalorder %s16, 0
    %p81 = por %p79, %p80
    %p82 = scmp.ne.s32.totalorder %s68, %s69
    %p83 = scmp.eq.s32.totalorder %s17, 15
    %p84 = por %p82, %p83
    %p86 = scmp.ne.s32.totalorder %s69, %s85
    %p87 = scmp.eq.s32.totalorder %s17, 0
    %p88 = por %p86, %p87
    %s89 = sadd.s32 %s19, 2
    %s90 = sadd.s32 %s26, 2
    %s91 = ssub.s32 %s18, %s30
    %s92 = ssub.s32 %s89, %s90
    %s93 = sor.u32 %s91, %s92
    %p94 = scmp.eq.s32.totalorder %s93, 0
    %s96 = sadd.s32 %s95, 1
    %s97 = scalar_select %p94, %s95, %s96
    %p100 = pneg %p94
    %p101 = scmp.eq.s32.totalorder %s11, 15
    %p102 = por %p100, %p101
    %p103 = scmp.ne.s32.totalorder %s95, %s98
    %p104 = scmp.eq.s32.totalorder %s11, 0
    %p105 = por %p103, %p104
    %p106 = scmp.ne.s32.totalorder %s95, %s98
    %p107 = scmp.eq.s32.totalorder %s16, 15
    %p108 = por %p106, %p107
    %p109 = scmp.ne.s32.totalorder %s98, %s99
    %p110 = scmp.eq.s32.totalorder %s16, 0
    %p111 = por %p109, %p110
    %p112 = scmp.ne.s32.totalorder %s98, %s99
    %p113 = scmp.eq.s32.totalorder %s17, 15
    %p114 = por %p112, %p113
    %p116 = scmp.ne.s32.totalorder %s99, %s115
    %p117 = scmp.eq.s32.totalorder %s17, 0
    %p118 = por %p116, %p117
    %s120 = sadd.s32 %s119, 1
    %p123 = scmp.eq.s32.totalorder %s11, 15
    %p124 = scmp.ne.s32.totalorder %s119, %s121
    %p125 = scmp.eq.s32.totalorder %s11, 0
    %p126 = por %p124, %p125
    %p127 = scmp.ne.s32.totalorder %s119, %s121
    %p128 = scmp.eq.s32.totalorder %s16, 15
    %p129 = por %p127, %p128
    %p130 = scmp.ne.s32.totalorder %s121, %s122
    %p131 = scmp.eq.s32.totalorder %s16, 0
    %p132 = por %p130, %p131
    %p133 = scmp.ne.s32.totalorder %s121, %s122
    %p134 = scmp.eq.s32.totalorder %s17, 15
    %p135 = por %p133, %p134
    %p137 = scmp.ne.s32.totalorder %s122, %s136
    %p138 = scmp.eq.s32.totalorder %s17, 0
    %p139 = por %p137, %p138
    %s141 = sadd.s32 %s140, 1
    %p144 = scmp.eq.s32.totalorder %s11, 15
    %p145 = scmp.ne.s32.totalorder %s140, %s142
    %p146 = scmp.eq.s32.totalorder %s11, 0
    %p147 = por %p145, %p146
    %p148 = scmp.ne.s32.totalorder %s140, %s142
    %p149 = scmp.eq.s32.totalorder %s16, 15
    %p150 = por %p148, %p149
    %p151 = scmp.ne.s32.totalorder %s142, %s143
    %p152 = scmp.eq.s32.totalorder %s16, 0
    %p153 = por %p151, %p152
    %p154 = scmp.ne.s32.totalorder %s142, %s143
    %p155 = scmp.eq.s32.totalorder %s17, 15
    %p156 = por %p154, %p155
    %p158 = scmp.ne.s32.totalorder %s143, %s157
    %p159 = scmp.eq.s32.totalorder %s17, 0
    %p160 = por %p158, %p159
    %s161 = ssub.s32 %s18, %s30
    %s162 = ssub.s32 %s19, %s26
    %s163 = sor.u32 %s161, %s162
    %p164 = scmp.eq.s32.totalorder %s163, 0
    %s166 = sadd.s32 %s165, 1
    %s167 = scalar_select %p164, %s165, %s166
    %p170 = pneg %p164
    %p171 = scmp.eq.s32.totalorder %s11, 15
    %p172 = por %p170, %p171
    %p173 = scmp.ne.s32.totalorder %s165, %s168
    %p174 = scmp.eq.s32.totalorder %s11, 0
    %p175 = por %p173, %p174
    %p176 = scmp.ne.s32.totalorder %s165, %s168
    %p177 = scmp.eq.s32.totalorder %s16, 15
    %p178 = por %p176, %p177
    %p179 = scmp.ne.s32.totalorder %s168, %s169
    %p180 = scmp.eq.s32.totalorder %s16, 0
    %p181 = por %p179, %p180
    %p182 = scmp.ne.s32.totalorder %s168, %s169
    %p183 = scmp.eq.s32.totalorder %s17, 15
    %p184 = por %p182, %p183
    %p186 = scmp.ne.s32.totalorder %s169, %s185
    %p187 = scmp.eq.s32.totalorder %s17, 0
    %p188 = por %p186, %p187
    %p189 = scmp.le.s32.totalorder 1, %s11
    %p190 = scmp.lt.s32.totalorder %s11, 17
    %p191 = pnand %p189, %p190
    %p192 = pneg %p191
    // Predicated region
    $region9: #{eeg3dcnn_forward.6} parent=5 // pred_check
      _
    $region10: #{eeg3dcnn_forward.6} parent=5 // pred_check_branch
      %194 = sbr.rel (%p191) target = $region12
    $region11: #{eeg3dcnn_forward.6} parent=5 // pred_region
      %s195 = ssub.s32 %s11, 1
      // Predicated region
      $region13: #{eeg3dcnn_forward.6} parent=11 // pred_check
        %p196 = pneg %p132
      $region14: #{eeg3dcnn_forward.6} parent=11 // pred_check_branch
        %198 = sbr.rel (%p196) target = $region16
      $region15: #{eeg3dcnn_forward.6} parent=11 // pred_region
        _
      $region16: #{eeg3dcnn_forward.6} parent=11 // pred_fallthru
        _
      // Predicated region
      $region17: #{eeg3dcnn_forward.6} parent=11 // pred_check
        %p199 = pneg %p153
      $region18: #{eeg3dcnn_forward.6} parent=11 // pred_check_branch
        %201 = sbr.rel (%p199) target = $region20
      $region19: #{eeg3dcnn_forward.6} parent=11 // pred_region
        _
      $region20: #{eeg3dcnn_forward.6} parent=11 // pred_fallthru
        _
    $region12: #{eeg3dcnn_forward.6} parent=5 // pred_fallthru
      _
    %p202 = scmp.lt.s32.totalorder %s11, 16
    // Predicated region
    $region21: #{eeg3dcnn_forward.6} parent=5 // pred_check
      %p203 = pneg %p202
    $region22: #{eeg3dcnn_forward.6} parent=5 // pred_check_branch
      %205 = sbr.rel (%p203) target = $region24
    $region23: #{eeg3dcnn_forward.6} parent=5 // pred_region
      // Predicated region
      $region25: #{eeg3dcnn_forward.6} parent=23 // pred_check
        %p206 = pneg %p45
      $region26: #{eeg3dcnn_forward.6} parent=23 // pred_check_branch
        %208 = sbr.rel (%p206) target = $region28
      $region27: #{eeg3dcnn_forward.6} parent=23 // pred_region
        %p209 = scmp.lt.s32.totalorder %s18, 1
        %s210 = scalar_select %p209, %s18, 1
        %p211 = scmp.lt.s32.totalorder %s19, 9
        %s212 = scalar_select %p211, %s19, 9
        %s213 = smul.addr %s212, 20
        %s214 = smul.addr %s210, 200
        %s215 = sadd.s32 %s213, %s214
        %s216 = smul.addr %s215, 4
        %s217 = scalar_lea.vmem %s0, %s216
      $region28: #{eeg3dcnn_forward.6} parent=23 // pred_fallthru
        _
      // Predicated region
      $region29: #{eeg3dcnn_forward.6} parent=23 // pred_check
        %p218 = pneg %p75
      $region30: #{eeg3dcnn_forward.6} parent=23 // pred_check_branch
        %220 = sbr.rel (%p218) target = $region32
      $region31: #{eeg3dcnn_forward.6} parent=23 // pred_region
        %s221 = sadd.s32 %s19, 1
        %p222 = scmp.lt.s32.totalorder %s18, 1
        %s223 = scalar_select %p222, %s18, 1
        %p224 = scmp.lt.s32.totalorder %s221, 9
        %s225 = scalar_select %p224, %s221, 9
        %s226 = smul.addr %s225, 20
        %s227 = smul.addr %s223, 200
        %s228 = sadd.s32 %s226, %s227
        %s229 = smul.addr %s228, 4
        %s230 = scalar_lea.vmem %s1, %s229
        %s231 = sadd.s32 %s19, 1
      $region32: #{eeg3dcnn_forward.6} parent=23 // pred_fallthru
        _
      // Predicated region
      $region33: #{eeg3dcnn_forward.6} parent=23 // pred_check
        %p232 = pneg %p105
      $region34: #{eeg3dcnn_forward.6} parent=23 // pred_check_branch
        %234 = sbr.rel (%p232) target = $region36
      $region35: #{eeg3dcnn_forward.6} parent=23 // pred_region
        %s235 = sadd.s32 %s19, 2
        %p236 = scmp.lt.s32.totalorder %s18, 1
        %s237 = scalar_select %p236, %s18, 1
        %p238 = scmp.lt.s32.totalorder %s235, 9
        %s239 = scalar_select %p238, %s235, 9
        %s240 = smul.addr %s239, 20
        %s241 = smul.addr %s237, 200
        %s242 = sadd.s32 %s240, %s241
        %s243 = smul.addr %s242, 4
        %s244 = scalar_lea.vmem %s2, %s243
        %s245 = sadd.s32 %s19, 2
      $region36: #{eeg3dcnn_forward.6} parent=23 // pred_fallthru
        _
    $region24: #{eeg3dcnn_forward.6} parent=5 // pred_fallthru
      _
    %p246 = scmp.le.s32.totalorder 1, %s11
    %p247 = scmp.lt.s32.totalorder %s11, 17
    %p248 = pnand %p246, %p247
    %p249 = pneg %p248
    // Predicated region
    $region37: #{eeg3dcnn_forward.6} parent=5 // pred_check
      _
    $region38: #{eeg3dcnn_forward.6} parent=5 // pred_check_branch
      %251 = sbr.rel (%p248) target = $region40
    $region39: #{eeg3dcnn_forward.6} parent=5 // pred_region
      %s252 = ssub.s32 %s11, 1
      %p253 = scmp.lt.s32.totalorder %s20, 1
      %s254 = scalar_select %p253, %s20, 1
      %p255 = scmp.lt.s32.totalorder %s21, 9
      %s256 = scalar_select %p255, %s21, 9
      %s257 = smul.addr %s256, 20
      %s258 = smul.addr %s254, 200
      %s259 = sadd.s32 %s257, %s258
      %s260 = smul.addr %s259, 4
      %s261 = scalar_lea.vmem %s0, %s260
      %p262 = pneg %p51
      %p263 = pneg %p48
      %s264 = sadd.s32 %s21, 1
      %p265 = scmp.lt.s32.totalorder %s20, 1
      %s266 = scalar_select %p265, %s20, 1
      %p267 = scmp.lt.s32.totalorder %s264, 9
      %s268 = scalar_select %p267, %s264, 9
      %s269 = smul.addr %s268, 20
      %s270 = smul.addr %s266, 200
      %s271 = sadd.s32 %s269, %s270
      %s272 = smul.addr %s271, 4
      %s273 = scalar_lea.vmem %s1, %s272
      %p274 = pneg %p81
      %p275 = pneg %p78
      %s276 = sadd.s32 %s21, 2
      %p277 = scmp.lt.s32.totalorder %s20, 1
      %s278 = scalar_select %p277, %s20, 1
      %p279 = scmp.lt.s32.totalorder %s276, 9
      %s280 = scalar_select %p279, %s276, 9
      %s281 = smul.addr %s280, 20
      %s282 = smul.addr %s278, 200
      %s283 = sadd.s32 %s281, %s282
      %s284 = smul.addr %s283, 4
      %s285 = scalar_lea.vmem %s2, %s284
      %p286 = pneg %p111
      %p287 = pneg %p108
      %p288 = pneg %p132
      %p289 = pneg %p129
      %p290 = pneg %p153
      %p291 = pneg %p150
      %p292 = pneg %p181
      %p293 = pneg %p178
      %p294 = scmp.lt.s32.totalorder %s20, 1
      %s295 = scalar_select %p294, %s20, 1
      %p296 = scmp.lt.s32.totalorder %s21, 7
      %s297 = scalar_select %p296, %s21, 7
      %s298 = smul.addr %s297, 8
      %s299 = smul.addr %s295, 64
      %s300 = sadd.s32 %s298, %s299
      %s301 = smul.addr %s300, 4
      %s302 = scalar_lea.vmem %s5, %s301
      %p303 = scmp.lt.s32.totalorder %s20, 1
      %s304 = scalar_select %p303, %s20, 1
      %p305 = scmp.lt.s32.totalorder %s21, 9
      %s306 = scalar_select %p305, %s21, 9
      %s307 = smul.addr %s306, 20
      %s308 = smul.addr %s304, 200
      %s309 = sadd.s32 %s307, %s308
      %s310 = smul.addr %s309, 4
      %s311 = scalar_lea.vmem %s0, %s310
      %s312 = sadd.s32 %s21, 1
      %p313 = scmp.lt.s32.totalorder %s20, 1
      %s314 = scalar_select %p313, %s20, 1
      %p315 = scmp.lt.s32.totalorder %s312, 9
      %s316 = scalar_select %p315, %s312, 9
      %s317 = smul.addr %s316, 20
      %s318 = smul.addr %s314, 200
      %s319 = sadd.s32 %s317, %s318
      %s320 = smul.addr %s319, 4
      %s321 = scalar_lea.vmem %s1, %s320
      %s322 = sadd.s32 %s21, 1
      %s323 = sadd.s32 %s21, 2
      %p324 = scmp.lt.s32.totalorder %s20, 1
      %s325 = scalar_select %p324, %s20, 1
      %p326 = scmp.lt.s32.totalorder %s323, 9
      %s327 = scalar_select %p326, %s323, 9
      %s328 = smul.addr %s327, 20
      %s329 = smul.addr %s325, 200
      %s330 = sadd.s32 %s328, %s329
      %s331 = smul.addr %s330, 4
      %s332 = scalar_lea.vmem %s2, %s331
      %s333 = sadd.s32 %s21, 2
      %p334 = scmp.lt.s32.totalorder %s20, 1
      %s335 = scalar_select %p334, %s20, 1
      %p336 = scmp.lt.s32.totalorder %s21, 7
      %s337 = scalar_select %p336, %s21, 7
      %s338 = smul.addr %s337, 8
      %s339 = smul.addr %s335, 64
      %s340 = sadd.s32 %s338, %s339
      %s341 = smul.addr %s340, 4
      %s342 = scalar_lea.vmem %s5, %s341
      %v344 = vld [vmem:[%s311] sm:$0xf]
      %v345 = vld [vmem:[%s311 + $0x8] sm:$0xf]
      %v346 = vld [vmem:[%s311 + $0x10] sm:$0xf]
      %v347 = vld [vmem:[%s311 + $0x18] sm:$0xf]
      %v348 = vld [vmem:[%s311 + $0x20] sm:$0xf]
      %v349 = vld [vmem:[%s311 + $0x28] sm:$0xf]
      %v350 = vld [vmem:[%s311 + $0x30] sm:$0xf]
      %v351 = vld [vmem:[%s311 + $0x38] sm:$0xf]
      %v352 = vld [vmem:[%s3] sm:$0xf]
      %v353 = vld [vmem:[%s311 + $0x4] sm:$0x1]
      %v354 = vld [vmem:[%s311 + $0xc] sm:$0x1]
      %v355 = vld [vmem:[%s311 + $0x14] sm:$0x1]
      %v356 = vld [vmem:[%s311 + $0x1c] sm:$0x1]
      %v357 = vld [vmem:[%s311 + $0x24] sm:$0x1]
      %v358 = vld [vmem:[%s311 + $0x2c] sm:$0x1]
      %v359 = vld [vmem:[%s311 + $0x34] sm:$0x1]
      %v360 = vld [vmem:[%s311 + $0x3c] sm:$0x1]
      %vm361 = vsmask.f32 3328
      %vm362 = vsmask.f32 7440
      %vm363 = vmor %vm361, %vm362
      %v365 = vshrl.u32 %v344, 16
      %v367 = vrot.slane %v365, 4
      %v368 = vshll.u32 %v344, 16
      %v370 = vrot.slane %v368, 5
      %v371 = vor.u32 %v367, %v370
      %v372 = vrot.slane %v371, 4
      %v374 = vshll.u32 %v353, 16
      %v376 = vrot.slane %v374, 5
      %v377 = vsel %vm363, %v372, %v376
      %v379 = vshrl.u32 %v345, 16
      %v381 = vrot.slane %v379, 4
      %v382 = vshll.u32 %v345, 16
      %v384 = vrot.slane %v382, 5
      %v385 = vor.u32 %v381, %v384
      %v386 = vrot.slane %v385, 4
      %v388 = vshll.u32 %v354, 16
      %v390 = vrot.slane %v388, 5
      %v391 = vsel %vm363, %v386, %v390
      %v393 = vshrl.u32 %v346, 16
      %v395 = vrot.slane %v393, 4
      %v396 = vshll.u32 %v346, 16
      %v398 = vrot.slane %v396, 5
      %v399 = vor.u32 %v395, %v398
      %v400 = vrot.slane %v399, 4
      %v402 = vshll.u32 %v355, 16
      %v404 = vrot.slane %v402, 5
      %v405 = vsel %vm363, %v400, %v404
      %v407 = vshrl.u32 %v347, 16
      %v409 = vrot.slane %v407, 4
      %v410 = vshll.u32 %v347, 16
      %v412 = vrot.slane %v410, 5
      %v413 = vor.u32 %v409, %v412
      %v414 = vrot.slane %v413, 4
      %v416 = vshll.u32 %v356, 16
      %v418 = vrot.slane %v416, 5
      %v419 = vsel %vm363, %v414, %v418
      %v421 = vshrl.u32 %v348, 16
      %v423 = vrot.slane %v421, 4
      %v424 = vshll.u32 %v348, 16
      %v426 = vrot.slane %v424, 5
      %v427 = vor.u32 %v423, %v426
      %v428 = vrot.slane %v427, 4
      %v430 = vshll.u32 %v357, 16
      %v432 = vrot.slane %v430, 5
      %v433 = vsel %vm363, %v428, %v432
      %v435 = vshrl.u32 %v349, 16
      %v437 = vrot.slane %v435, 4
      %v438 = vshll.u32 %v349, 16
      %v440 = vrot.slane %v438, 5
      %v441 = vor.u32 %v437, %v440
      %v442 = vrot.slane %v441, 4
      %v444 = vshll.u32 %v358, 16
      %v446 = vrot.slane %v444, 5
      %v447 = vsel %vm363, %v442, %v446
      %v449 = vshrl.u32 %v350, 16
      %v451 = vrot.slane %v449, 4
      %v452 = vshll.u32 %v350, 16
      %v454 = vrot.slane %v452, 5
      %v455 = vor.u32 %v451, %v454
      %v456 = vrot.slane %v455, 4
      %v458 = vshll.u32 %v359, 16
      %v460 = vrot.slane %v458, 5
      %v461 = vsel %vm363, %v456, %v460
      %v463 = vshrl.u32 %v351, 16
      %v465 = vrot.slane %v463, 4
      %v466 = vshll.u32 %v351, 16
      %v468 = vrot.slane %v466, 5
      %v469 = vor.u32 %v465, %v468
      %v470 = vrot.slane %v469, 4
      %v472 = vshll.u32 %v360, 16
      %v474 = vrot.slane %v472, 5
      %v475 = vsel %vm363, %v470, %v474
      %s476 = scalar_lea.vmem %s3, 4
      %v477 = vld [vmem:[%s476] sm:$0xf]
      %v478 = vunpack.c.l.b16 %v377
      %v479 = vunpack.c.l.b16 %v391
      %v480 = vunpack.c.l.b16 %v405
      %v481 = vunpack.c.l.b16 %v419
      %v482 = vunpack.c.l.b16 %v433
      %v483 = vunpack.c.l.b16 %v447
      %v484 = vunpack.c.l.b16 %v461
      %v485 = vunpack.c.l.b16 %v475
      %v486 = vpack.c.b16 %v479, %v478
      %v487 = vpack.c.b16 %v481, %v480
      %v488 = vpack.c.b16 %v483, %v482
      %v489 = vpack.c.b16 %v485, %v484
      %vm490 = vcmask 64512
      %v492 = vsel %vm490, %v486, 0
      %v495 = vsel %vm490, %v487, 0
      %v498 = vsel %vm490, %v488, 0
      %v501 = vsel %vm490, %v489, 0
      %vm503 = vcmask 1043456
      %v505 = vsel %vm503, %v477, 0
      %507 = vmatprep.subr.bf16.mxu0 0
      %508 = vmatpush1.bf16.msra.mxu0 0
      %509 = vmatprep.subr.bf16.mxu0 0
      %510 = vmatpush1.bf16.msra.mxu0 0
      %511 = vmatprep.subr.bf16.mxu0 0
      %512 = vmatpush1.bf16.msra.mxu0 0
      %513 = vmatprep.subr.bf16.mxu0 0
      %514 = vmatpush1.bf16.msra.mxu0 0
      %515 = vmatprep.subr.bf16.mxu0 0
      %516 = vmatpush1.bf16.msra.mxu0 0
      %517 = vmatprep.subr.bf16.mxu0 0
      %518 = vmatpush1.bf16.msra.mxu0 0
      %519 = vmatprep.subr.bf16.mxu0 0
      %520 = vmatpush1.bf16.msra.mxu0 0
      %521 = vmatprep.subr.bf16.mxu0 0
      %522 = vmatpush1.bf16.msra.mxu0 %v505
      %523 = vmatprep.subr.bf16.mxu0 0
      %524 = vmatpush2.bf16.msra.mxu0 0
      %525 = vmatprep.subr.bf16.mxu0 0
      %526 = vmatpush2.bf16.msra.mxu0 0
      %527 = vmatprep.subr.bf16.mxu0 0
      %528 = vmatpush2.bf16.msra.mxu0 0
      %529 = vmatprep.subr.bf16.mxu0 0
      %530 = vmatpush2.bf16.msra.mxu0 0
      %531 = vmatprep.subr.bf16.mxu0 0
      %532 = vmatpush2.bf16.msra.mxu0 0
      %533 = vmatprep.subr.bf16.mxu0 0
      %534 = vmatpush2.bf16.msra.mxu0 0
      %535 = vmatprep.subr.bf16.mxu0 0
      %536 = vmatpush2.bf16.msra.mxu0 0
      %537 = vmatprep.subr.bf16.mxu0 0
      %538 = vmatpush2.bf16.msra.mxu0 0
      %539 = vmatprep.mubr.bf16.mxu0 0
      %540 = vmatmul.mubr.bf16.gmra.mxu0 %v492
      %v541 = vpop.f32.mrf.mxu0
      %v542 = vadd.f32 0.0, %v541
      %v543 = vpop.f32.mrf.mxu0
      %v544 = vpop.f32.mrf.mxu0
      %v545 = vadd.f32 0.0, %v544
      %v546 = vpop.f32.mrf.mxu0
      %547 = vmatprep.mubr.bf16.mxu0 0
      %548 = vmatmul.mubr.bf16.gmra.mxu0 %v495
      %v549 = vpop.f32.mrf.mxu0
      %v550 = vadd.f32 0.0, %v549
      %v551 = vpop.f32.mrf.mxu0
      %v552 = vpop.f32.mrf.mxu0
      %v553 = vadd.f32 0.0, %v552
      %v554 = vpop.f32.mrf.mxu0
      %555 = vmatprep.mubr.bf16.mxu0 0
      %556 = vmatmul.mubr.bf16.gmra.mxu0 %v498
      %v557 = vpop.f32.mrf.mxu0
      %v558 = vadd.f32 0.0, %v557
      %v559 = vpop.f32.mrf.mxu0
      %v560 = vpop.f32.mrf.mxu0
      %v561 = vadd.f32 0.0, %v560
      %v562 = vpop.f32.mrf.mxu0
      %563 = vmatprep.mubr.bf16.mxu0 0
      %564 = vmatmul.mubr.bf16.gmra.mxu0 %v501
      %v565 = vpop.f32.mrf.mxu0
      %v566 = vadd.f32 0.0, %v565
      %v567 = vpop.f32.mrf.mxu0
      %v568 = vpop.f32.mrf.mxu0
      %v569 = vadd.f32 0.0, %v568
      %v570 = vpop.f32.mrf.mxu0
      %571 = vdwg.mxu0
      %v580 = vunpack.c.l.b16 %v344
      %v581 = vunpack.c.l.b16 %v345
      %v582 = vunpack.c.l.b16 %v346
      %v583 = vunpack.c.l.b16 %v347
      %v584 = vunpack.c.l.b16 %v348
      %v585 = vunpack.c.l.b16 %v349
      %v586 = vunpack.c.l.b16 %v350
      %v587 = vunpack.c.l.b16 %v351
      %v588 = vpack.c.b16 %v581, %v580
      %v589 = vpack.c.b16 %v583, %v582
      %v590 = vpack.c.b16 %v585, %v584
      %v591 = vpack.c.b16 %v587, %v586
      %v593 = vsel %vm490, %v588, 0
      %v596 = vsel %vm490, %v589, 0
      %v599 = vsel %vm490, %v590, 0
      %v602 = vsel %vm490, %v591, 0
      %v605 = vsel %vm503, %v352, 0
      %607 = vmatprep.subr.bf16.mxu0 0
      %608 = vmatpush1.bf16.msra.mxu0 0
      %609 = vmatprep.subr.bf16.mxu0 0
      %610 = vmatpush1.bf16.msra.mxu0 0
      %611 = vmatprep.subr.bf16.mxu0 0
      %612 = vmatpush1.bf16.msra.mxu0 0
      %613 = vmatprep.subr.bf16.mxu0 0
      %614 = vmatpush1.bf16.msra.mxu0 0
      %615 = vmatprep.subr.bf16.mxu0 0
      %616 = vmatpush1.bf16.msra.mxu0 0
      %617 = vmatprep.subr.bf16.mxu0 0
      %618 = vmatpush1.bf16.msra.mxu0 0
      %619 = vmatprep.subr.bf16.mxu0 0
      %620 = vmatpush1.bf16.msra.mxu0 0
      %621 = vmatprep.subr.bf16.mxu0 0
      %622 = vmatpush1.bf16.msra.mxu0 %v605
      %623 = vmatprep.subr.bf16.mxu0 0
      %624 = vmatpush2.bf16.msra.mxu0 0
      %625 = vmatprep.subr.bf16.mxu0 0
      %626 = vmatpush2.bf16.msra.mxu0 0
      %627 = vmatprep.subr.bf16.mxu0 0
      %628 = vmatpush2.bf16.msra.mxu0 0
      %629 = vmatprep.subr.bf16.mxu0 0
      %630 = vmatpush2.bf16.msra.mxu0 0
      %631 = vmatprep.subr.bf16.mxu0 0
      %632 = vmatpush2.bf16.msra.mxu0 0
      %633 = vmatprep.subr.bf16.mxu0 0
      %634 = vmatpush2.bf16.msra.mxu0 0
      %635 = vmatprep.subr.bf16.mxu0 0
      %636 = vmatpush2.bf16.msra.mxu0 0
      %637 = vmatprep.subr.bf16.mxu0 0
      %638 = vmatpush2.bf16.msra.mxu0 0
      %639 = vmatprep.mubr.bf16.mxu0 0
      %640 = vmatmul.mubr.bf16.gmra.mxu0 %v593
      %v641 = vpop.f32.mrf.mxu0
      %v642 = vadd.f32 %v542, %v641
      %v643 = vpop.f32.mrf.mxu0
      %v644 = vpop.f32.mrf.mxu0
      %v645 = vadd.f32 %v545, %v644
      %v646 = vpop.f32.mrf.mxu0
      %647 = vmatprep.mubr.bf16.mxu0 0
      %648 = vmatmul.mubr.bf16.gmra.mxu0 %v596
      %v649 = vpop.f32.mrf.mxu0
      %v650 = vadd.f32 %v550, %v649
      %v651 = vpop.f32.mrf.mxu0
      %v652 = vpop.f32.mrf.mxu0
      %v653 = vadd.f32 %v553, %v652
      %v654 = vpop.f32.mrf.mxu0
      %655 = vmatprep.mubr.bf16.mxu0 0
      %656 = vmatmul.mubr.bf16.gmra.mxu0 %v599
      %v657 = vpop.f32.mrf.mxu0
      %v658 = vadd.f32 %v558, %v657
      %v659 = vpop.f32.mrf.mxu0
      %v660 = vpop.f32.mrf.mxu0
      %v661 = vadd.f32 %v561, %v660
      %v662 = vpop.f32.mrf.mxu0
      %663 = vmatprep.mubr.bf16.mxu0 0
      %664 = vmatmul.mubr.bf16.gmra.mxu0 %v602
      %v665 = vpop.f32.mrf.mxu0
      %v666 = vadd.f32 %v566, %v665
      %v667 = vpop.f32.mrf.mxu0
      %v668 = vpop.f32.mrf.mxu0
      %v669 = vadd.f32 %v569, %v668
      %v670 = vpop.f32.mrf.mxu0
      %671 = vdwg.mxu0
      %v672 = vld [vmem:[%s311] sm:$0xe]
      %v673 = vld [vmem:[%s311 + $0x8] sm:$0xe]
      %v674 = vld [vmem:[%s311 + $0x10] sm:$0xe]
      %v675 = vld [vmem:[%s311 + $0x18] sm:$0xe]
      %v676 = vld [vmem:[%s311 + $0x20] sm:$0xe]
      %v677 = vld [vmem:[%s311 + $0x28] sm:$0xe]
      %v678 = vld [vmem:[%s311 + $0x30] sm:$0xe]
      %v679 = vld [vmem:[%s311 + $0x38] sm:$0xe]
      %vm696 = vcmask 1042432
      %vm697 = vcmask 1046532
      %vm698 = vmor %vm696, %vm697
      %v699 = vrot.slane %v672, 5
      %v700 = vrot.slane %v699, 4
      %v701 = vrot.slane %v353, 5
      %v702 = vsel %vm698, %v700, %v701
      %v703 = vrot.slane %v673, 5
      %v704 = vrot.slane %v703, 4
      %v705 = vrot.slane %v354, 5
      %v706 = vsel %vm698, %v704, %v705
      %v707 = vrot.slane %v674, 5
      %v708 = vrot.slane %v707, 4
      %v709 = vrot.slane %v355, 5
      %v710 = vsel %vm698, %v708, %v709
      %v711 = vrot.slane %v675, 5
      %v712 = vrot.slane %v711, 4
      %v713 = vrot.slane %v356, 5
      %v714 = vsel %vm698, %v712, %v713
      %v715 = vrot.slane %v676, 5
      %v716 = vrot.slane %v715, 4
      %v717 = vrot.slane %v357, 5
      %v718 = vsel %vm698, %v716, %v717
      %v719 = vrot.slane %v677, 5
      %v720 = vrot.slane %v719, 4
      %v721 = vrot.slane %v358, 5
      %v722 = vsel %vm698, %v720, %v721
      %v723 = vrot.slane %v678, 5
      %v724 = vrot.slane %v723, 4
      %v725 = vrot.slane %v359, 5
      %v726 = vsel %vm698, %v724, %v725
      %v727 = vrot.slane %v679, 5
      %v728 = vrot.slane %v727, 4
      %v729 = vrot.slane %v360, 5
      %v730 = vsel %vm698, %v728, %v729
      %s731 = scalar_lea.vmem %s3, 8
      %v732 = vld [vmem:[%s731] sm:$0xf]
      %v733 = vunpack.c.l.b16 %v702
      %v734 = vunpack.c.l.b16 %v706
      %v735 = vunpack.c.l.b16 %v710
      %v736 = vunpack.c.l.b16 %v714
      %v737 = vunpack.c.l.b16 %v718
      %v738 = vunpack.c.l.b16 %v722
      %v739 = vunpack.c.l.b16 %v726
      %v740 = vunpack.c.l.b16 %v730
      %v741 = vpack.c.b16 %v734, %v733
      %v742 = vpack.c.b16 %v736, %v735
      %v743 = vpack.c.b16 %v738, %v737
      %v744 = vpack.c.b16 %v740, %v739
      %v746 = vsel %vm490, %v741, 0
      %v749 = vsel %vm490, %v742, 0
      %v752 = vsel %vm490, %v743, 0
      %v755 = vsel %vm490, %v744, 0
      %v758 = vsel %vm503, %v732, 0
      %760 = vmatprep.subr.bf16.mxu0 0
      %761 = vmatpush1.bf16.msra.mxu0 0
      %762 = vmatprep.subr.bf16.mxu0 0
      %763 = vmatpush1.bf16.msra.mxu0 0
      %764 = vmatprep.subr.bf16.mxu0 0
      %765 = vmatpush1.bf16.msra.mxu0 0
      %766 = vmatprep.subr.bf16.mxu0 0
      %767 = vmatpush1.bf16.msra.mxu0 0
      %768 = vmatprep.subr.bf16.mxu0 0
      %769 = vmatpush1.bf16.msra.mxu0 0
      %770 = vmatprep.subr.bf16.mxu0 0
      %771 = vmatpush1.bf16.msra.mxu0 0
      %772 = vmatprep.subr.bf16.mxu0 0
      %773 = vmatpush1.bf16.msra.mxu0 0
      %774 = vmatprep.subr.bf16.mxu0 0
      %775 = vmatpush1.bf16.msra.mxu0 %v758
      %776 = vmatprep.subr.bf16.mxu0 0
      %777 = vmatpush2.bf16.msra.mxu0 0
      %778 = vmatprep.subr.bf16.mxu0 0
      %779 = vmatpush2.bf16.msra.mxu0 0
      %780 = vmatprep.subr.bf16.mxu0 0
      %781 = vmatpush2.bf16.msra.mxu0 0
      %782 = vmatprep.subr.bf16.mxu0 0
      %783 = vmatpush2.bf16.msra.mxu0 0
      %784 = vmatprep.subr.bf16.mxu0 0
      %785 = vmatpush2.bf16.msra.mxu0 0
      %786 = vmatprep.subr.bf16.mxu0 0
      %787 = vmatpush2.bf16.msra.mxu0 0
      %788 = vmatprep.subr.bf16.mxu0 0
      %789 = vmatpush2.bf16.msra.mxu0 0
      %790 = vmatprep.subr.bf16.mxu0 0
      %791 = vmatpush2.bf16.msra.mxu0 0
      %792 = vmatprep.mubr.bf16.mxu0 0
      %793 = vmatmul.mubr.bf16.gmra.mxu0 %v746
      %v794 = vpop.f32.mrf.mxu0
      %v795 = vadd.f32 0.0, %v794
      %v796 = vpop.f32.mrf.mxu0
      %v797 = vpop.f32.mrf.mxu0
      %v798 = vadd.f32 0.0, %v797
      %v799 = vpop.f32.mrf.mxu0
      %800 = vmatprep.mubr.bf16.mxu0 0
      %801 = vmatmul.mubr.bf16.gmra.mxu0 %v749
      %v802 = vpop.f32.mrf.mxu0
      %v803 = vadd.f32 0.0, %v802
      %v804 = vpop.f32.mrf.mxu0
      %v805 = vpop.f32.mrf.mxu0
      %v806 = vadd.f32 0.0, %v805
      %v807 = vpop.f32.mrf.mxu0
      %808 = vmatprep.mubr.bf16.mxu0 0
      %809 = vmatmul.mubr.bf16.gmra.mxu0 %v752
      %v810 = vpop.f32.mrf.mxu0
      %v811 = vadd.f32 0.0, %v810
      %v812 = vpop.f32.mrf.mxu0
      %v813 = vpop.f32.mrf.mxu0
      %v814 = vadd.f32 0.0, %v813
      %v815 = vpop.f32.mrf.mxu0
      %816 = vmatprep.mubr.bf16.mxu0 0
      %817 = vmatmul.mubr.bf16.gmra.mxu0 %v755
      %v818 = vpop.f32.mrf.mxu0
      %v819 = vadd.f32 0.0, %v818
      %v820 = vpop.f32.mrf.mxu0
      %v821 = vpop.f32.mrf.mxu0
      %v822 = vadd.f32 0.0, %v821
      %v823 = vpop.f32.mrf.mxu0
      %824 = vdwg.mxu0
      %v825 = vadd.f32 %v642, %v795
      %v826 = vadd.f32 %v645, %v798
      %v827 = vadd.f32 %v650, %v803
      %v828 = vadd.f32 %v653, %v806
      %v829 = vadd.f32 %v658, %v811
      %v830 = vadd.f32 %v661, %v814
      %v831 = vadd.f32 %v666, %v819
      %v832 = vadd.f32 %v669, %v822
      %s833 = scalar_lea.vmem %s311, 8
      %v834 = vld [vmem:[%s833] sm:$0xf]
      %v835 = vld [vmem:[%s833 + $0x8] sm:$0xf]
      %v836 = vld [vmem:[%s833 + $0x10] sm:$0xf]
      %v837 = vld [vmem:[%s833 + $0x18] sm:$0xf]
      %v838 = vld [vmem:[%s833 + $0x20] sm:$0xf]
      %v839 = vld [vmem:[%s833 + $0x28] sm:$0xf]
      %v840 = vld [vmem:[%s833 + $0x30] sm:$0xf]
      %v841 = vld [vmem:[%s833 + $0x38] sm:$0xf]
      %s842 = scalar_lea.vmem %s3, 12
      %v843 = vld [vmem:[%s842] sm:$0xf]
      %v852 = vunpack.c.l.b16 %v834
      %v853 = vunpack.c.l.b16 %v835
      %v854 = vunpack.c.l.b16 %v836
      %v855 = vunpack.c.l.b16 %v837
      %v856 = vunpack.c.l.b16 %v838
      %v857 = vunpack.c.l.b16 %v839
      %v858 = vunpack.c.l.b16 %v840
      %v859 = vunpack.c.l.b16 %v841
      %v860 = vpack.c.b16 %v853, %v852
      %v861 = vpack.c.b16 %v855, %v854
      %v862 = vpack.c.b16 %v857, %v856
      %v863 = vpack.c.b16 %v859, %v858
      %v865 = vsel %vm490, %v860, 0
      %v868 = vsel %vm490, %v861, 0
      %v871 = vsel %vm490, %v862, 0
      %v874 = vsel %vm490, %v863, 0
      %v877 = vsel %vm503, %v843, 0
      %879 = vmatprep.subr.bf16.mxu0 0
      %880 = vmatpush1.bf16.msra.mxu0 0
      %881 = vmatprep.subr.bf16.mxu0 0
      %882 = vmatpush1.bf16.msra.mxu0 0
      %883 = vmatprep.subr.bf16.mxu0 0
      %884 = vmatpush1.bf16.msra.mxu0 0
      %885 = vmatprep.subr.bf16.mxu0 0
      %886 = vmatpush1.bf16.msra.mxu0 0
      %887 = vmatprep.subr.bf16.mxu0 0
      %888 = vmatpush1.bf16.msra.mxu0 0
      %889 = vmatprep.subr.bf16.mxu0 0
      %890 = vmatpush1.bf16.msra.mxu0 0
      %891 = vmatprep.subr.bf16.mxu0 0
      %892 = vmatpush1.bf16.msra.mxu0 0
      %893 = vmatprep.subr.bf16.mxu0 0
      %894 = vmatpush1.bf16.msra.mxu0 %v877
      %895 = vmatprep.subr.bf16.mxu0 0
      %896 = vmatpush2.bf16.msra.mxu0 0
      %897 = vmatprep.subr.bf16.mxu0 0
      %898 = vmatpush2.bf16.msra.mxu0 0
      %899 = vmatprep.subr.bf16.mxu0 0
      %900 = vmatpush2.bf16.msra.mxu0 0
      %901 = vmatprep.subr.bf16.mxu0 0
      %902 = vmatpush2.bf16.msra.mxu0 0
      %903 = vmatprep.subr.bf16.mxu0 0
      %904 = vmatpush2.bf16.msra.mxu0 0
      %905 = vmatprep.subr.bf16.mxu0 0
      %906 = vmatpush2.bf16.msra.mxu0 0
      %907 = vmatprep.subr.bf16.mxu0 0
      %908 = vmatpush2.bf16.msra.mxu0 0
      %909 = vmatprep.subr.bf16.mxu0 0
      %910 = vmatpush2.bf16.msra.mxu0 0
      %911 = vmatprep.mubr.bf16.mxu0 0
      %912 = vmatmul.mubr.bf16.gmra.mxu0 %v865
      %v913 = vpop.f32.mrf.mxu0
      %v914 = vadd.f32 0.0, %v913
      %v915 = vpop.f32.mrf.mxu0
      %v916 = vpop.f32.mrf.mxu0
      %v917 = vadd.f32 0.0, %v916
      %v918 = vpop.f32.mrf.mxu0
      %919 = vmatprep.mubr.bf16.mxu0 0
      %920 = vmatmul.mubr.bf16.gmra.mxu0 %v868
      %v921 = vpop.f32.mrf.mxu0
      %v922 = vadd.f32 0.0, %v921
      %v923 = vpop.f32.mrf.mxu0
      %v924 = vpop.f32.mrf.mxu0
      %v925 = vadd.f32 0.0, %v924
      %v926 = vpop.f32.mrf.mxu0
      %927 = vmatprep.mubr.bf16.mxu0 0
      %928 = vmatmul.mubr.bf16.gmra.mxu0 %v871
      %v929 = vpop.f32.mrf.mxu0
      %v930 = vadd.f32 0.0, %v929
      %v931 = vpop.f32.mrf.mxu0
      %v932 = vpop.f32.mrf.mxu0
      %v933 = vadd.f32 0.0, %v932
      %v934 = vpop.f32.mrf.mxu0
      %935 = vmatprep.mubr.bf16.mxu0 0
      %936 = vmatmul.mubr.bf16.gmra.mxu0 %v874
      %v937 = vpop.f32.mrf.mxu0
      %v938 = vadd.f32 0.0, %v937
      %v939 = vpop.f32.mrf.mxu0
      %v940 = vpop.f32.mrf.mxu0
      %v941 = vadd.f32 0.0, %v940
      %v942 = vpop.f32.mrf.mxu0
      %943 = vdwg.mxu0
      %v944 = vadd.f32 %v825, %v914
      %v945 = vadd.f32 %v826, %v917
      %v946 = vadd.f32 %v827, %v922
      %v947 = vadd.f32 %v828, %v925
      %v948 = vadd.f32 %v829, %v930
      %v949 = vadd.f32 %v830, %v933
      %v950 = vadd.f32 %v831, %v938
      %v951 = vadd.f32 %v832, %v941
      %v952 = vld [vmem:[%s833] sm:$0xf]
      %v953 = vld [vmem:[%s833 + $0x4] sm:$0x1]
      %v954 = vld [vmem:[%s833 + $0x8] sm:$0xf]
      %v955 = vld [vmem:[%s833 + $0xc] sm:$0x1]
      %v956 = vld [vmem:[%s833 + $0x10] sm:$0xf]
      %v957 = vld [vmem:[%s833 + $0x14] sm:$0x1]
      %v958 = vld [vmem:[%s833 + $0x18] sm:$0xf]
      %v959 = vld [vmem:[%s833 + $0x1c] sm:$0x1]
      %v960 = vld [vmem:[%s833 + $0x20] sm:$0xf]
      %v961 = vld [vmem:[%s833 + $0x24] sm:$0x1]
      %v962 = vld [vmem:[%s833 + $0x28] sm:$0xf]
      %v963 = vld [vmem:[%s833 + $0x2c] sm:$0x1]
      %v964 = vld [vmem:[%s833 + $0x30] sm:$0xf]
      %v965 = vld [vmem:[%s833 + $0x34] sm:$0x1]
      %v966 = vld [vmem:[%s833 + $0x38] sm:$0xf]
      %v967 = vld [vmem:[%s833 + $0x3c] sm:$0x1]
      %v969 = vshrl.u32 %v952, 16
      %v971 = vrot.slane %v969, 4
      %v972 = vshll.u32 %v952, 16
      %v974 = vrot.slane %v972, 5
      %v975 = vor.u32 %v971, %v974
      %v976 = vrot.slane %v975, 4
      %v978 = vshll.u32 %v953, 16
      %v980 = vrot.slane %v978, 5
      %v981 = vsel %vm363, %v976, %v980
      %v983 = vshrl.u32 %v954, 16
      %v985 = vrot.slane %v983, 4
      %v986 = vshll.u32 %v954, 16
      %v988 = vrot.slane %v986, 5
      %v989 = vor.u32 %v985, %v988
      %v990 = vrot.slane %v989, 4
      %v992 = vshll.u32 %v955, 16
      %v994 = vrot.slane %v992, 5
      %v995 = vsel %vm363, %v990, %v994
      %v997 = vshrl.u32 %v956, 16
      %v999 = vrot.slane %v997, 4
      %v1000 = vshll.u32 %v956, 16
      %v1002 = vrot.slane %v1000, 5
      %v1003 = vor.u32 %v999, %v1002
      %v1004 = vrot.slane %v1003, 4
      %v1006 = vshll.u32 %v957, 16
      %v1008 = vrot.slane %v1006, 5
      %v1009 = vsel %vm363, %v1004, %v1008
      %v1011 = vshrl.u32 %v958, 16
      %v1013 = vrot.slane %v1011, 4
      %v1014 = vshll.u32 %v958, 16
      %v1016 = vrot.slane %v1014, 5
      %v1017 = vor.u32 %v1013, %v1016
      %v1018 = vrot.slane %v1017, 4
      %v1020 = vshll.u32 %v959, 16
      %v1022 = vrot.slane %v1020, 5
      %v1023 = vsel %vm363, %v1018, %v1022
      %v1025 = vshrl.u32 %v960, 16
      %v1027 = vrot.slane %v1025, 4
      %v1028 = vshll.u32 %v960, 16
      %v1030 = vrot.slane %v1028, 5
      %v1031 = vor.u32 %v1027, %v1030
      %v1032 = vrot.slane %v1031, 4
      %v1034 = vshll.u32 %v961, 16
      %v1036 = vrot.slane %v1034, 5
      %v1037 = vsel %vm363, %v1032, %v1036
      %v1039 = vshrl.u32 %v962, 16
      %v1041 = vrot.slane %v1039, 4
      %v1042 = vshll.u32 %v962, 16
      %v1044 = vrot.slane %v1042, 5
      %v1045 = vor.u32 %v1041, %v1044
      %v1046 = vrot.slane %v1045, 4
      %v1048 = vshll.u32 %v963, 16
      %v1050 = vrot.slane %v1048, 5
      %v1051 = vsel %vm363, %v1046, %v1050
      %v1053 = vshrl.u32 %v964, 16
      %v1055 = vrot.slane %v1053, 4
      %v1056 = vshll.u32 %v964, 16
      %v1058 = vrot.slane %v1056, 5
      %v1059 = vor.u32 %v1055, %v1058
      %v1060 = vrot.slane %v1059, 4
      %v1062 = vshll.u32 %v965, 16
      %v1064 = vrot.slane %v1062, 5
      %v1065 = vsel %vm363, %v1060, %v1064
      %v1067 = vshrl.u32 %v966, 16
      %v1069 = vrot.slane %v1067, 4
      %v1070 = vshll.u32 %v966, 16
      %v1072 = vrot.slane %v1070, 5
      %v1073 = vor.u32 %v1069, %v1072
      %v1074 = vrot.slane %v1073, 4
      %v1076 = vshll.u32 %v967, 16
      %v1078 = vrot.slane %v1076, 5
      %v1079 = vsel %vm363, %v1074, %v1078
      %s1080 = scalar_lea.vmem %s3, 16
      %v1081 = vld [vmem:[%s1080] sm:$0xf]
      %v1082 = vunpack.c.l.b16 %v981
      %v1083 = vunpack.c.l.b16 %v995
      %v1084 = vunpack.c.l.b16 %v1009
      %v1085 = vunpack.c.l.b16 %v1023
      %v1086 = vunpack.c.l.b16 %v1037
      %v1087 = vunpack.c.l.b16 %v1051
      %v1088 = vunpack.c.l.b16 %v1065
      %v1089 = vunpack.c.l.b16 %v1079
      %v1090 = vpack.c.b16 %v1083, %v1082
      %v1091 = vpack.c.b16 %v1085, %v1084
      %v1092 = vpack.c.b16 %v1087, %v1086
      %v1093 = vpack.c.b16 %v1089, %v1088
      %v1095 = vsel %vm490, %v1090, 0
      %v1098 = vsel %vm490, %v1091, 0
      %v1101 = vsel %vm490, %v1092, 0
      %v1104 = vsel %vm490, %v1093, 0
      %v1107 = vsel %vm503, %v1081, 0
      %1109 = vmatprep.subr.bf16.mxu0 0
      %1110 = vmatpush1.bf16.msra.mxu0 0
      %1111 = vmatprep.subr.bf16.mxu0 0
      %1112 = vmatpush1.bf16.msra.mxu0 0
      %1113 = vmatprep.subr.bf16.mxu0 0
      %1114 = vmatpush1.bf16.msra.mxu0 0
      %1115 = vmatprep.subr.bf16.mxu0 0
      %1116 = vmatpush1.bf16.msra.mxu0 0
      %1117 = vmatprep.subr.bf16.mxu0 0
      %1118 = vmatpush1.bf16.msra.mxu0 0
      %1119 = vmatprep.subr.bf16.mxu0 0
      %1120 = vmatpush1.bf16.msra.mxu0 0
      %1121 = vmatprep.subr.bf16.mxu0 0
      %1122 = vmatpush1.bf16.msra.mxu0 0
      %1123 = vmatprep.subr.bf16.mxu0 0
      %1124 = vmatpush1.bf16.msra.mxu0 %v1107
      %1125 = vmatprep.subr.bf16.mxu0 0
      %1126 = vmatpush2.bf16.msra.mxu0 0
      %1127 = vmatprep.subr.bf16.mxu0 0
      %1128 = vmatpush2.bf16.msra.mxu0 0
      %1129 = vmatprep.subr.bf16.mxu0 0
      %1130 = vmatpush2.bf16.msra.mxu0 0
      %1131 = vmatprep.subr.bf16.mxu0 0
      %1132 = vmatpush2.bf16.msra.mxu0 0
      %1133 = vmatprep.subr.bf16.mxu0 0
      %1134 = vmatpush2.bf16.msra.mxu0 0
      %1135 = vmatprep.subr.bf16.mxu0 0
      %1136 = vmatpush2.bf16.msra.mxu0 0
      %1137 = vmatprep.subr.bf16.mxu0 0
      %1138 = vmatpush2.bf16.msra.mxu0 0
      %1139 = vmatprep.subr.bf16.mxu0 0
      %1140 = vmatpush2.bf16.msra.mxu0 0
      %1141 = vmatprep.mubr.bf16.mxu0 0
      %1142 = vmatmul.mubr.bf16.gmra.mxu0 %v1095
      %v1143 = vpop.f32.mrf.mxu0
      %v1144 = vadd.f32 0.0, %v1143
      %v1145 = vpop.f32.mrf.mxu0
      %v1146 = vpop.f32.mrf.mxu0
      %v1147 = vadd.f32 0.0, %v1146
      %v1148 = vpop.f32.mrf.mxu0
      %1149 = vmatprep.mubr.bf16.mxu0 0
      %1150 = vmatmul.mubr.bf16.gmra.mxu0 %v1098
      %v1151 = vpop.f32.mrf.mxu0
      %v1152 = vadd.f32 0.0, %v1151
      %v1153 = vpop.f32.mrf.mxu0
      %v1154 = vpop.f32.mrf.mxu0
      %v1155 = vadd.f32 0.0, %v1154
      %v1156 = vpop.f32.mrf.mxu0
      %1157 = vmatprep.mubr.bf16.mxu0 0
      %1158 = vmatmul.mubr.bf16.gmra.mxu0 %v1101
      %v1159 = vpop.f32.mrf.mxu0
      %v1160 = vadd.f32 0.0, %v1159
      %v1161 = vpop.f32.mrf.mxu0
      %v1162 = vpop.f32.mrf.mxu0
      %v1163 = vadd.f32 0.0, %v1162
      %v1164 = vpop.f32.mrf.mxu0
      %1165 = vmatprep.mubr.bf16.mxu0 0
      %1166 = vmatmul.mubr.bf16.gmra.mxu0 %v1104
      %v1167 = vpop.f32.mrf.mxu0
      %v1168 = vadd.f32 0.0, %v1167
      %v1169 = vpop.f32.mrf.mxu0
      %v1170 = vpop.f32.mrf.mxu0
      %v1171 = vadd.f32 0.0, %v1170
      %v1172 = vpop.f32.mrf.mxu0
      %1173 = vdwg.mxu0
      %v1174 = vadd.f32 %v944, %v1144
      %v1175 = vadd.f32 %v945, %v1147
      %v1176 = vadd.f32 %v946, %v1152
      %v1177 = vadd.f32 %v947, %v1155
      %v1178 = vadd.f32 %v948, %v1160
      %v1179 = vadd.f32 %v949, %v1163
      %v1180 = vadd.f32 %v950, %v1168
      %v1181 = vadd.f32 %v951, %v1171
      %v1182 = vld [vmem:[%s833] sm:$0xe]
      %v1183 = vld [vmem:[%s833 + $0x8] sm:$0xe]
      %v1184 = vld [vmem:[%s833 + $0x10] sm:$0xe]
      %v1185 = vld [vmem:[%s833 + $0x18] sm:$0xe]
      %v1186 = vld [vmem:[%s833 + $0x20] sm:$0xe]
      %v1187 = vld [vmem:[%s833 + $0x28] sm:$0xe]
      %v1188 = vld [vmem:[%s833 + $0x30] sm:$0xe]
      %v1189 = vld [vmem:[%s833 + $0x38] sm:$0xe]
      %v1206 = vrot.slane %v1182, 5
      %v1207 = vrot.slane %v1206, 4
      %v1208 = vrot.slane %v953, 5
      %v1209 = vsel %vm698, %v1207, %v1208
      %v1210 = vrot.slane %v1183, 5
      %v1211 = vrot.slane %v1210, 4
      %v1212 = vrot.slane %v955, 5
      %v1213 = vsel %vm698, %v1211, %v1212
      %v1214 = vrot.slane %v1184, 5
      %v1215 = vrot.slane %v1214, 4
      %v1216 = vrot.slane %v957, 5
      %v1217 = vsel %vm698, %v1215, %v1216
      %v1218 = vrot.slane %v1185, 5
      %v1219 = vrot.slane %v1218, 4
      %v1220 = vrot.slane %v959, 5
      %v1221 = vsel %vm698, %v1219, %v1220
      %v1222 = vrot.slane %v1186, 5
      %v1223 = vrot.slane %v1222, 4
      %v1224 = vrot.slane %v961, 5
      %v1225 = vsel %vm698, %v1223, %v1224
      %v1226 = vrot.slane %v1187, 5
      %v1227 = vrot.slane %v1226, 4
      %v1228 = vrot.slane %v963, 5
      %v1229 = vsel %vm698, %v1227, %v1228
      %v1230 = vrot.slane %v1188, 5
      %v1231 = vrot.slane %v1230, 4
      %v1232 = vrot.slane %v965, 5
      %v1233 = vsel %vm698, %v1231, %v1232
      %v1234 = vrot.slane %v1189, 5
      %v1235 = vrot.slane %v1234, 4
      %v1236 = vrot.slane %v967, 5
      %v1237 = vsel %vm698, %v1235, %v1236
      %s1238 = scalar_lea.vmem %s3, 20
      %v1239 = vld [vmem:[%s1238] sm:$0xf]
      %v1240 = vunpack.c.l.b16 %v1209
      %v1241 = vunpack.c.l.b16 %v1213
      %v1242 = vunpack.c.l.b16 %v1217
      %v1243 = vunpack.c.l.b16 %v1221
      %v1244 = vunpack.c.l.b16 %v1225
      %v1245 = vunpack.c.l.b16 %v1229
      %v1246 = vunpack.c.l.b16 %v1233
      %v1247 = vunpack.c.l.b16 %v1237
      %v1248 = vpack.c.b16 %v1241, %v1240
      %v1249 = vpack.c.b16 %v1243, %v1242
      %v1250 = vpack.c.b16 %v1245, %v1244
      %v1251 = vpack.c.b16 %v1247, %v1246
      %v1253 = vsel %vm490, %v1248, 0
      %v1256 = vsel %vm490, %v1249, 0
      %v1259 = vsel %vm490, %v1250, 0
      %v1262 = vsel %vm490, %v1251, 0
      %v1265 = vsel %vm503, %v1239, 0
      %1267 = vmatprep.subr.bf16.mxu0 0
      %1268 = vmatpush1.bf16.msra.mxu0 0
      %1269 = vmatprep.subr.bf16.mxu0 0
      %1270 = vmatpush1.bf16.msra.mxu0 0
      %1271 = vmatprep.subr.bf16.mxu0 0
      %1272 = vmatpush1.bf16.msra.mxu0 0
      %1273 = vmatprep.subr.bf16.mxu0 0
      %1274 = vmatpush1.bf16.msra.mxu0 0
      %1275 = vmatprep.subr.bf16.mxu0 0
      %1276 = vmatpush1.bf16.msra.mxu0 0
      %1277 = vmatprep.subr.bf16.mxu0 0
      %1278 = vmatpush1.bf16.msra.mxu0 0
      %1279 = vmatprep.subr.bf16.mxu0 0
      %1280 = vmatpush1.bf16.msra.mxu0 0
      %1281 = vmatprep.subr.bf16.mxu0 0
      %1282 = vmatpush1.bf16.msra.mxu0 %v1265
      %1283 = vmatprep.subr.bf16.mxu0 0
      %1284 = vmatpush2.bf16.msra.mxu0 0
      %1285 = vmatprep.subr.bf16.mxu0 0
      %1286 = vmatpush2.bf16.msra.mxu0 0
      %1287 = vmatprep.subr.bf16.mxu0 0
      %1288 = vmatpush2.bf16.msra.mxu0 0
      %1289 = vmatprep.subr.bf16.mxu0 0
      %1290 = vmatpush2.bf16.msra.mxu0 0
      %1291 = vmatprep.subr.bf16.mxu0 0
      %1292 = vmatpush2.bf16.msra.mxu0 0
      %1293 = vmatprep.subr.bf16.mxu0 0
      %1294 = vmatpush2.bf16.msra.mxu0 0
      %1295 = vmatprep.subr.bf16.mxu0 0
      %1296 = vmatpush2.bf16.msra.mxu0 0
      %1297 = vmatprep.subr.bf16.mxu0 0
      %1298 = vmatpush2.bf16.msra.mxu0 0
      %1299 = vmatprep.mubr.bf16.mxu0 0
      %1300 = vmatmul.mubr.bf16.gmra.mxu0 %v1253
      %v1301 = vpop.f32.mrf.mxu0
      %v1302 = vadd.f32 0.0, %v1301
      %v1303 = vpop.f32.mrf.mxu0
      %v1304 = vpop.f32.mrf.mxu0
      %v1305 = vadd.f32 0.0, %v1304
      %v1306 = vpop.f32.mrf.mxu0
      %1307 = vmatprep.mubr.bf16.mxu0 0
      %1308 = vmatmul.mubr.bf16.gmra.mxu0 %v1256
      %v1309 = vpop.f32.mrf.mxu0
      %v1310 = vadd.f32 0.0, %v1309
      %v1311 = vpop.f32.mrf.mxu0
      %v1312 = vpop.f32.mrf.mxu0
      %v1313 = vadd.f32 0.0, %v1312
      %v1314 = vpop.f32.mrf.mxu0
      %1315 = vmatprep.mubr.bf16.mxu0 0
      %1316 = vmatmul.mubr.bf16.gmra.mxu0 %v1259
      %v1317 = vpop.f32.mrf.mxu0
      %v1318 = vadd.f32 0.0, %v1317
      %v1319 = vpop.f32.mrf.mxu0
      %v1320 = vpop.f32.mrf.mxu0
      %v1321 = vadd.f32 0.0, %v1320
      %v1322 = vpop.f32.mrf.mxu0
      %1323 = vmatprep.mubr.bf16.mxu0 0
      %1324 = vmatmul.mubr.bf16.gmra.mxu0 %v1262
      %v1325 = vpop.f32.mrf.mxu0
      %v1326 = vadd.f32 0.0, %v1325
      %v1327 = vpop.f32.mrf.mxu0
      %v1328 = vpop.f32.mrf.mxu0
      %v1329 = vadd.f32 0.0, %v1328
      %v1330 = vpop.f32.mrf.mxu0
      %1331 = vdwg.mxu0
      %v1332 = vadd.f32 %v1174, %v1302
      %v1333 = vadd.f32 %v1175, %v1305
      %v1334 = vadd.f32 %v1176, %v1310
      %v1335 = vadd.f32 %v1177, %v1313
      %v1336 = vadd.f32 %v1178, %v1318
      %v1337 = vadd.f32 %v1179, %v1321
      %v1338 = vadd.f32 %v1180, %v1326
      %v1339 = vadd.f32 %v1181, %v1329
      %s1340 = scalar_lea.vmem %s311, 16
      %v1341 = vld [vmem:[%s1340] sm:$0xf]
      %v1342 = vld [vmem:[%s1340 + $0x8] sm:$0xf]
      %v1343 = vld [vmem:[%s1340 + $0x10] sm:$0xf]
      %v1344 = vld [vmem:[%s1340 + $0x18] sm:$0xf]
      %v1345 = vld [vmem:[%s1340 + $0x20] sm:$0xf]
      %v1346 = vld [vmem:[%s1340 + $0x28] sm:$0xf]
      %v1347 = vld [vmem:[%s1340 + $0x30] sm:$0xf]
      %v1348 = vld [vmem:[%s1340 + $0x38] sm:$0xf]
      %s1349 = scalar_lea.vmem %s3, 24
      %v1350 = vld [vmem:[%s1349] sm:$0xf]
      %v1359 = vunpack.c.l.b16 %v1341
      %v1360 = vunpack.c.l.b16 %v1342
      %v1361 = vunpack.c.l.b16 %v1343
      %v1362 = vunpack.c.l.b16 %v1344
      %v1363 = vunpack.c.l.b16 %v1345
      %v1364 = vunpack.c.l.b16 %v1346
      %v1365 = vunpack.c.l.b16 %v1347
      %v1366 = vunpack.c.l.b16 %v1348
      %v1367 = vpack.c.b16 %v1360, %v1359
      %v1368 = vpack.c.b16 %v1362, %v1361
      %v1369 = vpack.c.b16 %v1364, %v1363
      %v1370 = vpack.c.b16 %v1366, %v1365
      %v1372 = vsel %vm490, %v1367, 0
      %v1375 = vsel %vm490, %v1368, 0
      %v1378 = vsel %vm490, %v1369, 0
      %v1381 = vsel %vm490, %v1370, 0
      %v1384 = vsel %vm503, %v1350, 0
      %1386 = vmatprep.subr.bf16.mxu0 0
      %1387 = vmatpush1.bf16.msra.mxu0 0
      %1388 = vmatprep.subr.bf16.mxu0 0
      %1389 = vmatpush1.bf16.msra.mxu0 0
      %1390 = vmatprep.subr.bf16.mxu0 0
      %1391 = vmatpush1.bf16.msra.mxu0 0
      %1392 = vmatprep.subr.bf16.mxu0 0
      %1393 = vmatpush1.bf16.msra.mxu0 0
      %1394 = vmatprep.subr.bf16.mxu0 0
      %1395 = vmatpush1.bf16.msra.mxu0 0
      %1396 = vmatprep.subr.bf16.mxu0 0
      %1397 = vmatpush1.bf16.msra.mxu0 0
      %1398 = vmatprep.subr.bf16.mxu0 0
      %1399 = vmatpush1.bf16.msra.mxu0 0
      %1400 = vmatprep.subr.bf16.mxu0 0
      %1401 = vmatpush1.bf16.msra.mxu0 %v1384
      %1402 = vmatprep.subr.bf16.mxu0 0
      %1403 = vmatpush2.bf16.msra.mxu0 0
      %1404 = vmatprep.subr.bf16.mxu0 0
      %1405 = vmatpush2.bf16.msra.mxu0 0
      %1406 = vmatprep.subr.bf16.mxu0 0
      %1407 = vmatpush2.bf16.msra.mxu0 0
      %1408 = vmatprep.subr.bf16.mxu0 0
      %1409 = vmatpush2.bf16.msra.mxu0 0
      %1410 = vmatprep.subr.bf16.mxu0 0
      %1411 = vmatpush2.bf16.msra.mxu0 0
      %1412 = vmatprep.subr.bf16.mxu0 0
      %1413 = vmatpush2.bf16.msra.mxu0 0
      %1414 = vmatprep.subr.bf16.mxu0 0
      %1415 = vmatpush2.bf16.msra.mxu0 0
      %1416 = vmatprep.subr.bf16.mxu0 0
      %1417 = vmatpush2.bf16.msra.mxu0 0
      %1418 = vmatprep.mubr.bf16.mxu0 0
      %1419 = vmatmul.mubr.bf16.gmra.mxu0 %v1372
      %v1420 = vpop.f32.mrf.mxu0
      %v1421 = vadd.f32 0.0, %v1420
      %v1422 = vpop.f32.mrf.mxu0
      %v1423 = vpop.f32.mrf.mxu0
      %v1424 = vadd.f32 0.0, %v1423
      %v1425 = vpop.f32.mrf.mxu0
      %1426 = vmatprep.mubr.bf16.mxu0 0
      %1427 = vmatmul.mubr.bf16.gmra.mxu0 %v1375
      %v1428 = vpop.f32.mrf.mxu0
      %v1429 = vadd.f32 0.0, %v1428
      %v1430 = vpop.f32.mrf.mxu0
      %v1431 = vpop.f32.mrf.mxu0
      %v1432 = vadd.f32 0.0, %v1431
      %v1433 = vpop.f32.mrf.mxu0
      %1434 = vmatprep.mubr.bf16.mxu0 0
      %1435 = vmatmul.mubr.bf16.gmra.mxu0 %v1378
      %v1436 = vpop.f32.mrf.mxu0
      %v1437 = vadd.f32 0.0, %v1436
      %v1438 = vpop.f32.mrf.mxu0
      %v1439 = vpop.f32.mrf.mxu0
      %v1440 = vadd.f32 0.0, %v1439
      %v1441 = vpop.f32.mrf.mxu0
      %1442 = vmatprep.mubr.bf16.mxu0 0
      %1443 = vmatmul.mubr.bf16.gmra.mxu0 %v1381
      %v1444 = vpop.f32.mrf.mxu0
      %v1445 = vadd.f32 0.0, %v1444
      %v1446 = vpop.f32.mrf.mxu0
      %v1447 = vpop.f32.mrf.mxu0
      %v1448 = vadd.f32 0.0, %v1447
      %v1449 = vpop.f32.mrf.mxu0
      %1450 = vdwg.mxu0
      %v1451 = vadd.f32 %v1332, %v1421
      %v1452 = vadd.f32 %v1333, %v1424
      %v1453 = vadd.f32 %v1334, %v1429
      %v1454 = vadd.f32 %v1335, %v1432
      %v1455 = vadd.f32 %v1336, %v1437
      %v1456 = vadd.f32 %v1337, %v1440
      %v1457 = vadd.f32 %v1338, %v1445
      %v1458 = vadd.f32 %v1339, %v1448
      %v1459 = vld [vmem:[%s1340] sm:$0xf]
      %v1460 = vld [vmem:[%s1340 + $0x4] sm:$0x1]
      %v1461 = vld [vmem:[%s1340 + $0x8] sm:$0xf]
      %v1462 = vld [vmem:[%s1340 + $0xc] sm:$0x1]
      %v1463 = vld [vmem:[%s1340 + $0x10] sm:$0xf]
      %v1464 = vld [vmem:[%s1340 + $0x14] sm:$0x1]
      %v1465 = vld [vmem:[%s1340 + $0x18] sm:$0xf]
      %v1466 = vld [vmem:[%s1340 + $0x1c] sm:$0x1]
      %v1467 = vld [vmem:[%s1340 + $0x20] sm:$0xf]
      %v1468 = vld [vmem:[%s1340 + $0x24] sm:$0x1]
      %v1469 = vld [vmem:[%s1340 + $0x28] sm:$0xf]
      %v1470 = vld [vmem:[%s1340 + $0x2c] sm:$0x1]
      %v1471 = vld [vmem:[%s1340 + $0x30] sm:$0xf]
      %v1472 = vld [vmem:[%s1340 + $0x34] sm:$0x1]
      %v1473 = vld [vmem:[%s1340 + $0x38] sm:$0xf]
      %v1474 = vld [vmem:[%s1340 + $0x3c] sm:$0x1]
      %v1476 = vshrl.u32 %v1459, 16
      %v1478 = vrot.slane %v1476, 4
      %v1479 = vshll.u32 %v1459, 16
      %v1481 = vrot.slane %v1479, 5
      %v1482 = vor.u32 %v1478, %v1481
      %v1483 = vrot.slane %v1482, 4
      %v1485 = vshll.u32 %v1460, 16
      %v1487 = vrot.slane %v1485, 5
      %v1488 = vsel %vm363, %v1483, %v1487
      %v1490 = vshrl.u32 %v1461, 16
      %v1492 = vrot.slane %v1490, 4
      %v1493 = vshll.u32 %v1461, 16
      %v1495 = vrot.slane %v1493, 5
      %v1496 = vor.u32 %v1492, %v1495
      %v1497 = vrot.slane %v1496, 4
      %v1499 = vshll.u32 %v1462, 16
      %v1501 = vrot.slane %v1499, 5
      %v1502 = vsel %vm363, %v1497, %v1501
      %v1504 = vshrl.u32 %v1463, 16
      %v1506 = vrot.slane %v1504, 4
      %v1507 = vshll.u32 %v1463, 16
      %v1509 = vrot.slane %v1507, 5
      %v1510 = vor.u32 %v1506, %v1509
      %v1511 = vrot.slane %v1510, 4
      %v1513 = vshll.u32 %v1464, 16
      %v1515 = vrot.slane %v1513, 5
      %v1516 = vsel %vm363, %v1511, %v1515
      %v1518 = vshrl.u32 %v1465, 16
      %v1520 = vrot.slane %v1518, 4
      %v1521 = vshll.u32 %v1465, 16
      %v1523 = vrot.slane %v1521, 5
      %v1524 = vor.u32 %v1520, %v1523
      %v1525 = vrot.slane %v1524, 4
      %v1527 = vshll.u32 %v1466, 16
      %v1529 = vrot.slane %v1527, 5
      %v1530 = vsel %vm363, %v1525, %v1529
      %v1532 = vshrl.u32 %v1467, 16
      %v1534 = vrot.slane %v1532, 4
      %v1535 = vshll.u32 %v1467, 16
      %v1537 = vrot.slane %v1535, 5
      %v1538 = vor.u32 %v1534, %v1537
      %v1539 = vrot.slane %v1538, 4
      %v1541 = vshll.u32 %v1468, 16
      %v1543 = vrot.slane %v1541, 5
      %v1544 = vsel %vm363, %v1539, %v1543
      %v1546 = vshrl.u32 %v1469, 16
      %v1548 = vrot.slane %v1546, 4
      %v1549 = vshll.u32 %v1469, 16
      %v1551 = vrot.slane %v1549, 5
      %v1552 = vor.u32 %v1548, %v1551
      %v1553 = vrot.slane %v1552, 4
      %v1555 = vshll.u32 %v1470, 16
      %v1557 = vrot.slane %v1555, 5
      %v1558 = vsel %vm363, %v1553, %v1557
      %v1560 = vshrl.u32 %v1471, 16
      %v1562 = vrot.slane %v1560, 4
      %v1563 = vshll.u32 %v1471, 16
      %v1565 = vrot.slane %v1563, 5
      %v1566 = vor.u32 %v1562, %v1565
      %v1567 = vrot.slane %v1566, 4
      %v1569 = vshll.u32 %v1472, 16
      %v1571 = vrot.slane %v1569, 5
      %v1572 = vsel %vm363, %v1567, %v1571
      %v1574 = vshrl.u32 %v1473, 16
      %v1576 = vrot.slane %v1574, 4
      %v1577 = vshll.u32 %v1473, 16
      %v1579 = vrot.slane %v1577, 5
      %v1580 = vor.u32 %v1576, %v1579
      %v1581 = vrot.slane %v1580, 4
      %v1583 = vshll.u32 %v1474, 16
      %v1585 = vrot.slane %v1583, 5
      %v1586 = vsel %vm363, %v1581, %v1585
      %s1587 = scalar_lea.vmem %s3, 28
      %v1588 = vld [vmem:[%s1587] sm:$0xf]
      %v1589 = vunpack.c.l.b16 %v1488
      %v1590 = vunpack.c.l.b16 %v1502
      %v1591 = vunpack.c.l.b16 %v1516
      %v1592 = vunpack.c.l.b16 %v1530
      %v1593 = vunpack.c.l.b16 %v1544
      %v1594 = vunpack.c.l.b16 %v1558
      %v1595 = vunpack.c.l.b16 %v1572
      %v1596 = vunpack.c.l.b16 %v1586
      %v1597 = vpack.c.b16 %v1590, %v1589
      %v1598 = vpack.c.b16 %v1592, %v1591
      %v1599 = vpack.c.b16 %v1594, %v1593
      %v1600 = vpack.c.b16 %v1596, %v1595
      %v1602 = vsel %vm490, %v1597, 0
      %v1605 = vsel %vm490, %v1598, 0
      %v1608 = vsel %vm490, %v1599, 0
      %v1611 = vsel %vm490, %v1600, 0
      %v1614 = vsel %vm503, %v1588, 0
      %1616 = vmatprep.subr.bf16.mxu0 0
      %1617 = vmatpush1.bf16.msra.mxu0 0
      %1618 = vmatprep.subr.bf16.mxu0 0
      %1619 = vmatpush1.bf16.msra.mxu0 0
      %1620 = vmatprep.subr.bf16.mxu0 0
      %1621 = vmatpush1.bf16.msra.mxu0 0
      %1622 = vmatprep.subr.bf16.mxu0 0
      %1623 = vmatpush1.bf16.msra.mxu0 0
      %1624 = vmatprep.subr.bf16.mxu0 0
      %1625 = vmatpush1.bf16.msra.mxu0 0
      %1626 = vmatprep.subr.bf16.mxu0 0
      %1627 = vmatpush1.bf16.msra.mxu0 0
      %1628 = vmatprep.subr.bf16.mxu0 0
      %1629 = vmatpush1.bf16.msra.mxu0 0
      %1630 = vmatprep.subr.bf16.mxu0 0
      %1631 = vmatpush1.bf16.msra.mxu0 %v1614
      %1632 = vmatprep.subr.bf16.mxu0 0
      %1633 = vmatpush2.bf16.msra.mxu0 0
      %1634 = vmatprep.subr.bf16.mxu0 0
      %1635 = vmatpush2.bf16.msra.mxu0 0
      %1636 = vmatprep.subr.bf16.mxu0 0
      %1637 = vmatpush2.bf16.msra.mxu0 0
      %1638 = vmatprep.subr.bf16.mxu0 0
      %1639 = vmatpush2.bf16.msra.mxu0 0
      %1640 = vmatprep.subr.bf16.mxu0 0
      %1641 = vmatpush2.bf16.msra.mxu0 0
      %1642 = vmatprep.subr.bf16.mxu0 0
      %1643 = vmatpush2.bf16.msra.mxu0 0
      %1644 = vmatprep.subr.bf16.mxu0 0
      %1645 = vmatpush2.bf16.msra.mxu0 0
      %1646 = vmatprep.subr.bf16.mxu0 0
      %1647 = vmatpush2.bf16.msra.mxu0 0
      %1648 = vmatprep.mubr.bf16.mxu0 0
      %1649 = vmatmul.mubr.bf16.gmra.mxu0 %v1602
      %v1650 = vpop.f32.mrf.mxu0
      %v1651 = vadd.f32 0.0, %v1650
      %v1652 = vpop.f32.mrf.mxu0
      %v1653 = vpop.f32.mrf.mxu0
      %v1654 = vadd.f32 0.0, %v1653
      %v1655 = vpop.f32.mrf.mxu0
      %1656 = vmatprep.mubr.bf16.mxu0 0
      %1657 = vmatmul.mubr.bf16.gmra.mxu0 %v1605
      %v1658 = vpop.f32.mrf.mxu0
      %v1659 = vadd.f32 0.0, %v1658
      %v1660 = vpop.f32.mrf.mxu0
      %v1661 = vpop.f32.mrf.mxu0
      %v1662 = vadd.f32 0.0, %v1661
      %v1663 = vpop.f32.mrf.mxu0
      %1664 = vmatprep.mubr.bf16.mxu0 0
      %1665 = vmatmul.mubr.bf16.gmra.mxu0 %v1608
      %v1666 = vpop.f32.mrf.mxu0
      %v1667 = vadd.f32 0.0, %v1666
      %v1668 = vpop.f32.mrf.mxu0
      %v1669 = vpop.f32.mrf.mxu0
      %v1670 = vadd.f32 0.0, %v1669
      %v1671 = vpop.f32.mrf.mxu0
      %1672 = vmatprep.mubr.bf16.mxu0 0
      %1673 = vmatmul.mubr.bf16.gmra.mxu0 %v1611
      %v1674 = vpop.f32.mrf.mxu0
      %v1675 = vadd.f32 0.0, %v1674
      %v1676 = vpop.f32.mrf.mxu0
      %v1677 = vpop.f32.mrf.mxu0
      %v1678 = vadd.f32 0.0, %v1677
      %v1679 = vpop.f32.mrf.mxu0
      %1680 = vdwg.mxu0
      %v1681 = vadd.f32 %v1451, %v1651
      %v1682 = vadd.f32 %v1452, %v1654
      %v1683 = vadd.f32 %v1453, %v1659
      %v1684 = vadd.f32 %v1454, %v1662
      %v1685 = vadd.f32 %v1455, %v1667
      %v1686 = vadd.f32 %v1456, %v1670
      %v1687 = vadd.f32 %v1457, %v1675
      %v1688 = vadd.f32 %v1458, %v1678
      %v1689 = vld [vmem:[%s1340] sm:$0xe]
      %v1690 = vld [vmem:[%s1340 + $0x8] sm:$0xe]
      %v1691 = vld [vmem:[%s1340 + $0x10] sm:$0xe]
      %v1692 = vld [vmem:[%s1340 + $0x18] sm:$0xe]
      %v1693 = vld [vmem:[%s1340 + $0x20] sm:$0xe]
      %v1694 = vld [vmem:[%s1340 + $0x28] sm:$0xe]
      %v1695 = vld [vmem:[%s1340 + $0x30] sm:$0xe]
      %v1696 = vld [vmem:[%s1340 + $0x38] sm:$0xe]
      %v1713 = vrot.slane %v1689, 5
      %v1714 = vrot.slane %v1713, 4
      %v1715 = vrot.slane %v1460, 5
      %v1716 = vsel %vm698, %v1714, %v1715
      %v1717 = vrot.slane %v1690, 5
      %v1718 = vrot.slane %v1717, 4
      %v1719 = vrot.slane %v1462, 5
      %v1720 = vsel %vm698, %v1718, %v1719
      %v1721 = vrot.slane %v1691, 5
      %v1722 = vrot.slane %v1721, 4
      %v1723 = vrot.slane %v1464, 5
      %v1724 = vsel %vm698, %v1722, %v1723
      %v1725 = vrot.slane %v1692, 5
      %v1726 = vrot.slane %v1725, 4
      %v1727 = vrot.slane %v1466, 5
      %v1728 = vsel %vm698, %v1726, %v1727
      %v1729 = vrot.slane %v1693, 5
      %v1730 = vrot.slane %v1729, 4
      %v1731 = vrot.slane %v1468, 5
      %v1732 = vsel %vm698, %v1730, %v1731
      %v1733 = vrot.slane %v1694, 5
      %v1734 = vrot.slane %v1733, 4
      %v1735 = vrot.slane %v1470, 5
      %v1736 = vsel %vm698, %v1734, %v1735
      %v1737 = vrot.slane %v1695, 5
      %v1738 = vrot.slane %v1737, 4
      %v1739 = vrot.slane %v1472, 5
      %v1740 = vsel %vm698, %v1738, %v1739
      %v1741 = vrot.slane %v1696, 5
      %v1742 = vrot.slane %v1741, 4
      %v1743 = vrot.slane %v1474, 5
      %v1744 = vsel %vm698, %v1742, %v1743
      %s1745 = scalar_lea.vmem %s3, 32
      %v1746 = vld [vmem:[%s1745] sm:$0xf]
      %v1747 = vunpack.c.l.b16 %v1716
      %v1748 = vunpack.c.l.b16 %v1720
      %v1749 = vunpack.c.l.b16 %v1724
      %v1750 = vunpack.c.l.b16 %v1728
      %v1751 = vunpack.c.l.b16 %v1732
      %v1752 = vunpack.c.l.b16 %v1736
      %v1753 = vunpack.c.l.b16 %v1740
      %v1754 = vunpack.c.l.b16 %v1744
      %v1755 = vpack.c.b16 %v1748, %v1747
      %v1756 = vpack.c.b16 %v1750, %v1749
      %v1757 = vpack.c.b16 %v1752, %v1751
      %v1758 = vpack.c.b16 %v1754, %v1753
      %v1760 = vsel %vm490, %v1755, 0
      %v1763 = vsel %vm490, %v1756, 0
      %v1766 = vsel %vm490, %v1757, 0
      %v1769 = vsel %vm490, %v1758, 0
      %v1772 = vsel %vm503, %v1746, 0
      %1774 = vmatprep.subr.bf16.mxu0 0
      %1775 = vmatpush1.bf16.msra.mxu0 0
      %1776 = vmatprep.subr.bf16.mxu0 0
      %1777 = vmatpush1.bf16.msra.mxu0 0
      %1778 = vmatprep.subr.bf16.mxu0 0
      %1779 = vmatpush1.bf16.msra.mxu0 0
      %1780 = vmatprep.subr.bf16.mxu0 0
      %1781 = vmatpush1.bf16.msra.mxu0 0
      %1782 = vmatprep.subr.bf16.mxu0 0
      %1783 = vmatpush1.bf16.msra.mxu0 0
      %1784 = vmatprep.subr.bf16.mxu0 0
      %1785 = vmatpush1.bf16.msra.mxu0 0
      %1786 = vmatprep.subr.bf16.mxu0 0
      %1787 = vmatpush1.bf16.msra.mxu0 0
      %1788 = vmatprep.subr.bf16.mxu0 0
      %1789 = vmatpush1.bf16.msra.mxu0 %v1772
      %1790 = vmatprep.subr.bf16.mxu0 0
      %1791 = vmatpush2.bf16.msra.mxu0 0
      %1792 = vmatprep.subr.bf16.mxu0 0
      %1793 = vmatpush2.bf16.msra.mxu0 0
      %1794 = vmatprep.subr.bf16.mxu0 0
      %1795 = vmatpush2.bf16.msra.mxu0 0
      %1796 = vmatprep.subr.bf16.mxu0 0
      %1797 = vmatpush2.bf16.msra.mxu0 0
      %1798 = vmatprep.subr.bf16.mxu0 0
      %1799 = vmatpush2.bf16.msra.mxu0 0
      %1800 = vmatprep.subr.bf16.mxu0 0
      %1801 = vmatpush2.bf16.msra.mxu0 0
      %1802 = vmatprep.subr.bf16.mxu0 0
      %1803 = vmatpush2.bf16.msra.mxu0 0
      %1804 = vmatprep.subr.bf16.mxu0 0
      %1805 = vmatpush2.bf16.msra.mxu0 0
      %1806 = vmatprep.mubr.bf16.mxu0 0
      %1807 = vmatmul.mubr.bf16.gmra.mxu0 %v1760
      %v1808 = vpop.f32.mrf.mxu0
      %v1809 = vadd.f32 0.0, %v1808
      %v1810 = vpop.f32.mrf.mxu0
      %v1811 = vpop.f32.mrf.mxu0
      %v1812 = vadd.f32 0.0, %v1811
      %v1813 = vpop.f32.mrf.mxu0
      %1814 = vmatprep.mubr.bf16.mxu0 0
      %1815 = vmatmul.mubr.bf16.gmra.mxu0 %v1763
      %v1816 = vpop.f32.mrf.mxu0
      %v1817 = vadd.f32 0.0, %v1816
      %v1818 = vpop.f32.mrf.mxu0
      %v1819 = vpop.f32.mrf.mxu0
      %v1820 = vadd.f32 0.0, %v1819
      %v1821 = vpop.f32.mrf.mxu0
      %1822 = vmatprep.mubr.bf16.mxu0 0
      %1823 = vmatmul.mubr.bf16.gmra.mxu0 %v1766
      %v1824 = vpop.f32.mrf.mxu0
      %v1825 = vadd.f32 0.0, %v1824
      %v1826 = vpop.f32.mrf.mxu0
      %v1827 = vpop.f32.mrf.mxu0
      %v1828 = vadd.f32 0.0, %v1827
      %v1829 = vpop.f32.mrf.mxu0
      %1830 = vmatprep.mubr.bf16.mxu0 0
      %1831 = vmatmul.mubr.bf16.gmra.mxu0 %v1769
      %v1832 = vpop.f32.mrf.mxu0
      %v1833 = vadd.f32 0.0, %v1832
      %v1834 = vpop.f32.mrf.mxu0
      %v1835 = vpop.f32.mrf.mxu0
      %v1836 = vadd.f32 0.0, %v1835
      %v1837 = vpop.f32.mrf.mxu0
      %1838 = vdwg.mxu0
      %v1839 = vadd.f32 %v1681, %v1809
      %v1840 = vadd.f32 %v1682, %v1812
      %v1841 = vadd.f32 %v1683, %v1817
      %v1842 = vadd.f32 %v1684, %v1820
      %v1843 = vadd.f32 %v1685, %v1825
      %v1844 = vadd.f32 %v1686, %v1828
      %v1845 = vadd.f32 %v1687, %v1833
      %v1846 = vadd.f32 %v1688, %v1836
      %v1847 = vld [vmem:[%s321] sm:$0xf]
      %v1848 = vld [vmem:[%s321 + $0x8] sm:$0xf]
      %v1849 = vld [vmem:[%s321 + $0x10] sm:$0xf]
      %v1850 = vld [vmem:[%s321 + $0x18] sm:$0xf]
      %v1851 = vld [vmem:[%s321 + $0x20] sm:$0xf]
      %v1852 = vld [vmem:[%s321 + $0x28] sm:$0xf]
      %v1853 = vld [vmem:[%s321 + $0x30] sm:$0xf]
      %v1854 = vld [vmem:[%s321 + $0x38] sm:$0xf]
      %s1855 = scalar_lea.vmem %s3, 36
      %v1856 = vld [vmem:[%s1855] sm:$0xf]
      %v1865 = vunpack.c.l.b16 %v1847
      %v1866 = vunpack.c.l.b16 %v1848
      %v1867 = vunpack.c.l.b16 %v1849
      %v1868 = vunpack.c.l.b16 %v1850
      %v1869 = vunpack.c.l.b16 %v1851
      %v1870 = vunpack.c.l.b16 %v1852
      %v1871 = vunpack.c.l.b16 %v1853
      %v1872 = vunpack.c.l.b16 %v1854
      %v1873 = vpack.c.b16 %v1866, %v1865
      %v1874 = vpack.c.b16 %v1868, %v1867
      %v1875 = vpack.c.b16 %v1870, %v1869
      %v1876 = vpack.c.b16 %v1872, %v1871
      %v1878 = vsel %vm490, %v1873, 0
      %v1881 = vsel %vm490, %v1874, 0
      %v1884 = vsel %vm490, %v1875, 0
      %v1887 = vsel %vm490, %v1876, 0
      %v1890 = vsel %vm503, %v1856, 0
      %1892 = vmatprep.subr.bf16.mxu0 0
      %1893 = vmatpush1.bf16.msra.mxu0 0
      %1894 = vmatprep.subr.bf16.mxu0 0
      %1895 = vmatpush1.bf16.msra.mxu0 0
      %1896 = vmatprep.subr.bf16.mxu0 0
      %1897 = vmatpush1.bf16.msra.mxu0 0
      %1898 = vmatprep.subr.bf16.mxu0 0
      %1899 = vmatpush1.bf16.msra.mxu0 0
      %1900 = vmatprep.subr.bf16.mxu0 0
      %1901 = vmatpush1.bf16.msra.mxu0 0
      %1902 = vmatprep.subr.bf16.mxu0 0
      %1903 = vmatpush1.bf16.msra.mxu0 0
      %1904 = vmatprep.subr.bf16.mxu0 0
      %1905 = vmatpush1.bf16.msra.mxu0 0
      %1906 = vmatprep.subr.bf16.mxu0 0
      %1907 = vmatpush1.bf16.msra.mxu0 %v1890
      %1908 = vmatprep.subr.bf16.mxu0 0
      %1909 = vmatpush2.bf16.msra.mxu0 0
      %1910 = vmatprep.subr.bf16.mxu0 0
      %1911 = vmatpush2.bf16.msra.mxu0 0
      %1912 = vmatprep.subr.bf16.mxu0 0
      %1913 = vmatpush2.bf16.msra.mxu0 0
      %1914 = vmatprep.subr.bf16.mxu0 0
      %1915 = vmatpush2.bf16.msra.mxu0 0
      %1916 = vmatprep.subr.bf16.mxu0 0
      %1917 = vmatpush2.bf16.msra.mxu0 0
      %1918 = vmatprep.subr.bf16.mxu0 0
      %1919 = vmatpush2.bf16.msra.mxu0 0
      %1920 = vmatprep.subr.bf16.mxu0 0
      %1921 = vmatpush2.bf16.msra.mxu0 0
      %1922 = vmatprep.subr.bf16.mxu0 0
      %1923 = vmatpush2.bf16.msra.mxu0 0
      %1924 = vmatprep.mubr.bf16.mxu0 0
      %1925 = vmatmul.mubr.bf16.gmra.mxu0 %v1878
      %v1926 = vpop.f32.mrf.mxu0
      %v1927 = vadd.f32 0.0, %v1926
      %v1928 = vpop.f32.mrf.mxu0
      %v1929 = vpop.f32.mrf.mxu0
      %v1930 = vadd.f32 0.0, %v1929
      %v1931 = vpop.f32.mrf.mxu0
      %1932 = vmatprep.mubr.bf16.mxu0 0
      %1933 = vmatmul.mubr.bf16.gmra.mxu0 %v1881
      %v1934 = vpop.f32.mrf.mxu0
      %v1935 = vadd.f32 0.0, %v1934
      %v1936 = vpop.f32.mrf.mxu0
      %v1937 = vpop.f32.mrf.mxu0
      %v1938 = vadd.f32 0.0, %v1937
      %v1939 = vpop.f32.mrf.mxu0
      %1940 = vmatprep.mubr.bf16.mxu0 0
      %1941 = vmatmul.mubr.bf16.gmra.mxu0 %v1884
      %v1942 = vpop.f32.mrf.mxu0
      %v1943 = vadd.f32 0.0, %v1942
      %v1944 = vpop.f32.mrf.mxu0
      %v1945 = vpop.f32.mrf.mxu0
      %v1946 = vadd.f32 0.0, %v1945
      %v1947 = vpop.f32.mrf.mxu0
      %1948 = vmatprep.mubr.bf16.mxu0 0
      %1949 = vmatmul.mubr.bf16.gmra.mxu0 %v1887
      %v1950 = vpop.f32.mrf.mxu0
      %v1951 = vadd.f32 0.0, %v1950
      %v1952 = vpop.f32.mrf.mxu0
      %v1953 = vpop.f32.mrf.mxu0
      %v1954 = vadd.f32 0.0, %v1953
      %v1955 = vpop.f32.mrf.mxu0
      %1956 = vdwg.mxu0
      %v1957 = vadd.f32 %v1839, %v1927
      %v1958 = vadd.f32 %v1840, %v1930
      %v1959 = vadd.f32 %v1841, %v1935
      %v1960 = vadd.f32 %v1842, %v1938
      %v1961 = vadd.f32 %v1843, %v1943
      %v1962 = vadd.f32 %v1844, %v1946
      %v1963 = vadd.f32 %v1845, %v1951
      %v1964 = vadd.f32 %v1846, %v1954
      %v1965 = vld [vmem:[%s321] sm:$0xf]
      %v1966 = vld [vmem:[%s321 + $0x4] sm:$0x1]
      %v1967 = vld [vmem:[%s321 + $0x8] sm:$0xf]
      %v1968 = vld [vmem:[%s321 + $0xc] sm:$0x1]
      %v1969 = vld [vmem:[%s321 + $0x10] sm:$0xf]
      %v1970 = vld [vmem:[%s321 + $0x14] sm:$0x1]
      %v1971 = vld [vmem:[%s321 + $0x18] sm:$0xf]
      %v1972 = vld [vmem:[%s321 + $0x1c] sm:$0x1]
      %v1973 = vld [vmem:[%s321 + $0x20] sm:$0xf]
      %v1974 = vld [vmem:[%s321 + $0x24] sm:$0x1]
      %v1975 = vld [vmem:[%s321 + $0x28] sm:$0xf]
      %v1976 = vld [vmem:[%s321 + $0x2c] sm:$0x1]
      %v1977 = vld [vmem:[%s321 + $0x30] sm:$0xf]
      %v1978 = vld [vmem:[%s321 + $0x34] sm:$0x1]
      %v1979 = vld [vmem:[%s321 + $0x38] sm:$0xf]
      %v1980 = vld [vmem:[%s321 + $0x3c] sm:$0x1]
      %v1982 = vshrl.u32 %v1965, 16
      %v1984 = vrot.slane %v1982, 4
      %v1985 = vshll.u32 %v1965, 16
      %v1987 = vrot.slane %v1985, 5
      %v1988 = vor.u32 %v1984, %v1987
      %v1989 = vrot.slane %v1988, 4
      %v1991 = vshll.u32 %v1966, 16
      %v1993 = vrot.slane %v1991, 5
      %v1994 = vsel %vm363, %v1989, %v1993
      %v1996 = vshrl.u32 %v1967, 16
      %v1998 = vrot.slane %v1996, 4
      %v1999 = vshll.u32 %v1967, 16
      %v2001 = vrot.slane %v1999, 5
      %v2002 = vor.u32 %v1998, %v2001
      %v2003 = vrot.slane %v2002, 4
      %v2005 = vshll.u32 %v1968, 16
      %v2007 = vrot.slane %v2005, 5
      %v2008 = vsel %vm363, %v2003, %v2007
      %v2010 = vshrl.u32 %v1969, 16
      %v2012 = vrot.slane %v2010, 4
      %v2013 = vshll.u32 %v1969, 16
      %v2015 = vrot.slane %v2013, 5
      %v2016 = vor.u32 %v2012, %v2015
      %v2017 = vrot.slane %v2016, 4
      %v2019 = vshll.u32 %v1970, 16
      %v2021 = vrot.slane %v2019, 5
      %v2022 = vsel %vm363, %v2017, %v2021
      %v2024 = vshrl.u32 %v1971, 16
      %v2026 = vrot.slane %v2024, 4
      %v2027 = vshll.u32 %v1971, 16
      %v2029 = vrot.slane %v2027, 5
      %v2030 = vor.u32 %v2026, %v2029
      %v2031 = vrot.slane %v2030, 4
      %v2033 = vshll.u32 %v1972, 16
      %v2035 = vrot.slane %v2033, 5
      %v2036 = vsel %vm363, %v2031, %v2035
      %v2038 = vshrl.u32 %v1973, 16
      %v2040 = vrot.slane %v2038, 4
      %v2041 = vshll.u32 %v1973, 16
      %v2043 = vrot.slane %v2041, 5
      %v2044 = vor.u32 %v2040, %v2043
      %v2045 = vrot.slane %v2044, 4
      %v2047 = vshll.u32 %v1974, 16
      %v2049 = vrot.slane %v2047, 5
      %v2050 = vsel %vm363, %v2045, %v2049
      %v2052 = vshrl.u32 %v1975, 16
      %v2054 = vrot.slane %v2052, 4
      %v2055 = vshll.u32 %v1975, 16
      %v2057 = vrot.slane %v2055, 5
      %v2058 = vor.u32 %v2054, %v2057
      %v2059 = vrot.slane %v2058, 4
      %v2061 = vshll.u32 %v1976, 16
      %v2063 = vrot.slane %v2061, 5
      %v2064 = vsel %vm363, %v2059, %v2063
      %v2066 = vshrl.u32 %v1977, 16
      %v2068 = vrot.slane %v2066, 4
      %v2069 = vshll.u32 %v1977, 16
      %v2071 = vrot.slane %v2069, 5
      %v2072 = vor.u32 %v2068, %v2071
      %v2073 = vrot.slane %v2072, 4
      %v2075 = vshll.u32 %v1978, 16
      %v2077 = vrot.slane %v2075, 5
      %v2078 = vsel %vm363, %v2073, %v2077
      %v2080 = vshrl.u32 %v1979, 16
      %v2082 = vrot.slane %v2080, 4
      %v2083 = vshll.u32 %v1979, 16
      %v2085 = vrot.slane %v2083, 5
      %v2086 = vor.u32 %v2082, %v2085
      %v2087 = vrot.slane %v2086, 4
      %v2089 = vshll.u32 %v1980, 16
      %v2091 = vrot.slane %v2089, 5
      %v2092 = vsel %vm363, %v2087, %v2091
      %s2093 = scalar_lea.vmem %s3, 40
      %v2094 = vld [vmem:[%s2093] sm:$0xf]
      %v2095 = vunpack.c.l.b16 %v1994
      %v2096 = vunpack.c.l.b16 %v2008
      %v2097 = vunpack.c.l.b16 %v2022
      %v2098 = vunpack.c.l.b16 %v2036
      %v2099 = vunpack.c.l.b16 %v2050
      %v2100 = vunpack.c.l.b16 %v2064
      %v2101 = vunpack.c.l.b16 %v2078
      %v2102 = vunpack.c.l.b16 %v2092
      %v2103 = vpack.c.b16 %v2096, %v2095
      %v2104 = vpack.c.b16 %v2098, %v2097
      %v2105 = vpack.c.b16 %v2100, %v2099
      %v2106 = vpack.c.b16 %v2102, %v2101
      %v2108 = vsel %vm490, %v2103, 0
      %v2111 = vsel %vm490, %v2104, 0
      %v2114 = vsel %vm490, %v2105, 0
      %v2117 = vsel %vm490, %v2106, 0
      %v2120 = vsel %vm503, %v2094, 0
      %2122 = vmatprep.subr.bf16.mxu0 0
      %2123 = vmatpush1.bf16.msra.mxu0 0
      %2124 = vmatprep.subr.bf16.mxu0 0
      %2125 = vmatpush1.bf16.msra.mxu0 0
      %2126 = vmatprep.subr.bf16.mxu0 0
      %2127 = vmatpush1.bf16.msra.mxu0 0
      %2128 = vmatprep.subr.bf16.mxu0 0
      %2129 = vmatpush1.bf16.msra.mxu0 0
      %2130 = vmatprep.subr.bf16.mxu0 0
      %2131 = vmatpush1.bf16.msra.mxu0 0
      %2132 = vmatprep.subr.bf16.mxu0 0
      %2133 = vmatpush1.bf16.msra.mxu0 0
      %2134 = vmatprep.subr.bf16.mxu0 0
      %2135 = vmatpush1.bf16.msra.mxu0 0
      %2136 = vmatprep.subr.bf16.mxu0 0
      %2137 = vmatpush1.bf16.msra.mxu0 %v2120
      %2138 = vmatprep.subr.bf16.mxu0 0
      %2139 = vmatpush2.bf16.msra.mxu0 0
      %2140 = vmatprep.subr.bf16.mxu0 0
      %2141 = vmatpush2.bf16.msra.mxu0 0
      %2142 = vmatprep.subr.bf16.mxu0 0
      %2143 = vmatpush2.bf16.msra.mxu0 0
      %2144 = vmatprep.subr.bf16.mxu0 0
      %2145 = vmatpush2.bf16.msra.mxu0 0
      %2146 = vmatprep.subr.bf16.mxu0 0
      %2147 = vmatpush2.bf16.msra.mxu0 0
      %2148 = vmatprep.subr.bf16.mxu0 0
      %2149 = vmatpush2.bf16.msra.mxu0 0
      %2150 = vmatprep.subr.bf16.mxu0 0
      %2151 = vmatpush2.bf16.msra.mxu0 0
      %2152 = vmatprep.subr.bf16.mxu0 0
      %2153 = vmatpush2.bf16.msra.mxu0 0
      %2154 = vmatprep.mubr.bf16.mxu0 0
      %2155 = vmatmul.mubr.bf16.gmra.mxu0 %v2108
      %v2156 = vpop.f32.mrf.mxu0
      %v2157 = vadd.f32 0.0, %v2156
      %v2158 = vpop.f32.mrf.mxu0
      %v2159 = vpop.f32.mrf.mxu0
      %v2160 = vadd.f32 0.0, %v2159
      %v2161 = vpop.f32.mrf.mxu0
      %2162 = vmatprep.mubr.bf16.mxu0 0
      %2163 = vmatmul.mubr.bf16.gmra.mxu0 %v2111
      %v2164 = vpop.f32.mrf.mxu0
      %v2165 = vadd.f32 0.0, %v2164
      %v2166 = vpop.f32.mrf.mxu0
      %v2167 = vpop.f32.mrf.mxu0
      %v2168 = vadd.f32 0.0, %v2167
      %v2169 = vpop.f32.mrf.mxu0
      %2170 = vmatprep.mubr.bf16.mxu0 0
      %2171 = vmatmul.mubr.bf16.gmra.mxu0 %v2114
      %v2172 = vpop.f32.mrf.mxu0
      %v2173 = vadd.f32 0.0, %v2172
      %v2174 = vpop.f32.mrf.mxu0
      %v2175 = vpop.f32.mrf.mxu0
      %v2176 = vadd.f32 0.0, %v2175
      %v2177 = vpop.f32.mrf.mxu0
      %2178 = vmatprep.mubr.bf16.mxu0 0
      %2179 = vmatmul.mubr.bf16.gmra.mxu0 %v2117
      %v2180 = vpop.f32.mrf.mxu0
      %v2181 = vadd.f32 0.0, %v2180
      %v2182 = vpop.f32.mrf.mxu0
      %v2183 = vpop.f32.mrf.mxu0
      %v2184 = vadd.f32 0.0, %v2183
      %v2185 = vpop.f32.mrf.mxu0
      %2186 = vdwg.mxu0
      %v2187 = vadd.f32 %v1957, %v2157
      %v2188 = vadd.f32 %v1958, %v2160
      %v2189 = vadd.f32 %v1959, %v2165
      %v2190 = vadd.f32 %v1960, %v2168
      %v2191 = vadd.f32 %v1961, %v2173
      %v2192 = vadd.f32 %v1962, %v2176
      %v2193 = vadd.f32 %v1963, %v2181
      %v2194 = vadd.f32 %v1964, %v2184
      %v2195 = vld [vmem:[%s321] sm:$0xe]
      %v2196 = vld [vmem:[%s321 + $0x8] sm:$0xe]
      %v2197 = vld [vmem:[%s321 + $0x10] sm:$0xe]
      %v2198 = vld [vmem:[%s321 + $0x18] sm:$0xe]
      %v2199 = vld [vmem:[%s321 + $0x20] sm:$0xe]
      %v2200 = vld [vmem:[%s321 + $0x28] sm:$0xe]
      %v2201 = vld [vmem:[%s321 + $0x30] sm:$0xe]
      %v2202 = vld [vmem:[%s321 + $0x38] sm:$0xe]
      %v2219 = vrot.slane %v2195, 5
      %v2220 = vrot.slane %v2219, 4
      %v2221 = vrot.slane %v1966, 5
      %v2222 = vsel %vm698, %v2220, %v2221
      %v2223 = vrot.slane %v2196, 5
      %v2224 = vrot.slane %v2223, 4
      %v2225 = vrot.slane %v1968, 5
      %v2226 = vsel %vm698, %v2224, %v2225
      %v2227 = vrot.slane %v2197, 5
      %v2228 = vrot.slane %v2227, 4
      %v2229 = vrot.slane %v1970, 5
      %v2230 = vsel %vm698, %v2228, %v2229
      %v2231 = vrot.slane %v2198, 5
      %v2232 = vrot.slane %v2231, 4
      %v2233 = vrot.slane %v1972, 5
      %v2234 = vsel %vm698, %v2232, %v2233
      %v2235 = vrot.slane %v2199, 5
      %v2236 = vrot.slane %v2235, 4
      %v2237 = vrot.slane %v1974, 5
      %v2238 = vsel %vm698, %v2236, %v2237
      %v2239 = vrot.slane %v2200, 5
      %v2240 = vrot.slane %v2239, 4
      %v2241 = vrot.slane %v1976, 5
      %v2242 = vsel %vm698, %v2240, %v2241
      %v2243 = vrot.slane %v2201, 5
      %v2244 = vrot.slane %v2243, 4
      %v2245 = vrot.slane %v1978, 5
      %v2246 = vsel %vm698, %v2244, %v2245
      %v2247 = vrot.slane %v2202, 5
      %v2248 = vrot.slane %v2247, 4
      %v2249 = vrot.slane %v1980, 5
      %v2250 = vsel %vm698, %v2248, %v2249
      %s2251 = scalar_lea.vmem %s3, 44
      %v2252 = vld [vmem:[%s2251] sm:$0xf]
      %v2253 = vunpack.c.l.b16 %v2222
      %v2254 = vunpack.c.l.b16 %v2226
      %v2255 = vunpack.c.l.b16 %v2230
      %v2256 = vunpack.c.l.b16 %v2234
      %v2257 = vunpack.c.l.b16 %v2238
      %v2258 = vunpack.c.l.b16 %v2242
      %v2259 = vunpack.c.l.b16 %v2246
      %v2260 = vunpack.c.l.b16 %v2250
      %v2261 = vpack.c.b16 %v2254, %v2253
      %v2262 = vpack.c.b16 %v2256, %v2255
      %v2263 = vpack.c.b16 %v2258, %v2257
      %v2264 = vpack.c.b16 %v2260, %v2259
      %v2266 = vsel %vm490, %v2261, 0
      %v2269 = vsel %vm490, %v2262, 0
      %v2272 = vsel %vm490, %v2263, 0
      %v2275 = vsel %vm490, %v2264, 0
      %v2278 = vsel %vm503, %v2252, 0
      %2280 = vmatprep.subr.bf16.mxu0 0
      %2281 = vmatpush1.bf16.msra.mxu0 0
      %2282 = vmatprep.subr.bf16.mxu0 0
      %2283 = vmatpush1.bf16.msra.mxu0 0
      %2284 = vmatprep.subr.bf16.mxu0 0
      %2285 = vmatpush1.bf16.msra.mxu0 0
      %2286 = vmatprep.subr.bf16.mxu0 0
      %2287 = vmatpush1.bf16.msra.mxu0 0
      %2288 = vmatprep.subr.bf16.mxu0 0
      %2289 = vmatpush1.bf16.msra.mxu0 0
      %2290 = vmatprep.subr.bf16.mxu0 0
      %2291 = vmatpush1.bf16.msra.mxu0 0
      %2292 = vmatprep.subr.bf16.mxu0 0
      %2293 = vmatpush1.bf16.msra.mxu0 0
      %2294 = vmatprep.subr.bf16.mxu0 0
      %2295 = vmatpush1.bf16.msra.mxu0 %v2278
      %2296 = vmatprep.subr.bf16.mxu0 0
      %2297 = vmatpush2.bf16.msra.mxu0 0
      %2298 = vmatprep.subr.bf16.mxu0 0
      %2299 = vmatpush2.bf16.msra.mxu0 0
      %2300 = vmatprep.subr.bf16.mxu0 0
      %2301 = vmatpush2.bf16.msra.mxu0 0
      %2302 = vmatprep.subr.bf16.mxu0 0
      %2303 = vmatpush2.bf16.msra.mxu0 0
      %2304 = vmatprep.subr.bf16.mxu0 0
      %2305 = vmatpush2.bf16.msra.mxu0 0
      %2306 = vmatprep.subr.bf16.mxu0 0
      %2307 = vmatpush2.bf16.msra.mxu0 0
      %2308 = vmatprep.subr.bf16.mxu0 0
      %2309 = vmatpush2.bf16.msra.mxu0 0
      %2310 = vmatprep.subr.bf16.mxu0 0
      %2311 = vmatpush2.bf16.msra.mxu0 0
      %2312 = vmatprep.mubr.bf16.mxu0 0
      %2313 = vmatmul.mubr.bf16.gmra.mxu0 %v2266
      %v2314 = vpop.f32.mrf.mxu0
      %v2315 = vadd.f32 0.0, %v2314
      %v2316 = vpop.f32.mrf.mxu0
      %v2317 = vpop.f32.mrf.mxu0
      %v2318 = vadd.f32 0.0, %v2317
      %v2319 = vpop.f32.mrf.mxu0
      %2320 = vmatprep.mubr.bf16.mxu0 0
      %2321 = vmatmul.mubr.bf16.gmra.mxu0 %v2269
      %v2322 = vpop.f32.mrf.mxu0
      %v2323 = vadd.f32 0.0, %v2322
      %v2324 = vpop.f32.mrf.mxu0
      %v2325 = vpop.f32.mrf.mxu0
      %v2326 = vadd.f32 0.0, %v2325
      %v2327 = vpop.f32.mrf.mxu0
      %2328 = vmatprep.mubr.bf16.mxu0 0
      %2329 = vmatmul.mubr.bf16.gmra.mxu0 %v2272
      %v2330 = vpop.f32.mrf.mxu0
      %v2331 = vadd.f32 0.0, %v2330
      %v2332 = vpop.f32.mrf.mxu0
      %v2333 = vpop.f32.mrf.mxu0
      %v2334 = vadd.f32 0.0, %v2333
      %v2335 = vpop.f32.mrf.mxu0
      %2336 = vmatprep.mubr.bf16.mxu0 0
      %2337 = vmatmul.mubr.bf16.gmra.mxu0 %v2275
      %v2338 = vpop.f32.mrf.mxu0
      %v2339 = vadd.f32 0.0, %v2338
      %v2340 = vpop.f32.mrf.mxu0
      %v2341 = vpop.f32.mrf.mxu0
      %v2342 = vadd.f32 0.0, %v2341
      %v2343 = vpop.f32.mrf.mxu0
      %2344 = vdwg.mxu0
      %v2345 = vadd.f32 %v2187, %v2315
      %v2346 = vadd.f32 %v2188, %v2318
      %v2347 = vadd.f32 %v2189, %v2323
      %v2348 = vadd.f32 %v2190, %v2326
      %v2349 = vadd.f32 %v2191, %v2331
      %v2350 = vadd.f32 %v2192, %v2334
      %v2351 = vadd.f32 %v2193, %v2339
      %v2352 = vadd.f32 %v2194, %v2342
      %s2353 = scalar_lea.vmem %s321, 8
      %v2354 = vld [vmem:[%s2353] sm:$0xf]
      %v2355 = vld [vmem:[%s2353 + $0x8] sm:$0xf]
      %v2356 = vld [vmem:[%s2353 + $0x10] sm:$0xf]
      %v2357 = vld [vmem:[%s2353 + $0x18] sm:$0xf]
      %v2358 = vld [vmem:[%s2353 + $0x20] sm:$0xf]
      %v2359 = vld [vmem:[%s2353 + $0x28] sm:$0xf]
      %v2360 = vld [vmem:[%s2353 + $0x30] sm:$0xf]
      %v2361 = vld [vmem:[%s2353 + $0x38] sm:$0xf]
      %s2362 = scalar_lea.vmem %s3, 48
      %v2363 = vld [vmem:[%s2362] sm:$0xf]
      %v2372 = vunpack.c.l.b16 %v2354
      %v2373 = vunpack.c.l.b16 %v2355
      %v2374 = vunpack.c.l.b16 %v2356
      %v2375 = vunpack.c.l.b16 %v2357
      %v2376 = vunpack.c.l.b16 %v2358
      %v2377 = vunpack.c.l.b16 %v2359
      %v2378 = vunpack.c.l.b16 %v2360
      %v2379 = vunpack.c.l.b16 %v2361
      %v2380 = vpack.c.b16 %v2373, %v2372
      %v2381 = vpack.c.b16 %v2375, %v2374
      %v2382 = vpack.c.b16 %v2377, %v2376
      %v2383 = vpack.c.b16 %v2379, %v2378
      %v2385 = vsel %vm490, %v2380, 0
      %v2388 = vsel %vm490, %v2381, 0
      %v2391 = vsel %vm490, %v2382, 0
      %v2394 = vsel %vm490, %v2383, 0
      %v2397 = vsel %vm503, %v2363, 0
      %2399 = vmatprep.subr.bf16.mxu0 0
      %2400 = vmatpush1.bf16.msra.mxu0 0
      %2401 = vmatprep.subr.bf16.mxu0 0
      %2402 = vmatpush1.bf16.msra.mxu0 0
      %2403 = vmatprep.subr.bf16.mxu0 0
      %2404 = vmatpush1.bf16.msra.mxu0 0
      %2405 = vmatprep.subr.bf16.mxu0 0
      %2406 = vmatpush1.bf16.msra.mxu0 0
      %2407 = vmatprep.subr.bf16.mxu0 0
      %2408 = vmatpush1.bf16.msra.mxu0 0
      %2409 = vmatprep.subr.bf16.mxu0 0
      %2410 = vmatpush1.bf16.msra.mxu0 0
      %2411 = vmatprep.subr.bf16.mxu0 0
      %2412 = vmatpush1.bf16.msra.mxu0 0
      %2413 = vmatprep.subr.bf16.mxu0 0
      %2414 = vmatpush1.bf16.msra.mxu0 %v2397
      %2415 = vmatprep.subr.bf16.mxu0 0
      %2416 = vmatpush2.bf16.msra.mxu0 0
      %2417 = vmatprep.subr.bf16.mxu0 0
      %2418 = vmatpush2.bf16.msra.mxu0 0
      %2419 = vmatprep.subr.bf16.mxu0 0
      %2420 = vmatpush2.bf16.msra.mxu0 0
      %2421 = vmatprep.subr.bf16.mxu0 0
      %2422 = vmatpush2.bf16.msra.mxu0 0
      %2423 = vmatprep.subr.bf16.mxu0 0
      %2424 = vmatpush2.bf16.msra.mxu0 0
      %2425 = vmatprep.subr.bf16.mxu0 0
      %2426 = vmatpush2.bf16.msra.mxu0 0
      %2427 = vmatprep.subr.bf16.mxu0 0
      %2428 = vmatpush2.bf16.msra.mxu0 0
      %2429 = vmatprep.subr.bf16.mxu0 0
      %2430 = vmatpush2.bf16.msra.mxu0 0
      %2431 = vmatprep.mubr.bf16.mxu0 0
      %2432 = vmatmul.mubr.bf16.gmra.mxu0 %v2385
      %v2433 = vpop.f32.mrf.mxu0
      %v2434 = vadd.f32 0.0, %v2433
      %v2435 = vpop.f32.mrf.mxu0
      %v2436 = vpop.f32.mrf.mxu0
      %v2437 = vadd.f32 0.0, %v2436
      %v2438 = vpop.f32.mrf.mxu0
      %2439 = vmatprep.mubr.bf16.mxu0 0
      %2440 = vmatmul.mubr.bf16.gmra.mxu0 %v2388
      %v2441 = vpop.f32.mrf.mxu0
      %v2442 = vadd.f32 0.0, %v2441
      %v2443 = vpop.f32.mrf.mxu0
      %v2444 = vpop.f32.mrf.mxu0
      %v2445 = vadd.f32 0.0, %v2444
      %v2446 = vpop.f32.mrf.mxu0
      %2447 = vmatprep.mubr.bf16.mxu0 0
      %2448 = vmatmul.mubr.bf16.gmra.mxu0 %v2391
      %v2449 = vpop.f32.mrf.mxu0
      %v2450 = vadd.f32 0.0, %v2449
      %v2451 = vpop.f32.mrf.mxu0
      %v2452 = vpop.f32.mrf.mxu0
      %v2453 = vadd.f32 0.0, %v2452
      %v2454 = vpop.f32.mrf.mxu0
      %2455 = vmatprep.mubr.bf16.mxu0 0
      %2456 = vmatmul.mubr.bf16.gmra.mxu0 %v2394
      %v2457 = vpop.f32.mrf.mxu0
      %v2458 = vadd.f32 0.0, %v2457
      %v2459 = vpop.f32.mrf.mxu0
      %v2460 = vpop.f32.mrf.mxu0
      %v2461 = vadd.f32 0.0, %v2460
      %v2462 = vpop.f32.mrf.mxu0
      %2463 = vdwg.mxu0
      %v2464 = vadd.f32 %v2345, %v2434
      %v2465 = vadd.f32 %v2346, %v2437
      %v2466 = vadd.f32 %v2347, %v2442
      %v2467 = vadd.f32 %v2348, %v2445
      %v2468 = vadd.f32 %v2349, %v2450
      %v2469 = vadd.f32 %v2350, %v2453
      %v2470 = vadd.f32 %v2351, %v2458
      %v2471 = vadd.f32 %v2352, %v2461
      %v2472 = vld [vmem:[%s2353] sm:$0xf]
      %v2473 = vld [vmem:[%s2353 + $0x4] sm:$0x1]
      %v2474 = vld [vmem:[%s2353 + $0x8] sm:$0xf]
      %v2475 = vld [vmem:[%s2353 + $0xc] sm:$0x1]
      %v2476 = vld [vmem:[%s2353 + $0x10] sm:$0xf]
      %v2477 = vld [vmem:[%s2353 + $0x14] sm:$0x1]
      %v2478 = vld [vmem:[%s2353 + $0x18] sm:$0xf]
      %v2479 = vld [vmem:[%s2353 + $0x1c] sm:$0x1]
      %v2480 = vld [vmem:[%s2353 + $0x20] sm:$0xf]
      %v2481 = vld [vmem:[%s2353 + $0x24] sm:$0x1]
      %v2482 = vld [vmem:[%s2353 + $0x28] sm:$0xf]
      %v2483 = vld [vmem:[%s2353 + $0x2c] sm:$0x1]
      %v2484 = vld [vmem:[%s2353 + $0x30] sm:$0xf]
      %v2485 = vld [vmem:[%s2353 + $0x34] sm:$0x1]
      %v2486 = vld [vmem:[%s2353 + $0x38] sm:$0xf]
      %v2487 = vld [vmem:[%s2353 + $0x3c] sm:$0x1]
      %v2489 = vshrl.u32 %v2472, 16
      %v2491 = vrot.slane %v2489, 4
      %v2492 = vshll.u32 %v2472, 16
      %v2494 = vrot.slane %v2492, 5
      %v2495 = vor.u32 %v2491, %v2494
      %v2496 = vrot.slane %v2495, 4
      %v2498 = vshll.u32 %v2473, 16
      %v2500 = vrot.slane %v2498, 5
      %v2501 = vsel %vm363, %v2496, %v2500
      %v2503 = vshrl.u32 %v2474, 16
      %v2505 = vrot.slane %v2503, 4
      %v2506 = vshll.u32 %v2474, 16
      %v2508 = vrot.slane %v2506, 5
      %v2509 = vor.u32 %v2505, %v2508
      %v2510 = vrot.slane %v2509, 4
      %v2512 = vshll.u32 %v2475, 16
      %v2514 = vrot.slane %v2512, 5
      %v2515 = vsel %vm363, %v2510, %v2514
      %v2517 = vshrl.u32 %v2476, 16
      %v2519 = vrot.slane %v2517, 4
      %v2520 = vshll.u32 %v2476, 16
      %v2522 = vrot.slane %v2520, 5
      %v2523 = vor.u32 %v2519, %v2522
      %v2524 = vrot.slane %v2523, 4
      %v2526 = vshll.u32 %v2477, 16
      %v2528 = vrot.slane %v2526, 5
      %v2529 = vsel %vm363, %v2524, %v2528
      %v2531 = vshrl.u32 %v2478, 16
      %v2533 = vrot.slane %v2531, 4
      %v2534 = vshll.u32 %v2478, 16
      %v2536 = vrot.slane %v2534, 5
      %v2537 = vor.u32 %v2533, %v2536
      %v2538 = vrot.slane %v2537, 4
      %v2540 = vshll.u32 %v2479, 16
      %v2542 = vrot.slane %v2540, 5
      %v2543 = vsel %vm363, %v2538, %v2542
      %v2545 = vshrl.u32 %v2480, 16
      %v2547 = vrot.slane %v2545, 4
      %v2548 = vshll.u32 %v2480, 16
      %v2550 = vrot.slane %v2548, 5
      %v2551 = vor.u32 %v2547, %v2550
      %v2552 = vrot.slane %v2551, 4
      %v2554 = vshll.u32 %v2481, 16
      %v2556 = vrot.slane %v2554, 5
      %v2557 = vsel %vm363, %v2552, %v2556
      %v2559 = vshrl.u32 %v2482, 16
      %v2561 = vrot.slane %v2559, 4
      %v2562 = vshll.u32 %v2482, 16
      %v2564 = vrot.slane %v2562, 5
      %v2565 = vor.u32 %v2561, %v2564
      %v2566 = vrot.slane %v2565, 4
      %v2568 = vshll.u32 %v2483, 16
      %v2570 = vrot.slane %v2568, 5
      %v2571 = vsel %vm363, %v2566, %v2570
      %v2573 = vshrl.u32 %v2484, 16
      %v2575 = vrot.slane %v2573, 4
      %v2576 = vshll.u32 %v2484, 16
      %v2578 = vrot.slane %v2576, 5
      %v2579 = vor.u32 %v2575, %v2578
      %v2580 = vrot.slane %v2579, 4
      %v2582 = vshll.u32 %v2485, 16
      %v2584 = vrot.slane %v2582, 5
      %v2585 = vsel %vm363, %v2580, %v2584
      %v2587 = vshrl.u32 %v2486, 16
      %v2589 = vrot.slane %v2587, 4
      %v2590 = vshll.u32 %v2486, 16
      %v2592 = vrot.slane %v2590, 5
      %v2593 = vor.u32 %v2589, %v2592
      %v2594 = vrot.slane %v2593, 4
      %v2596 = vshll.u32 %v2487, 16
      %v2598 = vrot.slane %v2596, 5
      %v2599 = vsel %vm363, %v2594, %v2598
      %s2600 = scalar_lea.vmem %s3, 52
      %v2601 = vld [vmem:[%s2600] sm:$0xf]
      %v2602 = vunpack.c.l.b16 %v2501
      %v2603 = vunpack.c.l.b16 %v2515
      %v2604 = vunpack.c.l.b16 %v2529
      %v2605 = vunpack.c.l.b16 %v2543
      %v2606 = vunpack.c.l.b16 %v2557
      %v2607 = vunpack.c.l.b16 %v2571
      %v2608 = vunpack.c.l.b16 %v2585
      %v2609 = vunpack.c.l.b16 %v2599
      %v2610 = vpack.c.b16 %v2603, %v2602
      %v2611 = vpack.c.b16 %v2605, %v2604
      %v2612 = vpack.c.b16 %v2607, %v2606
      %v2613 = vpack.c.b16 %v2609, %v2608
      %v2615 = vsel %vm490, %v2610, 0
      %v2618 = vsel %vm490, %v2611, 0
      %v2621 = vsel %vm490, %v2612, 0
      %v2624 = vsel %vm490, %v2613, 0
      %v2627 = vsel %vm503, %v2601, 0
      %2629 = vmatprep.subr.bf16.mxu0 0
      %2630 = vmatpush1.bf16.msra.mxu0 0
      %2631 = vmatprep.subr.bf16.mxu0 0
      %2632 = vmatpush1.bf16.msra.mxu0 0
      %2633 = vmatprep.subr.bf16.mxu0 0
      %2634 = vmatpush1.bf16.msra.mxu0 0
      %2635 = vmatprep.subr.bf16.mxu0 0
      %2636 = vmatpush1.bf16.msra.mxu0 0
      %2637 = vmatprep.subr.bf16.mxu0 0
      %2638 = vmatpush1.bf16.msra.mxu0 0
      %2639 = vmatprep.subr.bf16.mxu0 0
      %2640 = vmatpush1.bf16.msra.mxu0 0
      %2641 = vmatprep.subr.bf16.mxu0 0
      %2642 = vmatpush1.bf16.msra.mxu0 0
      %2643 = vmatprep.subr.bf16.mxu0 0
      %2644 = vmatpush1.bf16.msra.mxu0 %v2627
      %2645 = vmatprep.subr.bf16.mxu0 0
      %2646 = vmatpush2.bf16.msra.mxu0 0
      %2647 = vmatprep.subr.bf16.mxu0 0
      %2648 = vmatpush2.bf16.msra.mxu0 0
      %2649 = vmatprep.subr.bf16.mxu0 0
      %2650 = vmatpush2.bf16.msra.mxu0 0
      %2651 = vmatprep.subr.bf16.mxu0 0
      %2652 = vmatpush2.bf16.msra.mxu0 0
      %2653 = vmatprep.subr.bf16.mxu0 0
      %2654 = vmatpush2.bf16.msra.mxu0 0
      %2655 = vmatprep.subr.bf16.mxu0 0
      %2656 = vmatpush2.bf16.msra.mxu0 0
      %2657 = vmatprep.subr.bf16.mxu0 0
      %2658 = vmatpush2.bf16.msra.mxu0 0
      %2659 = vmatprep.subr.bf16.mxu0 0
      %2660 = vmatpush2.bf16.msra.mxu0 0
      %2661 = vmatprep.mubr.bf16.mxu0 0
      %2662 = vmatmul.mubr.bf16.gmra.mxu0 %v2615
      %v2663 = vpop.f32.mrf.mxu0
      %v2664 = vadd.f32 0.0, %v2663
      %v2665 = vpop.f32.mrf.mxu0
      %v2666 = vpop.f32.mrf.mxu0
      %v2667 = vadd.f32 0.0, %v2666
      %v2668 = vpop.f32.mrf.mxu0
      %2669 = vmatprep.mubr.bf16.mxu0 0
      %2670 = vmatmul.mubr.bf16.gmra.mxu0 %v2618
      %v2671 = vpop.f32.mrf.mxu0
      %v2672 = vadd.f32 0.0, %v2671
      %v2673 = vpop.f32.mrf.mxu0
      %v2674 = vpop.f32.mrf.mxu0
      %v2675 = vadd.f32 0.0, %v2674
      %v2676 = vpop.f32.mrf.mxu0
      %2677 = vmatprep.mubr.bf16.mxu0 0
      %2678 = vmatmul.mubr.bf16.gmra.mxu0 %v2621
      %v2679 = vpop.f32.mrf.mxu0
      %v2680 = vadd.f32 0.0, %v2679
      %v2681 = vpop.f32.mrf.mxu0
      %v2682 = vpop.f32.mrf.mxu0
      %v2683 = vadd.f32 0.0, %v2682
      %v2684 = vpop.f32.mrf.mxu0
      %2685 = vmatprep.mubr.bf16.mxu0 0
      %2686 = vmatmul.mubr.bf16.gmra.mxu0 %v2624
      %v2687 = vpop.f32.mrf.mxu0
      %v2688 = vadd.f32 0.0, %v2687
      %v2689 = vpop.f32.mrf.mxu0
      %v2690 = vpop.f32.mrf.mxu0
      %v2691 = vadd.f32 0.0, %v2690
      %v2692 = vpop.f32.mrf.mxu0
      %2693 = vdwg.mxu0
      %v2694 = vadd.f32 %v2464, %v2664
      %v2695 = vadd.f32 %v2465, %v2667
      %v2696 = vadd.f32 %v2466, %v2672
      %v2697 = vadd.f32 %v2467, %v2675
      %v2698 = vadd.f32 %v2468, %v2680
      %v2699 = vadd.f32 %v2469, %v2683
      %v2700 = vadd.f32 %v2470, %v2688
      %v2701 = vadd.f32 %v2471, %v2691
      %v2702 = vld [vmem:[%s2353] sm:$0xe]
      %v2703 = vld [vmem:[%s2353 + $0x8] sm:$0xe]
      %v2704 = vld [vmem:[%s2353 + $0x10] sm:$0xe]
      %v2705 = vld [vmem:[%s2353 + $0x18] sm:$0xe]
      %v2706 = vld [vmem:[%s2353 + $0x20] sm:$0xe]
      %v2707 = vld [vmem:[%s2353 + $0x28] sm:$0xe]
      %v2708 = vld [vmem:[%s2353 + $0x30] sm:$0xe]
      %v2709 = vld [vmem:[%s2353 + $0x38] sm:$0xe]
      %v2726 = vrot.slane %v2702, 5
      %v2727 = vrot.slane %v2726, 4
      %v2728 = vrot.slane %v2473, 5
      %v2729 = vsel %vm698, %v2727, %v2728
      %v2730 = vrot.slane %v2703, 5
      %v2731 = vrot.slane %v2730, 4
      %v2732 = vrot.slane %v2475, 5
      %v2733 = vsel %vm698, %v2731, %v2732
      %v2734 = vrot.slane %v2704, 5
      %v2735 = vrot.slane %v2734, 4
      %v2736 = vrot.slane %v2477, 5
      %v2737 = vsel %vm698, %v2735, %v2736
      %v2738 = vrot.slane %v2705, 5
      %v2739 = vrot.slane %v2738, 4
      %v2740 = vrot.slane %v2479, 5
      %v2741 = vsel %vm698, %v2739, %v2740
      %v2742 = vrot.slane %v2706, 5
      %v2743 = vrot.slane %v2742, 4
      %v2744 = vrot.slane %v2481, 5
      %v2745 = vsel %vm698, %v2743, %v2744
      %v2746 = vrot.slane %v2707, 5
      %v2747 = vrot.slane %v2746, 4
      %v2748 = vrot.slane %v2483, 5
      %v2749 = vsel %vm698, %v2747, %v2748
      %v2750 = vrot.slane %v2708, 5
      %v2751 = vrot.slane %v2750, 4
      %v2752 = vrot.slane %v2485, 5
      %v2753 = vsel %vm698, %v2751, %v2752
      %v2754 = vrot.slane %v2709, 5
      %v2755 = vrot.slane %v2754, 4
      %v2756 = vrot.slane %v2487, 5
      %v2757 = vsel %vm698, %v2755, %v2756
      %s2758 = scalar_lea.vmem %s3, 56
      %v2759 = vld [vmem:[%s2758] sm:$0xf]
      %v2760 = vunpack.c.l.b16 %v2729
      %v2761 = vunpack.c.l.b16 %v2733
      %v2762 = vunpack.c.l.b16 %v2737
      %v2763 = vunpack.c.l.b16 %v2741
      %v2764 = vunpack.c.l.b16 %v2745
      %v2765 = vunpack.c.l.b16 %v2749
      %v2766 = vunpack.c.l.b16 %v2753
      %v2767 = vunpack.c.l.b16 %v2757
      %v2768 = vpack.c.b16 %v2761, %v2760
      %v2769 = vpack.c.b16 %v2763, %v2762
      %v2770 = vpack.c.b16 %v2765, %v2764
      %v2771 = vpack.c.b16 %v2767, %v2766
      %v2773 = vsel %vm490, %v2768, 0
      %v2776 = vsel %vm490, %v2769, 0
      %v2779 = vsel %vm490, %v2770, 0
      %v2782 = vsel %vm490, %v2771, 0
      %v2785 = vsel %vm503, %v2759, 0
      %2787 = vmatprep.subr.bf16.mxu0 0
      %2788 = vmatpush1.bf16.msra.mxu0 0
      %2789 = vmatprep.subr.bf16.mxu0 0
      %2790 = vmatpush1.bf16.msra.mxu0 0
      %2791 = vmatprep.subr.bf16.mxu0 0
      %2792 = vmatpush1.bf16.msra.mxu0 0
      %2793 = vmatprep.subr.bf16.mxu0 0
      %2794 = vmatpush1.bf16.msra.mxu0 0
      %2795 = vmatprep.subr.bf16.mxu0 0
      %2796 = vmatpush1.bf16.msra.mxu0 0
      %2797 = vmatprep.subr.bf16.mxu0 0
      %2798 = vmatpush1.bf16.msra.mxu0 0
      %2799 = vmatprep.subr.bf16.mxu0 0
      %2800 = vmatpush1.bf16.msra.mxu0 0
      %2801 = vmatprep.subr.bf16.mxu0 0
      %2802 = vmatpush1.bf16.msra.mxu0 %v2785
      %2803 = vmatprep.subr.bf16.mxu0 0
      %2804 = vmatpush2.bf16.msra.mxu0 0
      %2805 = vmatprep.subr.bf16.mxu0 0
      %2806 = vmatpush2.bf16.msra.mxu0 0
      %2807 = vmatprep.subr.bf16.mxu0 0
      %2808 = vmatpush2.bf16.msra.mxu0 0
      %2809 = vmatprep.subr.bf16.mxu0 0
      %2810 = vmatpush2.bf16.msra.mxu0 0
      %2811 = vmatprep.subr.bf16.mxu0 0
      %2812 = vmatpush2.bf16.msra.mxu0 0
      %2813 = vmatprep.subr.bf16.mxu0 0
      %2814 = vmatpush2.bf16.msra.mxu0 0
      %2815 = vmatprep.subr.bf16.mxu0 0
      %2816 = vmatpush2.bf16.msra.mxu0 0
      %2817 = vmatprep.subr.bf16.mxu0 0
      %2818 = vmatpush2.bf16.msra.mxu0 0
      %2819 = vmatprep.mubr.bf16.mxu0 0
      %2820 = vmatmul.mubr.bf16.gmra.mxu0 %v2773
      %v2821 = vpop.f32.mrf.mxu0
      %v2822 = vadd.f32 0.0, %v2821
      %v2823 = vpop.f32.mrf.mxu0
      %v2824 = vpop.f32.mrf.mxu0
      %v2825 = vadd.f32 0.0, %v2824
      %v2826 = vpop.f32.mrf.mxu0
      %2827 = vmatprep.mubr.bf16.mxu0 0
      %2828 = vmatmul.mubr.bf16.gmra.mxu0 %v2776
      %v2829 = vpop.f32.mrf.mxu0
      %v2830 = vadd.f32 0.0, %v2829
      %v2831 = vpop.f32.mrf.mxu0
      %v2832 = vpop.f32.mrf.mxu0
      %v2833 = vadd.f32 0.0, %v2832
      %v2834 = vpop.f32.mrf.mxu0
      %2835 = vmatprep.mubr.bf16.mxu0 0
      %2836 = vmatmul.mubr.bf16.gmra.mxu0 %v2779
      %v2837 = vpop.f32.mrf.mxu0
      %v2838 = vadd.f32 0.0, %v2837
      %v2839 = vpop.f32.mrf.mxu0
      %v2840 = vpop.f32.mrf.mxu0
      %v2841 = vadd.f32 0.0, %v2840
      %v2842 = vpop.f32.mrf.mxu0
      %2843 = vmatprep.mubr.bf16.mxu0 0
      %2844 = vmatmul.mubr.bf16.gmra.mxu0 %v2782
      %v2845 = vpop.f32.mrf.mxu0
      %v2846 = vadd.f32 0.0, %v2845
      %v2847 = vpop.f32.mrf.mxu0
      %v2848 = vpop.f32.mrf.mxu0
      %v2849 = vadd.f32 0.0, %v2848
      %v2850 = vpop.f32.mrf.mxu0
      %2851 = vdwg.mxu0
      %v2852 = vadd.f32 %v2694, %v2822
      %v2853 = vadd.f32 %v2695, %v2825
      %v2854 = vadd.f32 %v2696, %v2830
      %v2855 = vadd.f32 %v2697, %v2833
      %v2856 = vadd.f32 %v2698, %v2838
      %v2857 = vadd.f32 %v2699, %v2841
      %v2858 = vadd.f32 %v2700, %v2846
      %v2859 = vadd.f32 %v2701, %v2849
      %s2860 = scalar_lea.vmem %s321, 16
      %v2861 = vld [vmem:[%s2860] sm:$0xf]
      %v2862 = vld [vmem:[%s2860 + $0x8] sm:$0xf]
      %v2863 = vld [vmem:[%s2860 + $0x10] sm:$0xf]
      %v2864 = vld [vmem:[%s2860 + $0x18] sm:$0xf]
      %v2865 = vld [vmem:[%s2860 + $0x20] sm:$0xf]
      %v2866 = vld [vmem:[%s2860 + $0x28] sm:$0xf]
      %v2867 = vld [vmem:[%s2860 + $0x30] sm:$0xf]
      %v2868 = vld [vmem:[%s2860 + $0x38] sm:$0xf]
      %s2869 = scalar_lea.vmem %s3, 60
      %v2870 = vld [vmem:[%s2869] sm:$0xf]
      %v2879 = vunpack.c.l.b16 %v2861
      %v2880 = vunpack.c.l.b16 %v2862
      %v2881 = vunpack.c.l.b16 %v2863
      %v2882 = vunpack.c.l.b16 %v2864
      %v2883 = vunpack.c.l.b16 %v2865
      %v2884 = vunpack.c.l.b16 %v2866
      %v2885 = vunpack.c.l.b16 %v2867
      %v2886 = vunpack.c.l.b16 %v2868
      %v2887 = vpack.c.b16 %v2880, %v2879
      %v2888 = vpack.c.b16 %v2882, %v2881
      %v2889 = vpack.c.b16 %v2884, %v2883
      %v2890 = vpack.c.b16 %v2886, %v2885
      %v2892 = vsel %vm490, %v2887, 0
      %v2895 = vsel %vm490, %v2888, 0
      %v2898 = vsel %vm490, %v2889, 0
      %v2901 = vsel %vm490, %v2890, 0
      %v2904 = vsel %vm503, %v2870, 0
      %2906 = vmatprep.subr.bf16.mxu0 0
      %2907 = vmatpush1.bf16.msra.mxu0 0
      %2908 = vmatprep.subr.bf16.mxu0 0
      %2909 = vmatpush1.bf16.msra.mxu0 0
      %2910 = vmatprep.subr.bf16.mxu0 0
      %2911 = vmatpush1.bf16.msra.mxu0 0
      %2912 = vmatprep.subr.bf16.mxu0 0
      %2913 = vmatpush1.bf16.msra.mxu0 0
      %2914 = vmatprep.subr.bf16.mxu0 0
      %2915 = vmatpush1.bf16.msra.mxu0 0
      %2916 = vmatprep.subr.bf16.mxu0 0
      %2917 = vmatpush1.bf16.msra.mxu0 0
      %2918 = vmatprep.subr.bf16.mxu0 0
      %2919 = vmatpush1.bf16.msra.mxu0 0
      %2920 = vmatprep.subr.bf16.mxu0 0
      %2921 = vmatpush1.bf16.msra.mxu0 %v2904
      %2922 = vmatprep.subr.bf16.mxu0 0
      %2923 = vmatpush2.bf16.msra.mxu0 0
      %2924 = vmatprep.subr.bf16.mxu0 0
      %2925 = vmatpush2.bf16.msra.mxu0 0
      %2926 = vmatprep.subr.bf16.mxu0 0
      %2927 = vmatpush2.bf16.msra.mxu0 0
      %2928 = vmatprep.subr.bf16.mxu0 0
      %2929 = vmatpush2.bf16.msra.mxu0 0
      %2930 = vmatprep.subr.bf16.mxu0 0
      %2931 = vmatpush2.bf16.msra.mxu0 0
      %2932 = vmatprep.subr.bf16.mxu0 0
      %2933 = vmatpush2.bf16.msra.mxu0 0
      %2934 = vmatprep.subr.bf16.mxu0 0
      %2935 = vmatpush2.bf16.msra.mxu0 0
      %2936 = vmatprep.subr.bf16.mxu0 0
      %2937 = vmatpush2.bf16.msra.mxu0 0
      %2938 = vmatprep.mubr.bf16.mxu0 0
      %2939 = vmatmul.mubr.bf16.gmra.mxu0 %v2892
      %v2940 = vpop.f32.mrf.mxu0
      %v2941 = vadd.f32 0.0, %v2940
      %v2942 = vpop.f32.mrf.mxu0
      %v2943 = vpop.f32.mrf.mxu0
      %v2944 = vadd.f32 0.0, %v2943
      %v2945 = vpop.f32.mrf.mxu0
      %2946 = vmatprep.mubr.bf16.mxu0 0
      %2947 = vmatmul.mubr.bf16.gmra.mxu0 %v2895
      %v2948 = vpop.f32.mrf.mxu0
      %v2949 = vadd.f32 0.0, %v2948
      %v2950 = vpop.f32.mrf.mxu0
      %v2951 = vpop.f32.mrf.mxu0
      %v2952 = vadd.f32 0.0, %v2951
      %v2953 = vpop.f32.mrf.mxu0
      %2954 = vmatprep.mubr.bf16.mxu0 0
      %2955 = vmatmul.mubr.bf16.gmra.mxu0 %v2898
      %v2956 = vpop.f32.mrf.mxu0
      %v2957 = vadd.f32 0.0, %v2956
      %v2958 = vpop.f32.mrf.mxu0
      %v2959 = vpop.f32.mrf.mxu0
      %v2960 = vadd.f32 0.0, %v2959
      %v2961 = vpop.f32.mrf.mxu0
      %2962 = vmatprep.mubr.bf16.mxu0 0
      %2963 = vmatmul.mubr.bf16.gmra.mxu0 %v2901
      %v2964 = vpop.f32.mrf.mxu0
      %v2965 = vadd.f32 0.0, %v2964
      %v2966 = vpop.f32.mrf.mxu0
      %v2967 = vpop.f32.mrf.mxu0
      %v2968 = vadd.f32 0.0, %v2967
      %v2969 = vpop.f32.mrf.mxu0
      %2970 = vdwg.mxu0
      %v2971 = vadd.f32 %v2852, %v2941
      %v2972 = vadd.f32 %v2853, %v2944
      %v2973 = vadd.f32 %v2854, %v2949
      %v2974 = vadd.f32 %v2855, %v2952
      %v2975 = vadd.f32 %v2856, %v2957
      %v2976 = vadd.f32 %v2857, %v2960
      %v2977 = vadd.f32 %v2858, %v2965
      %v2978 = vadd.f32 %v2859, %v2968
      %v2979 = vld [vmem:[%s2860] sm:$0xf]
      %v2980 = vld [vmem:[%s2860 + $0x4] sm:$0x1]
      %v2981 = vld [vmem:[%s2860 + $0x8] sm:$0xf]
      %v2982 = vld [vmem:[%s2860 + $0xc] sm:$0x1]
      %v2983 = vld [vmem:[%s2860 + $0x10] sm:$0xf]
      %v2984 = vld [vmem:[%s2860 + $0x14] sm:$0x1]
      %v2985 = vld [vmem:[%s2860 + $0x18] sm:$0xf]
      %v2986 = vld [vmem:[%s2860 + $0x1c] sm:$0x1]
      %v2987 = vld [vmem:[%s2860 + $0x20] sm:$0xf]
      %v2988 = vld [vmem:[%s2860 + $0x24] sm:$0x1]
      %v2989 = vld [vmem:[%s2860 + $0x28] sm:$0xf]
      %v2990 = vld [vmem:[%s2860 + $0x2c] sm:$0x1]
      %v2991 = vld [vmem:[%s2860 + $0x30] sm:$0xf]
      %v2992 = vld [vmem:[%s2860 + $0x34] sm:$0x1]
      %v2993 = vld [vmem:[%s2860 + $0x38] sm:$0xf]
      %v2994 = vld [vmem:[%s2860 + $0x3c] sm:$0x1]
      %v2996 = vshrl.u32 %v2979, 16
      %v2998 = vrot.slane %v2996, 4
      %v2999 = vshll.u32 %v2979, 16
      %v3001 = vrot.slane %v2999, 5
      %v3002 = vor.u32 %v2998, %v3001
      %v3003 = vrot.slane %v3002, 4
      %v3005 = vshll.u32 %v2980, 16
      %v3007 = vrot.slane %v3005, 5
      %v3008 = vsel %vm363, %v3003, %v3007
      %v3010 = vshrl.u32 %v2981, 16
      %v3012 = vrot.slane %v3010, 4
      %v3013 = vshll.u32 %v2981, 16
      %v3015 = vrot.slane %v3013, 5
      %v3016 = vor.u32 %v3012, %v3015
      %v3017 = vrot.slane %v3016, 4
      %v3019 = vshll.u32 %v2982, 16
      %v3021 = vrot.slane %v3019, 5
      %v3022 = vsel %vm363, %v3017, %v3021
      %v3024 = vshrl.u32 %v2983, 16
      %v3026 = vrot.slane %v3024, 4
      %v3027 = vshll.u32 %v2983, 16
      %v3029 = vrot.slane %v3027, 5
      %v3030 = vor.u32 %v3026, %v3029
      %v3031 = vrot.slane %v3030, 4
      %v3033 = vshll.u32 %v2984, 16
      %v3035 = vrot.slane %v3033, 5
      %v3036 = vsel %vm363, %v3031, %v3035
      %v3038 = vshrl.u32 %v2985, 16
      %v3040 = vrot.slane %v3038, 4
      %v3041 = vshll.u32 %v2985, 16
      %v3043 = vrot.slane %v3041, 5
      %v3044 = vor.u32 %v3040, %v3043
      %v3045 = vrot.slane %v3044, 4
      %v3047 = vshll.u32 %v2986, 16
      %v3049 = vrot.slane %v3047, 5
      %v3050 = vsel %vm363, %v3045, %v3049
      %v3052 = vshrl.u32 %v2987, 16
      %v3054 = vrot.slane %v3052, 4
      %v3055 = vshll.u32 %v2987, 16
      %v3057 = vrot.slane %v3055, 5
      %v3058 = vor.u32 %v3054, %v3057
      %v3059 = vrot.slane %v3058, 4
      %v3061 = vshll.u32 %v2988, 16
      %v3063 = vrot.slane %v3061, 5
      %v3064 = vsel %vm363, %v3059, %v3063
      %v3066 = vshrl.u32 %v2989, 16
      %v3068 = vrot.slane %v3066, 4
      %v3069 = vshll.u32 %v2989, 16
      %v3071 = vrot.slane %v3069, 5
      %v3072 = vor.u32 %v3068, %v3071
      %v3073 = vrot.slane %v3072, 4
      %v3075 = vshll.u32 %v2990, 16
      %v3077 = vrot.slane %v3075, 5
      %v3078 = vsel %vm363, %v3073, %v3077
      %v3080 = vshrl.u32 %v2991, 16
      %v3082 = vrot.slane %v3080, 4
      %v3083 = vshll.u32 %v2991, 16
      %v3085 = vrot.slane %v3083, 5
      %v3086 = vor.u32 %v3082, %v3085
      %v3087 = vrot.slane %v3086, 4
      %v3089 = vshll.u32 %v2992, 16
      %v3091 = vrot.slane %v3089, 5
      %v3092 = vsel %vm363, %v3087, %v3091
      %v3094 = vshrl.u32 %v2993, 16
      %v3096 = vrot.slane %v3094, 4
      %v3097 = vshll.u32 %v2993, 16
      %v3099 = vrot.slane %v3097, 5
      %v3100 = vor.u32 %v3096, %v3099
      %v3101 = vrot.slane %v3100, 4
      %v3103 = vshll.u32 %v2994, 16
      %v3105 = vrot.slane %v3103, 5
      %v3106 = vsel %vm363, %v3101, %v3105
      %s3107 = scalar_lea.vmem %s3, 64
      %v3108 = vld [vmem:[%s3107] sm:$0xf]
      %v3109 = vunpack.c.l.b16 %v3008
      %v3110 = vunpack.c.l.b16 %v3022
      %v3111 = vunpack.c.l.b16 %v3036
      %v3112 = vunpack.c.l.b16 %v3050
      %v3113 = vunpack.c.l.b16 %v3064
      %v3114 = vunpack.c.l.b16 %v3078
      %v3115 = vunpack.c.l.b16 %v3092
      %v3116 = vunpack.c.l.b16 %v3106
      %v3117 = vpack.c.b16 %v3110, %v3109
      %v3118 = vpack.c.b16 %v3112, %v3111
      %v3119 = vpack.c.b16 %v3114, %v3113
      %v3120 = vpack.c.b16 %v3116, %v3115
      %v3122 = vsel %vm490, %v3117, 0
      %v3125 = vsel %vm490, %v3118, 0
      %v3128 = vsel %vm490, %v3119, 0
      %v3131 = vsel %vm490, %v3120, 0
      %v3134 = vsel %vm503, %v3108, 0
      %3136 = vmatprep.subr.bf16.mxu0 0
      %3137 = vmatpush1.bf16.msra.mxu0 0
      %3138 = vmatprep.subr.bf16.mxu0 0
      %3139 = vmatpush1.bf16.msra.mxu0 0
      %3140 = vmatprep.subr.bf16.mxu0 0
      %3141 = vmatpush1.bf16.msra.mxu0 0
      %3142 = vmatprep.subr.bf16.mxu0 0
      %3143 = vmatpush1.bf16.msra.mxu0 0
      %3144 = vmatprep.subr.bf16.mxu0 0
      %3145 = vmatpush1.bf16.msra.mxu0 0
      %3146 = vmatprep.subr.bf16.mxu0 0
      %3147 = vmatpush1.bf16.msra.mxu0 0
      %3148 = vmatprep.subr.bf16.mxu0 0
      %3149 = vmatpush1.bf16.msra.mxu0 0
      %3150 = vmatprep.subr.bf16.mxu0 0
      %3151 = vmatpush1.bf16.msra.mxu0 %v3134
      %3152 = vmatprep.subr.bf16.mxu0 0
      %3153 = vmatpush2.bf16.msra.mxu0 0
      %3154 = vmatprep.subr.bf16.mxu0 0
      %3155 = vmatpush2.bf16.msra.mxu0 0
      %3156 = vmatprep.subr.bf16.mxu0 0
      %3157 = vmatpush2.bf16.msra.mxu0 0
      %3158 = vmatprep.subr.bf16.mxu0 0
      %3159 = vmatpush2.bf16.msra.mxu0 0
      %3160 = vmatprep.subr.bf16.mxu0 0
      %3161 = vmatpush2.bf16.msra.mxu0 0
      %3162 = vmatprep.subr.bf16.mxu0 0
      %3163 = vmatpush2.bf16.msra.mxu0 0
      %3164 = vmatprep.subr.bf16.mxu0 0
      %3165 = vmatpush2.bf16.msra.mxu0 0
      %3166 = vmatprep.subr.bf16.mxu0 0
      %3167 = vmatpush2.bf16.msra.mxu0 0
      %3168 = vmatprep.mubr.bf16.mxu0 0
      %3169 = vmatmul.mubr.bf16.gmra.mxu0 %v3122
      %v3170 = vpop.f32.mrf.mxu0
      %v3171 = vadd.f32 0.0, %v3170
      %v3172 = vpop.f32.mrf.mxu0
      %v3173 = vpop.f32.mrf.mxu0
      %v3174 = vadd.f32 0.0, %v3173
      %v3175 = vpop.f32.mrf.mxu0
      %3176 = vmatprep.mubr.bf16.mxu0 0
      %3177 = vmatmul.mubr.bf16.gmra.mxu0 %v3125
      %v3178 = vpop.f32.mrf.mxu0
      %v3179 = vadd.f32 0.0, %v3178
      %v3180 = vpop.f32.mrf.mxu0
      %v3181 = vpop.f32.mrf.mxu0
      %v3182 = vadd.f32 0.0, %v3181
      %v3183 = vpop.f32.mrf.mxu0
      %3184 = vmatprep.mubr.bf16.mxu0 0
      %3185 = vmatmul.mubr.bf16.gmra.mxu0 %v3128
      %v3186 = vpop.f32.mrf.mxu0
      %v3187 = vadd.f32 0.0, %v3186
      %v3188 = vpop.f32.mrf.mxu0
      %v3189 = vpop.f32.mrf.mxu0
      %v3190 = vadd.f32 0.0, %v3189
      %v3191 = vpop.f32.mrf.mxu0
      %3192 = vmatprep.mubr.bf16.mxu0 0
      %3193 = vmatmul.mubr.bf16.gmra.mxu0 %v3131
      %v3194 = vpop.f32.mrf.mxu0
      %v3195 = vadd.f32 0.0, %v3194
      %v3196 = vpop.f32.mrf.mxu0
      %v3197 = vpop.f32.mrf.mxu0
      %v3198 = vadd.f32 0.0, %v3197
      %v3199 = vpop.f32.mrf.mxu0
      %3200 = vdwg.mxu0
      %v3201 = vadd.f32 %v2971, %v3171
      %v3202 = vadd.f32 %v2972, %v3174
      %v3203 = vadd.f32 %v2973, %v3179
      %v3204 = vadd.f32 %v2974, %v3182
      %v3205 = vadd.f32 %v2975, %v3187
      %v3206 = vadd.f32 %v2976, %v3190
      %v3207 = vadd.f32 %v2977, %v3195
      %v3208 = vadd.f32 %v2978, %v3198
      %v3209 = vld [vmem:[%s2860] sm:$0xe]
      %v3210 = vld [vmem:[%s2860 + $0x8] sm:$0xe]
      %v3211 = vld [vmem:[%s2860 + $0x10] sm:$0xe]
      %v3212 = vld [vmem:[%s2860 + $0x18] sm:$0xe]
      %v3213 = vld [vmem:[%s2860 + $0x20] sm:$0xe]
      %v3214 = vld [vmem:[%s2860 + $0x28] sm:$0xe]
      %v3215 = vld [vmem:[%s2860 + $0x30] sm:$0xe]
      %v3216 = vld [vmem:[%s2860 + $0x38] sm:$0xe]
      %v3233 = vrot.slane %v3209, 5
      %v3234 = vrot.slane %v3233, 4
      %v3235 = vrot.slane %v2980, 5
      %v3236 = vsel %vm698, %v3234, %v3235
      %v3237 = vrot.slane %v3210, 5
      %v3238 = vrot.slane %v3237, 4
      %v3239 = vrot.slane %v2982, 5
      %v3240 = vsel %vm698, %v3238, %v3239
      %v3241 = vrot.slane %v3211, 5
      %v3242 = vrot.slane %v3241, 4
      %v3243 = vrot.slane %v2984, 5
      %v3244 = vsel %vm698, %v3242, %v3243
      %v3245 = vrot.slane %v3212, 5
      %v3246 = vrot.slane %v3245, 4
      %v3247 = vrot.slane %v2986, 5
      %v3248 = vsel %vm698, %v3246, %v3247
      %v3249 = vrot.slane %v3213, 5
      %v3250 = vrot.slane %v3249, 4
      %v3251 = vrot.slane %v2988, 5
      %v3252 = vsel %vm698, %v3250, %v3251
      %v3253 = vrot.slane %v3214, 5
      %v3254 = vrot.slane %v3253, 4
      %v3255 = vrot.slane %v2990, 5
      %v3256 = vsel %vm698, %v3254, %v3255
      %v3257 = vrot.slane %v3215, 5
      %v3258 = vrot.slane %v3257, 4
      %v3259 = vrot.slane %v2992, 5
      %v3260 = vsel %vm698, %v3258, %v3259
      %v3261 = vrot.slane %v3216, 5
      %v3262 = vrot.slane %v3261, 4
      %v3263 = vrot.slane %v2994, 5
      %v3264 = vsel %vm698, %v3262, %v3263
      %s3265 = scalar_lea.vmem %s3, 68
      %v3266 = vld [vmem:[%s3265] sm:$0xf]
      %v3267 = vunpack.c.l.b16 %v3236
      %v3268 = vunpack.c.l.b16 %v3240
      %v3269 = vunpack.c.l.b16 %v3244
      %v3270 = vunpack.c.l.b16 %v3248
      %v3271 = vunpack.c.l.b16 %v3252
      %v3272 = vunpack.c.l.b16 %v3256
      %v3273 = vunpack.c.l.b16 %v3260
      %v3274 = vunpack.c.l.b16 %v3264
      %v3275 = vpack.c.b16 %v3268, %v3267
      %v3276 = vpack.c.b16 %v3270, %v3269
      %v3277 = vpack.c.b16 %v3272, %v3271
      %v3278 = vpack.c.b16 %v3274, %v3273
      %v3280 = vsel %vm490, %v3275, 0
      %v3283 = vsel %vm490, %v3276, 0
      %v3286 = vsel %vm490, %v3277, 0
      %v3289 = vsel %vm490, %v3278, 0
      %v3292 = vsel %vm503, %v3266, 0
      %3294 = vmatprep.subr.bf16.mxu0 0
      %3295 = vmatpush1.bf16.msra.mxu0 0
      %3296 = vmatprep.subr.bf16.mxu0 0
      %3297 = vmatpush1.bf16.msra.mxu0 0
      %3298 = vmatprep.subr.bf16.mxu0 0
      %3299 = vmatpush1.bf16.msra.mxu0 0
      %3300 = vmatprep.subr.bf16.mxu0 0
      %3301 = vmatpush1.bf16.msra.mxu0 0
      %3302 = vmatprep.subr.bf16.mxu0 0
      %3303 = vmatpush1.bf16.msra.mxu0 0
      %3304 = vmatprep.subr.bf16.mxu0 0
      %3305 = vmatpush1.bf16.msra.mxu0 0
      %3306 = vmatprep.subr.bf16.mxu0 0
      %3307 = vmatpush1.bf16.msra.mxu0 0
      %3308 = vmatprep.subr.bf16.mxu0 0
      %3309 = vmatpush1.bf16.msra.mxu0 %v3292
      %3310 = vmatprep.subr.bf16.mxu0 0
      %3311 = vmatpush2.bf16.msra.mxu0 0
      %3312 = vmatprep.subr.bf16.mxu0 0
      %3313 = vmatpush2.bf16.msra.mxu0 0
      %3314 = vmatprep.subr.bf16.mxu0 0
      %3315 = vmatpush2.bf16.msra.mxu0 0
      %3316 = vmatprep.subr.bf16.mxu0 0
      %3317 = vmatpush2.bf16.msra.mxu0 0
      %3318 = vmatprep.subr.bf16.mxu0 0
      %3319 = vmatpush2.bf16.msra.mxu0 0
      %3320 = vmatprep.subr.bf16.mxu0 0
      %3321 = vmatpush2.bf16.msra.mxu0 0
      %3322 = vmatprep.subr.bf16.mxu0 0
      %3323 = vmatpush2.bf16.msra.mxu0 0
      %3324 = vmatprep.subr.bf16.mxu0 0
      %3325 = vmatpush2.bf16.msra.mxu0 0
      %3326 = vmatprep.mubr.bf16.mxu0 0
      %3327 = vmatmul.mubr.bf16.gmra.mxu0 %v3280
      %v3328 = vpop.f32.mrf.mxu0
      %v3329 = vadd.f32 0.0, %v3328
      %v3330 = vpop.f32.mrf.mxu0
      %v3331 = vpop.f32.mrf.mxu0
      %v3332 = vadd.f32 0.0, %v3331
      %v3333 = vpop.f32.mrf.mxu0
      %3334 = vmatprep.mubr.bf16.mxu0 0
      %3335 = vmatmul.mubr.bf16.gmra.mxu0 %v3283
      %v3336 = vpop.f32.mrf.mxu0
      %v3337 = vadd.f32 0.0, %v3336
      %v3338 = vpop.f32.mrf.mxu0
      %v3339 = vpop.f32.mrf.mxu0
      %v3340 = vadd.f32 0.0, %v3339
      %v3341 = vpop.f32.mrf.mxu0
      %3342 = vmatprep.mubr.bf16.mxu0 0
      %3343 = vmatmul.mubr.bf16.gmra.mxu0 %v3286
      %v3344 = vpop.f32.mrf.mxu0
      %v3345 = vadd.f32 0.0, %v3344
      %v3346 = vpop.f32.mrf.mxu0
      %v3347 = vpop.f32.mrf.mxu0
      %v3348 = vadd.f32 0.0, %v3347
      %v3349 = vpop.f32.mrf.mxu0
      %3350 = vmatprep.mubr.bf16.mxu0 0
      %3351 = vmatmul.mubr.bf16.gmra.mxu0 %v3289
      %v3352 = vpop.f32.mrf.mxu0
      %v3353 = vadd.f32 0.0, %v3352
      %v3354 = vpop.f32.mrf.mxu0
      %v3355 = vpop.f32.mrf.mxu0
      %v3356 = vadd.f32 0.0, %v3355
      %v3357 = vpop.f32.mrf.mxu0
      %3358 = vdwg.mxu0
      %v3359 = vadd.f32 %v3201, %v3329
      %v3360 = vadd.f32 %v3202, %v3332
      %v3361 = vadd.f32 %v3203, %v3337
      %v3362 = vadd.f32 %v3204, %v3340
      %v3363 = vadd.f32 %v3205, %v3345
      %v3364 = vadd.f32 %v3206, %v3348
      %v3365 = vadd.f32 %v3207, %v3353
      %v3366 = vadd.f32 %v3208, %v3356
      %v3367 = vld [vmem:[%s332] sm:$0xf]
      %v3368 = vld [vmem:[%s332 + $0x8] sm:$0xf]
      %v3369 = vld [vmem:[%s332 + $0x10] sm:$0xf]
      %v3370 = vld [vmem:[%s332 + $0x18] sm:$0xf]
      %v3371 = vld [vmem:[%s332 + $0x20] sm:$0xf]
      %v3372 = vld [vmem:[%s332 + $0x28] sm:$0xf]
      %v3373 = vld [vmem:[%s332 + $0x30] sm:$0xf]
      %v3374 = vld [vmem:[%s332 + $0x38] sm:$0xf]
      %s3375 = scalar_lea.vmem %s3, 72
      %v3376 = vld [vmem:[%s3375] sm:$0xf]
      %v3385 = vunpack.c.l.b16 %v3367
      %v3386 = vunpack.c.l.b16 %v3368
      %v3387 = vunpack.c.l.b16 %v3369
      %v3388 = vunpack.c.l.b16 %v3370
      %v3389 = vunpack.c.l.b16 %v3371
      %v3390 = vunpack.c.l.b16 %v3372
      %v3391 = vunpack.c.l.b16 %v3373
      %v3392 = vunpack.c.l.b16 %v3374
      %v3393 = vpack.c.b16 %v3386, %v3385
      %v3394 = vpack.c.b16 %v3388, %v3387
      %v3395 = vpack.c.b16 %v3390, %v3389
      %v3396 = vpack.c.b16 %v3392, %v3391
      %v3398 = vsel %vm490, %v3393, 0
      %v3401 = vsel %vm490, %v3394, 0
      %v3404 = vsel %vm490, %v3395, 0
      %v3407 = vsel %vm490, %v3396, 0
      %v3410 = vsel %vm503, %v3376, 0
      %3412 = vmatprep.subr.bf16.mxu0 0
      %3413 = vmatpush1.bf16.msra.mxu0 0
      %3414 = vmatprep.subr.bf16.mxu0 0
      %3415 = vmatpush1.bf16.msra.mxu0 0
      %3416 = vmatprep.subr.bf16.mxu0 0
      %3417 = vmatpush1.bf16.msra.mxu0 0
      %3418 = vmatprep.subr.bf16.mxu0 0
      %3419 = vmatpush1.bf16.msra.mxu0 0
      %3420 = vmatprep.subr.bf16.mxu0 0
      %3421 = vmatpush1.bf16.msra.mxu0 0
      %3422 = vmatprep.subr.bf16.mxu0 0
      %3423 = vmatpush1.bf16.msra.mxu0 0
      %3424 = vmatprep.subr.bf16.mxu0 0
      %3425 = vmatpush1.bf16.msra.mxu0 0
      %3426 = vmatprep.subr.bf16.mxu0 0
      %3427 = vmatpush1.bf16.msra.mxu0 %v3410
      %3428 = vmatprep.subr.bf16.mxu0 0
      %3429 = vmatpush2.bf16.msra.mxu0 0
      %3430 = vmatprep.subr.bf16.mxu0 0
      %3431 = vmatpush2.bf16.msra.mxu0 0
      %3432 = vmatprep.subr.bf16.mxu0 0
      %3433 = vmatpush2.bf16.msra.mxu0 0
      %3434 = vmatprep.subr.bf16.mxu0 0
      %3435 = vmatpush2.bf16.msra.mxu0 0
      %3436 = vmatprep.subr.bf16.mxu0 0
      %3437 = vmatpush2.bf16.msra.mxu0 0
      %3438 = vmatprep.subr.bf16.mxu0 0
      %3439 = vmatpush2.bf16.msra.mxu0 0
      %3440 = vmatprep.subr.bf16.mxu0 0
      %3441 = vmatpush2.bf16.msra.mxu0 0
      %3442 = vmatprep.subr.bf16.mxu0 0
      %3443 = vmatpush2.bf16.msra.mxu0 0
      %3444 = vmatprep.mubr.bf16.mxu0 0
      %3445 = vmatmul.mubr.bf16.gmra.mxu0 %v3398
      %v3446 = vpop.f32.mrf.mxu0
      %v3447 = vadd.f32 0.0, %v3446
      %v3448 = vpop.f32.mrf.mxu0
      %v3449 = vpop.f32.mrf.mxu0
      %v3450 = vadd.f32 0.0, %v3449
      %v3451 = vpop.f32.mrf.mxu0
      %3452 = vmatprep.mubr.bf16.mxu0 0
      %3453 = vmatmul.mubr.bf16.gmra.mxu0 %v3401
      %v3454 = vpop.f32.mrf.mxu0
      %v3455 = vadd.f32 0.0, %v3454
      %v3456 = vpop.f32.mrf.mxu0
      %v3457 = vpop.f32.mrf.mxu0
      %v3458 = vadd.f32 0.0, %v3457
      %v3459 = vpop.f32.mrf.mxu0
      %3460 = vmatprep.mubr.bf16.mxu0 0
      %3461 = vmatmul.mubr.bf16.gmra.mxu0 %v3404
      %v3462 = vpop.f32.mrf.mxu0
      %v3463 = vadd.f32 0.0, %v3462
      %v3464 = vpop.f32.mrf.mxu0
      %v3465 = vpop.f32.mrf.mxu0
      %v3466 = vadd.f32 0.0, %v3465
      %v3467 = vpop.f32.mrf.mxu0
      %3468 = vmatprep.mubr.bf16.mxu0 0
      %3469 = vmatmul.mubr.bf16.gmra.mxu0 %v3407
      %v3470 = vpop.f32.mrf.mxu0
      %v3471 = vadd.f32 0.0, %v3470
      %v3472 = vpop.f32.mrf.mxu0
      %v3473 = vpop.f32.mrf.mxu0
      %v3474 = vadd.f32 0.0, %v3473
      %v3475 = vpop.f32.mrf.mxu0
      %3476 = vdwg.mxu0
      %v3477 = vadd.f32 %v3359, %v3447
      %v3478 = vadd.f32 %v3360, %v3450
      %v3479 = vadd.f32 %v3361, %v3455
      %v3480 = vadd.f32 %v3362, %v3458
      %v3481 = vadd.f32 %v3363, %v3463
      %v3482 = vadd.f32 %v3364, %v3466
      %v3483 = vadd.f32 %v3365, %v3471
      %v3484 = vadd.f32 %v3366, %v3474
      %v3485 = vld [vmem:[%s332] sm:$0xf]
      %v3486 = vld [vmem:[%s332 + $0x4] sm:$0x1]
      %v3487 = vld [vmem:[%s332 + $0x8] sm:$0xf]
      %v3488 = vld [vmem:[%s332 + $0xc] sm:$0x1]
      %v3489 = vld [vmem:[%s332 + $0x10] sm:$0xf]
      %v3490 = vld [vmem:[%s332 + $0x14] sm:$0x1]
      %v3491 = vld [vmem:[%s332 + $0x18] sm:$0xf]
      %v3492 = vld [vmem:[%s332 + $0x1c] sm:$0x1]
      %v3493 = vld [vmem:[%s332 + $0x20] sm:$0xf]
      %v3494 = vld [vmem:[%s332 + $0x24] sm:$0x1]
      %v3495 = vld [vmem:[%s332 + $0x28] sm:$0xf]
      %v3496 = vld [vmem:[%s332 + $0x2c] sm:$0x1]
      %v3497 = vld [vmem:[%s332 + $0x30] sm:$0xf]
      %v3498 = vld [vmem:[%s332 + $0x34] sm:$0x1]
      %v3499 = vld [vmem:[%s332 + $0x38] sm:$0xf]
      %v3500 = vld [vmem:[%s332 + $0x3c] sm:$0x1]
      %v3502 = vshrl.u32 %v3485, 16
      %v3504 = vrot.slane %v3502, 4
      %v3505 = vshll.u32 %v3485, 16
      %v3507 = vrot.slane %v3505, 5
      %v3508 = vor.u32 %v3504, %v3507
      %v3509 = vrot.slane %v3508, 4
      %v3511 = vshll.u32 %v3486, 16
      %v3513 = vrot.slane %v3511, 5
      %v3514 = vsel %vm363, %v3509, %v3513
      %v3516 = vshrl.u32 %v3487, 16
      %v3518 = vrot.slane %v3516, 4
      %v3519 = vshll.u32 %v3487, 16
      %v3521 = vrot.slane %v3519, 5
      %v3522 = vor.u32 %v3518, %v3521
      %v3523 = vrot.slane %v3522, 4
      %v3525 = vshll.u32 %v3488, 16
      %v3527 = vrot.slane %v3525, 5
      %v3528 = vsel %vm363, %v3523, %v3527
      %v3530 = vshrl.u32 %v3489, 16
      %v3532 = vrot.slane %v3530, 4
      %v3533 = vshll.u32 %v3489, 16
      %v3535 = vrot.slane %v3533, 5
      %v3536 = vor.u32 %v3532, %v3535
      %v3537 = vrot.slane %v3536, 4
      %v3539 = vshll.u32 %v3490, 16
      %v3541 = vrot.slane %v3539, 5
      %v3542 = vsel %vm363, %v3537, %v3541
      %v3544 = vshrl.u32 %v3491, 16
      %v3546 = vrot.slane %v3544, 4
      %v3547 = vshll.u32 %v3491, 16
      %v3549 = vrot.slane %v3547, 5
      %v3550 = vor.u32 %v3546, %v3549
      %v3551 = vrot.slane %v3550, 4
      %v3553 = vshll.u32 %v3492, 16
      %v3555 = vrot.slane %v3553, 5
      %v3556 = vsel %vm363, %v3551, %v3555
      %v3558 = vshrl.u32 %v3493, 16
      %v3560 = vrot.slane %v3558, 4
      %v3561 = vshll.u32 %v3493, 16
      %v3563 = vrot.slane %v3561, 5
      %v3564 = vor.u32 %v3560, %v3563
      %v3565 = vrot.slane %v3564, 4
      %v3567 = vshll.u32 %v3494, 16
      %v3569 = vrot.slane %v3567, 5
      %v3570 = vsel %vm363, %v3565, %v3569
      %v3572 = vshrl.u32 %v3495, 16
      %v3574 = vrot.slane %v3572, 4
      %v3575 = vshll.u32 %v3495, 16
      %v3577 = vrot.slane %v3575, 5
      %v3578 = vor.u32 %v3574, %v3577
      %v3579 = vrot.slane %v3578, 4
      %v3581 = vshll.u32 %v3496, 16
      %v3583 = vrot.slane %v3581, 5
      %v3584 = vsel %vm363, %v3579, %v3583
      %v3586 = vshrl.u32 %v3497, 16
      %v3588 = vrot.slane %v3586, 4
      %v3589 = vshll.u32 %v3497, 16
      %v3591 = vrot.slane %v3589, 5
      %v3592 = vor.u32 %v3588, %v3591
      %v3593 = vrot.slane %v3592, 4
      %v3595 = vshll.u32 %v3498, 16
      %v3597 = vrot.slane %v3595, 5
      %v3598 = vsel %vm363, %v3593, %v3597
      %v3600 = vshrl.u32 %v3499, 16
      %v3602 = vrot.slane %v3600, 4
      %v3603 = vshll.u32 %v3499, 16
      %v3605 = vrot.slane %v3603, 5
      %v3606 = vor.u32 %v3602, %v3605
      %v3607 = vrot.slane %v3606, 4
      %v3609 = vshll.u32 %v3500, 16
      %v3611 = vrot.slane %v3609, 5
      %v3612 = vsel %vm363, %v3607, %v3611
      %s3613 = scalar_lea.vmem %s3, 76
      %v3614 = vld [vmem:[%s3613] sm:$0xf]
      %v3615 = vunpack.c.l.b16 %v3514
      %v3616 = vunpack.c.l.b16 %v3528
      %v3617 = vunpack.c.l.b16 %v3542
      %v3618 = vunpack.c.l.b16 %v3556
      %v3619 = vunpack.c.l.b16 %v3570
      %v3620 = vunpack.c.l.b16 %v3584
      %v3621 = vunpack.c.l.b16 %v3598
      %v3622 = vunpack.c.l.b16 %v3612
      %v3623 = vpack.c.b16 %v3616, %v3615
      %v3624 = vpack.c.b16 %v3618, %v3617
      %v3625 = vpack.c.b16 %v3620, %v3619
      %v3626 = vpack.c.b16 %v3622, %v3621
      %v3628 = vsel %vm490, %v3623, 0
      %v3631 = vsel %vm490, %v3624, 0
      %v3634 = vsel %vm490, %v3625, 0
      %v3637 = vsel %vm490, %v3626, 0
      %v3640 = vsel %vm503, %v3614, 0
      %3642 = vmatprep.subr.bf16.mxu0 0
      %3643 = vmatpush1.bf16.msra.mxu0 0
      %3644 = vmatprep.subr.bf16.mxu0 0
      %3645 = vmatpush1.bf16.msra.mxu0 0
      %3646 = vmatprep.subr.bf16.mxu0 0
      %3647 = vmatpush1.bf16.msra.mxu0 0
      %3648 = vmatprep.subr.bf16.mxu0 0
      %3649 = vmatpush1.bf16.msra.mxu0 0
      %3650 = vmatprep.subr.bf16.mxu0 0
      %3651 = vmatpush1.bf16.msra.mxu0 0
      %3652 = vmatprep.subr.bf16.mxu0 0
      %3653 = vmatpush1.bf16.msra.mxu0 0
      %3654 = vmatprep.subr.bf16.mxu0 0
      %3655 = vmatpush1.bf16.msra.mxu0 0
      %3656 = vmatprep.subr.bf16.mxu0 0
      %3657 = vmatpush1.bf16.msra.mxu0 %v3640
      %3658 = vmatprep.subr.bf16.mxu0 0
      %3659 = vmatpush2.bf16.msra.mxu0 0
      %3660 = vmatprep.subr.bf16.mxu0 0
      %3661 = vmatpush2.bf16.msra.mxu0 0
      %3662 = vmatprep.subr.bf16.mxu0 0
      %3663 = vmatpush2.bf16.msra.mxu0 0
      %3664 = vmatprep.subr.bf16.mxu0 0
      %3665 = vmatpush2.bf16.msra.mxu0 0
      %3666 = vmatprep.subr.bf16.mxu0 0
      %3667 = vmatpush2.bf16.msra.mxu0 0
      %3668 = vmatprep.subr.bf16.mxu0 0
      %3669 = vmatpush2.bf16.msra.mxu0 0
      %3670 = vmatprep.subr.bf16.mxu0 0
      %3671 = vmatpush2.bf16.msra.mxu0 0
      %3672 = vmatprep.subr.bf16.mxu0 0
      %3673 = vmatpush2.bf16.msra.mxu0 0
      %3674 = vmatprep.mubr.bf16.mxu0 0
      %3675 = vmatmul.mubr.bf16.gmra.mxu0 %v3628
      %v3676 = vpop.f32.mrf.mxu0
      %v3677 = vadd.f32 0.0, %v3676
      %v3678 = vpop.f32.mrf.mxu0
      %v3679 = vpop.f32.mrf.mxu0
      %v3680 = vadd.f32 0.0, %v3679
      %v3681 = vpop.f32.mrf.mxu0
      %3682 = vmatprep.mubr.bf16.mxu0 0
      %3683 = vmatmul.mubr.bf16.gmra.mxu0 %v3631
      %v3684 = vpop.f32.mrf.mxu0
      %v3685 = vadd.f32 0.0, %v3684
      %v3686 = vpop.f32.mrf.mxu0
      %v3687 = vpop.f32.mrf.mxu0
      %v3688 = vadd.f32 0.0, %v3687
      %v3689 = vpop.f32.mrf.mxu0
      %3690 = vmatprep.mubr.bf16.mxu0 0
      %3691 = vmatmul.mubr.bf16.gmra.mxu0 %v3634
      %v3692 = vpop.f32.mrf.mxu0
      %v3693 = vadd.f32 0.0, %v3692
      %v3694 = vpop.f32.mrf.mxu0
      %v3695 = vpop.f32.mrf.mxu0
      %v3696 = vadd.f32 0.0, %v3695
      %v3697 = vpop.f32.mrf.mxu0
      %3698 = vmatprep.mubr.bf16.mxu0 0
      %3699 = vmatmul.mubr.bf16.gmra.mxu0 %v3637
      %v3700 = vpop.f32.mrf.mxu0
      %v3701 = vadd.f32 0.0, %v3700
      %v3702 = vpop.f32.mrf.mxu0
      %v3703 = vpop.f32.mrf.mxu0
      %v3704 = vadd.f32 0.0, %v3703
      %v3705 = vpop.f32.mrf.mxu0
      %3706 = vdwg.mxu0
      %v3707 = vadd.f32 %v3477, %v3677
      %v3708 = vadd.f32 %v3478, %v3680
      %v3709 = vadd.f32 %v3479, %v3685
      %v3710 = vadd.f32 %v3480, %v3688
      %v3711 = vadd.f32 %v3481, %v3693
      %v3712 = vadd.f32 %v3482, %v3696
      %v3713 = vadd.f32 %v3483, %v3701
      %v3714 = vadd.f32 %v3484, %v3704
      %v3715 = vld [vmem:[%s332] sm:$0xe]
      %v3716 = vld [vmem:[%s332 + $0x8] sm:$0xe]
      %v3717 = vld [vmem:[%s332 + $0x10] sm:$0xe]
      %v3718 = vld [vmem:[%s332 + $0x18] sm:$0xe]
      %v3719 = vld [vmem:[%s332 + $0x20] sm:$0xe]
      %v3720 = vld [vmem:[%s332 + $0x28] sm:$0xe]
      %v3721 = vld [vmem:[%s332 + $0x30] sm:$0xe]
      %v3722 = vld [vmem:[%s332 + $0x38] sm:$0xe]
      %v3739 = vrot.slane %v3715, 5
      %v3740 = vrot.slane %v3739, 4
      %v3741 = vrot.slane %v3486, 5
      %v3742 = vsel %vm698, %v3740, %v3741
      %v3743 = vrot.slane %v3716, 5
      %v3744 = vrot.slane %v3743, 4
      %v3745 = vrot.slane %v3488, 5
      %v3746 = vsel %vm698, %v3744, %v3745
      %v3747 = vrot.slane %v3717, 5
      %v3748 = vrot.slane %v3747, 4
      %v3749 = vrot.slane %v3490, 5
      %v3750 = vsel %vm698, %v3748, %v3749
      %v3751 = vrot.slane %v3718, 5
      %v3752 = vrot.slane %v3751, 4
      %v3753 = vrot.slane %v3492, 5
      %v3754 = vsel %vm698, %v3752, %v3753
      %v3755 = vrot.slane %v3719, 5
      %v3756 = vrot.slane %v3755, 4
      %v3757 = vrot.slane %v3494, 5
      %v3758 = vsel %vm698, %v3756, %v3757
      %v3759 = vrot.slane %v3720, 5
      %v3760 = vrot.slane %v3759, 4
      %v3761 = vrot.slane %v3496, 5
      %v3762 = vsel %vm698, %v3760, %v3761
      %v3763 = vrot.slane %v3721, 5
      %v3764 = vrot.slane %v3763, 4
      %v3765 = vrot.slane %v3498, 5
      %v3766 = vsel %vm698, %v3764, %v3765
      %v3767 = vrot.slane %v3722, 5
      %v3768 = vrot.slane %v3767, 4
      %v3769 = vrot.slane %v3500, 5
      %v3770 = vsel %vm698, %v3768, %v3769
      %s3771 = scalar_lea.vmem %s3, 80
      %v3772 = vld [vmem:[%s3771] sm:$0xf]
      %v3773 = vunpack.c.l.b16 %v3742
      %v3774 = vunpack.c.l.b16 %v3746
      %v3775 = vunpack.c.l.b16 %v3750
      %v3776 = vunpack.c.l.b16 %v3754
      %v3777 = vunpack.c.l.b16 %v3758
      %v3778 = vunpack.c.l.b16 %v3762
      %v3779 = vunpack.c.l.b16 %v3766
      %v3780 = vunpack.c.l.b16 %v3770
      %v3781 = vpack.c.b16 %v3774, %v3773
      %v3782 = vpack.c.b16 %v3776, %v3775
      %v3783 = vpack.c.b16 %v3778, %v3777
      %v3784 = vpack.c.b16 %v3780, %v3779
      %v3786 = vsel %vm490, %v3781, 0
      %v3789 = vsel %vm490, %v3782, 0
      %v3792 = vsel %vm490, %v3783, 0
      %v3795 = vsel %vm490, %v3784, 0
      %v3798 = vsel %vm503, %v3772, 0
      %3800 = vmatprep.subr.bf16.mxu0 0
      %3801 = vmatpush1.bf16.msra.mxu0 0
      %3802 = vmatprep.subr.bf16.mxu0 0
      %3803 = vmatpush1.bf16.msra.mxu0 0
      %3804 = vmatprep.subr.bf16.mxu0 0
      %3805 = vmatpush1.bf16.msra.mxu0 0
      %3806 = vmatprep.subr.bf16.mxu0 0
      %3807 = vmatpush1.bf16.msra.mxu0 0
      %3808 = vmatprep.subr.bf16.mxu0 0
      %3809 = vmatpush1.bf16.msra.mxu0 0
      %3810 = vmatprep.subr.bf16.mxu0 0
      %3811 = vmatpush1.bf16.msra.mxu0 0
      %3812 = vmatprep.subr.bf16.mxu0 0
      %3813 = vmatpush1.bf16.msra.mxu0 0
      %3814 = vmatprep.subr.bf16.mxu0 0
      %3815 = vmatpush1.bf16.msra.mxu0 %v3798
      %3816 = vmatprep.subr.bf16.mxu0 0
      %3817 = vmatpush2.bf16.msra.mxu0 0
      %3818 = vmatprep.subr.bf16.mxu0 0
      %3819 = vmatpush2.bf16.msra.mxu0 0
      %3820 = vmatprep.subr.bf16.mxu0 0
      %3821 = vmatpush2.bf16.msra.mxu0 0
      %3822 = vmatprep.subr.bf16.mxu0 0
      %3823 = vmatpush2.bf16.msra.mxu0 0
      %3824 = vmatprep.subr.bf16.mxu0 0
      %3825 = vmatpush2.bf16.msra.mxu0 0
      %3826 = vmatprep.subr.bf16.mxu0 0
      %3827 = vmatpush2.bf16.msra.mxu0 0
      %3828 = vmatprep.subr.bf16.mxu0 0
      %3829 = vmatpush2.bf16.msra.mxu0 0
      %3830 = vmatprep.subr.bf16.mxu0 0
      %3831 = vmatpush2.bf16.msra.mxu0 0
      %3832 = vmatprep.mubr.bf16.mxu0 0
      %3833 = vmatmul.mubr.bf16.gmra.mxu0 %v3786
      %v3834 = vpop.f32.mrf.mxu0
      %v3835 = vadd.f32 0.0, %v3834
      %v3836 = vpop.f32.mrf.mxu0
      %v3837 = vpop.f32.mrf.mxu0
      %v3838 = vadd.f32 0.0, %v3837
      %v3839 = vpop.f32.mrf.mxu0
      %3840 = vmatprep.mubr.bf16.mxu0 0
      %3841 = vmatmul.mubr.bf16.gmra.mxu0 %v3789
      %v3842 = vpop.f32.mrf.mxu0
      %v3843 = vadd.f32 0.0, %v3842
      %v3844 = vpop.f32.mrf.mxu0
      %v3845 = vpop.f32.mrf.mxu0
      %v3846 = vadd.f32 0.0, %v3845
      %v3847 = vpop.f32.mrf.mxu0
      %3848 = vmatprep.mubr.bf16.mxu0 0
      %3849 = vmatmul.mubr.bf16.gmra.mxu0 %v3792
      %v3850 = vpop.f32.mrf.mxu0
      %v3851 = vadd.f32 0.0, %v3850
      %v3852 = vpop.f32.mrf.mxu0
      %v3853 = vpop.f32.mrf.mxu0
      %v3854 = vadd.f32 0.0, %v3853
      %v3855 = vpop.f32.mrf.mxu0
      %3856 = vmatprep.mubr.bf16.mxu0 0
      %3857 = vmatmul.mubr.bf16.gmra.mxu0 %v3795
      %v3858 = vpop.f32.mrf.mxu0
      %v3859 = vadd.f32 0.0, %v3858
      %v3860 = vpop.f32.mrf.mxu0
      %v3861 = vpop.f32.mrf.mxu0
      %v3862 = vadd.f32 0.0, %v3861
      %v3863 = vpop.f32.mrf.mxu0
      %3864 = vdwg.mxu0
      %v3865 = vadd.f32 %v3707, %v3835
      %v3866 = vadd.f32 %v3708, %v3838
      %v3867 = vadd.f32 %v3709, %v3843
      %v3868 = vadd.f32 %v3710, %v3846
      %v3869 = vadd.f32 %v3711, %v3851
      %v3870 = vadd.f32 %v3712, %v3854
      %v3871 = vadd.f32 %v3713, %v3859
      %v3872 = vadd.f32 %v3714, %v3862
      %s3873 = scalar_lea.vmem %s332, 8
      %v3874 = vld [vmem:[%s3873] sm:$0xf]
      %v3875 = vld [vmem:[%s3873 + $0x8] sm:$0xf]
      %v3876 = vld [vmem:[%s3873 + $0x10] sm:$0xf]
      %v3877 = vld [vmem:[%s3873 + $0x18] sm:$0xf]
      %v3878 = vld [vmem:[%s3873 + $0x20] sm:$0xf]
      %v3879 = vld [vmem:[%s3873 + $0x28] sm:$0xf]
      %v3880 = vld [vmem:[%s3873 + $0x30] sm:$0xf]
      %v3881 = vld [vmem:[%s3873 + $0x38] sm:$0xf]
      %s3882 = scalar_lea.vmem %s3, 84
      %v3883 = vld [vmem:[%s3882] sm:$0xf]
      %v3892 = vunpack.c.l.b16 %v3874
      %v3893 = vunpack.c.l.b16 %v3875
      %v3894 = vunpack.c.l.b16 %v3876
      %v3895 = vunpack.c.l.b16 %v3877
      %v3896 = vunpack.c.l.b16 %v3878
      %v3897 = vunpack.c.l.b16 %v3879
      %v3898 = vunpack.c.l.b16 %v3880
      %v3899 = vunpack.c.l.b16 %v3881
      %v3900 = vpack.c.b16 %v3893, %v3892
      %v3901 = vpack.c.b16 %v3895, %v3894
      %v3902 = vpack.c.b16 %v3897, %v3896
      %v3903 = vpack.c.b16 %v3899, %v3898
      %v3905 = vsel %vm490, %v3900, 0
      %v3908 = vsel %vm490, %v3901, 0
      %v3911 = vsel %vm490, %v3902, 0
      %v3914 = vsel %vm490, %v3903, 0
      %v3917 = vsel %vm503, %v3883, 0
      %3919 = vmatprep.subr.bf16.mxu0 0
      %3920 = vmatpush1.bf16.msra.mxu0 0
      %3921 = vmatprep.subr.bf16.mxu0 0
      %3922 = vmatpush1.bf16.msra.mxu0 0
      %3923 = vmatprep.subr.bf16.mxu0 0
      %3924 = vmatpush1.bf16.msra.mxu0 0
      %3925 = vmatprep.subr.bf16.mxu0 0
      %3926 = vmatpush1.bf16.msra.mxu0 0
      %3927 = vmatprep.subr.bf16.mxu0 0
      %3928 = vmatpush1.bf16.msra.mxu0 0
      %3929 = vmatprep.subr.bf16.mxu0 0
      %3930 = vmatpush1.bf16.msra.mxu0 0
      %3931 = vmatprep.subr.bf16.mxu0 0
      %3932 = vmatpush1.bf16.msra.mxu0 0
      %3933 = vmatprep.subr.bf16.mxu0 0
      %3934 = vmatpush1.bf16.msra.mxu0 %v3917
      %3935 = vmatprep.subr.bf16.mxu0 0
      %3936 = vmatpush2.bf16.msra.mxu0 0
      %3937 = vmatprep.subr.bf16.mxu0 0
      %3938 = vmatpush2.bf16.msra.mxu0 0
      %3939 = vmatprep.subr.bf16.mxu0 0
      %3940 = vmatpush2.bf16.msra.mxu0 0
      %3941 = vmatprep.subr.bf16.mxu0 0
      %3942 = vmatpush2.bf16.msra.mxu0 0
      %3943 = vmatprep.subr.bf16.mxu0 0
      %3944 = vmatpush2.bf16.msra.mxu0 0
      %3945 = vmatprep.subr.bf16.mxu0 0
      %3946 = vmatpush2.bf16.msra.mxu0 0
      %3947 = vmatprep.subr.bf16.mxu0 0
      %3948 = vmatpush2.bf16.msra.mxu0 0
      %3949 = vmatprep.subr.bf16.mxu0 0
      %3950 = vmatpush2.bf16.msra.mxu0 0
      %3951 = vmatprep.mubr.bf16.mxu0 0
      %3952 = vmatmul.mubr.bf16.gmra.mxu0 %v3905
      %v3953 = vpop.f32.mrf.mxu0
      %v3954 = vadd.f32 0.0, %v3953
      %v3955 = vpop.f32.mrf.mxu0
      %v3956 = vpop.f32.mrf.mxu0
      %v3957 = vadd.f32 0.0, %v3956
      %v3958 = vpop.f32.mrf.mxu0
      %3959 = vmatprep.mubr.bf16.mxu0 0
      %3960 = vmatmul.mubr.bf16.gmra.mxu0 %v3908
      %v3961 = vpop.f32.mrf.mxu0
      %v3962 = vadd.f32 0.0, %v3961
      %v3963 = vpop.f32.mrf.mxu0
      %v3964 = vpop.f32.mrf.mxu0
      %v3965 = vadd.f32 0.0, %v3964
      %v3966 = vpop.f32.mrf.mxu0
      %3967 = vmatprep.mubr.bf16.mxu0 0
      %3968 = vmatmul.mubr.bf16.gmra.mxu0 %v3911
      %v3969 = vpop.f32.mrf.mxu0
      %v3970 = vadd.f32 0.0, %v3969
      %v3971 = vpop.f32.mrf.mxu0
      %v3972 = vpop.f32.mrf.mxu0
      %v3973 = vadd.f32 0.0, %v3972
      %v3974 = vpop.f32.mrf.mxu0
      %3975 = vmatprep.mubr.bf16.mxu0 0
      %3976 = vmatmul.mubr.bf16.gmra.mxu0 %v3914
      %v3977 = vpop.f32.mrf.mxu0
      %v3978 = vadd.f32 0.0, %v3977
      %v3979 = vpop.f32.mrf.mxu0
      %v3980 = vpop.f32.mrf.mxu0
      %v3981 = vadd.f32 0.0, %v3980
      %v3982 = vpop.f32.mrf.mxu0
      %3983 = vdwg.mxu0
      %v3984 = vadd.f32 %v3865, %v3954
      %v3985 = vadd.f32 %v3866, %v3957
      %v3986 = vadd.f32 %v3867, %v3962
      %v3987 = vadd.f32 %v3868, %v3965
      %v3988 = vadd.f32 %v3869, %v3970
      %v3989 = vadd.f32 %v3870, %v3973
      %v3990 = vadd.f32 %v3871, %v3978
      %v3991 = vadd.f32 %v3872, %v3981
      %v3992 = vld [vmem:[%s3873] sm:$0xf]
      %v3993 = vld [vmem:[%s3873 + $0x4] sm:$0x1]
      %v3994 = vld [vmem:[%s3873 + $0x8] sm:$0xf]
      %v3995 = vld [vmem:[%s3873 + $0xc] sm:$0x1]
      %v3996 = vld [vmem:[%s3873 + $0x10] sm:$0xf]
      %v3997 = vld [vmem:[%s3873 + $0x14] sm:$0x1]
      %v3998 = vld [vmem:[%s3873 + $0x18] sm:$0xf]
      %v3999 = vld [vmem:[%s3873 + $0x1c] sm:$0x1]
      %v4000 = vld [vmem:[%s3873 + $0x20] sm:$0xf]
      %v4001 = vld [vmem:[%s3873 + $0x24] sm:$0x1]
      %v4002 = vld [vmem:[%s3873 + $0x28] sm:$0xf]
      %v4003 = vld [vmem:[%s3873 + $0x2c] sm:$0x1]
      %v4004 = vld [vmem:[%s3873 + $0x30] sm:$0xf]
      %v4005 = vld [vmem:[%s3873 + $0x34] sm:$0x1]
      %v4006 = vld [vmem:[%s3873 + $0x38] sm:$0xf]
      %v4007 = vld [vmem:[%s3873 + $0x3c] sm:$0x1]
      %v4009 = vshrl.u32 %v3992, 16
      %v4011 = vrot.slane %v4009, 4
      %v4012 = vshll.u32 %v3992, 16
      %v4014 = vrot.slane %v4012, 5
      %v4015 = vor.u32 %v4011, %v4014
      %v4016 = vrot.slane %v4015, 4
      %v4018 = vshll.u32 %v3993, 16
      %v4020 = vrot.slane %v4018, 5
      %v4021 = vsel %vm363, %v4016, %v4020
      %v4023 = vshrl.u32 %v3994, 16
      %v4025 = vrot.slane %v4023, 4
      %v4026 = vshll.u32 %v3994, 16
      %v4028 = vrot.slane %v4026, 5
      %v4029 = vor.u32 %v4025, %v4028
      %v4030 = vrot.slane %v4029, 4
      %v4032 = vshll.u32 %v3995, 16
      %v4034 = vrot.slane %v4032, 5
      %v4035 = vsel %vm363, %v4030, %v4034
      %v4037 = vshrl.u32 %v3996, 16
      %v4039 = vrot.slane %v4037, 4
      %v4040 = vshll.u32 %v3996, 16
      %v4042 = vrot.slane %v4040, 5
      %v4043 = vor.u32 %v4039, %v4042
      %v4044 = vrot.slane %v4043, 4
      %v4046 = vshll.u32 %v3997, 16
      %v4048 = vrot.slane %v4046, 5
      %v4049 = vsel %vm363, %v4044, %v4048
      %v4051 = vshrl.u32 %v3998, 16
      %v4053 = vrot.slane %v4051, 4
      %v4054 = vshll.u32 %v3998, 16
      %v4056 = vrot.slane %v4054, 5
      %v4057 = vor.u32 %v4053, %v4056
      %v4058 = vrot.slane %v4057, 4
      %v4060 = vshll.u32 %v3999, 16
      %v4062 = vrot.slane %v4060, 5
      %v4063 = vsel %vm363, %v4058, %v4062
      %v4065 = vshrl.u32 %v4000, 16
      %v4067 = vrot.slane %v4065, 4
      %v4068 = vshll.u32 %v4000, 16
      %v4070 = vrot.slane %v4068, 5
      %v4071 = vor.u32 %v4067, %v4070
      %v4072 = vrot.slane %v4071, 4
      %v4074 = vshll.u32 %v4001, 16
      %v4076 = vrot.slane %v4074, 5
      %v4077 = vsel %vm363, %v4072, %v4076
      %v4079 = vshrl.u32 %v4002, 16
      %v4081 = vrot.slane %v4079, 4
      %v4082 = vshll.u32 %v4002, 16
      %v4084 = vrot.slane %v4082, 5
      %v4085 = vor.u32 %v4081, %v4084
      %v4086 = vrot.slane %v4085, 4
      %v4088 = vshll.u32 %v4003, 16
      %v4090 = vrot.slane %v4088, 5
      %v4091 = vsel %vm363, %v4086, %v4090
      %v4093 = vshrl.u32 %v4004, 16
      %v4095 = vrot.slane %v4093, 4
      %v4096 = vshll.u32 %v4004, 16
      %v4098 = vrot.slane %v4096, 5
      %v4099 = vor.u32 %v4095, %v4098
      %v4100 = vrot.slane %v4099, 4
      %v4102 = vshll.u32 %v4005, 16
      %v4104 = vrot.slane %v4102, 5
      %v4105 = vsel %vm363, %v4100, %v4104
      %v4107 = vshrl.u32 %v4006, 16
      %v4109 = vrot.slane %v4107, 4
      %v4110 = vshll.u32 %v4006, 16
      %v4112 = vrot.slane %v4110, 5
      %v4113 = vor.u32 %v4109, %v4112
      %v4114 = vrot.slane %v4113, 4
      %v4116 = vshll.u32 %v4007, 16
      %v4118 = vrot.slane %v4116, 5
      %v4119 = vsel %vm363, %v4114, %v4118
      %s4120 = scalar_lea.vmem %s3, 88
      %v4121 = vld [vmem:[%s4120] sm:$0xf]
      %v4122 = vunpack.c.l.b16 %v4021
      %v4123 = vunpack.c.l.b16 %v4035
      %v4124 = vunpack.c.l.b16 %v4049
      %v4125 = vunpack.c.l.b16 %v4063
      %v4126 = vunpack.c.l.b16 %v4077
      %v4127 = vunpack.c.l.b16 %v4091
      %v4128 = vunpack.c.l.b16 %v4105
      %v4129 = vunpack.c.l.b16 %v4119
      %v4130 = vpack.c.b16 %v4123, %v4122
      %v4131 = vpack.c.b16 %v4125, %v4124
      %v4132 = vpack.c.b16 %v4127, %v4126
      %v4133 = vpack.c.b16 %v4129, %v4128
      %v4135 = vsel %vm490, %v4130, 0
      %v4138 = vsel %vm490, %v4131, 0
      %v4141 = vsel %vm490, %v4132, 0
      %v4144 = vsel %vm490, %v4133, 0
      %v4147 = vsel %vm503, %v4121, 0
      %4149 = vmatprep.subr.bf16.mxu0 0
      %4150 = vmatpush1.bf16.msra.mxu0 0
      %4151 = vmatprep.subr.bf16.mxu0 0
      %4152 = vmatpush1.bf16.msra.mxu0 0
      %4153 = vmatprep.subr.bf16.mxu0 0
      %4154 = vmatpush1.bf16.msra.mxu0 0
      %4155 = vmatprep.subr.bf16.mxu0 0
      %4156 = vmatpush1.bf16.msra.mxu0 0
      %4157 = vmatprep.subr.bf16.mxu0 0
      %4158 = vmatpush1.bf16.msra.mxu0 0
      %4159 = vmatprep.subr.bf16.mxu0 0
      %4160 = vmatpush1.bf16.msra.mxu0 0
      %4161 = vmatprep.subr.bf16.mxu0 0
      %4162 = vmatpush1.bf16.msra.mxu0 0
      %4163 = vmatprep.subr.bf16.mxu0 0
      %4164 = vmatpush1.bf16.msra.mxu0 %v4147
      %4165 = vmatprep.subr.bf16.mxu0 0
      %4166 = vmatpush2.bf16.msra.mxu0 0
      %4167 = vmatprep.subr.bf16.mxu0 0
      %4168 = vmatpush2.bf16.msra.mxu0 0
      %4169 = vmatprep.subr.bf16.mxu0 0
      %4170 = vmatpush2.bf16.msra.mxu0 0
      %4171 = vmatprep.subr.bf16.mxu0 0
      %4172 = vmatpush2.bf16.msra.mxu0 0
      %4173 = vmatprep.subr.bf16.mxu0 0
      %4174 = vmatpush2.bf16.msra.mxu0 0
      %4175 = vmatprep.subr.bf16.mxu0 0
      %4176 = vmatpush2.bf16.msra.mxu0 0
      %4177 = vmatprep.subr.bf16.mxu0 0
      %4178 = vmatpush2.bf16.msra.mxu0 0
      %4179 = vmatprep.subr.bf16.mxu0 0
      %4180 = vmatpush2.bf16.msra.mxu0 0
      %4181 = vmatprep.mubr.bf16.mxu0 0
      %4182 = vmatmul.mubr.bf16.gmra.mxu0 %v4135
      %v4183 = vpop.f32.mrf.mxu0
      %v4184 = vadd.f32 0.0, %v4183
      %v4185 = vpop.f32.mrf.mxu0
      %v4186 = vpop.f32.mrf.mxu0
      %v4187 = vadd.f32 0.0, %v4186
      %v4188 = vpop.f32.mrf.mxu0
      %4189 = vmatprep.mubr.bf16.mxu0 0
      %4190 = vmatmul.mubr.bf16.gmra.mxu0 %v4138
      %v4191 = vpop.f32.mrf.mxu0
      %v4192 = vadd.f32 0.0, %v4191
      %v4193 = vpop.f32.mrf.mxu0
      %v4194 = vpop.f32.mrf.mxu0
      %v4195 = vadd.f32 0.0, %v4194
      %v4196 = vpop.f32.mrf.mxu0
      %4197 = vmatprep.mubr.bf16.mxu0 0
      %4198 = vmatmul.mubr.bf16.gmra.mxu0 %v4141
      %v4199 = vpop.f32.mrf.mxu0
      %v4200 = vadd.f32 0.0, %v4199
      %v4201 = vpop.f32.mrf.mxu0
      %v4202 = vpop.f32.mrf.mxu0
      %v4203 = vadd.f32 0.0, %v4202
      %v4204 = vpop.f32.mrf.mxu0
      %4205 = vmatprep.mubr.bf16.mxu0 0
      %4206 = vmatmul.mubr.bf16.gmra.mxu0 %v4144
      %v4207 = vpop.f32.mrf.mxu0
      %v4208 = vadd.f32 0.0, %v4207
      %v4209 = vpop.f32.mrf.mxu0
      %v4210 = vpop.f32.mrf.mxu0
      %v4211 = vadd.f32 0.0, %v4210
      %v4212 = vpop.f32.mrf.mxu0
      %4213 = vdwg.mxu0
      %v4214 = vadd.f32 %v3984, %v4184
      %v4215 = vadd.f32 %v3985, %v4187
      %v4216 = vadd.f32 %v3986, %v4192
      %v4217 = vadd.f32 %v3987, %v4195
      %v4218 = vadd.f32 %v3988, %v4200
      %v4219 = vadd.f32 %v3989, %v4203
      %v4220 = vadd.f32 %v3990, %v4208
      %v4221 = vadd.f32 %v3991, %v4211
      %v4222 = vld [vmem:[%s3873] sm:$0xe]
      %v4223 = vld [vmem:[%s3873 + $0x8] sm:$0xe]
      %v4224 = vld [vmem:[%s3873 + $0x10] sm:$0xe]
      %v4225 = vld [vmem:[%s3873 + $0x18] sm:$0xe]
      %v4226 = vld [vmem:[%s3873 + $0x20] sm:$0xe]
      %v4227 = vld [vmem:[%s3873 + $0x28] sm:$0xe]
      %v4228 = vld [vmem:[%s3873 + $0x30] sm:$0xe]
      %v4229 = vld [vmem:[%s3873 + $0x38] sm:$0xe]
      %v4246 = vrot.slane %v4222, 5
      %v4247 = vrot.slane %v4246, 4
      %v4248 = vrot.slane %v3993, 5
      %v4249 = vsel %vm698, %v4247, %v4248
      %v4250 = vrot.slane %v4223, 5
      %v4251 = vrot.slane %v4250, 4
      %v4252 = vrot.slane %v3995, 5
      %v4253 = vsel %vm698, %v4251, %v4252
      %v4254 = vrot.slane %v4224, 5
      %v4255 = vrot.slane %v4254, 4
      %v4256 = vrot.slane %v3997, 5
      %v4257 = vsel %vm698, %v4255, %v4256
      %v4258 = vrot.slane %v4225, 5
      %v4259 = vrot.slane %v4258, 4
      %v4260 = vrot.slane %v3999, 5
      %v4261 = vsel %vm698, %v4259, %v4260
      %v4262 = vrot.slane %v4226, 5
      %v4263 = vrot.slane %v4262, 4
      %v4264 = vrot.slane %v4001, 5
      %v4265 = vsel %vm698, %v4263, %v4264
      %v4266 = vrot.slane %v4227, 5
      %v4267 = vrot.slane %v4266, 4
      %v4268 = vrot.slane %v4003, 5
      %v4269 = vsel %vm698, %v4267, %v4268
      %v4270 = vrot.slane %v4228, 5
      %v4271 = vrot.slane %v4270, 4
      %v4272 = vrot.slane %v4005, 5
      %v4273 = vsel %vm698, %v4271, %v4272
      %v4274 = vrot.slane %v4229, 5
      %v4275 = vrot.slane %v4274, 4
      %v4276 = vrot.slane %v4007, 5
      %v4277 = vsel %vm698, %v4275, %v4276
      %s4278 = scalar_lea.vmem %s3, 92
      %v4279 = vld [vmem:[%s4278] sm:$0xf]
      %v4280 = vunpack.c.l.b16 %v4249
      %v4281 = vunpack.c.l.b16 %v4253
      %v4282 = vunpack.c.l.b16 %v4257
      %v4283 = vunpack.c.l.b16 %v4261
      %v4284 = vunpack.c.l.b16 %v4265
      %v4285 = vunpack.c.l.b16 %v4269
      %v4286 = vunpack.c.l.b16 %v4273
      %v4287 = vunpack.c.l.b16 %v4277
      %v4288 = vpack.c.b16 %v4281, %v4280
      %v4289 = vpack.c.b16 %v4283, %v4282
      %v4290 = vpack.c.b16 %v4285, %v4284
      %v4291 = vpack.c.b16 %v4287, %v4286
      %v4293 = vsel %vm490, %v4288, 0
      %v4296 = vsel %vm490, %v4289, 0
      %v4299 = vsel %vm490, %v4290, 0
      %v4302 = vsel %vm490, %v4291, 0
      %v4305 = vsel %vm503, %v4279, 0
      %4307 = vmatprep.subr.bf16.mxu0 0
      %4308 = vmatpush1.bf16.msra.mxu0 0
      %4309 = vmatprep.subr.bf16.mxu0 0
      %4310 = vmatpush1.bf16.msra.mxu0 0
      %4311 = vmatprep.subr.bf16.mxu0 0
      %4312 = vmatpush1.bf16.msra.mxu0 0
      %4313 = vmatprep.subr.bf16.mxu0 0
      %4314 = vmatpush1.bf16.msra.mxu0 0
      %4315 = vmatprep.subr.bf16.mxu0 0
      %4316 = vmatpush1.bf16.msra.mxu0 0
      %4317 = vmatprep.subr.bf16.mxu0 0
      %4318 = vmatpush1.bf16.msra.mxu0 0
      %4319 = vmatprep.subr.bf16.mxu0 0
      %4320 = vmatpush1.bf16.msra.mxu0 0
      %4321 = vmatprep.subr.bf16.mxu0 0
      %4322 = vmatpush1.bf16.msra.mxu0 %v4305
      %4323 = vmatprep.subr.bf16.mxu0 0
      %4324 = vmatpush2.bf16.msra.mxu0 0
      %4325 = vmatprep.subr.bf16.mxu0 0
      %4326 = vmatpush2.bf16.msra.mxu0 0
      %4327 = vmatprep.subr.bf16.mxu0 0
      %4328 = vmatpush2.bf16.msra.mxu0 0
      %4329 = vmatprep.subr.bf16.mxu0 0
      %4330 = vmatpush2.bf16.msra.mxu0 0
      %4331 = vmatprep.subr.bf16.mxu0 0
      %4332 = vmatpush2.bf16.msra.mxu0 0
      %4333 = vmatprep.subr.bf16.mxu0 0
      %4334 = vmatpush2.bf16.msra.mxu0 0
      %4335 = vmatprep.subr.bf16.mxu0 0
      %4336 = vmatpush2.bf16.msra.mxu0 0
      %4337 = vmatprep.subr.bf16.mxu0 0
      %4338 = vmatpush2.bf16.msra.mxu0 0
      %4339 = vmatprep.mubr.bf16.mxu0 0
      %4340 = vmatmul.mubr.bf16.gmra.mxu0 %v4293
      %v4341 = vpop.f32.mrf.mxu0
      %v4342 = vadd.f32 0.0, %v4341
      %v4343 = vpop.f32.mrf.mxu0
      %v4344 = vpop.f32.mrf.mxu0
      %v4345 = vadd.f32 0.0, %v4344
      %v4346 = vpop.f32.mrf.mxu0
      %4347 = vmatprep.mubr.bf16.mxu0 0
      %4348 = vmatmul.mubr.bf16.gmra.mxu0 %v4296
      %v4349 = vpop.f32.mrf.mxu0
      %v4350 = vadd.f32 0.0, %v4349
      %v4351 = vpop.f32.mrf.mxu0
      %v4352 = vpop.f32.mrf.mxu0
      %v4353 = vadd.f32 0.0, %v4352
      %v4354 = vpop.f32.mrf.mxu0
      %4355 = vmatprep.mubr.bf16.mxu0 0
      %4356 = vmatmul.mubr.bf16.gmra.mxu0 %v4299
      %v4357 = vpop.f32.mrf.mxu0
      %v4358 = vadd.f32 0.0, %v4357
      %v4359 = vpop.f32.mrf.mxu0
      %v4360 = vpop.f32.mrf.mxu0
      %v4361 = vadd.f32 0.0, %v4360
      %v4362 = vpop.f32.mrf.mxu0
      %4363 = vmatprep.mubr.bf16.mxu0 0
      %4364 = vmatmul.mubr.bf16.gmra.mxu0 %v4302
      %v4365 = vpop.f32.mrf.mxu0
      %v4366 = vadd.f32 0.0, %v4365
      %v4367 = vpop.f32.mrf.mxu0
      %v4368 = vpop.f32.mrf.mxu0
      %v4369 = vadd.f32 0.0, %v4368
      %v4370 = vpop.f32.mrf.mxu0
      %4371 = vdwg.mxu0
      %v4372 = vadd.f32 %v4214, %v4342
      %v4373 = vadd.f32 %v4215, %v4345
      %v4374 = vadd.f32 %v4216, %v4350
      %v4375 = vadd.f32 %v4217, %v4353
      %v4376 = vadd.f32 %v4218, %v4358
      %v4377 = vadd.f32 %v4219, %v4361
      %v4378 = vadd.f32 %v4220, %v4366
      %v4379 = vadd.f32 %v4221, %v4369
      %s4380 = scalar_lea.vmem %s332, 16
      %v4381 = vld [vmem:[%s4380] sm:$0xf]
      %v4382 = vld [vmem:[%s4380 + $0x8] sm:$0xf]
      %v4383 = vld [vmem:[%s4380 + $0x10] sm:$0xf]
      %v4384 = vld [vmem:[%s4380 + $0x18] sm:$0xf]
      %v4385 = vld [vmem:[%s4380 + $0x20] sm:$0xf]
      %v4386 = vld [vmem:[%s4380 + $0x28] sm:$0xf]
      %v4387 = vld [vmem:[%s4380 + $0x30] sm:$0xf]
      %v4388 = vld [vmem:[%s4380 + $0x38] sm:$0xf]
      %s4389 = scalar_lea.vmem %s3, 96
      %v4390 = vld [vmem:[%s4389] sm:$0xf]
      %v4399 = vunpack.c.l.b16 %v4381
      %v4400 = vunpack.c.l.b16 %v4382
      %v4401 = vunpack.c.l.b16 %v4383
      %v4402 = vunpack.c.l.b16 %v4384
      %v4403 = vunpack.c.l.b16 %v4385
      %v4404 = vunpack.c.l.b16 %v4386
      %v4405 = vunpack.c.l.b16 %v4387
      %v4406 = vunpack.c.l.b16 %v4388
      %v4407 = vpack.c.b16 %v4400, %v4399
      %v4408 = vpack.c.b16 %v4402, %v4401
      %v4409 = vpack.c.b16 %v4404, %v4403
      %v4410 = vpack.c.b16 %v4406, %v4405
      %v4412 = vsel %vm490, %v4407, 0
      %v4415 = vsel %vm490, %v4408, 0
      %v4418 = vsel %vm490, %v4409, 0
      %v4421 = vsel %vm490, %v4410, 0
      %v4424 = vsel %vm503, %v4390, 0
      %4426 = vmatprep.subr.bf16.mxu0 0
      %4427 = vmatpush1.bf16.msra.mxu0 0
      %4428 = vmatprep.subr.bf16.mxu0 0
      %4429 = vmatpush1.bf16.msra.mxu0 0
      %4430 = vmatprep.subr.bf16.mxu0 0
      %4431 = vmatpush1.bf16.msra.mxu0 0
      %4432 = vmatprep.subr.bf16.mxu0 0
      %4433 = vmatpush1.bf16.msra.mxu0 0
      %4434 = vmatprep.subr.bf16.mxu0 0
      %4435 = vmatpush1.bf16.msra.mxu0 0
      %4436 = vmatprep.subr.bf16.mxu0 0
      %4437 = vmatpush1.bf16.msra.mxu0 0
      %4438 = vmatprep.subr.bf16.mxu0 0
      %4439 = vmatpush1.bf16.msra.mxu0 0
      %4440 = vmatprep.subr.bf16.mxu0 0
      %4441 = vmatpush1.bf16.msra.mxu0 %v4424
      %4442 = vmatprep.subr.bf16.mxu0 0
      %4443 = vmatpush2.bf16.msra.mxu0 0
      %4444 = vmatprep.subr.bf16.mxu0 0
      %4445 = vmatpush2.bf16.msra.mxu0 0
      %4446 = vmatprep.subr.bf16.mxu0 0
      %4447 = vmatpush2.bf16.msra.mxu0 0
      %4448 = vmatprep.subr.bf16.mxu0 0
      %4449 = vmatpush2.bf16.msra.mxu0 0
      %4450 = vmatprep.subr.bf16.mxu0 0
      %4451 = vmatpush2.bf16.msra.mxu0 0
      %4452 = vmatprep.subr.bf16.mxu0 0
      %4453 = vmatpush2.bf16.msra.mxu0 0
      %4454 = vmatprep.subr.bf16.mxu0 0
      %4455 = vmatpush2.bf16.msra.mxu0 0
      %4456 = vmatprep.subr.bf16.mxu0 0
      %4457 = vmatpush2.bf16.msra.mxu0 0
      %4458 = vmatprep.mubr.bf16.mxu0 0
      %4459 = vmatmul.mubr.bf16.gmra.mxu0 %v4412
      %v4460 = vpop.f32.mrf.mxu0
      %v4461 = vadd.f32 0.0, %v4460
      %v4462 = vpop.f32.mrf.mxu0
      %v4463 = vpop.f32.mrf.mxu0
      %v4464 = vadd.f32 0.0, %v4463
      %v4465 = vpop.f32.mrf.mxu0
      %4466 = vmatprep.mubr.bf16.mxu0 0
      %4467 = vmatmul.mubr.bf16.gmra.mxu0 %v4415
      %v4468 = vpop.f32.mrf.mxu0
      %v4469 = vadd.f32 0.0, %v4468
      %v4470 = vpop.f32.mrf.mxu0
      %v4471 = vpop.f32.mrf.mxu0
      %v4472 = vadd.f32 0.0, %v4471
      %v4473 = vpop.f32.mrf.mxu0
      %4474 = vmatprep.mubr.bf16.mxu0 0
      %4475 = vmatmul.mubr.bf16.gmra.mxu0 %v4418
      %v4476 = vpop.f32.mrf.mxu0
      %v4477 = vadd.f32 0.0, %v4476
      %v4478 = vpop.f32.mrf.mxu0
      %v4479 = vpop.f32.mrf.mxu0
      %v4480 = vadd.f32 0.0, %v4479
      %v4481 = vpop.f32.mrf.mxu0
      %4482 = vmatprep.mubr.bf16.mxu0 0
      %4483 = vmatmul.mubr.bf16.gmra.mxu0 %v4421
      %v4484 = vpop.f32.mrf.mxu0
      %v4485 = vadd.f32 0.0, %v4484
      %v4486 = vpop.f32.mrf.mxu0
      %v4487 = vpop.f32.mrf.mxu0
      %v4488 = vadd.f32 0.0, %v4487
      %v4489 = vpop.f32.mrf.mxu0
      %4490 = vdwg.mxu0
      %v4491 = vadd.f32 %v4372, %v4461
      %v4492 = vadd.f32 %v4373, %v4464
      %v4493 = vadd.f32 %v4374, %v4469
      %v4494 = vadd.f32 %v4375, %v4472
      %v4495 = vadd.f32 %v4376, %v4477
      %v4496 = vadd.f32 %v4377, %v4480
      %v4497 = vadd.f32 %v4378, %v4485
      %v4498 = vadd.f32 %v4379, %v4488
      %v4499 = vld [vmem:[%s4380] sm:$0xf]
      %v4500 = vld [vmem:[%s4380 + $0x4] sm:$0x1]
      %v4501 = vld [vmem:[%s4380 + $0x8] sm:$0xf]
      %v4502 = vld [vmem:[%s4380 + $0xc] sm:$0x1]
      %v4503 = vld [vmem:[%s4380 + $0x10] sm:$0xf]
      %v4504 = vld [vmem:[%s4380 + $0x14] sm:$0x1]
      %v4505 = vld [vmem:[%s4380 + $0x18] sm:$0xf]
      %v4506 = vld [vmem:[%s4380 + $0x1c] sm:$0x1]
      %v4507 = vld [vmem:[%s4380 + $0x20] sm:$0xf]
      %v4508 = vld [vmem:[%s4380 + $0x24] sm:$0x1]
      %v4509 = vld [vmem:[%s4380 + $0x28] sm:$0xf]
      %v4510 = vld [vmem:[%s4380 + $0x2c] sm:$0x1]
      %v4511 = vld [vmem:[%s4380 + $0x30] sm:$0xf]
      %v4512 = vld [vmem:[%s4380 + $0x34] sm:$0x1]
      %v4513 = vld [vmem:[%s4380 + $0x38] sm:$0xf]
      %v4514 = vld [vmem:[%s4380 + $0x3c] sm:$0x1]
      %v4516 = vshrl.u32 %v4499, 16
      %v4518 = vrot.slane %v4516, 4
      %v4519 = vshll.u32 %v4499, 16
      %v4521 = vrot.slane %v4519, 5
      %v4522 = vor.u32 %v4518, %v4521
      %v4523 = vrot.slane %v4522, 4
      %v4525 = vshll.u32 %v4500, 16
      %v4527 = vrot.slane %v4525, 5
      %v4528 = vsel %vm363, %v4523, %v4527
      %v4530 = vshrl.u32 %v4501, 16
      %v4532 = vrot.slane %v4530, 4
      %v4533 = vshll.u32 %v4501, 16
      %v4535 = vrot.slane %v4533, 5
      %v4536 = vor.u32 %v4532, %v4535
      %v4537 = vrot.slane %v4536, 4
      %v4539 = vshll.u32 %v4502, 16
      %v4541 = vrot.slane %v4539, 5
      %v4542 = vsel %vm363, %v4537, %v4541
      %v4544 = vshrl.u32 %v4503, 16
      %v4546 = vrot.slane %v4544, 4
      %v4547 = vshll.u32 %v4503, 16
      %v4549 = vrot.slane %v4547, 5
      %v4550 = vor.u32 %v4546, %v4549
      %v4551 = vrot.slane %v4550, 4
      %v4553 = vshll.u32 %v4504, 16
      %v4555 = vrot.slane %v4553, 5
      %v4556 = vsel %vm363, %v4551, %v4555
      %v4558 = vshrl.u32 %v4505, 16
      %v4560 = vrot.slane %v4558, 4
      %v4561 = vshll.u32 %v4505, 16
      %v4563 = vrot.slane %v4561, 5
      %v4564 = vor.u32 %v4560, %v4563
      %v4565 = vrot.slane %v4564, 4
      %v4567 = vshll.u32 %v4506, 16
      %v4569 = vrot.slane %v4567, 5
      %v4570 = vsel %vm363, %v4565, %v4569
      %v4572 = vshrl.u32 %v4507, 16
      %v4574 = vrot.slane %v4572, 4
      %v4575 = vshll.u32 %v4507, 16
      %v4577 = vrot.slane %v4575, 5
      %v4578 = vor.u32 %v4574, %v4577
      %v4579 = vrot.slane %v4578, 4
      %v4581 = vshll.u32 %v4508, 16
      %v4583 = vrot.slane %v4581, 5
      %v4584 = vsel %vm363, %v4579, %v4583
      %v4586 = vshrl.u32 %v4509, 16
      %v4588 = vrot.slane %v4586, 4
      %v4589 = vshll.u32 %v4509, 16
      %v4591 = vrot.slane %v4589, 5
      %v4592 = vor.u32 %v4588, %v4591
      %v4593 = vrot.slane %v4592, 4
      %v4595 = vshll.u32 %v4510, 16
      %v4597 = vrot.slane %v4595, 5
      %v4598 = vsel %vm363, %v4593, %v4597
      %v4600 = vshrl.u32 %v4511, 16
      %v4602 = vrot.slane %v4600, 4
      %v4603 = vshll.u32 %v4511, 16
      %v4605 = vrot.slane %v4603, 5
      %v4606 = vor.u32 %v4602, %v4605
      %v4607 = vrot.slane %v4606, 4
      %v4609 = vshll.u32 %v4512, 16
      %v4611 = vrot.slane %v4609, 5
      %v4612 = vsel %vm363, %v4607, %v4611
      %v4614 = vshrl.u32 %v4513, 16
      %v4616 = vrot.slane %v4614, 4
      %v4617 = vshll.u32 %v4513, 16
      %v4619 = vrot.slane %v4617, 5
      %v4620 = vor.u32 %v4616, %v4619
      %v4621 = vrot.slane %v4620, 4
      %v4623 = vshll.u32 %v4514, 16
      %v4625 = vrot.slane %v4623, 5
      %v4626 = vsel %vm363, %v4621, %v4625
      %s4627 = scalar_lea.vmem %s3, 100
      %v4628 = vld [vmem:[%s4627] sm:$0xf]
      %v4629 = vunpack.c.l.b16 %v4528
      %v4630 = vunpack.c.l.b16 %v4542
      %v4631 = vunpack.c.l.b16 %v4556
      %v4632 = vunpack.c.l.b16 %v4570
      %v4633 = vunpack.c.l.b16 %v4584
      %v4634 = vunpack.c.l.b16 %v4598
      %v4635 = vunpack.c.l.b16 %v4612
      %v4636 = vunpack.c.l.b16 %v4626
      %v4637 = vpack.c.b16 %v4630, %v4629
      %v4638 = vpack.c.b16 %v4632, %v4631
      %v4639 = vpack.c.b16 %v4634, %v4633
      %v4640 = vpack.c.b16 %v4636, %v4635
      %v4642 = vsel %vm490, %v4637, 0
      %v4645 = vsel %vm490, %v4638, 0
      %v4648 = vsel %vm490, %v4639, 0
      %v4651 = vsel %vm490, %v4640, 0
      %v4654 = vsel %vm503, %v4628, 0
      %4656 = vmatprep.subr.bf16.mxu0 0
      %4657 = vmatpush1.bf16.msra.mxu0 0
      %4658 = vmatprep.subr.bf16.mxu0 0
      %4659 = vmatpush1.bf16.msra.mxu0 0
      %4660 = vmatprep.subr.bf16.mxu0 0
      %4661 = vmatpush1.bf16.msra.mxu0 0
      %4662 = vmatprep.subr.bf16.mxu0 0
      %4663 = vmatpush1.bf16.msra.mxu0 0
      %4664 = vmatprep.subr.bf16.mxu0 0
      %4665 = vmatpush1.bf16.msra.mxu0 0
      %4666 = vmatprep.subr.bf16.mxu0 0
      %4667 = vmatpush1.bf16.msra.mxu0 0
      %4668 = vmatprep.subr.bf16.mxu0 0
      %4669 = vmatpush1.bf16.msra.mxu0 0
      %4670 = vmatprep.subr.bf16.mxu0 0
      %4671 = vmatpush1.bf16.msra.mxu0 %v4654
      %4672 = vmatprep.subr.bf16.mxu0 0
      %4673 = vmatpush2.bf16.msra.mxu0 0
      %4674 = vmatprep.subr.bf16.mxu0 0
      %4675 = vmatpush2.bf16.msra.mxu0 0
      %4676 = vmatprep.subr.bf16.mxu0 0
      %4677 = vmatpush2.bf16.msra.mxu0 0
      %4678 = vmatprep.subr.bf16.mxu0 0
      %4679 = vmatpush2.bf16.msra.mxu0 0
      %4680 = vmatprep.subr.bf16.mxu0 0
      %4681 = vmatpush2.bf16.msra.mxu0 0
      %4682 = vmatprep.subr.bf16.mxu0 0
      %4683 = vmatpush2.bf16.msra.mxu0 0
      %4684 = vmatprep.subr.bf16.mxu0 0
      %4685 = vmatpush2.bf16.msra.mxu0 0
      %4686 = vmatprep.subr.bf16.mxu0 0
      %4687 = vmatpush2.bf16.msra.mxu0 0
      %4688 = vmatprep.mubr.bf16.mxu0 0
      %4689 = vmatmul.mubr.bf16.gmra.mxu0 %v4642
      %v4690 = vpop.f32.mrf.mxu0
      %v4691 = vadd.f32 0.0, %v4690
      %v4692 = vpop.f32.mrf.mxu0
      %v4693 = vpop.f32.mrf.mxu0
      %v4694 = vadd.f32 0.0, %v4693
      %v4695 = vpop.f32.mrf.mxu0
      %4696 = vmatprep.mubr.bf16.mxu0 0
      %4697 = vmatmul.mubr.bf16.gmra.mxu0 %v4645
      %v4698 = vpop.f32.mrf.mxu0
      %v4699 = vadd.f32 0.0, %v4698
      %v4700 = vpop.f32.mrf.mxu0
      %v4701 = vpop.f32.mrf.mxu0
      %v4702 = vadd.f32 0.0, %v4701
      %v4703 = vpop.f32.mrf.mxu0
      %4704 = vmatprep.mubr.bf16.mxu0 0
      %4705 = vmatmul.mubr.bf16.gmra.mxu0 %v4648
      %v4706 = vpop.f32.mrf.mxu0
      %v4707 = vadd.f32 0.0, %v4706
      %v4708 = vpop.f32.mrf.mxu0
      %v4709 = vpop.f32.mrf.mxu0
      %v4710 = vadd.f32 0.0, %v4709
      %v4711 = vpop.f32.mrf.mxu0
      %4712 = vmatprep.mubr.bf16.mxu0 0
      %4713 = vmatmul.mubr.bf16.gmra.mxu0 %v4651
      %v4714 = vpop.f32.mrf.mxu0
      %v4715 = vadd.f32 0.0, %v4714
      %v4716 = vpop.f32.mrf.mxu0
      %v4717 = vpop.f32.mrf.mxu0
      %v4718 = vadd.f32 0.0, %v4717
      %v4719 = vpop.f32.mrf.mxu0
      %4720 = vdwg.mxu0
      %v4721 = vadd.f32 %v4491, %v4691
      %v4722 = vadd.f32 %v4492, %v4694
      %v4723 = vadd.f32 %v4493, %v4699
      %v4724 = vadd.f32 %v4494, %v4702
      %v4725 = vadd.f32 %v4495, %v4707
      %v4726 = vadd.f32 %v4496, %v4710
      %v4727 = vadd.f32 %v4497, %v4715
      %v4728 = vadd.f32 %v4498, %v4718
      %v4729 = vld [vmem:[%s4380] sm:$0xe]
      %v4730 = vld [vmem:[%s4380 + $0x8] sm:$0xe]
      %v4731 = vld [vmem:[%s4380 + $0x10] sm:$0xe]
      %v4732 = vld [vmem:[%s4380 + $0x18] sm:$0xe]
      %v4733 = vld [vmem:[%s4380 + $0x20] sm:$0xe]
      %v4734 = vld [vmem:[%s4380 + $0x28] sm:$0xe]
      %v4735 = vld [vmem:[%s4380 + $0x30] sm:$0xe]
      %v4736 = vld [vmem:[%s4380 + $0x38] sm:$0xe]
      %v4753 = vrot.slane %v4729, 5
      %v4754 = vrot.slane %v4753, 4
      %v4755 = vrot.slane %v4500, 5
      %v4756 = vsel %vm698, %v4754, %v4755
      %v4757 = vrot.slane %v4730, 5
      %v4758 = vrot.slane %v4757, 4
      %v4759 = vrot.slane %v4502, 5
      %v4760 = vsel %vm698, %v4758, %v4759
      %v4761 = vrot.slane %v4731, 5
      %v4762 = vrot.slane %v4761, 4
      %v4763 = vrot.slane %v4504, 5
      %v4764 = vsel %vm698, %v4762, %v4763
      %v4765 = vrot.slane %v4732, 5
      %v4766 = vrot.slane %v4765, 4
      %v4767 = vrot.slane %v4506, 5
      %v4768 = vsel %vm698, %v4766, %v4767
      %v4769 = vrot.slane %v4733, 5
      %v4770 = vrot.slane %v4769, 4
      %v4771 = vrot.slane %v4508, 5
      %v4772 = vsel %vm698, %v4770, %v4771
      %v4773 = vrot.slane %v4734, 5
      %v4774 = vrot.slane %v4773, 4
      %v4775 = vrot.slane %v4510, 5
      %v4776 = vsel %vm698, %v4774, %v4775
      %v4777 = vrot.slane %v4735, 5
      %v4778 = vrot.slane %v4777, 4
      %v4779 = vrot.slane %v4512, 5
      %v4780 = vsel %vm698, %v4778, %v4779
      %v4781 = vrot.slane %v4736, 5
      %v4782 = vrot.slane %v4781, 4
      %v4783 = vrot.slane %v4514, 5
      %v4784 = vsel %vm698, %v4782, %v4783
      %s4785 = scalar_lea.vmem %s3, 104
      %v4786 = vld [vmem:[%s4785] sm:$0xf]
      %v4787 = vunpack.c.l.b16 %v4756
      %v4788 = vunpack.c.l.b16 %v4760
      %v4789 = vunpack.c.l.b16 %v4764
      %v4790 = vunpack.c.l.b16 %v4768
      %v4791 = vunpack.c.l.b16 %v4772
      %v4792 = vunpack.c.l.b16 %v4776
      %v4793 = vunpack.c.l.b16 %v4780
      %v4794 = vunpack.c.l.b16 %v4784
      %v4795 = vpack.c.b16 %v4788, %v4787
      %v4796 = vpack.c.b16 %v4790, %v4789
      %v4797 = vpack.c.b16 %v4792, %v4791
      %v4798 = vpack.c.b16 %v4794, %v4793
      %v4800 = vsel %vm490, %v4795, 0
      %v4803 = vsel %vm490, %v4796, 0
      %v4806 = vsel %vm490, %v4797, 0
      %v4809 = vsel %vm490, %v4798, 0
      %v4812 = vsel %vm503, %v4786, 0
      %4814 = vmatprep.subr.bf16.mxu0 0
      %4815 = vmatpush1.bf16.msra.mxu0 0
      %4816 = vmatprep.subr.bf16.mxu0 0
      %4817 = vmatpush1.bf16.msra.mxu0 0
      %4818 = vmatprep.subr.bf16.mxu0 0
      %4819 = vmatpush1.bf16.msra.mxu0 0
      %4820 = vmatprep.subr.bf16.mxu0 0
      %4821 = vmatpush1.bf16.msra.mxu0 0
      %4822 = vmatprep.subr.bf16.mxu0 0
      %4823 = vmatpush1.bf16.msra.mxu0 0
      %4824 = vmatprep.subr.bf16.mxu0 0
      %4825 = vmatpush1.bf16.msra.mxu0 0
      %4826 = vmatprep.subr.bf16.mxu0 0
      %4827 = vmatpush1.bf16.msra.mxu0 0
      %4828 = vmatprep.subr.bf16.mxu0 0
      %4829 = vmatpush1.bf16.msra.mxu0 %v4812
      %4830 = vmatprep.subr.bf16.mxu0 0
      %4831 = vmatpush2.bf16.msra.mxu0 0
      %4832 = vmatprep.subr.bf16.mxu0 0
      %4833 = vmatpush2.bf16.msra.mxu0 0
      %4834 = vmatprep.subr.bf16.mxu0 0
      %4835 = vmatpush2.bf16.msra.mxu0 0
      %4836 = vmatprep.subr.bf16.mxu0 0
      %4837 = vmatpush2.bf16.msra.mxu0 0
      %4838 = vmatprep.subr.bf16.mxu0 0
      %4839 = vmatpush2.bf16.msra.mxu0 0
      %4840 = vmatprep.subr.bf16.mxu0 0
      %4841 = vmatpush2.bf16.msra.mxu0 0
      %4842 = vmatprep.subr.bf16.mxu0 0
      %4843 = vmatpush2.bf16.msra.mxu0 0
      %4844 = vmatprep.subr.bf16.mxu0 0
      %4845 = vmatpush2.bf16.msra.mxu0 0
      %4846 = vmatprep.mubr.bf16.mxu0 0
      %4847 = vmatmul.mubr.bf16.gmra.mxu0 %v4800
      %v4848 = vpop.f32.mrf.mxu0
      %v4849 = vadd.f32 0.0, %v4848
      %v4850 = vpop.f32.mrf.mxu0
      %v4851 = vpop.f32.mrf.mxu0
      %v4852 = vadd.f32 0.0, %v4851
      %v4853 = vpop.f32.mrf.mxu0
      %4854 = vmatprep.mubr.bf16.mxu0 0
      %4855 = vmatmul.mubr.bf16.gmra.mxu0 %v4803
      %v4856 = vpop.f32.mrf.mxu0
      %v4857 = vadd.f32 0.0, %v4856
      %v4858 = vpop.f32.mrf.mxu0
      %v4859 = vpop.f32.mrf.mxu0
      %v4860 = vadd.f32 0.0, %v4859
      %v4861 = vpop.f32.mrf.mxu0
      %4862 = vmatprep.mubr.bf16.mxu0 0
      %4863 = vmatmul.mubr.bf16.gmra.mxu0 %v4806
      %v4864 = vpop.f32.mrf.mxu0
      %v4865 = vadd.f32 0.0, %v4864
      %v4866 = vpop.f32.mrf.mxu0
      %v4867 = vpop.f32.mrf.mxu0
      %v4868 = vadd.f32 0.0, %v4867
      %v4869 = vpop.f32.mrf.mxu0
      %4870 = vmatprep.mubr.bf16.mxu0 0
      %4871 = vmatmul.mubr.bf16.gmra.mxu0 %v4809
      %v4872 = vpop.f32.mrf.mxu0
      %v4873 = vadd.f32 0.0, %v4872
      %v4874 = vpop.f32.mrf.mxu0
      %v4875 = vpop.f32.mrf.mxu0
      %v4876 = vadd.f32 0.0, %v4875
      %v4877 = vpop.f32.mrf.mxu0
      %4878 = vdwg.mxu0
      %v4879 = vadd.f32 %v4721, %v4849
      %v4880 = vadd.f32 %v4722, %v4852
      %v4881 = vadd.f32 %v4723, %v4857
      %v4882 = vadd.f32 %v4724, %v4860
      %v4883 = vadd.f32 %v4725, %v4865
      %v4884 = vadd.f32 %v4726, %v4868
      %v4885 = vadd.f32 %v4727, %v4873
      %v4886 = vadd.f32 %v4728, %v4876
      %v4887 = vld [vmem:[%s4] sm:$0x1]
      %v4889 = vlaneseq
      %v4890 = vshrl.u32 %v4889, 7
      %v4891 = vsub.s32 0, %v4890
      %v4892 = vrot.slane %v4887, %v4891
      %v4894 = vadd.f32 %v4879, %v4892
      %v4895 = vadd.f32 %v4880, %v4892
      %v4896 = vadd.f32 %v4881, %v4892
      %v4897 = vadd.f32 %v4882, %v4892
      %v4898 = vadd.f32 %v4883, %v4892
      %v4899 = vadd.f32 %v4884, %v4892
      %v4900 = vadd.f32 %v4885, %v4892
      %v4901 = vadd.f32 %v4886, %v4892
      %v4902 = vmax.f32 %v4894, 0.0
      %v4903 = vmax.f32 %v4895, 0.0
      %v4904 = vmax.f32 %v4896, 0.0
      %v4905 = vmax.f32 %v4897, 0.0
      %v4906 = vmax.f32 %v4898, 0.0
      %v4907 = vmax.f32 %v4899, 0.0
      %v4908 = vmax.f32 %v4900, 0.0
      %v4909 = vmax.f32 %v4901, 0.0
      %v4910 = vpack.c.bf16 %v4902, %v4902
      %v4911 = vpack.c.bf16 %v4903, %v4903
      %v4912 = vpack.c.bf16 %v4904, %v4904
      %v4913 = vpack.c.bf16 %v4905, %v4905
      %v4914 = vpack.c.bf16 %v4906, %v4906
      %v4915 = vpack.c.bf16 %v4907, %v4907
      %v4916 = vpack.c.bf16 %v4908, %v4908
      %v4917 = vpack.c.bf16 %v4909, %v4909
      %4918 = vst [vmem:[%s342] sm:$0xf] %v4910
      %4919 = vst [vmem:[%s342 + $0x4] sm:$0xf] %v4911
      %4920 = vst [vmem:[%s342 + $0x8] sm:$0xf] %v4912
      %4921 = vst [vmem:[%s342 + $0xc] sm:$0xf] %v4913
      %4922 = vst [vmem:[%s342 + $0x10] sm:$0xf] %v4914
      %4923 = vst [vmem:[%s342 + $0x14] sm:$0xf] %v4915
      %4924 = vst [vmem:[%s342 + $0x18] sm:$0xf] %v4916
      %4925 = vst [vmem:[%s342 + $0x1c] sm:$0xf] %v4917
      %p4926 = scmp.lt.s32.totalorder %s20, 1
      %s4927 = scalar_select %p4926, %s20, 1
      %p4928 = scmp.lt.s32.totalorder %s21, 7
      %s4929 = scalar_select %p4928, %s21, 7
      %s4930 = smul.addr %s4929, 8
      %s4931 = smul.addr %s4927, 64
      %s4932 = sadd.s32 %s4930, %s4931
      %s4933 = smul.addr %s4932, 4
      %s4934 = scalar_lea.vmem %s5, %s4933
      // Predicated region
      $region41: #{eeg3dcnn_forward.6} parent=39 // pred_check
        %p4935 = pneg %p178
      $region42: #{eeg3dcnn_forward.6} parent=39 // pred_check_branch
        %4937 = sbr.rel (%p4935) target = $region44
      $region43: #{eeg3dcnn_forward.6} parent=39 // pred_region
        _
      $region44: #{eeg3dcnn_forward.6} parent=39 // pred_fallthru
        _
    $region40: #{eeg3dcnn_forward.6} parent=5 // pred_fallthru
      _
    %p4938 = scmp.le.s32.totalorder 2, %s11
    // Predicated region
    $region45: #{eeg3dcnn_forward.6} parent=5 // pred_check
      %p4939 = pneg %p4938
    $region46: #{eeg3dcnn_forward.6} parent=5 // pred_check_branch
      %4941 = sbr.rel (%p4939) target = $region48
    $region47: #{eeg3dcnn_forward.6} parent=5 // pred_region
      %s4942 = ssub.s32 %s11, 2
      // Predicated region
      $region49: #{eeg3dcnn_forward.6} parent=47 // pred_check
        %p4943 = pneg %p184
      $region50: #{eeg3dcnn_forward.6} parent=47 // pred_check_branch
        %4945 = sbr.rel (%p4943) target = $region52
      $region51: #{eeg3dcnn_forward.6} parent=47 // pred_region
        %p4946 = scmp.lt.s32.totalorder %s22, 1
        %s4947 = scalar_select %p4946, %s22, 1
        %p4948 = scmp.lt.s32.totalorder %s23, 7
        %s4949 = scalar_select %p4948, %s23, 7
        %s4950 = smul.addr %s4949, 8
        %s4951 = smul.addr %s4947, 64
        %s4952 = sadd.s32 %s4950, %s4951
        %s4953 = smul.addr %s4952, 4
        %s4954 = scalar_lea.vmem %s5, %s4953
      $region52: #{eeg3dcnn_forward.6} parent=47 // pred_fallthru
        _
    $region48: #{eeg3dcnn_forward.6} parent=5 // pred_fallthru
      _
  $region6: #{eeg3dcnn_forward.6} parent=0 // loop_footer
    %s15 = sadd.s32 1, %s11
  $region7: #{eeg3dcnn_forward.6} parent=0 // loop_footer_branch
    %10 = sbr.rel target = $region3
  $region8: #{eeg3dcnn_forward.6} parent=0 // loop_exit
    _

// kernel: eeg3dcnn_forward.11
$region0: #{eeg3dcnn_forward.11}
  #allocation0 [shape = 'u32[]', space=smem, size = 0x4, offset = 0x4, fixed_abs, tag = 'smem constant byte address 0x4 - core index']
  #allocation1 [shape = 'u32[144,128]{1,0:T(1,128)}', space=vmem, size = 0x12000, scoped, tag = 'internal scratch']
  #allocation2 [shape = 'f32[8,128]{1,0:T(8,128)}', space=vmem, size = 0x1000, scoped, tag = 'scratch operand']
  %s0 = inlined_call_operand.vmem [shape: bf16[8,128], index: 0, kind: input, shape index: {}]
  %s1 = inlined_call_operand.vmem [shape: bf16[128,128], index: 1, kind: input, shape index: {}]
  %s2 = inlined_call_operand.vmem [shape: f32[1,128], index: 2, kind: input, shape index: {}]
  %s3 = inlined_call_operand.vmem [shape: f32[8,128], index: 3, kind: output, shape index: {}]
  %s4 = sld [smem:[#allocation0]]
  $region30: #{eeg3dcnn_forward.11} parent=0
    _
  %s6 = ssub.s32 1, %s4
  %s7 = scalar_select 0, %s6, %s4
  // Predicated region
  $region2: #{eeg3dcnn_forward.11} parent=0 // pred_check
    _
  $region3: #{eeg3dcnn_forward.11} parent=0 // pred_check_branch
    %9 = sbr.rel (0) target = $region5
  $region4: #{eeg3dcnn_forward.11} parent=0 // pred_region
    _
  $region5: #{eeg3dcnn_forward.11} parent=0 // pred_fallthru
    _
  // Predicated region
  $region6: #{eeg3dcnn_forward.11} parent=0 // pred_check
    _
  $region7: #{eeg3dcnn_forward.11} parent=0 // pred_check_branch
    %11 = sbr.rel (0) target = $region9
  $region8: #{eeg3dcnn_forward.11} parent=0 // pred_region
    _
  $region9: #{eeg3dcnn_forward.11} parent=0 // pred_fallthru
    _
  // Predicated region
  $region10: #{eeg3dcnn_forward.11} parent=0 // pred_check
    _
  $region11: #{eeg3dcnn_forward.11} parent=0 // pred_check_branch
    %13 = sbr.rel (0) target = $region13
  $region12: #{eeg3dcnn_forward.11} parent=0 // pred_region
    _
  $region13: #{eeg3dcnn_forward.11} parent=0 // pred_fallthru
    _
  %p15 = scmp.eq.s32.totalorder 0, 0
  // Predicated region
  $region14: #{eeg3dcnn_forward.11} parent=0 // pred_check
    %p16 = pneg %p15
  $region15: #{eeg3dcnn_forward.11} parent=0 // pred_check_branch
    %18 = sbr.rel (%p16) target = $region17
  $region16: #{eeg3dcnn_forward.11} parent=0 // pred_region
    %19 = vst [vmem:[#allocation2] sm:$0xff] 0.0
  $region17: #{eeg3dcnn_forward.11} parent=0 // pred_fallthru
    _
  %v20 = vld [vmem:[#allocation2] sm:$0xff]
  %v21 = vld [vmem:[%s0] sm:$0xf]
  %v22 = vld [vmem:[%s1] sm:$0xf]
  %v23 = vld [vmem:[%s1 + $0x4] sm:$0xf]
  %v24 = vld [vmem:[%s1 + $0x8] sm:$0xf]
  %v25 = vld [vmem:[%s1 + $0xc] sm:$0xf]
  %v26 = vld [vmem:[%s1 + $0x10] sm:$0xf]
  %v27 = vld [vmem:[%s1 + $0x14] sm:$0xf]
  %v28 = vld [vmem:[%s1 + $0x18] sm:$0xf]
  %v29 = vld [vmem:[%s1 + $0x1c] sm:$0xf]
  %v30 = vld [vmem:[%s1 + $0x20] sm:$0xf]
  %v31 = vld [vmem:[%s1 + $0x24] sm:$0xf]
  %v32 = vld [vmem:[%s1 + $0x28] sm:$0xf]
  %v33 = vld [vmem:[%s1 + $0x2c] sm:$0xf]
  %v34 = vld [vmem:[%s1 + $0x30] sm:$0xf]
  %v35 = vld [vmem:[%s1 + $0x34] sm:$0xf]
  %v36 = vld [vmem:[%s1 + $0x38] sm:$0xf]
  %v37 = vld [vmem:[%s1 + $0x3c] sm:$0xf]
  %v54 = vunpack.c.l.b16 %v22
  %v55 = vunpack.c.l.b16 %v23
  %v56 = vunpack.c.l.b16 %v24
  %v57 = vunpack.c.l.b16 %v25
  %v58 = vunpack.c.l.b16 %v26
  %v59 = vunpack.c.l.b16 %v27
  %v60 = vunpack.c.l.b16 %v28
  %v61 = vunpack.c.l.b16 %v29
  %v62 = vunpack.c.l.b16 %v30
  %v63 = vunpack.c.l.b16 %v31
  %v64 = vunpack.c.l.b16 %v32
  %v65 = vunpack.c.l.b16 %v33
  %v66 = vunpack.c.l.b16 %v34
  %v67 = vunpack.c.l.b16 %v35
  %v68 = vunpack.c.l.b16 %v36
  %v69 = vunpack.c.l.b16 %v37
  %v70 = vpack.c.b16 %v55, %v54
  %v71 = vpack.c.b16 %v57, %v56
  %v72 = vpack.c.b16 %v59, %v58
  %v73 = vpack.c.b16 %v61, %v60
  %v74 = vpack.c.b16 %v63, %v62
  %v75 = vpack.c.b16 %v65, %v64
  %v76 = vpack.c.b16 %v67, %v66
  %v77 = vpack.c.b16 %v69, %v68
  %86 = vmatprep.subr.bf16.mxu0 0
  %87 = vmatpush1.bf16.msra.mxu0 %v77
  %88 = vmatprep.subr.bf16.mxu0 0
  %89 = vmatpush1.bf16.msra.mxu0 %v76
  %90 = vmatprep.subr.bf16.mxu0 0
  %91 = vmatpush1.bf16.msra.mxu0 %v75
  %92 = vmatprep.subr.bf16.mxu0 0
  %93 = vmatpush1.bf16.msra.mxu0 %v74
  %94 = vmatprep.subr.bf16.mxu0 0
  %95 = vmatpush1.bf16.msra.mxu0 %v73
  %96 = vmatprep.subr.bf16.mxu0 0
  %97 = vmatpush1.bf16.msra.mxu0 %v72
  %98 = vmatprep.subr.bf16.mxu0 0
  %99 = vmatpush1.bf16.msra.mxu0 %v71
  %100 = vmatprep.subr.bf16.mxu0 0
  %101 = vmatpush1.bf16.msra.mxu0 %v70
  %102 = vmatprep.subr.bf16.mxu0 0
  %103 = vmatpush2.bf16.msra.mxu0 0
  %104 = vmatprep.subr.bf16.mxu0 0
  %105 = vmatpush2.bf16.msra.mxu0 0
  %106 = vmatprep.subr.bf16.mxu0 0
  %107 = vmatpush2.bf16.msra.mxu0 0
  %108 = vmatprep.subr.bf16.mxu0 0
  %109 = vmatpush2.bf16.msra.mxu0 0
  %110 = vmatprep.subr.bf16.mxu0 0
  %111 = vmatpush2.bf16.msra.mxu0 0
  %112 = vmatprep.subr.bf16.mxu0 0
  %113 = vmatpush2.bf16.msra.mxu0 0
  %114 = vmatprep.subr.bf16.mxu0 0
  %115 = vmatpush2.bf16.msra.mxu0 0
  %116 = vmatprep.subr.bf16.mxu0 0
  %117 = vmatpush2.bf16.msra.mxu0 0
  %118 = vmatprep.mubr.bf16.mxu0 0
  %119 = vmatmul.mubr.bf16.gmra.mxu0 %v21
  %v120 = vpop.f32.mrf.mxu0
  %v121 = vadd.f32 0.0, %v120
  %v122 = vpop.f32.mrf.mxu0
  %v123 = vpop.f32.mrf.mxu0
  %v124 = vpop.f32.mrf.mxu0
  %125 = vdwg.mxu0
  %v126 = vadd.f32 %v20, %v121
  %127 = vst [vmem:[#allocation2] sm:$0xff] %v126
  // Predicated region
  $region18: #{eeg3dcnn_forward.11} parent=0 // pred_check
    %p128 = pneg %p15
  $region19: #{eeg3dcnn_forward.11} parent=0 // pred_check_branch
    %130 = sbr.rel (%p128) target = $region21
  $region20: #{eeg3dcnn_forward.11} parent=0 // pred_region
    %v131 = vld [vmem:[#allocation2] sm:$0xff]
    %v132 = vld [vmem:[%s2] sm:$0x1]
    %v134 = vlaneseq
    %v135 = vshrl.u32 %v134, 7
    %v136 = vsub.s32 0, %v135
    %v137 = vrot.slane %v132, %v136
    %v139 = vadd.f32 %v131, %v137
    %v140 = vsub.f32 0.0, %v139
    %v141 = vmul.f32 %v140, 1.442695
    %v142 = vpow.pop %v141
    %v143 = vadd.f32 %v142, 1.0
    %v144 = vrcp.pop %v143
    %v145 = vmul.f32 1.0, %v144
    %146 = vst [vmem:[%s3] sm:$0xff] %v145
  $region21: #{eeg3dcnn_forward.11} parent=0 // pred_fallthru
    _
  // Predicated region
  $region22: #{eeg3dcnn_forward.11} parent=0 // pred_check
    _
  $region23: #{eeg3dcnn_forward.11} parent=0 // pred_check_branch
    %148 = sbr.rel (0) target = $region25
  $region24: #{eeg3dcnn_forward.11} parent=0 // pred_region
    _
  $region25: #{eeg3dcnn_forward.11} parent=0 // pred_fallthru
    _
  // Predicated region
  $region26: #{eeg3dcnn_forward.11} parent=0 // pred_check
    _
  $region27: #{eeg3dcnn_forward.11} parent=0 // pred_check_branch
    %150 = sbr.rel (0) target = $region29
  $region28: #{eeg3dcnn_forward.11} parent=0 // pred_region
    _
  $region29: #{eeg3dcnn_forward.11} parent=0 // pred_fallthru
    _

// kernel: eeg3dcnn_forward.10
$region0: #{eeg3dcnn_forward.10}
  #allocation0 [shape = 'u32[]', space=smem, size = 0x4, offset = 0x4, fixed_abs, tag = 'smem constant byte address 0x4 - core index']
  #allocation1 [shape = 'u32[144,128]{1,0:T(1,128)}', space=vmem, size = 0x12000, scoped, tag = 'internal scratch']
  #allocation2 [shape = 'f32[8,128]{1,0:T(8,128)}', space=vmem, size = 0x1000, scoped, tag = 'scratch operand']
  %s0 = inlined_call_operand.vmem [shape: bf16[8,1024], index: 0, kind: input, shape index: {}]
  %s1 = inlined_call_operand.vmem [shape: bf16[1024,128], index: 1, kind: input, shape index: {}]
  %s2 = inlined_call_operand.vmem [shape: f32[1,128], index: 2, kind: input, shape index: {}]
  %s3 = inlined_call_operand.vmem [shape: bf16[8,128], index: 3, kind: output, shape index: {}]
  %s4 = sld [smem:[#allocation0]]
  $region53: #{eeg3dcnn_forward.10} parent=0
    _
  %s6 = ssub.s32 1, %s4
  %s7 = scalar_select 0, %s6, %s4
  loop: start=0, step=1, limit=4
  $region2: #{eeg3dcnn_forward.10} parent=0 // loop_pre_header
    _
  $region3: #{eeg3dcnn_forward.10} parent=0 // loop_header
    %s9 = sphi 0, %s13
    %p10 = scmp.ge.s32.totalorder %s9, 4
    %s16 = sphi 0, %s35
    %s17 = sphi 0, %s31
    %s18 = sphi 0, %s27
    %s19 = sphi 0, %s16
    %s20 = sphi 0, %s17
    %s21 = sphi 0, %s18
    %s22 = sphi 0, %s19
    %s23 = sphi 0, %s20
    %s24 = sphi 0, %s21
    %s40 = sphi 0, %s42
    %s43 = sphi 0, %s40
    %s44 = sphi 0, %s43
    %s60 = sphi 0, %s44
    %s68 = sphi 0, %s70
    %s71 = sphi 0, %s68
    %s72 = sphi 0, %s71
    %s88 = sphi 0, %s72
    %s94 = sphi 0, %s96
    %s97 = sphi 0, %s94
    %s98 = sphi 0, %s97
    %s114 = sphi 0, %s98
    %s122 = sphi 0, %s124
    %s125 = sphi 0, %s122
    %s126 = sphi 0, %s125
    %s142 = sphi 0, %s126
  $region4: #{eeg3dcnn_forward.10} parent=0 // loop_header_branch
    %12 = sbr.rel (%p10) target = $region8
  $region5: #{eeg3dcnn_forward.10} parent=0 // loop_body
    %s14 = ssub.s32 %s9, 1
    %s15 = ssub.s32 %s9, 2
    %s25 = sadd.s32 1, %s18
    %p26 = scmp.ge.s32.totalorder %s25, 2
    %s27 = scalar_select %p26, 0, %s25
    %s28 = sadd.s32 1, %s17
    %s29 = scalar_select %p26, %s28, %s17
    %p30 = scmp.ge.s32.totalorder %s29, 1
    %s31 = scalar_select %p30, 0, %s29
    %s32 = sadd.s32 1, %s16
    %s33 = scalar_select %p30, %s32, %s16
    %p34 = scmp.ge.s32.totalorder %s33, 1
    %s35 = scalar_select %p34, 0, %s33
    %s36 = ssub.s32 %s16, %s35
    %s37 = ssub.s32 %s18, %s27
    %s38 = sor.u32 %s36, %s37
    %p39 = scmp.eq.s32.totalorder %s38, 0
    %s41 = sadd.s32 %s40, 1
    %s42 = scalar_select %p39, %s40, %s41
    %p45 = pneg %p39
    %p46 = scmp.eq.s32.totalorder %s9, 1
    %p47 = por %p45, %p46
    %p48 = scmp.ne.s32.totalorder %s40, %s43
    %p49 = scmp.eq.s32.totalorder %s9, 0
    %p50 = por %p48, %p49
    %p51 = scmp.ne.s32.totalorder %s40, %s43
    %p52 = scmp.eq.s32.totalorder %s14, 1
    %p53 = por %p51, %p52
    %p54 = scmp.ne.s32.totalorder %s43, %s44
    %p55 = scmp.eq.s32.totalorder %s14, 0
    %p56 = por %p54, %p55
    %p57 = scmp.ne.s32.totalorder %s43, %s44
    %p58 = scmp.eq.s32.totalorder %s15, 1
    %p59 = por %p57, %p58
    %p61 = scmp.ne.s32.totalorder %s44, %s60
    %p62 = scmp.eq.s32.totalorder %s15, 0
    %p63 = por %p61, %p62
    %s64 = ssub.s32 %s18, %s27
    %s65 = ssub.s32 %s17, %s31
    %s66 = sor.u32 %s64, %s65
    %p67 = scmp.eq.s32.totalorder %s66, 0
    %s69 = sadd.s32 %s68, 1
    %s70 = scalar_select %p67, %s68, %s69
    %p73 = pneg %p67
    %p74 = scmp.eq.s32.totalorder %s9, 1
    %p75 = por %p73, %p74
    %p76 = scmp.ne.s32.totalorder %s68, %s71
    %p77 = scmp.eq.s32.totalorder %s9, 0
    %p78 = por %p76, %p77
    %p79 = scmp.ne.s32.totalorder %s68, %s71
    %p80 = scmp.eq.s32.totalorder %s14, 1
    %p81 = por %p79, %p80
    %p82 = scmp.ne.s32.totalorder %s71, %s72
    %p83 = scmp.eq.s32.totalorder %s14, 0
    %p84 = por %p82, %p83
    %p85 = scmp.ne.s32.totalorder %s71, %s72
    %p86 = scmp.eq.s32.totalorder %s15, 1
    %p87 = por %p85, %p86
    %p89 = scmp.ne.s32.totalorder %s72, %s88
    %p90 = scmp.eq.s32.totalorder %s15, 0
    %p91 = por %p89, %p90
    %s92 = ssub.s32 %s17, %s31
    %p93 = scmp.eq.s32.totalorder %s92, 0
    %s95 = sadd.s32 %s94, 1
    %s96 = scalar_select %p93, %s94, %s95
    %p99 = pneg %p93
    %p100 = scmp.eq.s32.totalorder %s9, 1
    %p101 = por %p99, %p100
    %p102 = scmp.ne.s32.totalorder %s94, %s97
    %p103 = scmp.eq.s32.totalorder %s9, 0
    %p104 = por %p102, %p103
    %p105 = scmp.ne.s32.totalorder %s94, %s97
    %p106 = scmp.eq.s32.totalorder %s14, 1
    %p107 = por %p105, %p106
    %p108 = scmp.ne.s32.totalorder %s97, %s98
    %p109 = scmp.eq.s32.totalorder %s14, 0
    %p110 = por %p108, %p109
    %p111 = scmp.ne.s32.totalorder %s97, %s98
    %p112 = scmp.eq.s32.totalorder %s15, 1
    %p113 = por %p111, %p112
    %p115 = scmp.ne.s32.totalorder %s98, %s114
    %p116 = scmp.eq.s32.totalorder %s15, 0
    %p117 = por %p115, %p116
    %s118 = ssub.s32 %s16, %s35
    %s119 = ssub.s32 %s17, %s31
    %s120 = sor.u32 %s118, %s119
    %p121 = scmp.eq.s32.totalorder %s120, 0
    %s123 = sadd.s32 %s122, 1
    %s124 = scalar_select %p121, %s122, %s123
    %p127 = pneg %p121
    %p128 = scmp.eq.s32.totalorder %s9, 1
    %p129 = por %p127, %p128
    %p130 = scmp.ne.s32.totalorder %s122, %s125
    %p131 = scmp.eq.s32.totalorder %s9, 0
    %p132 = por %p130, %p131
    %p133 = scmp.ne.s32.totalorder %s122, %s125
    %p134 = scmp.eq.s32.totalorder %s14, 1
    %p135 = por %p133, %p134
    %p136 = scmp.ne.s32.totalorder %s125, %s126
    %p137 = scmp.eq.s32.totalorder %s14, 0
    %p138 = por %p136, %p137
    %p139 = scmp.ne.s32.totalorder %s125, %s126
    %p140 = scmp.eq.s32.totalorder %s15, 1
    %p141 = por %p139, %p140
    %p143 = scmp.ne.s32.totalorder %s126, %s142
    %p144 = scmp.eq.s32.totalorder %s15, 0
    %p145 = por %p143, %p144
    %p146 = scmp.le.s32.totalorder 1, %s9
    %p147 = scmp.lt.s32.totalorder %s9, 3
    %p148 = pnand %p146, %p147
    %p149 = pneg %p148
    // Predicated region
    $region9: #{eeg3dcnn_forward.10} parent=5 // pred_check
      _
    $region10: #{eeg3dcnn_forward.10} parent=5 // pred_check_branch
      %151 = sbr.rel (%p148) target = $region12
    $region11: #{eeg3dcnn_forward.10} parent=5 // pred_region
      %s152 = ssub.s32 %s9, 1
      // Predicated region
      $region13: #{eeg3dcnn_forward.10} parent=11 // pred_check
        %p153 = pneg %p110
      $region14: #{eeg3dcnn_forward.10} parent=11 // pred_check_branch
        %155 = sbr.rel (%p153) target = $region16
      $region15: #{eeg3dcnn_forward.10} parent=11 // pred_region
        %p156 = scmp.lt.s32.totalorder %s20, 0
        %s157 = scalar_select %p156, %s20, 0
        %s158 = scalar_lea.vmem %s2, %s157
      $region16: #{eeg3dcnn_forward.10} parent=11 // pred_fallthru
        _
    $region12: #{eeg3dcnn_forward.10} parent=5 // pred_fallthru
      _
    %p159 = scmp.lt.s32.totalorder %s9, 2
    // Predicated region
    $region17: #{eeg3dcnn_forward.10} parent=5 // pred_check
      %p160 = pneg %p159
    $region18: #{eeg3dcnn_forward.10} parent=5 // pred_check_branch
      %162 = sbr.rel (%p160) target = $region20
    $region19: #{eeg3dcnn_forward.10} parent=5 // pred_region
      // Predicated region
      $region21: #{eeg3dcnn_forward.10} parent=19 // pred_check
        %p163 = pneg %p50
      $region22: #{eeg3dcnn_forward.10} parent=19 // pred_check_branch
        %165 = sbr.rel (%p163) target = $region24
      $region23: #{eeg3dcnn_forward.10} parent=19 // pred_region
        %s166 = smul.u32 4, %s18
        %p167 = scmp.lt.s32.totalorder %s16, 0
        %s168 = scalar_select %p167, %s16, 0
        %p169 = scmp.lt.s32.totalorder %s166, 7
        %s170 = scalar_select %p169, %s166, 7
        %s171 = smul.addr %s168, 8
        %s172 = sadd.s32 %s170, %s171
        %s173 = smul.addr %s172, 4
        %s174 = scalar_lea.vmem %s0, %s173
        %s175 = smul.u32 4, %s18
      $region24: #{eeg3dcnn_forward.10} parent=19 // pred_fallthru
        _
      // Predicated region
      $region25: #{eeg3dcnn_forward.10} parent=19 // pred_check
        %p176 = pneg %p78
      $region26: #{eeg3dcnn_forward.10} parent=19 // pred_check_branch
        %178 = sbr.rel (%p176) target = $region28
      $region27: #{eeg3dcnn_forward.10} parent=19 // pred_region
        %s179 = smul.u32 64, %s18
        %p180 = scmp.lt.s32.totalorder %s179, 127
        %s181 = scalar_select %p180, %s179, 127
        %p182 = scmp.lt.s32.totalorder %s17, 0
        %s183 = scalar_select %p182, %s17, 0
        %s184 = sadd.s32 %s183, %s181
        %s185 = smul.addr %s184, 4
        %s186 = scalar_lea.vmem %s1, %s185
        %s187 = smul.u32 64, %s18
      $region28: #{eeg3dcnn_forward.10} parent=19 // pred_fallthru
        _
    $region20: #{eeg3dcnn_forward.10} parent=5 // pred_fallthru
      _
    %p188 = scmp.le.s32.totalorder 1, %s9
    %p189 = scmp.lt.s32.totalorder %s9, 3
    %p190 = pnand %p188, %p189
    %p191 = pneg %p190
    // Predicated region
    $region29: #{eeg3dcnn_forward.10} parent=5 // pred_check
      _
    $region30: #{eeg3dcnn_forward.10} parent=5 // pred_check_branch
      %193 = sbr.rel (%p190) target = $region32
    $region31: #{eeg3dcnn_forward.10} parent=5 // pred_region
      %s194 = ssub.s32 %s9, 1
      %s195 = smul.u32 4, %s21
      %p196 = scmp.lt.s32.totalorder %s19, 0
      %s197 = scalar_select %p196, %s19, 0
      %p198 = scmp.lt.s32.totalorder %s195, 7
      %s199 = scalar_select %p198, %s195, 7
      %s200 = smul.addr %s197, 8
      %s201 = sadd.s32 %s199, %s200
      %s202 = smul.addr %s201, 4
      %s203 = scalar_lea.vmem %s0, %s202
      %p204 = pneg %p56
      %p205 = pneg %p53
      %s206 = smul.u32 64, %s21
      %p207 = scmp.lt.s32.totalorder %s206, 127
      %s208 = scalar_select %p207, %s206, 127
      %p209 = scmp.lt.s32.totalorder %s20, 0
      %s210 = scalar_select %p209, %s20, 0
      %s211 = sadd.s32 %s210, %s208
      %s212 = smul.addr %s211, 4
      %s213 = scalar_lea.vmem %s1, %s212
      %p214 = pneg %p84
      %p215 = pneg %p81
      %p216 = scmp.lt.s32.totalorder %s20, 0
      %s217 = scalar_select %p216, %s20, 0
      %s218 = scalar_lea.vmem %s2, %s217
      %p219 = pneg %p110
      %p220 = pneg %p107
      %p221 = pneg %p138
      %p222 = pneg %p135
      %p223 = scmp.lt.s32.totalorder %s19, 0
      %s224 = scalar_select %p223, %s19, 0
      %p225 = scmp.lt.s32.totalorder %s20, 0
      %s226 = scalar_select %p225, %s20, 0
      %s227 = sadd.s32 %s226, %s224
      %s228 = smul.addr %s227, 4
      %s229 = scalar_lea.vmem %s3, %s228
      %s230 = smul.u32 4, %s21
      %p231 = scmp.lt.s32.totalorder %s19, 0
      %s232 = scalar_select %p231, %s19, 0
      %p233 = scmp.lt.s32.totalorder %s230, 7
      %s234 = scalar_select %p233, %s230, 7
      %s235 = smul.addr %s232, 8
      %s236 = sadd.s32 %s234, %s235
      %s237 = smul.addr %s236, 4
      %s238 = scalar_lea.vmem %s0, %s237
      %s239 = smul.u32 4, %s21
      %s240 = smul.u32 64, %s21
      %p241 = scmp.lt.s32.totalorder %s240, 127
      %s242 = scalar_select %p241, %s240, 127
      %p243 = scmp.lt.s32.totalorder %s20, 0
      %s244 = scalar_select %p243, %s20, 0
      %s245 = sadd.s32 %s244, %s242
      %s246 = smul.addr %s245, 4
      %s247 = scalar_lea.vmem %s1, %s246
      %s248 = smul.u32 64, %s21
      %p249 = scmp.lt.s32.totalorder %s20, 0
      %s250 = scalar_select %p249, %s20, 0
      %s251 = scalar_lea.vmem %s2, %s250
      %p252 = scmp.lt.s32.totalorder %s19, 0
      %s253 = scalar_select %p252, %s19, 0
      %p254 = scmp.lt.s32.totalorder %s20, 0
      %s255 = scalar_select %p254, %s20, 0
      %s256 = sadd.s32 %s255, %s253
      %s257 = smul.addr %s256, 4
      %s258 = scalar_lea.vmem %s3, %s257
      %p260 = scmp.eq.s32.totalorder %s21, 0
      // Predicated region
      $region33: #{eeg3dcnn_forward.10} parent=31 // pred_check
        %p261 = pneg %p260
      $region34: #{eeg3dcnn_forward.10} parent=31 // pred_check_branch
        %263 = sbr.rel (%p261) target = $region36
      $region35: #{eeg3dcnn_forward.10} parent=31 // pred_region
        %264 = vst [vmem:[#allocation2] sm:$0xff] 0.0
      $region36: #{eeg3dcnn_forward.10} parent=31 // pred_fallthru
        _
      %v265 = vld [vmem:[#allocation2] sm:$0xff]
      %v266 = vld [vmem:[%s238] sm:$0xff]
      %v267 = vld [vmem:[%s238 + $0x8] sm:$0xff]
      %v268 = vld [vmem:[%s247] sm:$0xf]
      %v269 = vld [vmem:[%s247 + $0x4] sm:$0xf]
      %v270 = vld [vmem:[%s247 + $0x8] sm:$0xf]
      %v271 = vld [vmem:[%s247 + $0xc] sm:$0xf]
      %v272 = vld [vmem:[%s247 + $0x10] sm:$0xf]
      %v273 = vld [vmem:[%s247 + $0x14] sm:$0xf]
      %v274 = vld [vmem:[%s247 + $0x18] sm:$0xf]
      %v275 = vld [vmem:[%s247 + $0x1c] sm:$0xf]
      %v276 = vld [vmem:[%s247 + $0x20] sm:$0xf]
      %v277 = vld [vmem:[%s247 + $0x24] sm:$0xf]
      %v278 = vld [vmem:[%s247 + $0x28] sm:$0xf]
      %v279 = vld [vmem:[%s247 + $0x2c] sm:$0xf]
      %v280 = vld [vmem:[%s247 + $0x30] sm:$0xf]
      %v281 = vld [vmem:[%s247 + $0x34] sm:$0xf]
      %v282 = vld [vmem:[%s247 + $0x38] sm:$0xf]
      %v283 = vld [vmem:[%s247 + $0x3c] sm:$0xf]
      %v284 = vld [vmem:[%s247 + $0x40] sm:$0xf]
      %v285 = vld [vmem:[%s247 + $0x44] sm:$0xf]
      %v286 = vld [vmem:[%s247 + $0x48] sm:$0xf]
      %v287 = vld [vmem:[%s247 + $0x4c] sm:$0xf]
      %v288 = vld [vmem:[%s247 + $0x50] sm:$0xf]
      %v289 = vld [vmem:[%s247 + $0x54] sm:$0xf]
      %v290 = vld [vmem:[%s247 + $0x58] sm:$0xf]
      %v291 = vld [vmem:[%s247 + $0x5c] sm:$0xf]
      %v292 = vld [vmem:[%s247 + $0x60] sm:$0xf]
      %v293 = vld [vmem:[%s247 + $0x64] sm:$0xf]
      %v294 = vld [vmem:[%s247 + $0x68] sm:$0xf]
      %v295 = vld [vmem:[%s247 + $0x6c] sm:$0xf]
      %v296 = vld [vmem:[%s247 + $0x70] sm:$0xf]
      %v297 = vld [vmem:[%s247 + $0x74] sm:$0xf]
      %v298 = vld [vmem:[%s247 + $0x78] sm:$0xf]
      %v299 = vld [vmem:[%s247 + $0x7c] sm:$0xf]
      %v300 = vld [vmem:[%s247 + $0x80] sm:$0xf]
      %v301 = vld [vmem:[%s247 + $0x84] sm:$0xf]
      %v302 = vld [vmem:[%s247 + $0x88] sm:$0xf]
      %v303 = vld [vmem:[%s247 + $0x8c] sm:$0xf]
      %v304 = vld [vmem:[%s247 + $0x90] sm:$0xf]
      %v305 = vld [vmem:[%s247 + $0x94] sm:$0xf]
      %v306 = vld [vmem:[%s247 + $0x98] sm:$0xf]
      %v307 = vld [vmem:[%s247 + $0x9c] sm:$0xf]
      %v308 = vld [vmem:[%s247 + $0xa0] sm:$0xf]
      %v309 = vld [vmem:[%s247 + $0xa4] sm:$0xf]
      %v310 = vld [vmem:[%s247 + $0xa8] sm:$0xf]
      %v311 = vld [vmem:[%s247 + $0xac] sm:$0xf]
      %v312 = vld [vmem:[%s247 + $0xb0] sm:$0xf]
      %v313 = vld [vmem:[%s247 + $0xb4] sm:$0xf]
      %v314 = vld [vmem:[%s247 + $0xb8] sm:$0xf]
      %v315 = vld [vmem:[%s247 + $0xbc] sm:$0xf]
      %v316 = vld [vmem:[%s247 + $0xc0] sm:$0xf]
      %v317 = vld [vmem:[%s247 + $0xc4] sm:$0xf]
      %v318 = vld [vmem:[%s247 + $0xc8] sm:$0xf]
      %v319 = vld [vmem:[%s247 + $0xcc] sm:$0xf]
      %v320 = vld [vmem:[%s247 + $0xd0] sm:$0xf]
      %v321 = vld [vmem:[%s247 + $0xd4] sm:$0xf]
      %v322 = vld [vmem:[%s247 + $0xd8] sm:$0xf]
      %v323 = vld [vmem:[%s247 + $0xdc] sm:$0xf]
      %v324 = vld [vmem:[%s247 + $0xe0] sm:$0xf]
      %v325 = vld [vmem:[%s247 + $0xe4] sm:$0xf]
      %v326 = vld [vmem:[%s247 + $0xe8] sm:$0xf]
      %v327 = vld [vmem:[%s247 + $0xec] sm:$0xf]
      %v328 = vld [vmem:[%s247 + $0xf0] sm:$0xf]
      %v329 = vld [vmem:[%s247 + $0xf4] sm:$0xf]
      %v330 = vld [vmem:[%s247 + $0xf8] sm:$0xf]
      %v331 = vld [vmem:[%s247 + $0xfc] sm:$0xf]
      %v334 = vunpack.c.l.b16 %v266
      %v335 = vunpack.c.h.b16 %v266
      %v336 = vunpack.c.l.b16 %v267
      %v337 = vunpack.c.h.b16 %v267
      %v338 = vpack.c.b16 %v334, %v334
      %v339 = vpack.c.b16 %v335, %v335
      %v340 = vpack.c.b16 %v336, %v336
      %v341 = vpack.c.b16 %v337, %v337
      %v410 = vunpack.c.l.b16 %v268
      %v411 = vunpack.c.l.b16 %v269
      %v412 = vunpack.c.l.b16 %v270
      %v413 = vunpack.c.l.b16 %v271
      %v414 = vunpack.c.l.b16 %v272
      %v415 = vunpack.c.l.b16 %v273
      %v416 = vunpack.c.l.b16 %v274
      %v417 = vunpack.c.l.b16 %v275
      %v418 = vunpack.c.l.b16 %v276
      %v419 = vunpack.c.l.b16 %v277
      %v420 = vunpack.c.l.b16 %v278
      %v421 = vunpack.c.l.b16 %v279
      %v422 = vunpack.c.l.b16 %v280
      %v423 = vunpack.c.l.b16 %v281
      %v424 = vunpack.c.l.b16 %v282
      %v425 = vunpack.c.l.b16 %v283
      %v426 = vunpack.c.l.b16 %v284
      %v427 = vunpack.c.l.b16 %v285
      %v428 = vunpack.c.l.b16 %v286
      %v429 = vunpack.c.l.b16 %v287
      %v430 = vunpack.c.l.b16 %v288
      %v431 = vunpack.c.l.b16 %v289
      %v432 = vunpack.c.l.b16 %v290
      %v433 = vunpack.c.l.b16 %v291
      %v434 = vunpack.c.l.b16 %v292
      %v435 = vunpack.c.l.b16 %v293
      %v436 = vunpack.c.l.b16 %v294
      %v437 = vunpack.c.l.b16 %v295
      %v438 = vunpack.c.l.b16 %v296
      %v439 = vunpack.c.l.b16 %v297
      %v440 = vunpack.c.l.b16 %v298
      %v441 = vunpack.c.l.b16 %v299
      %v442 = vunpack.c.l.b16 %v300
      %v443 = vunpack.c.l.b16 %v301
      %v444 = vunpack.c.l.b16 %v302
      %v445 = vunpack.c.l.b16 %v303
      %v446 = vunpack.c.l.b16 %v304
      %v447 = vunpack.c.l.b16 %v305
      %v448 = vunpack.c.l.b16 %v306
      %v449 = vunpack.c.l.b16 %v307
      %v450 = vunpack.c.l.b16 %v308
      %v451 = vunpack.c.l.b16 %v309
      %v452 = vunpack.c.l.b16 %v310
      %v453 = vunpack.c.l.b16 %v311
      %v454 = vunpack.c.l.b16 %v312
      %v455 = vunpack.c.l.b16 %v313
      %v456 = vunpack.c.l.b16 %v314
      %v457 = vunpack.c.l.b16 %v315
      %v458 = vunpack.c.l.b16 %v316
      %v459 = vunpack.c.l.b16 %v317
      %v460 = vunpack.c.l.b16 %v318
      %v461 = vunpack.c.l.b16 %v319
      %v462 = vunpack.c.l.b16 %v320
      %v463 = vunpack.c.l.b16 %v321
      %v464 = vunpack.c.l.b16 %v322
      %v465 = vunpack.c.l.b16 %v323
      %v466 = vunpack.c.l.b16 %v324
      %v467 = vunpack.c.l.b16 %v325
      %v468 = vunpack.c.l.b16 %v326
      %v469 = vunpack.c.l.b16 %v327
      %v470 = vunpack.c.l.b16 %v328
      %v471 = vunpack.c.l.b16 %v329
      %v472 = vunpack.c.l.b16 %v330
      %v473 = vunpack.c.l.b16 %v331
      %v474 = vpack.c.b16 %v411, %v410
      %v475 = vpack.c.b16 %v413, %v412
      %v476 = vpack.c.b16 %v415, %v414
      %v477 = vpack.c.b16 %v417, %v416
      %v478 = vpack.c.b16 %v419, %v418
      %v479 = vpack.c.b16 %v421, %v420
      %v480 = vpack.c.b16 %v423, %v422
      %v481 = vpack.c.b16 %v425, %v424
      %v482 = vpack.c.b16 %v427, %v426
      %v483 = vpack.c.b16 %v429, %v428
      %v484 = vpack.c.b16 %v431, %v430
      %v485 = vpack.c.b16 %v433, %v432
      %v486 = vpack.c.b16 %v435, %v434
      %v487 = vpack.c.b16 %v437, %v436
      %v488 = vpack.c.b16 %v439, %v438
      %v489 = vpack.c.b16 %v441, %v440
      %v490 = vpack.c.b16 %v443, %v442
      %v491 = vpack.c.b16 %v445, %v444
      %v492 = vpack.c.b16 %v447, %v446
      %v493 = vpack.c.b16 %v449, %v448
      %v494 = vpack.c.b16 %v451, %v450
      %v495 = vpack.c.b16 %v453, %v452
      %v496 = vpack.c.b16 %v455, %v454
      %v497 = vpack.c.b16 %v457, %v456
      %v498 = vpack.c.b16 %v459, %v458
      %v499 = vpack.c.b16 %v461, %v460
      %v500 = vpack.c.b16 %v463, %v462
      %v501 = vpack.c.b16 %v465, %v464
      %v502 = vpack.c.b16 %v467, %v466
      %v503 = vpack.c.b16 %v469, %v468
      %v504 = vpack.c.b16 %v471, %v470
      %v505 = vpack.c.b16 %v473, %v472
      %538 = vmatprep.subr.bf16.mxu0 0
      %539 = vmatpush1.bf16.msra.mxu0 %v481
      %540 = vmatprep.subr.bf16.mxu0 0
      %541 = vmatpush1.bf16.msra.mxu0 %v480
      %542 = vmatprep.subr.bf16.mxu0 0
      %543 = vmatpush1.bf16.msra.mxu0 %v479
      %544 = vmatprep.subr.bf16.mxu0 0
      %545 = vmatpush1.bf16.msra.mxu0 %v478
      %546 = vmatprep.subr.bf16.mxu0 0
      %547 = vmatpush1.bf16.msra.mxu0 %v477
      %548 = vmatprep.subr.bf16.mxu0 0
      %549 = vmatpush1.bf16.msra.mxu0 %v476
      %550 = vmatprep.subr.bf16.mxu0 0
      %551 = vmatpush1.bf16.msra.mxu0 %v475
      %552 = vmatprep.subr.bf16.mxu0 0
      %553 = vmatpush1.bf16.msra.mxu0 %v474
      %554 = vmatprep.subr.bf16.mxu0 0
      %555 = vmatpush2.bf16.msra.mxu0 %v489
      %556 = vmatprep.subr.bf16.mxu0 0
      %557 = vmatpush2.bf16.msra.mxu0 %v488
      %558 = vmatprep.subr.bf16.mxu0 0
      %559 = vmatpush2.bf16.msra.mxu0 %v487
      %560 = vmatprep.subr.bf16.mxu0 0
      %561 = vmatpush2.bf16.msra.mxu0 %v486
      %562 = vmatprep.subr.bf16.mxu0 0
      %563 = vmatpush2.bf16.msra.mxu0 %v485
      %564 = vmatprep.subr.bf16.mxu0 0
      %565 = vmatpush2.bf16.msra.mxu0 %v484
      %566 = vmatprep.subr.bf16.mxu0 0
      %567 = vmatpush2.bf16.msra.mxu0 %v483
      %568 = vmatprep.subr.bf16.mxu0 0
      %569 = vmatpush2.bf16.msra.mxu0 %v482
      %570 = vmatprep.mubr.bf16.mxu0 %v339
      %571 = vmatmul.mubr.bf16.gmra.mxu0 %v338
      %v572 = vpop.f32.mrf.mxu0
      %v573 = vadd.f32 0.0, %v572
      %v574 = vpop.f32.mrf.mxu0
      %v575 = vpop.f32.mrf.mxu0
      %v576 = vpop.f32.mrf.mxu0
      %577 = vdwg.mxu0
      %578 = vmatprep.subr.bf16.mxu0 0
      %579 = vmatpush1.bf16.msra.mxu0 %v497
      %580 = vmatprep.subr.bf16.mxu0 0
      %581 = vmatpush1.bf16.msra.mxu0 %v496
      %582 = vmatprep.subr.bf16.mxu0 0
      %583 = vmatpush1.bf16.msra.mxu0 %v495
      %584 = vmatprep.subr.bf16.mxu0 0
      %585 = vmatpush1.bf16.msra.mxu0 %v494
      %586 = vmatprep.subr.bf16.mxu0 0
      %587 = vmatpush1.bf16.msra.mxu0 %v493
      %588 = vmatprep.subr.bf16.mxu0 0
      %589 = vmatpush1.bf16.msra.mxu0 %v492
      %590 = vmatprep.subr.bf16.mxu0 0
      %591 = vmatpush1.bf16.msra.mxu0 %v491
      %592 = vmatprep.subr.bf16.mxu0 0
      %593 = vmatpush1.bf16.msra.mxu0 %v490
      %594 = vmatprep.subr.bf16.mxu0 0
      %595 = vmatpush2.bf16.msra.mxu0 %v505
      %596 = vmatprep.subr.bf16.mxu0 0
      %597 = vmatpush2.bf16.msra.mxu0 %v504
      %598 = vmatprep.subr.bf16.mxu0 0
      %599 = vmatpush2.bf16.msra.mxu0 %v503
      %600 = vmatprep.subr.bf16.mxu0 0
      %601 = vmatpush2.bf16.msra.mxu0 %v502
      %602 = vmatprep.subr.bf16.mxu0 0
      %603 = vmatpush2.bf16.msra.mxu0 %v501
      %604 = vmatprep.subr.bf16.mxu0 0
      %605 = vmatpush2.bf16.msra.mxu0 %v500
      %606 = vmatprep.subr.bf16.mxu0 0
      %607 = vmatpush2.bf16.msra.mxu0 %v499
      %608 = vmatprep.subr.bf16.mxu0 0
      %609 = vmatpush2.bf16.msra.mxu0 %v498
      %610 = vmatprep.mubr.bf16.mxu0 %v341
      %611 = vmatmul.mubr.bf16.gmra.mxu0 %v340
      %v612 = vpop.f32.mrf.mxu0
      %v613 = vadd.f32 %v573, %v612
      %v614 = vpop.f32.mrf.mxu0
      %v615 = vpop.f32.mrf.mxu0
      %v616 = vpop.f32.mrf.mxu0
      %617 = vdwg.mxu0
      %v618 = vadd.f32 %v265, %v613
      %619 = vst [vmem:[#allocation2] sm:$0xff] %v618
      %p620 = scmp.eq.s32.totalorder %s21, 1
      // Predicated region
      $region37: #{eeg3dcnn_forward.10} parent=31 // pred_check
        %p621 = pneg %p620
      $region38: #{eeg3dcnn_forward.10} parent=31 // pred_check_branch
        %623 = sbr.rel (%p621) target = $region40
      $region39: #{eeg3dcnn_forward.10} parent=31 // pred_region
        %v624 = vld [vmem:[#allocation2] sm:$0xff]
        %v625 = vld [vmem:[%s251] sm:$0x1]
        %v627 = vlaneseq
        %v628 = vshrl.u32 %v627, 7
        %v629 = vsub.s32 0, %v628
        %v630 = vrot.slane %v625, %v629
        %v632 = vadd.f32 %v624, %v630
        %v633 = vmax.f32 %v632, 0.0
        %v634 = vpack.c.bf16 %v633, %v633
        %635 = vst [vmem:[%s258] sm:$0xf] %v634
      $region40: #{eeg3dcnn_forward.10} parent=31 // pred_fallthru
        _
      %p636 = scmp.lt.s32.totalorder %s19, 0
      %s637 = scalar_select %p636, %s19, 0
      %p638 = scmp.lt.s32.totalorder %s20, 0
      %s639 = scalar_select %p638, %s20, 0
      %s640 = sadd.s32 %s639, %s637
      %s641 = smul.addr %s640, 4
      %s642 = scalar_lea.vmem %s3, %s641
      // Predicated region
      $region41: #{eeg3dcnn_forward.10} parent=31 // pred_check
        %p643 = pneg %p135
      $region42: #{eeg3dcnn_forward.10} parent=31 // pred_check_branch
        %645 = sbr.rel (%p643) target = $region44
      $region43: #{eeg3dcnn_forward.10} parent=31 // pred_region
        _
      $region44: #{eeg3dcnn_forward.10} parent=31 // pred_fallthru
        _
      // Predicated region
      $region45: #{eeg3dcnn_forward.10} parent=31 // pred_check
        %p646 = pneg %p135
      $region46: #{eeg3dcnn_forward.10} parent=31 // pred_check_branch
        %648 = sbr.rel (%p646) target = $region48
      $region47: #{eeg3dcnn_forward.10} parent=31 // pred_region
        %p649 = scmp.lt.s32.totalorder %s19, 0
        %s650 = scalar_select %p649, %s19, 0
        %p651 = scmp.lt.s32.totalorder %s20, 0
        %s652 = scalar_select %p651, %s20, 0
        %s653 = sadd.s32 %s652, %s650
        %s654 = smul.addr %s653, 4
        %s655 = scalar_lea.vmem %s3, %s654
      $region48: #{eeg3dcnn_forward.10} parent=31 // pred_fallthru
        _
    $region32: #{eeg3dcnn_forward.10} parent=5 // pred_fallthru
      _
    %p656 = scmp.le.s32.totalorder 2, %s9
    // Predicated region
    $region49: #{eeg3dcnn_forward.10} parent=5 // pred_check
      %p657 = pneg %p656
    $region50: #{eeg3dcnn_forward.10} parent=5 // pred_check_branch
      %659 = sbr.rel (%p657) target = $region52
    $region51: #{eeg3dcnn_forward.10} parent=5 // pred_region
      %s660 = ssub.s32 %s9, 2
    $region52: #{eeg3dcnn_forward.10} parent=5 // pred_fallthru
      _
  $region6: #{eeg3dcnn_forward.10} parent=0 // loop_footer
    %s13 = sadd.s32 1, %s9
  $region7: #{eeg3dcnn_forward.10} parent=0 // loop_footer_branch
    %8 = sbr.rel target = $region3
  $region8: #{eeg3dcnn_forward.10} parent=0 // loop_exit
    _

// kernel: eeg3dcnn_forward.8
$region0: #{eeg3dcnn_forward.8}
  #allocation0 [shape = 'u32[]', space=smem, size = 0x4, offset = 0x4, fixed_abs, tag = 'smem constant byte address 0x4 - core index']
  #allocation1 [shape = 'u32[144,128]{1,0:T(1,128)}', space=vmem, size = 0x12000, scoped, tag = 'internal scratch']
  %s0 = inlined_call_operand.vmem [shape: bf16[2,6,6,6,128], index: 0, kind: input, shape index: {}, may-alias: {0,1,2}]
  %s1 = inlined_call_operand.vmem [shape: bf16[2,6,6,6,128], index: 1, kind: input, shape index: {}, may-alias: {0,1,2}]
  %s2 = inlined_call_operand.vmem [shape: bf16[2,6,6,6,128], index: 2, kind: input, shape index: {}, may-alias: {0,1,2}]
  %s3 = inlined_call_operand.vmem [shape: bf16[3,3,3,128,128], index: 3, kind: input, shape index: {}]
  %s4 = inlined_call_operand.vmem [shape: f32[1,128], index: 4, kind: input, shape index: {}]
  %s5 = inlined_call_operand.vmem [shape: bf16[2,4,4,4,128], index: 5, kind: output, shape index: {}]
  %s6 = sld [smem:[#allocation0]]
  $region53: #{eeg3dcnn_forward.8} parent=0
    _
  %s8 = ssub.s32 1, %s6
  %s9 = scalar_select 0, %s8, %s6
  loop: start=0, step=1, limit=10
  $region2: #{eeg3dcnn_forward.8} parent=0 // loop_pre_header
    _
  $region3: #{eeg3dcnn_forward.8} parent=0 // loop_header
    %s11 = sphi 0, %s15
    %p12 = scmp.ge.s32.totalorder %s11, 10
    %s18 = sphi 0, %s30
    %s19 = sphi 0, %s26
    %s20 = sphi 0, %s18
    %s21 = sphi 0, %s19
    %s22 = sphi 0, %s20
    %s23 = sphi 0, %s21
    %s35 = sphi 0, %s37
    %s38 = sphi 0, %s35
    %s39 = sphi 0, %s38
    %s55 = sphi 0, %s39
    %s65 = sphi 0, %s67
    %s68 = sphi 0, %s65
    %s69 = sphi 0, %s68
    %s85 = sphi 0, %s69
    %s95 = sphi 0, %s97
    %s98 = sphi 0, %s95
    %s99 = sphi 0, %s98
    %s115 = sphi 0, %s99
    %s119 = sphi 0, %s119
    %s121 = sphi 0, %s119
    %s122 = sphi 0, %s121
    %s136 = sphi 0, %s122
    %s140 = sphi 0, %s140
    %s142 = sphi 0, %s140
    %s143 = sphi 0, %s142
    %s157 = sphi 0, %s143
    %s165 = sphi 0, %s167
    %s168 = sphi 0, %s165
    %s169 = sphi 0, %s168
    %s185 = sphi 0, %s169
  $region4: #{eeg3dcnn_forward.8} parent=0 // loop_header_branch
    %14 = sbr.rel (%p12) target = $region8
  $region5: #{eeg3dcnn_forward.8} parent=0 // loop_body
    %s16 = ssub.s32 %s11, 1
    %s17 = ssub.s32 %s11, 2
    %s24 = sadd.s32 1, %s19
    %p25 = scmp.ge.s32.totalorder %s24, 4
    %s26 = scalar_select %p25, 0, %s24
    %s27 = sadd.s32 1, %s18
    %s28 = scalar_select %p25, %s27, %s18
    %p29 = scmp.ge.s32.totalorder %s28, 2
    %s30 = scalar_select %p29, 0, %s28
    %s31 = ssub.s32 %s18, %s30
    %s32 = ssub.s32 %s19, %s26
    %s33 = sor.u32 %s31, %s32
    %p34 = scmp.eq.s32.totalorder %s33, 0
    %s36 = sadd.s32 %s35, 1
    %s37 = scalar_select %p34, %s35, %s36
    %p40 = pneg %p34
    %p41 = scmp.eq.s32.totalorder %s11, 7
    %p42 = por %p40, %p41
    %p43 = scmp.ne.s32.totalorder %s35, %s38
    %p44 = scmp.eq.s32.totalorder %s11, 0
    %p45 = por %p43, %p44
    %p46 = scmp.ne.s32.totalorder %s35, %s38
    %p47 = scmp.eq.s32.totalorder %s16, 7
    %p48 = por %p46, %p47
    %p49 = scmp.ne.s32.totalorder %s38, %s39
    %p50 = scmp.eq.s32.totalorder %s16, 0
    %p51 = por %p49, %p50
    %p52 = scmp.ne.s32.totalorder %s38, %s39
    %p53 = scmp.eq.s32.totalorder %s17, 7
    %p54 = por %p52, %p53
    %p56 = scmp.ne.s32.totalorder %s39, %s55
    %p57 = scmp.eq.s32.totalorder %s17, 0
    %p58 = por %p56, %p57
    %s59 = sadd.s32 %s19, 1
    %s60 = sadd.s32 %s26, 1
    %s61 = ssub.s32 %s18, %s30
    %s62 = ssub.s32 %s59, %s60
    %s63 = sor.u32 %s61, %s62
    %p64 = scmp.eq.s32.totalorder %s63, 0
    %s66 = sadd.s32 %s65, 1
    %s67 = scalar_select %p64, %s65, %s66
    %p70 = pneg %p64
    %p71 = scmp.eq.s32.totalorder %s11, 7
    %p72 = por %p70, %p71
    %p73 = scmp.ne.s32.totalorder %s65, %s68
    %p74 = scmp.eq.s32.totalorder %s11, 0
    %p75 = por %p73, %p74
    %p76 = scmp.ne.s32.totalorder %s65, %s68
    %p77 = scmp.eq.s32.totalorder %s16, 7
    %p78 = por %p76, %p77
    %p79 = scmp.ne.s32.totalorder %s68, %s69
    %p80 = scmp.eq.s32.totalorder %s16, 0
    %p81 = por %p79, %p80
    %p82 = scmp.ne.s32.totalorder %s68, %s69
    %p83 = scmp.eq.s32.totalorder %s17, 7
    %p84 = por %p82, %p83
    %p86 = scmp.ne.s32.totalorder %s69, %s85
    %p87 = scmp.eq.s32.totalorder %s17, 0
    %p88 = por %p86, %p87
    %s89 = sadd.s32 %s19, 2
    %s90 = sadd.s32 %s26, 2
    %s91 = ssub.s32 %s18, %s30
    %s92 = ssub.s32 %s89, %s90
    %s93 = sor.u32 %s91, %s92
    %p94 = scmp.eq.s32.totalorder %s93, 0
    %s96 = sadd.s32 %s95, 1
    %s97 = scalar_select %p94, %s95, %s96
    %p100 = pneg %p94
    %p101 = scmp.eq.s32.totalorder %s11, 7
    %p102 = por %p100, %p101
    %p103 = scmp.ne.s32.totalorder %s95, %s98
    %p104 = scmp.eq.s32.totalorder %s11, 0
    %p105 = por %p103, %p104
    %p106 = scmp.ne.s32.totalorder %s95, %s98
    %p107 = scmp.eq.s32.totalorder %s16, 7
    %p108 = por %p106, %p107
    %p109 = scmp.ne.s32.totalorder %s98, %s99
    %p110 = scmp.eq.s32.totalorder %s16, 0
    %p111 = por %p109, %p110
    %p112 = scmp.ne.s32.totalorder %s98, %s99
    %p113 = scmp.eq.s32.totalorder %s17, 7
    %p114 = por %p112, %p113
    %p116 = scmp.ne.s32.totalorder %s99, %s115
    %p117 = scmp.eq.s32.totalorder %s17, 0
    %p118 = por %p116, %p117
    %s120 = sadd.s32 %s119, 1
    %p123 = scmp.eq.s32.totalorder %s11, 7
    %p124 = scmp.ne.s32.totalorder %s119, %s121
    %p125 = scmp.eq.s32.totalorder %s11, 0
    %p126 = por %p124, %p125
    %p127 = scmp.ne.s32.totalorder %s119, %s121
    %p128 = scmp.eq.s32.totalorder %s16, 7
    %p129 = por %p127, %p128
    %p130 = scmp.ne.s32.totalorder %s121, %s122
    %p131 = scmp.eq.s32.totalorder %s16, 0
    %p132 = por %p130, %p131
    %p133 = scmp.ne.s32.totalorder %s121, %s122
    %p134 = scmp.eq.s32.totalorder %s17, 7
    %p135 = por %p133, %p134
    %p137 = scmp.ne.s32.totalorder %s122, %s136
    %p138 = scmp.eq.s32.totalorder %s17, 0
    %p139 = por %p137, %p138
    %s141 = sadd.s32 %s140, 1
    %p144 = scmp.eq.s32.totalorder %s11, 7
    %p145 = scmp.ne.s32.totalorder %s140, %s142
    %p146 = scmp.eq.s32.totalorder %s11, 0
    %p147 = por %p145, %p146
    %p148 = scmp.ne.s32.totalorder %s140, %s142
    %p149 = scmp.eq.s32.totalorder %s16, 7
    %p150 = por %p148, %p149
    %p151 = scmp.ne.s32.totalorder %s142, %s143
    %p152 = scmp.eq.s32.totalorder %s16, 0
    %p153 = por %p151, %p152
    %p154 = scmp.ne.s32.totalorder %s142, %s143
    %p155 = scmp.eq.s32.totalorder %s17, 7
    %p156 = por %p154, %p155
    %p158 = scmp.ne.s32.totalorder %s143, %s157
    %p159 = scmp.eq.s32.totalorder %s17, 0
    %p160 = por %p158, %p159
    %s161 = ssub.s32 %s18, %s30
    %s162 = ssub.s32 %s19, %s26
    %s163 = sor.u32 %s161, %s162
    %p164 = scmp.eq.s32.totalorder %s163, 0
    %s166 = sadd.s32 %s165, 1
    %s167 = scalar_select %p164, %s165, %s166
    %p170 = pneg %p164
    %p171 = scmp.eq.s32.totalorder %s11, 7
    %p172 = por %p170, %p171
    %p173 = scmp.ne.s32.totalorder %s165, %s168
    %p174 = scmp.eq.s32.totalorder %s11, 0
    %p175 = por %p173, %p174
    %p176 = scmp.ne.s32.totalorder %s165, %s168
    %p177 = scmp.eq.s32.totalorder %s16, 7
    %p178 = por %p176, %p177
    %p179 = scmp.ne.s32.totalorder %s168, %s169
    %p180 = scmp.eq.s32.totalorder %s16, 0
    %p181 = por %p179, %p180
    %p182 = scmp.ne.s32.totalorder %s168, %s169
    %p183 = scmp.eq.s32.totalorder %s17, 7
    %p184 = por %p182, %p183
    %p186 = scmp.ne.s32.totalorder %s169, %s185
    %p187 = scmp.eq.s32.totalorder %s17, 0
    %p188 = por %p186, %p187
    %p189 = scmp.le.s32.totalorder 1, %s11
    %p190 = scmp.lt.s32.totalorder %s11, 9
    %p191 = pnand %p189, %p190
    %p192 = pneg %p191
    // Predicated region
    $region9: #{eeg3dcnn_forward.8} parent=5 // pred_check
      _
    $region10: #{eeg3dcnn_forward.8} parent=5 // pred_check_branch
      %194 = sbr.rel (%p191) target = $region12
    $region11: #{eeg3dcnn_forward.8} parent=5 // pred_region
      %s195 = ssub.s32 %s11, 1
      // Predicated region
      $region13: #{eeg3dcnn_forward.8} parent=11 // pred_check
        %p196 = pneg %p132
      $region14: #{eeg3dcnn_forward.8} parent=11 // pred_check_branch
        %198 = sbr.rel (%p196) target = $region16
      $region15: #{eeg3dcnn_forward.8} parent=11 // pred_region
        _
      $region16: #{eeg3dcnn_forward.8} parent=11 // pred_fallthru
        _
      // Predicated region
      $region17: #{eeg3dcnn_forward.8} parent=11 // pred_check
        %p199 = pneg %p153
      $region18: #{eeg3dcnn_forward.8} parent=11 // pred_check_branch
        %201 = sbr.rel (%p199) target = $region20
      $region19: #{eeg3dcnn_forward.8} parent=11 // pred_region
        _
      $region20: #{eeg3dcnn_forward.8} parent=11 // pred_fallthru
        _
    $region12: #{eeg3dcnn_forward.8} parent=5 // pred_fallthru
      _
    %p202 = scmp.lt.s32.totalorder %s11, 8
    // Predicated region
    $region21: #{eeg3dcnn_forward.8} parent=5 // pred_check
      %p203 = pneg %p202
    $region22: #{eeg3dcnn_forward.8} parent=5 // pred_check_branch
      %205 = sbr.rel (%p203) target = $region24
    $region23: #{eeg3dcnn_forward.8} parent=5 // pred_region
      // Predicated region
      $region25: #{eeg3dcnn_forward.8} parent=23 // pred_check
        %p206 = pneg %p45
      $region26: #{eeg3dcnn_forward.8} parent=23 // pred_check_branch
        %208 = sbr.rel (%p206) target = $region28
      $region27: #{eeg3dcnn_forward.8} parent=23 // pred_region
        %p209 = scmp.lt.s32.totalorder %s18, 1
        %s210 = scalar_select %p209, %s18, 1
        %p211 = scmp.lt.s32.totalorder %s19, 5
        %s212 = scalar_select %p211, %s19, 5
        %s213 = smul.addr %s212, 6
        %s214 = smul.addr %s210, 36
        %s215 = sadd.s32 %s213, %s214
        %s216 = smul.addr %s215, 4
        %s217 = scalar_lea.vmem %s0, %s216
      $region28: #{eeg3dcnn_forward.8} parent=23 // pred_fallthru
        _
      // Predicated region
      $region29: #{eeg3dcnn_forward.8} parent=23 // pred_check
        %p218 = pneg %p75
      $region30: #{eeg3dcnn_forward.8} parent=23 // pred_check_branch
        %220 = sbr.rel (%p218) target = $region32
      $region31: #{eeg3dcnn_forward.8} parent=23 // pred_region
        %s221 = sadd.s32 %s19, 1
        %p222 = scmp.lt.s32.totalorder %s18, 1
        %s223 = scalar_select %p222, %s18, 1
        %p224 = scmp.lt.s32.totalorder %s221, 5
        %s225 = scalar_select %p224, %s221, 5
        %s226 = smul.addr %s225, 6
        %s227 = smul.addr %s223, 36
        %s228 = sadd.s32 %s226, %s227
        %s229 = smul.addr %s228, 4
        %s230 = scalar_lea.vmem %s1, %s229
        %s231 = sadd.s32 %s19, 1
      $region32: #{eeg3dcnn_forward.8} parent=23 // pred_fallthru
        _
      // Predicated region
      $region33: #{eeg3dcnn_forward.8} parent=23 // pred_check
        %p232 = pneg %p105
      $region34: #{eeg3dcnn_forward.8} parent=23 // pred_check_branch
        %234 = sbr.rel (%p232) target = $region36
      $region35: #{eeg3dcnn_forward.8} parent=23 // pred_region
        %s235 = sadd.s32 %s19, 2
        %p236 = scmp.lt.s32.totalorder %s18, 1
        %s237 = scalar_select %p236, %s18, 1
        %p238 = scmp.lt.s32.totalorder %s235, 5
        %s239 = scalar_select %p238, %s235, 5
        %s240 = smul.addr %s239, 6
        %s241 = smul.addr %s237, 36
        %s242 = sadd.s32 %s240, %s241
        %s243 = smul.addr %s242, 4
        %s244 = scalar_lea.vmem %s2, %s243
        %s245 = sadd.s32 %s19, 2
      $region36: #{eeg3dcnn_forward.8} parent=23 // pred_fallthru
        _
    $region24: #{eeg3dcnn_forward.8} parent=5 // pred_fallthru
      _
    %p246 = scmp.le.s32.totalorder 1, %s11
    %p247 = scmp.lt.s32.totalorder %s11, 9
    %p248 = pnand %p246, %p247
    %p249 = pneg %p248
    // Predicated region
    $region37: #{eeg3dcnn_forward.8} parent=5 // pred_check
      _
    $region38: #{eeg3dcnn_forward.8} parent=5 // pred_check_branch
      %251 = sbr.rel (%p248) target = $region40
    $region39: #{eeg3dcnn_forward.8} parent=5 // pred_region
      %s252 = ssub.s32 %s11, 1
      %p253 = scmp.lt.s32.totalorder %s20, 1
      %s254 = scalar_select %p253, %s20, 1
      %p255 = scmp.lt.s32.totalorder %s21, 5
      %s256 = scalar_select %p255, %s21, 5
      %s257 = smul.addr %s256, 6
      %s258 = smul.addr %s254, 36
      %s259 = sadd.s32 %s257, %s258
      %s260 = smul.addr %s259, 4
      %s261 = scalar_lea.vmem %s0, %s260
      %p262 = pneg %p51
      %p263 = pneg %p48
      %s264 = sadd.s32 %s21, 1
      %p265 = scmp.lt.s32.totalorder %s20, 1
      %s266 = scalar_select %p265, %s20, 1
      %p267 = scmp.lt.s32.totalorder %s264, 5
      %s268 = scalar_select %p267, %s264, 5
      %s269 = smul.addr %s268, 6
      %s270 = smul.addr %s266, 36
      %s271 = sadd.s32 %s269, %s270
      %s272 = smul.addr %s271, 4
      %s273 = scalar_lea.vmem %s1, %s272
      %p274 = pneg %p81
      %p275 = pneg %p78
      %s276 = sadd.s32 %s21, 2
      %p277 = scmp.lt.s32.totalorder %s20, 1
      %s278 = scalar_select %p277, %s20, 1
      %p279 = scmp.lt.s32.totalorder %s276, 5
      %s280 = scalar_select %p279, %s276, 5
      %s281 = smul.addr %s280, 6
      %s282 = smul.addr %s278, 36
      %s283 = sadd.s32 %s281, %s282
      %s284 = smul.addr %s283, 4
      %s285 = scalar_lea.vmem %s2, %s284
      %p286 = pneg %p111
      %p287 = pneg %p108
      %p288 = pneg %p132
      %p289 = pneg %p129
      %p290 = pneg %p153
      %p291 = pneg %p150
      %p292 = pneg %p181
      %p293 = pneg %p178
      %p294 = scmp.lt.s32.totalorder %s20, 1
      %s295 = scalar_select %p294, %s20, 1
      %p296 = scmp.lt.s32.totalorder %s21, 3
      %s297 = scalar_select %p296, %s21, 3
      %s298 = smul.addr %s297, 4
      %s299 = smul.addr %s295, 16
      %s300 = sadd.s32 %s298, %s299
      %s301 = smul.addr %s300, 2
      %s302 = scalar_lea.vmem %s5, %s301
      %p303 = scmp.lt.s32.totalorder %s20, 1
      %s304 = scalar_select %p303, %s20, 1
      %p305 = scmp.lt.s32.totalorder %s21, 5
      %s306 = scalar_select %p305, %s21, 5
      %s307 = smul.addr %s306, 6
      %s308 = smul.addr %s304, 36
      %s309 = sadd.s32 %s307, %s308
      %s310 = smul.addr %s309, 4
      %s311 = scalar_lea.vmem %s0, %s310
      %s312 = sadd.s32 %s21, 1
      %p313 = scmp.lt.s32.totalorder %s20, 1
      %s314 = scalar_select %p313, %s20, 1
      %p315 = scmp.lt.s32.totalorder %s312, 5
      %s316 = scalar_select %p315, %s312, 5
      %s317 = smul.addr %s316, 6
      %s318 = smul.addr %s314, 36
      %s319 = sadd.s32 %s317, %s318
      %s320 = smul.addr %s319, 4
      %s321 = scalar_lea.vmem %s1, %s320
      %s322 = sadd.s32 %s21, 1
      %s323 = sadd.s32 %s21, 2
      %p324 = scmp.lt.s32.totalorder %s20, 1
      %s325 = scalar_select %p324, %s20, 1
      %p326 = scmp.lt.s32.totalorder %s323, 5
      %s327 = scalar_select %p326, %s323, 5
      %s328 = smul.addr %s327, 6
      %s329 = smul.addr %s325, 36
      %s330 = sadd.s32 %s328, %s329
      %s331 = smul.addr %s330, 4
      %s332 = scalar_lea.vmem %s2, %s331
      %s333 = sadd.s32 %s21, 2
      %p334 = scmp.lt.s32.totalorder %s20, 1
      %s335 = scalar_select %p334, %s20, 1
      %p336 = scmp.lt.s32.totalorder %s21, 3
      %s337 = scalar_select %p336, %s21, 3
      %s338 = smul.addr %s337, 4
      %s339 = smul.addr %s335, 16
      %s340 = sadd.s32 %s338, %s339
      %s341 = smul.addr %s340, 2
      %s342 = scalar_lea.vmem %s5, %s341
      %v344 = vld [vmem:[%s311] sm:$0x3]
      %v345 = vld [vmem:[%s311 + $0x4] sm:$0x3]
      %v346 = vld [vmem:[%s311 + $0x8] sm:$0x3]
      %v347 = vld [vmem:[%s311 + $0xc] sm:$0x3]
      %v348 = vld [vmem:[%s3] sm:$0xf]
      %v349 = vld [vmem:[%s3 + $0x4] sm:$0xf]
      %v350 = vld [vmem:[%s3 + $0x8] sm:$0xf]
      %v351 = vld [vmem:[%s3 + $0xc] sm:$0xf]
      %v352 = vld [vmem:[%s3 + $0x10] sm:$0xf]
      %v353 = vld [vmem:[%s3 + $0x14] sm:$0xf]
      %v354 = vld [vmem:[%s3 + $0x18] sm:$0xf]
      %v355 = vld [vmem:[%s3 + $0x1c] sm:$0xf]
      %v356 = vld [vmem:[%s3 + $0x20] sm:$0xf]
      %v357 = vld [vmem:[%s3 + $0x24] sm:$0xf]
      %v358 = vld [vmem:[%s3 + $0x28] sm:$0xf]
      %v359 = vld [vmem:[%s3 + $0x2c] sm:$0xf]
      %v360 = vld [vmem:[%s3 + $0x30] sm:$0xf]
      %v361 = vld [vmem:[%s3 + $0x34] sm:$0xf]
      %v362 = vld [vmem:[%s3 + $0x38] sm:$0xf]
      %v363 = vld [vmem:[%s3 + $0x3c] sm:$0xf]
      %v364 = vld [vmem:[%s311] sm:$0x7]
      %v365 = vld [vmem:[%s311 + $0x4] sm:$0x7]
      %v366 = vld [vmem:[%s311 + $0x8] sm:$0x7]
      %v367 = vld [vmem:[%s311 + $0xc] sm:$0x7]
      %v373 = vunpack.c.l.s4 1983009808
      %v374 = vunpack.c.0.s8 %v373
      %v375 = vlaneseq
      %v376 = vshrl.u32 %v375, 7
      %v377 = vsub.s32 %v374, %v376
      %v378 = vrot.slane %v364, %v377
      %v379 = vcombine.high %v378, %v378
      %v381 = vunpack.c.l.s4 1983009808
      %v382 = vunpack.c.0.s8 %v381
      %v383 = vlaneseq
      %v384 = vshrl.u32 %v383, 7
      %v385 = vsub.s32 %v382, %v384
      %v386 = vrot.slane %v365, %v385
      %v387 = vcombine.high %v386, %v386
      %v389 = vunpack.c.l.s4 1983009808
      %v390 = vunpack.c.0.s8 %v389
      %v391 = vlaneseq
      %v392 = vshrl.u32 %v391, 7
      %v393 = vsub.s32 %v390, %v392
      %v394 = vrot.slane %v366, %v393
      %v395 = vcombine.high %v394, %v394
      %v397 = vunpack.c.l.s4 1983009808
      %v398 = vunpack.c.0.s8 %v397
      %v399 = vlaneseq
      %v400 = vshrl.u32 %v399, 7
      %v401 = vsub.s32 %v398, %v400
      %v402 = vrot.slane %v367, %v401
      %v403 = vcombine.high %v402, %v402
      %vm404 = vsmask.f32 1280
      %vm405 = vsmask.f32 3336
      %vm406 = vmor %vm404, %vm405
      %vm407 = vsmask.f32 5392
      %vm408 = vmor %vm406, %vm407
      %vm409 = vsmask.f32 7448
      %vm410 = vmor %vm408, %vm409
      %v412 = vshrl.u32 %v378, 16
      %v414 = vrot.slane %v412, 6
      %v415 = vshll.u32 %v378, 16
      %v417 = vrot.slane %v415, 7
      %v418 = vor.u32 %v414, %v417
      %v419 = vrot.slane %v418, 2
      %v421 = vshll.u32 %v379, 16
      %v423 = vrot.slane %v421, 7
      %v424 = vsel %vm410, %v419, %v423
      %v426 = vshrl.u32 %v386, 16
      %v428 = vrot.slane %v426, 6
      %v429 = vshll.u32 %v386, 16
      %v431 = vrot.slane %v429, 7
      %v432 = vor.u32 %v428, %v431
      %v433 = vrot.slane %v432, 2
      %v435 = vshll.u32 %v387, 16
      %v437 = vrot.slane %v435, 7
      %v438 = vsel %vm410, %v433, %v437
      %v440 = vshrl.u32 %v394, 16
      %v442 = vrot.slane %v440, 6
      %v443 = vshll.u32 %v394, 16
      %v445 = vrot.slane %v443, 7
      %v446 = vor.u32 %v442, %v445
      %v447 = vrot.slane %v446, 2
      %v449 = vshll.u32 %v395, 16
      %v451 = vrot.slane %v449, 7
      %v452 = vsel %vm410, %v447, %v451
      %v454 = vshrl.u32 %v402, 16
      %v456 = vrot.slane %v454, 6
      %v457 = vshll.u32 %v402, 16
      %v459 = vrot.slane %v457, 7
      %v460 = vor.u32 %v456, %v459
      %v461 = vrot.slane %v460, 2
      %v463 = vshll.u32 %v403, 16
      %v465 = vrot.slane %v463, 7
      %v466 = vsel %vm410, %v461, %v465
      %s467 = scalar_lea.vmem %s3, 64
      %v468 = vld [vmem:[%s467] sm:$0xf]
      %v469 = vld [vmem:[%s467 + $0x4] sm:$0xf]
      %v470 = vld [vmem:[%s467 + $0x8] sm:$0xf]
      %v471 = vld [vmem:[%s467 + $0xc] sm:$0xf]
      %v472 = vld [vmem:[%s467 + $0x10] sm:$0xf]
      %v473 = vld [vmem:[%s467 + $0x14] sm:$0xf]
      %v474 = vld [vmem:[%s467 + $0x18] sm:$0xf]
      %v475 = vld [vmem:[%s467 + $0x1c] sm:$0xf]
      %v476 = vld [vmem:[%s467 + $0x20] sm:$0xf]
      %v477 = vld [vmem:[%s467 + $0x24] sm:$0xf]
      %v478 = vld [vmem:[%s467 + $0x28] sm:$0xf]
      %v479 = vld [vmem:[%s467 + $0x2c] sm:$0xf]
      %v480 = vld [vmem:[%s467 + $0x30] sm:$0xf]
      %v481 = vld [vmem:[%s467 + $0x34] sm:$0xf]
      %v482 = vld [vmem:[%s467 + $0x38] sm:$0xf]
      %v483 = vld [vmem:[%s467 + $0x3c] sm:$0xf]
      %v484 = vcombine.low %v424, %v438
      %v485 = vcombine.low %v452, %v466
      %v487 = vunpack.c.l.s4 1983009808
      %v488 = vunpack.c.0.s8 %v487
      %v489 = vlaneseq
      %v490 = vshrl.u32 %v489, 7
      %v491 = vsub.s32 %v488, %v490
      %v492 = vrot.slane %v484, %v491
      %v494 = vunpack.c.l.s4 1983009808
      %v495 = vunpack.c.0.s8 %v494
      %v496 = vlaneseq
      %v497 = vshrl.u32 %v496, 7
      %v498 = vsub.s32 %v495, %v497
      %v499 = vrot.slane %v485, %v498
      %v500 = vcombine.low %v492, %v499
      %v518 = vunpack.c.l.b16 %v468
      %v519 = vunpack.c.l.b16 %v469
      %v520 = vunpack.c.l.b16 %v470
      %v521 = vunpack.c.l.b16 %v471
      %v522 = vunpack.c.l.b16 %v472
      %v523 = vunpack.c.l.b16 %v473
      %v524 = vunpack.c.l.b16 %v474
      %v525 = vunpack.c.l.b16 %v475
      %v526 = vunpack.c.l.b16 %v476
      %v527 = vunpack.c.l.b16 %v477
      %v528 = vunpack.c.l.b16 %v478
      %v529 = vunpack.c.l.b16 %v479
      %v530 = vunpack.c.l.b16 %v480
      %v531 = vunpack.c.l.b16 %v481
      %v532 = vunpack.c.l.b16 %v482
      %v533 = vunpack.c.l.b16 %v483
      %v534 = vpack.c.b16 %v519, %v518
      %v535 = vpack.c.b16 %v521, %v520
      %v536 = vpack.c.b16 %v523, %v522
      %v537 = vpack.c.b16 %v525, %v524
      %v538 = vpack.c.b16 %v527, %v526
      %v539 = vpack.c.b16 %v529, %v528
      %v540 = vpack.c.b16 %v531, %v530
      %v541 = vpack.c.b16 %v533, %v532
      %550 = vmatprep.subr.bf16.mxu0 0
      %551 = vmatpush1.bf16.msra.mxu0 %v541
      %552 = vmatprep.subr.bf16.mxu0 0
      %553 = vmatpush1.bf16.msra.mxu0 %v540
      %554 = vmatprep.subr.bf16.mxu0 0
      %555 = vmatpush1.bf16.msra.mxu0 %v539
      %556 = vmatprep.subr.bf16.mxu0 0
      %557 = vmatpush1.bf16.msra.mxu0 %v538
      %558 = vmatprep.subr.bf16.mxu0 0
      %559 = vmatpush1.bf16.msra.mxu0 %v537
      %560 = vmatprep.subr.bf16.mxu0 0
      %561 = vmatpush1.bf16.msra.mxu0 %v536
      %562 = vmatprep.subr.bf16.mxu0 0
      %563 = vmatpush1.bf16.msra.mxu0 %v535
      %564 = vmatprep.subr.bf16.mxu0 0
      %565 = vmatpush1.bf16.msra.mxu0 %v534
      %566 = vmatprep.subr.bf16.mxu0 0
      %567 = vmatpush2.bf16.msra.mxu0 0
      %568 = vmatprep.subr.bf16.mxu0 0
      %569 = vmatpush2.bf16.msra.mxu0 0
      %570 = vmatprep.subr.bf16.mxu0 0
      %571 = vmatpush2.bf16.msra.mxu0 0
      %572 = vmatprep.subr.bf16.mxu0 0
      %573 = vmatpush2.bf16.msra.mxu0 0
      %574 = vmatprep.subr.bf16.mxu0 0
      %575 = vmatpush2.bf16.msra.mxu0 0
      %576 = vmatprep.subr.bf16.mxu0 0
      %577 = vmatpush2.bf16.msra.mxu0 0
      %578 = vmatprep.subr.bf16.mxu0 0
      %579 = vmatpush2.bf16.msra.mxu0 0
      %580 = vmatprep.subr.bf16.mxu0 0
      %581 = vmatpush2.bf16.msra.mxu0 0
      %582 = vmatprep.mubr.bf16.mxu0 0
      %583 = vmatmul.mubr.bf16.gmra.mxu0 %v500
      %v584 = vpop.f32.mrf.mxu0
      %v585 = vadd.f32 0.0, %v584
      %v586 = vpop.f32.mrf.mxu0
      %v587 = vpop.f32.mrf.mxu0
      %v588 = vadd.f32 0.0, %v587
      %v589 = vpop.f32.mrf.mxu0
      %590 = vdwg.mxu0
      %v595 = vcombine.low %v344, %v345
      %v596 = vcombine.low %v346, %v347
      %v598 = vunpack.c.l.s4 1983009808
      %v599 = vunpack.c.0.s8 %v598
      %v600 = vlaneseq
      %v601 = vshrl.u32 %v600, 7
      %v602 = vsub.s32 %v599, %v601
      %v603 = vrot.slane %v595, %v602
      %v605 = vunpack.c.l.s4 1983009808
      %v606 = vunpack.c.0.s8 %v605
      %v607 = vlaneseq
      %v608 = vshrl.u32 %v607, 7
      %v609 = vsub.s32 %v606, %v608
      %v610 = vrot.slane %v596, %v609
      %v611 = vcombine.low %v603, %v610
      %v629 = vunpack.c.l.b16 %v348
      %v630 = vunpack.c.l.b16 %v349
      %v631 = vunpack.c.l.b16 %v350
      %v632 = vunpack.c.l.b16 %v351
      %v633 = vunpack.c.l.b16 %v352
      %v634 = vunpack.c.l.b16 %v353
      %v635 = vunpack.c.l.b16 %v354
      %v636 = vunpack.c.l.b16 %v355
      %v637 = vunpack.c.l.b16 %v356
      %v638 = vunpack.c.l.b16 %v357
      %v639 = vunpack.c.l.b16 %v358
      %v640 = vunpack.c.l.b16 %v359
      %v641 = vunpack.c.l.b16 %v360
      %v642 = vunpack.c.l.b16 %v361
      %v643 = vunpack.c.l.b16 %v362
      %v644 = vunpack.c.l.b16 %v363
      %v645 = vpack.c.b16 %v630, %v629
      %v646 = vpack.c.b16 %v632, %v631
      %v647 = vpack.c.b16 %v634, %v633
      %v648 = vpack.c.b16 %v636, %v635
      %v649 = vpack.c.b16 %v638, %v637
      %v650 = vpack.c.b16 %v640, %v639
      %v651 = vpack.c.b16 %v642, %v641
      %v652 = vpack.c.b16 %v644, %v643
      %661 = vmatprep.subr.bf16.mxu0 0
      %662 = vmatpush1.bf16.msra.mxu0 %v652
      %663 = vmatprep.subr.bf16.mxu0 0
      %664 = vmatpush1.bf16.msra.mxu0 %v651
      %665 = vmatprep.subr.bf16.mxu0 0
      %666 = vmatpush1.bf16.msra.mxu0 %v650
      %667 = vmatprep.subr.bf16.mxu0 0
      %668 = vmatpush1.bf16.msra.mxu0 %v649
      %669 = vmatprep.subr.bf16.mxu0 0
      %670 = vmatpush1.bf16.msra.mxu0 %v648
      %671 = vmatprep.subr.bf16.mxu0 0
      %672 = vmatpush1.bf16.msra.mxu0 %v647
      %673 = vmatprep.subr.bf16.mxu0 0
      %674 = vmatpush1.bf16.msra.mxu0 %v646
      %675 = vmatprep.subr.bf16.mxu0 0
      %676 = vmatpush1.bf16.msra.mxu0 %v645
      %677 = vmatprep.subr.bf16.mxu0 0
      %678 = vmatpush2.bf16.msra.mxu0 0
      %679 = vmatprep.subr.bf16.mxu0 0
      %680 = vmatpush2.bf16.msra.mxu0 0
      %681 = vmatprep.subr.bf16.mxu0 0
      %682 = vmatpush2.bf16.msra.mxu0 0
      %683 = vmatprep.subr.bf16.mxu0 0
      %684 = vmatpush2.bf16.msra.mxu0 0
      %685 = vmatprep.subr.bf16.mxu0 0
      %686 = vmatpush2.bf16.msra.mxu0 0
      %687 = vmatprep.subr.bf16.mxu0 0
      %688 = vmatpush2.bf16.msra.mxu0 0
      %689 = vmatprep.subr.bf16.mxu0 0
      %690 = vmatpush2.bf16.msra.mxu0 0
      %691 = vmatprep.subr.bf16.mxu0 0
      %692 = vmatpush2.bf16.msra.mxu0 0
      %693 = vmatprep.mubr.bf16.mxu0 0
      %694 = vmatmul.mubr.bf16.gmra.mxu0 %v611
      %v695 = vpop.f32.mrf.mxu0
      %v696 = vadd.f32 %v585, %v695
      %v697 = vpop.f32.mrf.mxu0
      %v698 = vpop.f32.mrf.mxu0
      %v699 = vadd.f32 %v588, %v698
      %v700 = vpop.f32.mrf.mxu0
      %701 = vdwg.mxu0
      %v702 = vld [vmem:[%s311] sm:$0x6]
      %v703 = vld [vmem:[%s311 + $0x4] sm:$0x6]
      %v704 = vld [vmem:[%s311 + $0x8] sm:$0x6]
      %v705 = vld [vmem:[%s311 + $0xc] sm:$0x6]
      %v711 = vunpack.c.l.s4 1983009808
      %v712 = vunpack.c.0.s8 %v711
      %v713 = vlaneseq
      %v714 = vshrl.u32 %v713, 7
      %v715 = vsub.s32 %v712, %v714
      %v716 = vrot.slane %v702, %v715
      %v717 = vcombine.high %v716, %v716
      %v719 = vunpack.c.l.s4 1983009808
      %v720 = vunpack.c.0.s8 %v719
      %v721 = vlaneseq
      %v722 = vshrl.u32 %v721, 7
      %v723 = vsub.s32 %v720, %v722
      %v724 = vrot.slane %v703, %v723
      %v725 = vcombine.high %v724, %v724
      %v727 = vunpack.c.l.s4 1983009808
      %v728 = vunpack.c.0.s8 %v727
      %v729 = vlaneseq
      %v730 = vshrl.u32 %v729, 7
      %v731 = vsub.s32 %v728, %v730
      %v732 = vrot.slane %v704, %v731
      %v733 = vcombine.high %v732, %v732
      %v735 = vunpack.c.l.s4 1983009808
      %v736 = vunpack.c.0.s8 %v735
      %v737 = vlaneseq
      %v738 = vshrl.u32 %v737, 7
      %v739 = vsub.s32 %v736, %v738
      %v740 = vrot.slane %v705, %v739
      %v741 = vcombine.high %v740, %v740
      %vm742 = vcmask 1040384
      %vm743 = vcmask 1042434
      %vm744 = vmor %vm742, %vm743
      %vm745 = vcmask 1044484
      %vm746 = vmor %vm744, %vm745
      %vm747 = vcmask 1046534
      %vm748 = vmor %vm746, %vm747
      %v749 = vrot.slane %v716, 7
      %v750 = vrot.slane %v749, 2
      %v751 = vrot.slane %v717, 7
      %v752 = vsel %vm748, %v750, %v751
      %v753 = vrot.slane %v724, 7
      %v754 = vrot.slane %v753, 2
      %v755 = vrot.slane %v725, 7
      %v756 = vsel %vm748, %v754, %v755
      %v757 = vrot.slane %v732, 7
      %v758 = vrot.slane %v757, 2
      %v759 = vrot.slane %v733, 7
      %v760 = vsel %vm748, %v758, %v759
      %v761 = vrot.slane %v740, 7
      %v762 = vrot.slane %v761, 2
      %v763 = vrot.slane %v741, 7
      %v764 = vsel %vm748, %v762, %v763
      %s765 = scalar_lea.vmem %s3, 128
      %v766 = vld [vmem:[%s765] sm:$0xf]
      %v767 = vld [vmem:[%s765 + $0x4] sm:$0xf]
      %v768 = vld [vmem:[%s765 + $0x8] sm:$0xf]
      %v769 = vld [vmem:[%s765 + $0xc] sm:$0xf]
      %v770 = vld [vmem:[%s765 + $0x10] sm:$0xf]
      %v771 = vld [vmem:[%s765 + $0x14] sm:$0xf]
      %v772 = vld [vmem:[%s765 + $0x18] sm:$0xf]
      %v773 = vld [vmem:[%s765 + $0x1c] sm:$0xf]
      %v774 = vld [vmem:[%s765 + $0x20] sm:$0xf]
      %v775 = vld [vmem:[%s765 + $0x24] sm:$0xf]
      %v776 = vld [vmem:[%s765 + $0x28] sm:$0xf]
      %v777 = vld [vmem:[%s765 + $0x2c] sm:$0xf]
      %v778 = vld [vmem:[%s765 + $0x30] sm:$0xf]
      %v779 = vld [vmem:[%s765 + $0x34] sm:$0xf]
      %v780 = vld [vmem:[%s765 + $0x38] sm:$0xf]
      %v781 = vld [vmem:[%s765 + $0x3c] sm:$0xf]
      %v782 = vcombine.low %v752, %v756
      %v783 = vcombine.low %v760, %v764
      %v785 = vunpack.c.l.s4 1983009808
      %v786 = vunpack.c.0.s8 %v785
      %v787 = vlaneseq
      %v788 = vshrl.u32 %v787, 7
      %v789 = vsub.s32 %v786, %v788
      %v790 = vrot.slane %v782, %v789
      %v792 = vunpack.c.l.s4 1983009808
      %v793 = vunpack.c.0.s8 %v792
      %v794 = vlaneseq
      %v795 = vshrl.u32 %v794, 7
      %v796 = vsub.s32 %v793, %v795
      %v797 = vrot.slane %v783, %v796
      %v798 = vcombine.low %v790, %v797
      %v816 = vunpack.c.l.b16 %v766
      %v817 = vunpack.c.l.b16 %v767
      %v818 = vunpack.c.l.b16 %v768
      %v819 = vunpack.c.l.b16 %v769
      %v820 = vunpack.c.l.b16 %v770
      %v821 = vunpack.c.l.b16 %v771
      %v822 = vunpack.c.l.b16 %v772
      %v823 = vunpack.c.l.b16 %v773
      %v824 = vunpack.c.l.b16 %v774
      %v825 = vunpack.c.l.b16 %v775
      %v826 = vunpack.c.l.b16 %v776
      %v827 = vunpack.c.l.b16 %v777
      %v828 = vunpack.c.l.b16 %v778
      %v829 = vunpack.c.l.b16 %v779
      %v830 = vunpack.c.l.b16 %v780
      %v831 = vunpack.c.l.b16 %v781
      %v832 = vpack.c.b16 %v817, %v816
      %v833 = vpack.c.b16 %v819, %v818
      %v834 = vpack.c.b16 %v821, %v820
      %v835 = vpack.c.b16 %v823, %v822
      %v836 = vpack.c.b16 %v825, %v824
      %v837 = vpack.c.b16 %v827, %v826
      %v838 = vpack.c.b16 %v829, %v828
      %v839 = vpack.c.b16 %v831, %v830
      %848 = vmatprep.subr.bf16.mxu0 0
      %849 = vmatpush1.bf16.msra.mxu0 %v839
      %850 = vmatprep.subr.bf16.mxu0 0
      %851 = vmatpush1.bf16.msra.mxu0 %v838
      %852 = vmatprep.subr.bf16.mxu0 0
      %853 = vmatpush1.bf16.msra.mxu0 %v837
      %854 = vmatprep.subr.bf16.mxu0 0
      %855 = vmatpush1.bf16.msra.mxu0 %v836
      %856 = vmatprep.subr.bf16.mxu0 0
      %857 = vmatpush1.bf16.msra.mxu0 %v835
      %858 = vmatprep.subr.bf16.mxu0 0
      %859 = vmatpush1.bf16.msra.mxu0 %v834
      %860 = vmatprep.subr.bf16.mxu0 0
      %861 = vmatpush1.bf16.msra.mxu0 %v833
      %862 = vmatprep.subr.bf16.mxu0 0
      %863 = vmatpush1.bf16.msra.mxu0 %v832
      %864 = vmatprep.subr.bf16.mxu0 0
      %865 = vmatpush2.bf16.msra.mxu0 0
      %866 = vmatprep.subr.bf16.mxu0 0
      %867 = vmatpush2.bf16.msra.mxu0 0
      %868 = vmatprep.subr.bf16.mxu0 0
      %869 = vmatpush2.bf16.msra.mxu0 0
      %870 = vmatprep.subr.bf16.mxu0 0
      %871 = vmatpush2.bf16.msra.mxu0 0
      %872 = vmatprep.subr.bf16.mxu0 0
      %873 = vmatpush2.bf16.msra.mxu0 0
      %874 = vmatprep.subr.bf16.mxu0 0
      %875 = vmatpush2.bf16.msra.mxu0 0
      %876 = vmatprep.subr.bf16.mxu0 0
      %877 = vmatpush2.bf16.msra.mxu0 0
      %878 = vmatprep.subr.bf16.mxu0 0
      %879 = vmatpush2.bf16.msra.mxu0 0
      %880 = vmatprep.mubr.bf16.mxu0 0
      %881 = vmatmul.mubr.bf16.gmra.mxu0 %v798
      %v882 = vpop.f32.mrf.mxu0
      %v883 = vadd.f32 0.0, %v882
      %v884 = vpop.f32.mrf.mxu0
      %v885 = vpop.f32.mrf.mxu0
      %v886 = vadd.f32 0.0, %v885
      %v887 = vpop.f32.mrf.mxu0
      %888 = vdwg.mxu0
      %v889 = vadd.f32 %v696, %v883
      %v890 = vadd.f32 %v699, %v886
      %s891 = scalar_lea.vmem %s311, 4
      %v892 = vld [vmem:[%s891] sm:$0x3]
      %v893 = vld [vmem:[%s891 + $0x4] sm:$0x3]
      %v894 = vld [vmem:[%s891 + $0x8] sm:$0x3]
      %v895 = vld [vmem:[%s891 + $0xc] sm:$0x3]
      %s896 = scalar_lea.vmem %s3, 192
      %v897 = vld [vmem:[%s896] sm:$0xf]
      %v898 = vld [vmem:[%s896 + $0x4] sm:$0xf]
      %v899 = vld [vmem:[%s896 + $0x8] sm:$0xf]
      %v900 = vld [vmem:[%s896 + $0xc] sm:$0xf]
      %v901 = vld [vmem:[%s896 + $0x10] sm:$0xf]
      %v902 = vld [vmem:[%s896 + $0x14] sm:$0xf]
      %v903 = vld [vmem:[%s896 + $0x18] sm:$0xf]
      %v904 = vld [vmem:[%s896 + $0x1c] sm:$0xf]
      %v905 = vld [vmem:[%s896 + $0x20] sm:$0xf]
      %v906 = vld [vmem:[%s896 + $0x24] sm:$0xf]
      %v907 = vld [vmem:[%s896 + $0x28] sm:$0xf]
      %v908 = vld [vmem:[%s896 + $0x2c] sm:$0xf]
      %v909 = vld [vmem:[%s896 + $0x30] sm:$0xf]
      %v910 = vld [vmem:[%s896 + $0x34] sm:$0xf]
      %v911 = vld [vmem:[%s896 + $0x38] sm:$0xf]
      %v912 = vld [vmem:[%s896 + $0x3c] sm:$0xf]
      %v917 = vcombine.low %v892, %v893
      %v918 = vcombine.low %v894, %v895
      %v920 = vunpack.c.l.s4 1983009808
      %v921 = vunpack.c.0.s8 %v920
      %v922 = vlaneseq
      %v923 = vshrl.u32 %v922, 7
      %v924 = vsub.s32 %v921, %v923
      %v925 = vrot.slane %v917, %v924
      %v927 = vunpack.c.l.s4 1983009808
      %v928 = vunpack.c.0.s8 %v927
      %v929 = vlaneseq
      %v930 = vshrl.u32 %v929, 7
      %v931 = vsub.s32 %v928, %v930
      %v932 = vrot.slane %v918, %v931
      %v933 = vcombine.low %v925, %v932
      %v951 = vunpack.c.l.b16 %v897
      %v952 = vunpack.c.l.b16 %v898
      %v953 = vunpack.c.l.b16 %v899
      %v954 = vunpack.c.l.b16 %v900
      %v955 = vunpack.c.l.b16 %v901
      %v956 = vunpack.c.l.b16 %v902
      %v957 = vunpack.c.l.b16 %v903
      %v958 = vunpack.c.l.b16 %v904
      %v959 = vunpack.c.l.b16 %v905
      %v960 = vunpack.c.l.b16 %v906
      %v961 = vunpack.c.l.b16 %v907
      %v962 = vunpack.c.l.b16 %v908
      %v963 = vunpack.c.l.b16 %v909
      %v964 = vunpack.c.l.b16 %v910
      %v965 = vunpack.c.l.b16 %v911
      %v966 = vunpack.c.l.b16 %v912
      %v967 = vpack.c.b16 %v952, %v951
      %v968 = vpack.c.b16 %v954, %v953
      %v969 = vpack.c.b16 %v956, %v955
      %v970 = vpack.c.b16 %v958, %v957
      %v971 = vpack.c.b16 %v960, %v959
      %v972 = vpack.c.b16 %v962, %v961
      %v973 = vpack.c.b16 %v964, %v963
      %v974 = vpack.c.b16 %v966, %v965
      %983 = vmatprep.subr.bf16.mxu0 0
      %984 = vmatpush1.bf16.msra.mxu0 %v974
      %985 = vmatprep.subr.bf16.mxu0 0
      %986 = vmatpush1.bf16.msra.mxu0 %v973
      %987 = vmatprep.subr.bf16.mxu0 0
      %988 = vmatpush1.bf16.msra.mxu0 %v972
      %989 = vmatprep.subr.bf16.mxu0 0
      %990 = vmatpush1.bf16.msra.mxu0 %v971
      %991 = vmatprep.subr.bf16.mxu0 0
      %992 = vmatpush1.bf16.msra.mxu0 %v970
      %993 = vmatprep.subr.bf16.mxu0 0
      %994 = vmatpush1.bf16.msra.mxu0 %v969
      %995 = vmatprep.subr.bf16.mxu0 0
      %996 = vmatpush1.bf16.msra.mxu0 %v968
      %997 = vmatprep.subr.bf16.mxu0 0
      %998 = vmatpush1.bf16.msra.mxu0 %v967
      %999 = vmatprep.subr.bf16.mxu0 0
      %1000 = vmatpush2.bf16.msra.mxu0 0
      %1001 = vmatprep.subr.bf16.mxu0 0
      %1002 = vmatpush2.bf16.msra.mxu0 0
      %1003 = vmatprep.subr.bf16.mxu0 0
      %1004 = vmatpush2.bf16.msra.mxu0 0
      %1005 = vmatprep.subr.bf16.mxu0 0
      %1006 = vmatpush2.bf16.msra.mxu0 0
      %1007 = vmatprep.subr.bf16.mxu0 0
      %1008 = vmatpush2.bf16.msra.mxu0 0
      %1009 = vmatprep.subr.bf16.mxu0 0
      %1010 = vmatpush2.bf16.msra.mxu0 0
      %1011 = vmatprep.subr.bf16.mxu0 0
      %1012 = vmatpush2.bf16.msra.mxu0 0
      %1013 = vmatprep.subr.bf16.mxu0 0
      %1014 = vmatpush2.bf16.msra.mxu0 0
      %1015 = vmatprep.mubr.bf16.mxu0 0
      %1016 = vmatmul.mubr.bf16.gmra.mxu0 %v933
      %v1017 = vpop.f32.mrf.mxu0
      %v1018 = vadd.f32 0.0, %v1017
      %v1019 = vpop.f32.mrf.mxu0
      %v1020 = vpop.f32.mrf.mxu0
      %v1021 = vadd.f32 0.0, %v1020
      %v1022 = vpop.f32.mrf.mxu0
      %1023 = vdwg.mxu0
      %v1024 = vadd.f32 %v889, %v1018
      %v1025 = vadd.f32 %v890, %v1021
      %v1026 = vld [vmem:[%s891] sm:$0x7]
      %v1027 = vld [vmem:[%s891 + $0x4] sm:$0x7]
      %v1028 = vld [vmem:[%s891 + $0x8] sm:$0x7]
      %v1029 = vld [vmem:[%s891 + $0xc] sm:$0x7]
      %v1035 = vunpack.c.l.s4 1983009808
      %v1036 = vunpack.c.0.s8 %v1035
      %v1037 = vlaneseq
      %v1038 = vshrl.u32 %v1037, 7
      %v1039 = vsub.s32 %v1036, %v1038
      %v1040 = vrot.slane %v1026, %v1039
      %v1041 = vcombine.high %v1040, %v1040
      %v1043 = vunpack.c.l.s4 1983009808
      %v1044 = vunpack.c.0.s8 %v1043
      %v1045 = vlaneseq
      %v1046 = vshrl.u32 %v1045, 7
      %v1047 = vsub.s32 %v1044, %v1046
      %v1048 = vrot.slane %v1027, %v1047
      %v1049 = vcombine.high %v1048, %v1048
      %v1051 = vunpack.c.l.s4 1983009808
      %v1052 = vunpack.c.0.s8 %v1051
      %v1053 = vlaneseq
      %v1054 = vshrl.u32 %v1053, 7
      %v1055 = vsub.s32 %v1052, %v1054
      %v1056 = vrot.slane %v1028, %v1055
      %v1057 = vcombine.high %v1056, %v1056
      %v1059 = vunpack.c.l.s4 1983009808
      %v1060 = vunpack.c.0.s8 %v1059
      %v1061 = vlaneseq
      %v1062 = vshrl.u32 %v1061, 7
      %v1063 = vsub.s32 %v1060, %v1062
      %v1064 = vrot.slane %v1029, %v1063
      %v1065 = vcombine.high %v1064, %v1064
      %v1067 = vshrl.u32 %v1040, 16
      %v1069 = vrot.slane %v1067, 6
      %v1070 = vshll.u32 %v1040, 16
      %v1072 = vrot.slane %v1070, 7
      %v1073 = vor.u32 %v1069, %v1072
      %v1074 = vrot.slane %v1073, 2
      %v1076 = vshll.u32 %v1041, 16
      %v1078 = vrot.slane %v1076, 7
      %v1079 = vsel %vm410, %v1074, %v1078
      %v1081 = vshrl.u32 %v1048, 16
      %v1083 = vrot.slane %v1081, 6
      %v1084 = vshll.u32 %v1048, 16
      %v1086 = vrot.slane %v1084, 7
      %v1087 = vor.u32 %v1083, %v1086
      %v1088 = vrot.slane %v1087, 2
      %v1090 = vshll.u32 %v1049, 16
      %v1092 = vrot.slane %v1090, 7
      %v1093 = vsel %vm410, %v1088, %v1092
      %v1095 = vshrl.u32 %v1056, 16
      %v1097 = vrot.slane %v1095, 6
      %v1098 = vshll.u32 %v1056, 16
      %v1100 = vrot.slane %v1098, 7
      %v1101 = vor.u32 %v1097, %v1100
      %v1102 = vrot.slane %v1101, 2
      %v1104 = vshll.u32 %v1057, 16
      %v1106 = vrot.slane %v1104, 7
      %v1107 = vsel %vm410, %v1102, %v1106
      %v1109 = vshrl.u32 %v1064, 16
      %v1111 = vrot.slane %v1109, 6
      %v1112 = vshll.u32 %v1064, 16
      %v1114 = vrot.slane %v1112, 7
      %v1115 = vor.u32 %v1111, %v1114
      %v1116 = vrot.slane %v1115, 2
      %v1118 = vshll.u32 %v1065, 16
      %v1120 = vrot.slane %v1118, 7
      %v1121 = vsel %vm410, %v1116, %v1120
      %s1122 = scalar_lea.vmem %s3, 256
      %v1123 = vld [vmem:[%s1122] sm:$0xf]
      %v1124 = vld [vmem:[%s1122 + $0x4] sm:$0xf]
      %v1125 = vld [vmem:[%s1122 + $0x8] sm:$0xf]
      %v1126 = vld [vmem:[%s1122 + $0xc] sm:$0xf]
      %v1127 = vld [vmem:[%s1122 + $0x10] sm:$0xf]
      %v1128 = vld [vmem:[%s1122 + $0x14] sm:$0xf]
      %v1129 = vld [vmem:[%s1122 + $0x18] sm:$0xf]
      %v1130 = vld [vmem:[%s1122 + $0x1c] sm:$0xf]
      %v1131 = vld [vmem:[%s1122 + $0x20] sm:$0xf]
      %v1132 = vld [vmem:[%s1122 + $0x24] sm:$0xf]
      %v1133 = vld [vmem:[%s1122 + $0x28] sm:$0xf]
      %v1134 = vld [vmem:[%s1122 + $0x2c] sm:$0xf]
      %v1135 = vld [vmem:[%s1122 + $0x30] sm:$0xf]
      %v1136 = vld [vmem:[%s1122 + $0x34] sm:$0xf]
      %v1137 = vld [vmem:[%s1122 + $0x38] sm:$0xf]
      %v1138 = vld [vmem:[%s1122 + $0x3c] sm:$0xf]
      %v1139 = vcombine.low %v1079, %v1093
      %v1140 = vcombine.low %v1107, %v1121
      %v1142 = vunpack.c.l.s4 1983009808
      %v1143 = vunpack.c.0.s8 %v1142
      %v1144 = vlaneseq
      %v1145 = vshrl.u32 %v1144, 7
      %v1146 = vsub.s32 %v1143, %v1145
      %v1147 = vrot.slane %v1139, %v1146
      %v1149 = vunpack.c.l.s4 1983009808
      %v1150 = vunpack.c.0.s8 %v1149
      %v1151 = vlaneseq
      %v1152 = vshrl.u32 %v1151, 7
      %v1153 = vsub.s32 %v1150, %v1152
      %v1154 = vrot.slane %v1140, %v1153
      %v1155 = vcombine.low %v1147, %v1154
      %v1173 = vunpack.c.l.b16 %v1123
      %v1174 = vunpack.c.l.b16 %v1124
      %v1175 = vunpack.c.l.b16 %v1125
      %v1176 = vunpack.c.l.b16 %v1126
      %v1177 = vunpack.c.l.b16 %v1127
      %v1178 = vunpack.c.l.b16 %v1128
      %v1179 = vunpack.c.l.b16 %v1129
      %v1180 = vunpack.c.l.b16 %v1130
      %v1181 = vunpack.c.l.b16 %v1131
      %v1182 = vunpack.c.l.b16 %v1132
      %v1183 = vunpack.c.l.b16 %v1133
      %v1184 = vunpack.c.l.b16 %v1134
      %v1185 = vunpack.c.l.b16 %v1135
      %v1186 = vunpack.c.l.b16 %v1136
      %v1187 = vunpack.c.l.b16 %v1137
      %v1188 = vunpack.c.l.b16 %v1138
      %v1189 = vpack.c.b16 %v1174, %v1173
      %v1190 = vpack.c.b16 %v1176, %v1175
      %v1191 = vpack.c.b16 %v1178, %v1177
      %v1192 = vpack.c.b16 %v1180, %v1179
      %v1193 = vpack.c.b16 %v1182, %v1181
      %v1194 = vpack.c.b16 %v1184, %v1183
      %v1195 = vpack.c.b16 %v1186, %v1185
      %v1196 = vpack.c.b16 %v1188, %v1187
      %1205 = vmatprep.subr.bf16.mxu0 0
      %1206 = vmatpush1.bf16.msra.mxu0 %v1196
      %1207 = vmatprep.subr.bf16.mxu0 0
      %1208 = vmatpush1.bf16.msra.mxu0 %v1195
      %1209 = vmatprep.subr.bf16.mxu0 0
      %1210 = vmatpush1.bf16.msra.mxu0 %v1194
      %1211 = vmatprep.subr.bf16.mxu0 0
      %1212 = vmatpush1.bf16.msra.mxu0 %v1193
      %1213 = vmatprep.subr.bf16.mxu0 0
      %1214 = vmatpush1.bf16.msra.mxu0 %v1192
      %1215 = vmatprep.subr.bf16.mxu0 0
      %1216 = vmatpush1.bf16.msra.mxu0 %v1191
      %1217 = vmatprep.subr.bf16.mxu0 0
      %1218 = vmatpush1.bf16.msra.mxu0 %v1190
      %1219 = vmatprep.subr.bf16.mxu0 0
      %1220 = vmatpush1.bf16.msra.mxu0 %v1189
      %1221 = vmatprep.subr.bf16.mxu0 0
      %1222 = vmatpush2.bf16.msra.mxu0 0
      %1223 = vmatprep.subr.bf16.mxu0 0
      %1224 = vmatpush2.bf16.msra.mxu0 0
      %1225 = vmatprep.subr.bf16.mxu0 0
      %1226 = vmatpush2.bf16.msra.mxu0 0
      %1227 = vmatprep.subr.bf16.mxu0 0
      %1228 = vmatpush2.bf16.msra.mxu0 0
      %1229 = vmatprep.subr.bf16.mxu0 0
      %1230 = vmatpush2.bf16.msra.mxu0 0
      %1231 = vmatprep.subr.bf16.mxu0 0
      %1232 = vmatpush2.bf16.msra.mxu0 0
      %1233 = vmatprep.subr.bf16.mxu0 0
      %1234 = vmatpush2.bf16.msra.mxu0 0
      %1235 = vmatprep.subr.bf16.mxu0 0
      %1236 = vmatpush2.bf16.msra.mxu0 0
      %1237 = vmatprep.mubr.bf16.mxu0 0
      %1238 = vmatmul.mubr.bf16.gmra.mxu0 %v1155
      %v1239 = vpop.f32.mrf.mxu0
      %v1240 = vadd.f32 0.0, %v1239
      %v1241 = vpop.f32.mrf.mxu0
      %v1242 = vpop.f32.mrf.mxu0
      %v1243 = vadd.f32 0.0, %v1242
      %v1244 = vpop.f32.mrf.mxu0
      %1245 = vdwg.mxu0
      %v1246 = vadd.f32 %v1024, %v1240
      %v1247 = vadd.f32 %v1025, %v1243
      %v1248 = vld [vmem:[%s891] sm:$0x6]
      %v1249 = vld [vmem:[%s891 + $0x4] sm:$0x6]
      %v1250 = vld [vmem:[%s891 + $0x8] sm:$0x6]
      %v1251 = vld [vmem:[%s891 + $0xc] sm:$0x6]
      %v1257 = vunpack.c.l.s4 1983009808
      %v1258 = vunpack.c.0.s8 %v1257
      %v1259 = vlaneseq
      %v1260 = vshrl.u32 %v1259, 7
      %v1261 = vsub.s32 %v1258, %v1260
      %v1262 = vrot.slane %v1248, %v1261
      %v1263 = vcombine.high %v1262, %v1262
      %v1265 = vunpack.c.l.s4 1983009808
      %v1266 = vunpack.c.0.s8 %v1265
      %v1267 = vlaneseq
      %v1268 = vshrl.u32 %v1267, 7
      %v1269 = vsub.s32 %v1266, %v1268
      %v1270 = vrot.slane %v1249, %v1269
      %v1271 = vcombine.high %v1270, %v1270
      %v1273 = vunpack.c.l.s4 1983009808
      %v1274 = vunpack.c.0.s8 %v1273
      %v1275 = vlaneseq
      %v1276 = vshrl.u32 %v1275, 7
      %v1277 = vsub.s32 %v1274, %v1276
      %v1278 = vrot.slane %v1250, %v1277
      %v1279 = vcombine.high %v1278, %v1278
      %v1281 = vunpack.c.l.s4 1983009808
      %v1282 = vunpack.c.0.s8 %v1281
      %v1283 = vlaneseq
      %v1284 = vshrl.u32 %v1283, 7
      %v1285 = vsub.s32 %v1282, %v1284
      %v1286 = vrot.slane %v1251, %v1285
      %v1287 = vcombine.high %v1286, %v1286
      %v1288 = vrot.slane %v1262, 7
      %v1289 = vrot.slane %v1288, 2
      %v1290 = vrot.slane %v1263, 7
      %v1291 = vsel %vm748, %v1289, %v1290
      %v1292 = vrot.slane %v1270, 7
      %v1293 = vrot.slane %v1292, 2
      %v1294 = vrot.slane %v1271, 7
      %v1295 = vsel %vm748, %v1293, %v1294
      %v1296 = vrot.slane %v1278, 7
      %v1297 = vrot.slane %v1296, 2
      %v1298 = vrot.slane %v1279, 7
      %v1299 = vsel %vm748, %v1297, %v1298
      %v1300 = vrot.slane %v1286, 7
      %v1301 = vrot.slane %v1300, 2
      %v1302 = vrot.slane %v1287, 7
      %v1303 = vsel %vm748, %v1301, %v1302
      %s1304 = scalar_lea.vmem %s3, 320
      %v1305 = vld [vmem:[%s1304] sm:$0xf]
      %v1306 = vld [vmem:[%s1304 + $0x4] sm:$0xf]
      %v1307 = vld [vmem:[%s1304 + $0x8] sm:$0xf]
      %v1308 = vld [vmem:[%s1304 + $0xc] sm:$0xf]
      %v1309 = vld [vmem:[%s1304 + $0x10] sm:$0xf]
      %v1310 = vld [vmem:[%s1304 + $0x14] sm:$0xf]
      %v1311 = vld [vmem:[%s1304 + $0x18] sm:$0xf]
      %v1312 = vld [vmem:[%s1304 + $0x1c] sm:$0xf]
      %v1313 = vld [vmem:[%s1304 + $0x20] sm:$0xf]
      %v1314 = vld [vmem:[%s1304 + $0x24] sm:$0xf]
      %v1315 = vld [vmem:[%s1304 + $0x28] sm:$0xf]
      %v1316 = vld [vmem:[%s1304 + $0x2c] sm:$0xf]
      %v1317 = vld [vmem:[%s1304 + $0x30] sm:$0xf]
      %v1318 = vld [vmem:[%s1304 + $0x34] sm:$0xf]
      %v1319 = vld [vmem:[%s1304 + $0x38] sm:$0xf]
      %v1320 = vld [vmem:[%s1304 + $0x3c] sm:$0xf]
      %v1321 = vcombine.low %v1291, %v1295
      %v1322 = vcombine.low %v1299, %v1303
      %v1324 = vunpack.c.l.s4 1983009808
      %v1325 = vunpack.c.0.s8 %v1324
      %v1326 = vlaneseq
      %v1327 = vshrl.u32 %v1326, 7
      %v1328 = vsub.s32 %v1325, %v1327
      %v1329 = vrot.slane %v1321, %v1328
      %v1331 = vunpack.c.l.s4 1983009808
      %v1332 = vunpack.c.0.s8 %v1331
      %v1333 = vlaneseq
      %v1334 = vshrl.u32 %v1333, 7
      %v1335 = vsub.s32 %v1332, %v1334
      %v1336 = vrot.slane %v1322, %v1335
      %v1337 = vcombine.low %v1329, %v1336
      %v1355 = vunpack.c.l.b16 %v1305
      %v1356 = vunpack.c.l.b16 %v1306
      %v1357 = vunpack.c.l.b16 %v1307
      %v1358 = vunpack.c.l.b16 %v1308
      %v1359 = vunpack.c.l.b16 %v1309
      %v1360 = vunpack.c.l.b16 %v1310
      %v1361 = vunpack.c.l.b16 %v1311
      %v1362 = vunpack.c.l.b16 %v1312
      %v1363 = vunpack.c.l.b16 %v1313
      %v1364 = vunpack.c.l.b16 %v1314
      %v1365 = vunpack.c.l.b16 %v1315
      %v1366 = vunpack.c.l.b16 %v1316
      %v1367 = vunpack.c.l.b16 %v1317
      %v1368 = vunpack.c.l.b16 %v1318
      %v1369 = vunpack.c.l.b16 %v1319
      %v1370 = vunpack.c.l.b16 %v1320
      %v1371 = vpack.c.b16 %v1356, %v1355
      %v1372 = vpack.c.b16 %v1358, %v1357
      %v1373 = vpack.c.b16 %v1360, %v1359
      %v1374 = vpack.c.b16 %v1362, %v1361
      %v1375 = vpack.c.b16 %v1364, %v1363
      %v1376 = vpack.c.b16 %v1366, %v1365
      %v1377 = vpack.c.b16 %v1368, %v1367
      %v1378 = vpack.c.b16 %v1370, %v1369
      %1387 = vmatprep.subr.bf16.mxu0 0
      %1388 = vmatpush1.bf16.msra.mxu0 %v1378
      %1389 = vmatprep.subr.bf16.mxu0 0
      %1390 = vmatpush1.bf16.msra.mxu0 %v1377
      %1391 = vmatprep.subr.bf16.mxu0 0
      %1392 = vmatpush1.bf16.msra.mxu0 %v1376
      %1393 = vmatprep.subr.bf16.mxu0 0
      %1394 = vmatpush1.bf16.msra.mxu0 %v1375
      %1395 = vmatprep.subr.bf16.mxu0 0
      %1396 = vmatpush1.bf16.msra.mxu0 %v1374
      %1397 = vmatprep.subr.bf16.mxu0 0
      %1398 = vmatpush1.bf16.msra.mxu0 %v1373
      %1399 = vmatprep.subr.bf16.mxu0 0
      %1400 = vmatpush1.bf16.msra.mxu0 %v1372
      %1401 = vmatprep.subr.bf16.mxu0 0
      %1402 = vmatpush1.bf16.msra.mxu0 %v1371
      %1403 = vmatprep.subr.bf16.mxu0 0
      %1404 = vmatpush2.bf16.msra.mxu0 0
      %1405 = vmatprep.subr.bf16.mxu0 0
      %1406 = vmatpush2.bf16.msra.mxu0 0
      %1407 = vmatprep.subr.bf16.mxu0 0
      %1408 = vmatpush2.bf16.msra.mxu0 0
      %1409 = vmatprep.subr.bf16.mxu0 0
      %1410 = vmatpush2.bf16.msra.mxu0 0
      %1411 = vmatprep.subr.bf16.mxu0 0
      %1412 = vmatpush2.bf16.msra.mxu0 0
      %1413 = vmatprep.subr.bf16.mxu0 0
      %1414 = vmatpush2.bf16.msra.mxu0 0
      %1415 = vmatprep.subr.bf16.mxu0 0
      %1416 = vmatpush2.bf16.msra.mxu0 0
      %1417 = vmatprep.subr.bf16.mxu0 0
      %1418 = vmatpush2.bf16.msra.mxu0 0
      %1419 = vmatprep.mubr.bf16.mxu0 0
      %1420 = vmatmul.mubr.bf16.gmra.mxu0 %v1337
      %v1421 = vpop.f32.mrf.mxu0
      %v1422 = vadd.f32 0.0, %v1421
      %v1423 = vpop.f32.mrf.mxu0
      %v1424 = vpop.f32.mrf.mxu0
      %v1425 = vadd.f32 0.0, %v1424
      %v1426 = vpop.f32.mrf.mxu0
      %1427 = vdwg.mxu0
      %v1428 = vadd.f32 %v1246, %v1422
      %v1429 = vadd.f32 %v1247, %v1425
      %s1430 = scalar_lea.vmem %s311, 8
      %v1431 = vld [vmem:[%s1430] sm:$0x3]
      %v1432 = vld [vmem:[%s1430 + $0x4] sm:$0x3]
      %v1433 = vld [vmem:[%s1430 + $0x8] sm:$0x3]
      %v1434 = vld [vmem:[%s1430 + $0xc] sm:$0x3]
      %s1435 = scalar_lea.vmem %s3, 384
      %v1436 = vld [vmem:[%s1435] sm:$0xf]
      %v1437 = vld [vmem:[%s1435 + $0x4] sm:$0xf]
      %v1438 = vld [vmem:[%s1435 + $0x8] sm:$0xf]
      %v1439 = vld [vmem:[%s1435 + $0xc] sm:$0xf]
      %v1440 = vld [vmem:[%s1435 + $0x10] sm:$0xf]
      %v1441 = vld [vmem:[%s1435 + $0x14] sm:$0xf]
      %v1442 = vld [vmem:[%s1435 + $0x18] sm:$0xf]
      %v1443 = vld [vmem:[%s1435 + $0x1c] sm:$0xf]
      %v1444 = vld [vmem:[%s1435 + $0x20] sm:$0xf]
      %v1445 = vld [vmem:[%s1435 + $0x24] sm:$0xf]
      %v1446 = vld [vmem:[%s1435 + $0x28] sm:$0xf]
      %v1447 = vld [vmem:[%s1435 + $0x2c] sm:$0xf]
      %v1448 = vld [vmem:[%s1435 + $0x30] sm:$0xf]
      %v1449 = vld [vmem:[%s1435 + $0x34] sm:$0xf]
      %v1450 = vld [vmem:[%s1435 + $0x38] sm:$0xf]
      %v1451 = vld [vmem:[%s1435 + $0x3c] sm:$0xf]
      %v1456 = vcombine.low %v1431, %v1432
      %v1457 = vcombine.low %v1433, %v1434
      %v1459 = vunpack.c.l.s4 1983009808
      %v1460 = vunpack.c.0.s8 %v1459
      %v1461 = vlaneseq
      %v1462 = vshrl.u32 %v1461, 7
      %v1463 = vsub.s32 %v1460, %v1462
      %v1464 = vrot.slane %v1456, %v1463
      %v1466 = vunpack.c.l.s4 1983009808
      %v1467 = vunpack.c.0.s8 %v1466
      %v1468 = vlaneseq
      %v1469 = vshrl.u32 %v1468, 7
      %v1470 = vsub.s32 %v1467, %v1469
      %v1471 = vrot.slane %v1457, %v1470
      %v1472 = vcombine.low %v1464, %v1471
      %v1490 = vunpack.c.l.b16 %v1436
      %v1491 = vunpack.c.l.b16 %v1437
      %v1492 = vunpack.c.l.b16 %v1438
      %v1493 = vunpack.c.l.b16 %v1439
      %v1494 = vunpack.c.l.b16 %v1440
      %v1495 = vunpack.c.l.b16 %v1441
      %v1496 = vunpack.c.l.b16 %v1442
      %v1497 = vunpack.c.l.b16 %v1443
      %v1498 = vunpack.c.l.b16 %v1444
      %v1499 = vunpack.c.l.b16 %v1445
      %v1500 = vunpack.c.l.b16 %v1446
      %v1501 = vunpack.c.l.b16 %v1447
      %v1502 = vunpack.c.l.b16 %v1448
      %v1503 = vunpack.c.l.b16 %v1449
      %v1504 = vunpack.c.l.b16 %v1450
      %v1505 = vunpack.c.l.b16 %v1451
      %v1506 = vpack.c.b16 %v1491, %v1490
      %v1507 = vpack.c.b16 %v1493, %v1492
      %v1508 = vpack.c.b16 %v1495, %v1494
      %v1509 = vpack.c.b16 %v1497, %v1496
      %v1510 = vpack.c.b16 %v1499, %v1498
      %v1511 = vpack.c.b16 %v1501, %v1500
      %v1512 = vpack.c.b16 %v1503, %v1502
      %v1513 = vpack.c.b16 %v1505, %v1504
      %1522 = vmatprep.subr.bf16.mxu0 0
      %1523 = vmatpush1.bf16.msra.mxu0 %v1513
      %1524 = vmatprep.subr.bf16.mxu0 0
      %1525 = vmatpush1.bf16.msra.mxu0 %v1512
      %1526 = vmatprep.subr.bf16.mxu0 0
      %1527 = vmatpush1.bf16.msra.mxu0 %v1511
      %1528 = vmatprep.subr.bf16.mxu0 0
      %1529 = vmatpush1.bf16.msra.mxu0 %v1510
      %1530 = vmatprep.subr.bf16.mxu0 0
      %1531 = vmatpush1.bf16.msra.mxu0 %v1509
      %1532 = vmatprep.subr.bf16.mxu0 0
      %1533 = vmatpush1.bf16.msra.mxu0 %v1508
      %1534 = vmatprep.subr.bf16.mxu0 0
      %1535 = vmatpush1.bf16.msra.mxu0 %v1507
      %1536 = vmatprep.subr.bf16.mxu0 0
      %1537 = vmatpush1.bf16.msra.mxu0 %v1506
      %1538 = vmatprep.subr.bf16.mxu0 0
      %1539 = vmatpush2.bf16.msra.mxu0 0
      %1540 = vmatprep.subr.bf16.mxu0 0
      %1541 = vmatpush2.bf16.msra.mxu0 0
      %1542 = vmatprep.subr.bf16.mxu0 0
      %1543 = vmatpush2.bf16.msra.mxu0 0
      %1544 = vmatprep.subr.bf16.mxu0 0
      %1545 = vmatpush2.bf16.msra.mxu0 0
      %1546 = vmatprep.subr.bf16.mxu0 0
      %1547 = vmatpush2.bf16.msra.mxu0 0
      %1548 = vmatprep.subr.bf16.mxu0 0
      %1549 = vmatpush2.bf16.msra.mxu0 0
      %1550 = vmatprep.subr.bf16.mxu0 0
      %1551 = vmatpush2.bf16.msra.mxu0 0
      %1552 = vmatprep.subr.bf16.mxu0 0
      %1553 = vmatpush2.bf16.msra.mxu0 0
      %1554 = vmatprep.mubr.bf16.mxu0 0
      %1555 = vmatmul.mubr.bf16.gmra.mxu0 %v1472
      %v1556 = vpop.f32.mrf.mxu0
      %v1557 = vadd.f32 0.0, %v1556
      %v1558 = vpop.f32.mrf.mxu0
      %v1559 = vpop.f32.mrf.mxu0
      %v1560 = vadd.f32 0.0, %v1559
      %v1561 = vpop.f32.mrf.mxu0
      %1562 = vdwg.mxu0
      %v1563 = vadd.f32 %v1428, %v1557
      %v1564 = vadd.f32 %v1429, %v1560
      %v1565 = vld [vmem:[%s1430] sm:$0x7]
      %v1566 = vld [vmem:[%s1430 + $0x4] sm:$0x7]
      %v1567 = vld [vmem:[%s1430 + $0x8] sm:$0x7]
      %v1568 = vld [vmem:[%s1430 + $0xc] sm:$0x7]
      %v1574 = vunpack.c.l.s4 1983009808
      %v1575 = vunpack.c.0.s8 %v1574
      %v1576 = vlaneseq
      %v1577 = vshrl.u32 %v1576, 7
      %v1578 = vsub.s32 %v1575, %v1577
      %v1579 = vrot.slane %v1565, %v1578
      %v1580 = vcombine.high %v1579, %v1579
      %v1582 = vunpack.c.l.s4 1983009808
      %v1583 = vunpack.c.0.s8 %v1582
      %v1584 = vlaneseq
      %v1585 = vshrl.u32 %v1584, 7
      %v1586 = vsub.s32 %v1583, %v1585
      %v1587 = vrot.slane %v1566, %v1586
      %v1588 = vcombine.high %v1587, %v1587
      %v1590 = vunpack.c.l.s4 1983009808
      %v1591 = vunpack.c.0.s8 %v1590
      %v1592 = vlaneseq
      %v1593 = vshrl.u32 %v1592, 7
      %v1594 = vsub.s32 %v1591, %v1593
      %v1595 = vrot.slane %v1567, %v1594
      %v1596 = vcombine.high %v1595, %v1595
      %v1598 = vunpack.c.l.s4 1983009808
      %v1599 = vunpack.c.0.s8 %v1598
      %v1600 = vlaneseq
      %v1601 = vshrl.u32 %v1600, 7
      %v1602 = vsub.s32 %v1599, %v1601
      %v1603 = vrot.slane %v1568, %v1602
      %v1604 = vcombine.high %v1603, %v1603
      %v1606 = vshrl.u32 %v1579, 16
      %v1608 = vrot.slane %v1606, 6
      %v1609 = vshll.u32 %v1579, 16
      %v1611 = vrot.slane %v1609, 7
      %v1612 = vor.u32 %v1608, %v1611
      %v1613 = vrot.slane %v1612, 2
      %v1615 = vshll.u32 %v1580, 16
      %v1617 = vrot.slane %v1615, 7
      %v1618 = vsel %vm410, %v1613, %v1617
      %v1620 = vshrl.u32 %v1587, 16
      %v1622 = vrot.slane %v1620, 6
      %v1623 = vshll.u32 %v1587, 16
      %v1625 = vrot.slane %v1623, 7
      %v1626 = vor.u32 %v1622, %v1625
      %v1627 = vrot.slane %v1626, 2
      %v1629 = vshll.u32 %v1588, 16
      %v1631 = vrot.slane %v1629, 7
      %v1632 = vsel %vm410, %v1627, %v1631
      %v1634 = vshrl.u32 %v1595, 16
      %v1636 = vrot.slane %v1634, 6
      %v1637 = vshll.u32 %v1595, 16
      %v1639 = vrot.slane %v1637, 7
      %v1640 = vor.u32 %v1636, %v1639
      %v1641 = vrot.slane %v1640, 2
      %v1643 = vshll.u32 %v1596, 16
      %v1645 = vrot.slane %v1643, 7
      %v1646 = vsel %vm410, %v1641, %v1645
      %v1648 = vshrl.u32 %v1603, 16
      %v1650 = vrot.slane %v1648, 6
      %v1651 = vshll.u32 %v1603, 16
      %v1653 = vrot.slane %v1651, 7
      %v1654 = vor.u32 %v1650, %v1653
      %v1655 = vrot.slane %v1654, 2
      %v1657 = vshll.u32 %v1604, 16
      %v1659 = vrot.slane %v1657, 7
      %v1660 = vsel %vm410, %v1655, %v1659
      %s1661 = scalar_lea.vmem %s3, 448
      %v1662 = vld [vmem:[%s1661] sm:$0xf]
      %v1663 = vld [vmem:[%s1661 + $0x4] sm:$0xf]
      %v1664 = vld [vmem:[%s1661 + $0x8] sm:$0xf]
      %v1665 = vld [vmem:[%s1661 + $0xc] sm:$0xf]
      %v1666 = vld [vmem:[%s1661 + $0x10] sm:$0xf]
      %v1667 = vld [vmem:[%s1661 + $0x14] sm:$0xf]
      %v1668 = vld [vmem:[%s1661 + $0x18] sm:$0xf]
      %v1669 = vld [vmem:[%s1661 + $0x1c] sm:$0xf]
      %v1670 = vld [vmem:[%s1661 + $0x20] sm:$0xf]
      %v1671 = vld [vmem:[%s1661 + $0x24] sm:$0xf]
      %v1672 = vld [vmem:[%s1661 + $0x28] sm:$0xf]
      %v1673 = vld [vmem:[%s1661 + $0x2c] sm:$0xf]
      %v1674 = vld [vmem:[%s1661 + $0x30] sm:$0xf]
      %v1675 = vld [vmem:[%s1661 + $0x34] sm:$0xf]
      %v1676 = vld [vmem:[%s1661 + $0x38] sm:$0xf]
      %v1677 = vld [vmem:[%s1661 + $0x3c] sm:$0xf]
      %v1678 = vcombine.low %v1618, %v1632
      %v1679 = vcombine.low %v1646, %v1660
      %v1681 = vunpack.c.l.s4 1983009808
      %v1682 = vunpack.c.0.s8 %v1681
      %v1683 = vlaneseq
      %v1684 = vshrl.u32 %v1683, 7
      %v1685 = vsub.s32 %v1682, %v1684
      %v1686 = vrot.slane %v1678, %v1685
      %v1688 = vunpack.c.l.s4 1983009808
      %v1689 = vunpack.c.0.s8 %v1688
      %v1690 = vlaneseq
      %v1691 = vshrl.u32 %v1690, 7
      %v1692 = vsub.s32 %v1689, %v1691
      %v1693 = vrot.slane %v1679, %v1692
      %v1694 = vcombine.low %v1686, %v1693
      %v1712 = vunpack.c.l.b16 %v1662
      %v1713 = vunpack.c.l.b16 %v1663
      %v1714 = vunpack.c.l.b16 %v1664
      %v1715 = vunpack.c.l.b16 %v1665
      %v1716 = vunpack.c.l.b16 %v1666
      %v1717 = vunpack.c.l.b16 %v1667
      %v1718 = vunpack.c.l.b16 %v1668
      %v1719 = vunpack.c.l.b16 %v1669
      %v1720 = vunpack.c.l.b16 %v1670
      %v1721 = vunpack.c.l.b16 %v1671
      %v1722 = vunpack.c.l.b16 %v1672
      %v1723 = vunpack.c.l.b16 %v1673
      %v1724 = vunpack.c.l.b16 %v1674
      %v1725 = vunpack.c.l.b16 %v1675
      %v1726 = vunpack.c.l.b16 %v1676
      %v1727 = vunpack.c.l.b16 %v1677
      %v1728 = vpack.c.b16 %v1713, %v1712
      %v1729 = vpack.c.b16 %v1715, %v1714
      %v1730 = vpack.c.b16 %v1717, %v1716
      %v1731 = vpack.c.b16 %v1719, %v1718
      %v1732 = vpack.c.b16 %v1721, %v1720
      %v1733 = vpack.c.b16 %v1723, %v1722
      %v1734 = vpack.c.b16 %v1725, %v1724
      %v1735 = vpack.c.b16 %v1727, %v1726
      %1744 = vmatprep.subr.bf16.mxu0 0
      %1745 = vmatpush1.bf16.msra.mxu0 %v1735
      %1746 = vmatprep.subr.bf16.mxu0 0
      %1747 = vmatpush1.bf16.msra.mxu0 %v1734
      %1748 = vmatprep.subr.bf16.mxu0 0
      %1749 = vmatpush1.bf16.msra.mxu0 %v1733
      %1750 = vmatprep.subr.bf16.mxu0 0
      %1751 = vmatpush1.bf16.msra.mxu0 %v1732
      %1752 = vmatprep.subr.bf16.mxu0 0
      %1753 = vmatpush1.bf16.msra.mxu0 %v1731
      %1754 = vmatprep.subr.bf16.mxu0 0
      %1755 = vmatpush1.bf16.msra.mxu0 %v1730
      %1756 = vmatprep.subr.bf16.mxu0 0
      %1757 = vmatpush1.bf16.msra.mxu0 %v1729
      %1758 = vmatprep.subr.bf16.mxu0 0
      %1759 = vmatpush1.bf16.msra.mxu0 %v1728
      %1760 = vmatprep.subr.bf16.mxu0 0
      %1761 = vmatpush2.bf16.msra.mxu0 0
      %1762 = vmatprep.subr.bf16.mxu0 0
      %1763 = vmatpush2.bf16.msra.mxu0 0
      %1764 = vmatprep.subr.bf16.mxu0 0
      %1765 = vmatpush2.bf16.msra.mxu0 0
      %1766 = vmatprep.subr.bf16.mxu0 0
      %1767 = vmatpush2.bf16.msra.mxu0 0
      %1768 = vmatprep.subr.bf16.mxu0 0
      %1769 = vmatpush2.bf16.msra.mxu0 0
      %1770 = vmatprep.subr.bf16.mxu0 0
      %1771 = vmatpush2.bf16.msra.mxu0 0
      %1772 = vmatprep.subr.bf16.mxu0 0
      %1773 = vmatpush2.bf16.msra.mxu0 0
      %1774 = vmatprep.subr.bf16.mxu0 0
      %1775 = vmatpush2.bf16.msra.mxu0 0
      %1776 = vmatprep.mubr.bf16.mxu0 0
      %1777 = vmatmul.mubr.bf16.gmra.mxu0 %v1694
      %v1778 = vpop.f32.mrf.mxu0
      %v1779 = vadd.f32 0.0, %v1778
      %v1780 = vpop.f32.mrf.mxu0
      %v1781 = vpop.f32.mrf.mxu0
      %v1782 = vadd.f32 0.0, %v1781
      %v1783 = vpop.f32.mrf.mxu0
      %1784 = vdwg.mxu0
      %v1785 = vadd.f32 %v1563, %v1779
      %v1786 = vadd.f32 %v1564, %v1782
      %v1787 = vld [vmem:[%s1430] sm:$0x6]
      %v1788 = vld [vmem:[%s1430 + $0x4] sm:$0x6]
      %v1789 = vld [vmem:[%s1430 + $0x8] sm:$0x6]
      %v1790 = vld [vmem:[%s1430 + $0xc] sm:$0x6]
      %v1796 = vunpack.c.l.s4 1983009808
      %v1797 = vunpack.c.0.s8 %v1796
      %v1798 = vlaneseq
      %v1799 = vshrl.u32 %v1798, 7
      %v1800 = vsub.s32 %v1797, %v1799
      %v1801 = vrot.slane %v1787, %v1800
      %v1802 = vcombine.high %v1801, %v1801
      %v1804 = vunpack.c.l.s4 1983009808
      %v1805 = vunpack.c.0.s8 %v1804
      %v1806 = vlaneseq
      %v1807 = vshrl.u32 %v1806, 7
      %v1808 = vsub.s32 %v1805, %v1807
      %v1809 = vrot.slane %v1788, %v1808
      %v1810 = vcombine.high %v1809, %v1809
      %v1812 = vunpack.c.l.s4 1983009808
      %v1813 = vunpack.c.0.s8 %v1812
      %v1814 = vlaneseq
      %v1815 = vshrl.u32 %v1814, 7
      %v1816 = vsub.s32 %v1813, %v1815
      %v1817 = vrot.slane %v1789, %v1816
      %v1818 = vcombine.high %v1817, %v1817
      %v1820 = vunpack.c.l.s4 1983009808
      %v1821 = vunpack.c.0.s8 %v1820
      %v1822 = vlaneseq
      %v1823 = vshrl.u32 %v1822, 7
      %v1824 = vsub.s32 %v1821, %v1823
      %v1825 = vrot.slane %v1790, %v1824
      %v1826 = vcombine.high %v1825, %v1825
      %v1827 = vrot.slane %v1801, 7
      %v1828 = vrot.slane %v1827, 2
      %v1829 = vrot.slane %v1802, 7
      %v1830 = vsel %vm748, %v1828, %v1829
      %v1831 = vrot.slane %v1809, 7
      %v1832 = vrot.slane %v1831, 2
      %v1833 = vrot.slane %v1810, 7
      %v1834 = vsel %vm748, %v1832, %v1833
      %v1835 = vrot.slane %v1817, 7
      %v1836 = vrot.slane %v1835, 2
      %v1837 = vrot.slane %v1818, 7
      %v1838 = vsel %vm748, %v1836, %v1837
      %v1839 = vrot.slane %v1825, 7
      %v1840 = vrot.slane %v1839, 2
      %v1841 = vrot.slane %v1826, 7
      %v1842 = vsel %vm748, %v1840, %v1841
      %s1843 = scalar_lea.vmem %s3, 512
      %v1844 = vld [vmem:[%s1843] sm:$0xf]
      %v1845 = vld [vmem:[%s1843 + $0x4] sm:$0xf]
      %v1846 = vld [vmem:[%s1843 + $0x8] sm:$0xf]
      %v1847 = vld [vmem:[%s1843 + $0xc] sm:$0xf]
      %v1848 = vld [vmem:[%s1843 + $0x10] sm:$0xf]
      %v1849 = vld [vmem:[%s1843 + $0x14] sm:$0xf]
      %v1850 = vld [vmem:[%s1843 + $0x18] sm:$0xf]
      %v1851 = vld [vmem:[%s1843 + $0x1c] sm:$0xf]
      %v1852 = vld [vmem:[%s1843 + $0x20] sm:$0xf]
      %v1853 = vld [vmem:[%s1843 + $0x24] sm:$0xf]
      %v1854 = vld [vmem:[%s1843 + $0x28] sm:$0xf]
      %v1855 = vld [vmem:[%s1843 + $0x2c] sm:$0xf]
      %v1856 = vld [vmem:[%s1843 + $0x30] sm:$0xf]
      %v1857 = vld [vmem:[%s1843 + $0x34] sm:$0xf]
      %v1858 = vld [vmem:[%s1843 + $0x38] sm:$0xf]
      %v1859 = vld [vmem:[%s1843 + $0x3c] sm:$0xf]
      %v1860 = vcombine.low %v1830, %v1834
      %v1861 = vcombine.low %v1838, %v1842
      %v1863 = vunpack.c.l.s4 1983009808
      %v1864 = vunpack.c.0.s8 %v1863
      %v1865 = vlaneseq
      %v1866 = vshrl.u32 %v1865, 7
      %v1867 = vsub.s32 %v1864, %v1866
      %v1868 = vrot.slane %v1860, %v1867
      %v1870 = vunpack.c.l.s4 1983009808
      %v1871 = vunpack.c.0.s8 %v1870
      %v1872 = vlaneseq
      %v1873 = vshrl.u32 %v1872, 7
      %v1874 = vsub.s32 %v1871, %v1873
      %v1875 = vrot.slane %v1861, %v1874
      %v1876 = vcombine.low %v1868, %v1875
      %v1894 = vunpack.c.l.b16 %v1844
      %v1895 = vunpack.c.l.b16 %v1845
      %v1896 = vunpack.c.l.b16 %v1846
      %v1897 = vunpack.c.l.b16 %v1847
      %v1898 = vunpack.c.l.b16 %v1848
      %v1899 = vunpack.c.l.b16 %v1849
      %v1900 = vunpack.c.l.b16 %v1850
      %v1901 = vunpack.c.l.b16 %v1851
      %v1902 = vunpack.c.l.b16 %v1852
      %v1903 = vunpack.c.l.b16 %v1853
      %v1904 = vunpack.c.l.b16 %v1854
      %v1905 = vunpack.c.l.b16 %v1855
      %v1906 = vunpack.c.l.b16 %v1856
      %v1907 = vunpack.c.l.b16 %v1857
      %v1908 = vunpack.c.l.b16 %v1858
      %v1909 = vunpack.c.l.b16 %v1859
      %v1910 = vpack.c.b16 %v1895, %v1894
      %v1911 = vpack.c.b16 %v1897, %v1896
      %v1912 = vpack.c.b16 %v1899, %v1898
      %v1913 = vpack.c.b16 %v1901, %v1900
      %v1914 = vpack.c.b16 %v1903, %v1902
      %v1915 = vpack.c.b16 %v1905, %v1904
      %v1916 = vpack.c.b16 %v1907, %v1906
      %v1917 = vpack.c.b16 %v1909, %v1908
      %1926 = vmatprep.subr.bf16.mxu0 0
      %1927 = vmatpush1.bf16.msra.mxu0 %v1917
      %1928 = vmatprep.subr.bf16.mxu0 0
      %1929 = vmatpush1.bf16.msra.mxu0 %v1916
      %1930 = vmatprep.subr.bf16.mxu0 0
      %1931 = vmatpush1.bf16.msra.mxu0 %v1915
      %1932 = vmatprep.subr.bf16.mxu0 0
      %1933 = vmatpush1.bf16.msra.mxu0 %v1914
      %1934 = vmatprep.subr.bf16.mxu0 0
      %1935 = vmatpush1.bf16.msra.mxu0 %v1913
      %1936 = vmatprep.subr.bf16.mxu0 0
      %1937 = vmatpush1.bf16.msra.mxu0 %v1912
      %1938 = vmatprep.subr.bf16.mxu0 0
      %1939 = vmatpush1.bf16.msra.mxu0 %v1911
      %1940 = vmatprep.subr.bf16.mxu0 0
      %1941 = vmatpush1.bf16.msra.mxu0 %v1910
      %1942 = vmatprep.subr.bf16.mxu0 0
      %1943 = vmatpush2.bf16.msra.mxu0 0
      %1944 = vmatprep.subr.bf16.mxu0 0
      %1945 = vmatpush2.bf16.msra.mxu0 0
      %1946 = vmatprep.subr.bf16.mxu0 0
      %1947 = vmatpush2.bf16.msra.mxu0 0
      %1948 = vmatprep.subr.bf16.mxu0 0
      %1949 = vmatpush2.bf16.msra.mxu0 0
      %1950 = vmatprep.subr.bf16.mxu0 0
      %1951 = vmatpush2.bf16.msra.mxu0 0
      %1952 = vmatprep.subr.bf16.mxu0 0
      %1953 = vmatpush2.bf16.msra.mxu0 0
      %1954 = vmatprep.subr.bf16.mxu0 0
      %1955 = vmatpush2.bf16.msra.mxu0 0
      %1956 = vmatprep.subr.bf16.mxu0 0
      %1957 = vmatpush2.bf16.msra.mxu0 0
      %1958 = vmatprep.mubr.bf16.mxu0 0
      %1959 = vmatmul.mubr.bf16.gmra.mxu0 %v1876
      %v1960 = vpop.f32.mrf.mxu0
      %v1961 = vadd.f32 0.0, %v1960
      %v1962 = vpop.f32.mrf.mxu0
      %v1963 = vpop.f32.mrf.mxu0
      %v1964 = vadd.f32 0.0, %v1963
      %v1965 = vpop.f32.mrf.mxu0
      %1966 = vdwg.mxu0
      %v1967 = vadd.f32 %v1785, %v1961
      %v1968 = vadd.f32 %v1786, %v1964
      %v1969 = vld [vmem:[%s321] sm:$0x3]
      %v1970 = vld [vmem:[%s321 + $0x4] sm:$0x3]
      %v1971 = vld [vmem:[%s321 + $0x8] sm:$0x3]
      %v1972 = vld [vmem:[%s321 + $0xc] sm:$0x3]
      %s1973 = scalar_lea.vmem %s3, 576
      %v1974 = vld [vmem:[%s1973] sm:$0xf]
      %v1975 = vld [vmem:[%s1973 + $0x4] sm:$0xf]
      %v1976 = vld [vmem:[%s1973 + $0x8] sm:$0xf]
      %v1977 = vld [vmem:[%s1973 + $0xc] sm:$0xf]
      %v1978 = vld [vmem:[%s1973 + $0x10] sm:$0xf]
      %v1979 = vld [vmem:[%s1973 + $0x14] sm:$0xf]
      %v1980 = vld [vmem:[%s1973 + $0x18] sm:$0xf]
      %v1981 = vld [vmem:[%s1973 + $0x1c] sm:$0xf]
      %v1982 = vld [vmem:[%s1973 + $0x20] sm:$0xf]
      %v1983 = vld [vmem:[%s1973 + $0x24] sm:$0xf]
      %v1984 = vld [vmem:[%s1973 + $0x28] sm:$0xf]
      %v1985 = vld [vmem:[%s1973 + $0x2c] sm:$0xf]
      %v1986 = vld [vmem:[%s1973 + $0x30] sm:$0xf]
      %v1987 = vld [vmem:[%s1973 + $0x34] sm:$0xf]
      %v1988 = vld [vmem:[%s1973 + $0x38] sm:$0xf]
      %v1989 = vld [vmem:[%s1973 + $0x3c] sm:$0xf]
      %v1994 = vcombine.low %v1969, %v1970
      %v1995 = vcombine.low %v1971, %v1972
      %v1997 = vunpack.c.l.s4 1983009808
      %v1998 = vunpack.c.0.s8 %v1997
      %v1999 = vlaneseq
      %v2000 = vshrl.u32 %v1999, 7
      %v2001 = vsub.s32 %v1998, %v2000
      %v2002 = vrot.slane %v1994, %v2001
      %v2004 = vunpack.c.l.s4 1983009808
      %v2005 = vunpack.c.0.s8 %v2004
      %v2006 = vlaneseq
      %v2007 = vshrl.u32 %v2006, 7
      %v2008 = vsub.s32 %v2005, %v2007
      %v2009 = vrot.slane %v1995, %v2008
      %v2010 = vcombine.low %v2002, %v2009
      %v2028 = vunpack.c.l.b16 %v1974
      %v2029 = vunpack.c.l.b16 %v1975
      %v2030 = vunpack.c.l.b16 %v1976
      %v2031 = vunpack.c.l.b16 %v1977
      %v2032 = vunpack.c.l.b16 %v1978
      %v2033 = vunpack.c.l.b16 %v1979
      %v2034 = vunpack.c.l.b16 %v1980
      %v2035 = vunpack.c.l.b16 %v1981
      %v2036 = vunpack.c.l.b16 %v1982
      %v2037 = vunpack.c.l.b16 %v1983
      %v2038 = vunpack.c.l.b16 %v1984
      %v2039 = vunpack.c.l.b16 %v1985
      %v2040 = vunpack.c.l.b16 %v1986
      %v2041 = vunpack.c.l.b16 %v1987
      %v2042 = vunpack.c.l.b16 %v1988
      %v2043 = vunpack.c.l.b16 %v1989
      %v2044 = vpack.c.b16 %v2029, %v2028
      %v2045 = vpack.c.b16 %v2031, %v2030
      %v2046 = vpack.c.b16 %v2033, %v2032
      %v2047 = vpack.c.b16 %v2035, %v2034
      %v2048 = vpack.c.b16 %v2037, %v2036
      %v2049 = vpack.c.b16 %v2039, %v2038
      %v2050 = vpack.c.b16 %v2041, %v2040
      %v2051 = vpack.c.b16 %v2043, %v2042
      %2060 = vmatprep.subr.bf16.mxu0 0
      %2061 = vmatpush1.bf16.msra.mxu0 %v2051
      %2062 = vmatprep.subr.bf16.mxu0 0
      %2063 = vmatpush1.bf16.msra.mxu0 %v2050
      %2064 = vmatprep.subr.bf16.mxu0 0
      %2065 = vmatpush1.bf16.msra.mxu0 %v2049
      %2066 = vmatprep.subr.bf16.mxu0 0
      %2067 = vmatpush1.bf16.msra.mxu0 %v2048
      %2068 = vmatprep.subr.bf16.mxu0 0
      %2069 = vmatpush1.bf16.msra.mxu0 %v2047
      %2070 = vmatprep.subr.bf16.mxu0 0
      %2071 = vmatpush1.bf16.msra.mxu0 %v2046
      %2072 = vmatprep.subr.bf16.mxu0 0
      %2073 = vmatpush1.bf16.msra.mxu0 %v2045
      %2074 = vmatprep.subr.bf16.mxu0 0
      %2075 = vmatpush1.bf16.msra.mxu0 %v2044
      %2076 = vmatprep.subr.bf16.mxu0 0
      %2077 = vmatpush2.bf16.msra.mxu0 0
      %2078 = vmatprep.subr.bf16.mxu0 0
      %2079 = vmatpush2.bf16.msra.mxu0 0
      %2080 = vmatprep.subr.bf16.mxu0 0
      %2081 = vmatpush2.bf16.msra.mxu0 0
      %2082 = vmatprep.subr.bf16.mxu0 0
      %2083 = vmatpush2.bf16.msra.mxu0 0
      %2084 = vmatprep.subr.bf16.mxu0 0
      %2085 = vmatpush2.bf16.msra.mxu0 0
      %2086 = vmatprep.subr.bf16.mxu0 0
      %2087 = vmatpush2.bf16.msra.mxu0 0
      %2088 = vmatprep.subr.bf16.mxu0 0
      %2089 = vmatpush2.bf16.msra.mxu0 0
      %2090 = vmatprep.subr.bf16.mxu0 0
      %2091 = vmatpush2.bf16.msra.mxu0 0
      %2092 = vmatprep.mubr.bf16.mxu0 0
      %2093 = vmatmul.mubr.bf16.gmra.mxu0 %v2010
      %v2094 = vpop.f32.mrf.mxu0
      %v2095 = vadd.f32 0.0, %v2094
      %v2096 = vpop.f32.mrf.mxu0
      %v2097 = vpop.f32.mrf.mxu0
      %v2098 = vadd.f32 0.0, %v2097
      %v2099 = vpop.f32.mrf.mxu0
      %2100 = vdwg.mxu0
      %v2101 = vadd.f32 %v1967, %v2095
      %v2102 = vadd.f32 %v1968, %v2098
      %v2103 = vld [vmem:[%s321] sm:$0x7]
      %v2104 = vld [vmem:[%s321 + $0x4] sm:$0x7]
      %v2105 = vld [vmem:[%s321 + $0x8] sm:$0x7]
      %v2106 = vld [vmem:[%s321 + $0xc] sm:$0x7]
      %v2112 = vunpack.c.l.s4 1983009808
      %v2113 = vunpack.c.0.s8 %v2112
      %v2114 = vlaneseq
      %v2115 = vshrl.u32 %v2114, 7
      %v2116 = vsub.s32 %v2113, %v2115
      %v2117 = vrot.slane %v2103, %v2116
      %v2118 = vcombine.high %v2117, %v2117
      %v2120 = vunpack.c.l.s4 1983009808
      %v2121 = vunpack.c.0.s8 %v2120
      %v2122 = vlaneseq
      %v2123 = vshrl.u32 %v2122, 7
      %v2124 = vsub.s32 %v2121, %v2123
      %v2125 = vrot.slane %v2104, %v2124
      %v2126 = vcombine.high %v2125, %v2125
      %v2128 = vunpack.c.l.s4 1983009808
      %v2129 = vunpack.c.0.s8 %v2128
      %v2130 = vlaneseq
      %v2131 = vshrl.u32 %v2130, 7
      %v2132 = vsub.s32 %v2129, %v2131
      %v2133 = vrot.slane %v2105, %v2132
      %v2134 = vcombine.high %v2133, %v2133
      %v2136 = vunpack.c.l.s4 1983009808
      %v2137 = vunpack.c.0.s8 %v2136
      %v2138 = vlaneseq
      %v2139 = vshrl.u32 %v2138, 7
      %v2140 = vsub.s32 %v2137, %v2139
      %v2141 = vrot.slane %v2106, %v2140
      %v2142 = vcombine.high %v2141, %v2141
      %v2144 = vshrl.u32 %v2117, 16
      %v2146 = vrot.slane %v2144, 6
      %v2147 = vshll.u32 %v2117, 16
      %v2149 = vrot.slane %v2147, 7
      %v2150 = vor.u32 %v2146, %v2149
      %v2151 = vrot.slane %v2150, 2
      %v2153 = vshll.u32 %v2118, 16
      %v2155 = vrot.slane %v2153, 7
      %v2156 = vsel %vm410, %v2151, %v2155
      %v2158 = vshrl.u32 %v2125, 16
      %v2160 = vrot.slane %v2158, 6
      %v2161 = vshll.u32 %v2125, 16
      %v2163 = vrot.slane %v2161, 7
      %v2164 = vor.u32 %v2160, %v2163
      %v2165 = vrot.slane %v2164, 2
      %v2167 = vshll.u32 %v2126, 16
      %v2169 = vrot.slane %v2167, 7
      %v2170 = vsel %vm410, %v2165, %v2169
      %v2172 = vshrl.u32 %v2133, 16
      %v2174 = vrot.slane %v2172, 6
      %v2175 = vshll.u32 %v2133, 16
      %v2177 = vrot.slane %v2175, 7
      %v2178 = vor.u32 %v2174, %v2177
      %v2179 = vrot.slane %v2178, 2
      %v2181 = vshll.u32 %v2134, 16
      %v2183 = vrot.slane %v2181, 7
      %v2184 = vsel %vm410, %v2179, %v2183
      %v2186 = vshrl.u32 %v2141, 16
      %v2188 = vrot.slane %v2186, 6
      %v2189 = vshll.u32 %v2141, 16
      %v2191 = vrot.slane %v2189, 7
      %v2192 = vor.u32 %v2188, %v2191
      %v2193 = vrot.slane %v2192, 2
      %v2195 = vshll.u32 %v2142, 16
      %v2197 = vrot.slane %v2195, 7
      %v2198 = vsel %vm410, %v2193, %v2197
      %s2199 = scalar_lea.vmem %s3, 640
      %v2200 = vld [vmem:[%s2199] sm:$0xf]
      %v2201 = vld [vmem:[%s2199 + $0x4] sm:$0xf]
      %v2202 = vld [vmem:[%s2199 + $0x8] sm:$0xf]
      %v2203 = vld [vmem:[%s2199 + $0xc] sm:$0xf]
      %v2204 = vld [vmem:[%s2199 + $0x10] sm:$0xf]
      %v2205 = vld [vmem:[%s2199 + $0x14] sm:$0xf]
      %v2206 = vld [vmem:[%s2199 + $0x18] sm:$0xf]
      %v2207 = vld [vmem:[%s2199 + $0x1c] sm:$0xf]
      %v2208 = vld [vmem:[%s2199 + $0x20] sm:$0xf]
      %v2209 = vld [vmem:[%s2199 + $0x24] sm:$0xf]
      %v2210 = vld [vmem:[%s2199 + $0x28] sm:$0xf]
      %v2211 = vld [vmem:[%s2199 + $0x2c] sm:$0xf]
      %v2212 = vld [vmem:[%s2199 + $0x30] sm:$0xf]
      %v2213 = vld [vmem:[%s2199 + $0x34] sm:$0xf]
      %v2214 = vld [vmem:[%s2199 + $0x38] sm:$0xf]
      %v2215 = vld [vmem:[%s2199 + $0x3c] sm:$0xf]
      %v2216 = vcombine.low %v2156, %v2170
      %v2217 = vcombine.low %v2184, %v2198
      %v2219 = vunpack.c.l.s4 1983009808
      %v2220 = vunpack.c.0.s8 %v2219
      %v2221 = vlaneseq
      %v2222 = vshrl.u32 %v2221, 7
      %v2223 = vsub.s32 %v2220, %v2222
      %v2224 = vrot.slane %v2216, %v2223
      %v2226 = vunpack.c.l.s4 1983009808
      %v2227 = vunpack.c.0.s8 %v2226
      %v2228 = vlaneseq
      %v2229 = vshrl.u32 %v2228, 7
      %v2230 = vsub.s32 %v2227, %v2229
      %v2231 = vrot.slane %v2217, %v2230
      %v2232 = vcombine.low %v2224, %v2231
      %v2250 = vunpack.c.l.b16 %v2200
      %v2251 = vunpack.c.l.b16 %v2201
      %v2252 = vunpack.c.l.b16 %v2202
      %v2253 = vunpack.c.l.b16 %v2203
      %v2254 = vunpack.c.l.b16 %v2204
      %v2255 = vunpack.c.l.b16 %v2205
      %v2256 = vunpack.c.l.b16 %v2206
      %v2257 = vunpack.c.l.b16 %v2207
      %v2258 = vunpack.c.l.b16 %v2208
      %v2259 = vunpack.c.l.b16 %v2209
      %v2260 = vunpack.c.l.b16 %v2210
      %v2261 = vunpack.c.l.b16 %v2211
      %v2262 = vunpack.c.l.b16 %v2212
      %v2263 = vunpack.c.l.b16 %v2213
      %v2264 = vunpack.c.l.b16 %v2214
      %v2265 = vunpack.c.l.b16 %v2215
      %v2266 = vpack.c.b16 %v2251, %v2250
      %v2267 = vpack.c.b16 %v2253, %v2252
      %v2268 = vpack.c.b16 %v2255, %v2254
      %v2269 = vpack.c.b16 %v2257, %v2256
      %v2270 = vpack.c.b16 %v2259, %v2258
      %v2271 = vpack.c.b16 %v2261, %v2260
      %v2272 = vpack.c.b16 %v2263, %v2262
      %v2273 = vpack.c.b16 %v2265, %v2264
      %2282 = vmatprep.subr.bf16.mxu0 0
      %2283 = vmatpush1.bf16.msra.mxu0 %v2273
      %2284 = vmatprep.subr.bf16.mxu0 0
      %2285 = vmatpush1.bf16.msra.mxu0 %v2272
      %2286 = vmatprep.subr.bf16.mxu0 0
      %2287 = vmatpush1.bf16.msra.mxu0 %v2271
      %2288 = vmatprep.subr.bf16.mxu0 0
      %2289 = vmatpush1.bf16.msra.mxu0 %v2270
      %2290 = vmatprep.subr.bf16.mxu0 0
      %2291 = vmatpush1.bf16.msra.mxu0 %v2269
      %2292 = vmatprep.subr.bf16.mxu0 0
      %2293 = vmatpush1.bf16.msra.mxu0 %v2268
      %2294 = vmatprep.subr.bf16.mxu0 0
      %2295 = vmatpush1.bf16.msra.mxu0 %v2267
      %2296 = vmatprep.subr.bf16.mxu0 0
      %2297 = vmatpush1.bf16.msra.mxu0 %v2266
      %2298 = vmatprep.subr.bf16.mxu0 0
      %2299 = vmatpush2.bf16.msra.mxu0 0
      %2300 = vmatprep.subr.bf16.mxu0 0
      %2301 = vmatpush2.bf16.msra.mxu0 0
      %2302 = vmatprep.subr.bf16.mxu0 0
      %2303 = vmatpush2.bf16.msra.mxu0 0
      %2304 = vmatprep.subr.bf16.mxu0 0
      %2305 = vmatpush2.bf16.msra.mxu0 0
      %2306 = vmatprep.subr.bf16.mxu0 0
      %2307 = vmatpush2.bf16.msra.mxu0 0
      %2308 = vmatprep.subr.bf16.mxu0 0
      %2309 = vmatpush2.bf16.msra.mxu0 0
      %2310 = vmatprep.subr.bf16.mxu0 0
      %2311 = vmatpush2.bf16.msra.mxu0 0
      %2312 = vmatprep.subr.bf16.mxu0 0
      %2313 = vmatpush2.bf16.msra.mxu0 0
      %2314 = vmatprep.mubr.bf16.mxu0 0
      %2315 = vmatmul.mubr.bf16.gmra.mxu0 %v2232
      %v2316 = vpop.f32.mrf.mxu0
      %v2317 = vadd.f32 0.0, %v2316
      %v2318 = vpop.f32.mrf.mxu0
      %v2319 = vpop.f32.mrf.mxu0
      %v2320 = vadd.f32 0.0, %v2319
      %v2321 = vpop.f32.mrf.mxu0
      %2322 = vdwg.mxu0
      %v2323 = vadd.f32 %v2101, %v2317
      %v2324 = vadd.f32 %v2102, %v2320
      %v2325 = vld [vmem:[%s321] sm:$0x6]
      %v2326 = vld [vmem:[%s321 + $0x4] sm:$0x6]
      %v2327 = vld [vmem:[%s321 + $0x8] sm:$0x6]
      %v2328 = vld [vmem:[%s321 + $0xc] sm:$0x6]
      %v2334 = vunpack.c.l.s4 1983009808
      %v2335 = vunpack.c.0.s8 %v2334
      %v2336 = vlaneseq
      %v2337 = vshrl.u32 %v2336, 7
      %v2338 = vsub.s32 %v2335, %v2337
      %v2339 = vrot.slane %v2325, %v2338
      %v2340 = vcombine.high %v2339, %v2339
      %v2342 = vunpack.c.l.s4 1983009808
      %v2343 = vunpack.c.0.s8 %v2342
      %v2344 = vlaneseq
      %v2345 = vshrl.u32 %v2344, 7
      %v2346 = vsub.s32 %v2343, %v2345
      %v2347 = vrot.slane %v2326, %v2346
      %v2348 = vcombine.high %v2347, %v2347
      %v2350 = vunpack.c.l.s4 1983009808
      %v2351 = vunpack.c.0.s8 %v2350
      %v2352 = vlaneseq
      %v2353 = vshrl.u32 %v2352, 7
      %v2354 = vsub.s32 %v2351, %v2353
      %v2355 = vrot.slane %v2327, %v2354
      %v2356 = vcombine.high %v2355, %v2355
      %v2358 = vunpack.c.l.s4 1983009808
      %v2359 = vunpack.c.0.s8 %v2358
      %v2360 = vlaneseq
      %v2361 = vshrl.u32 %v2360, 7
      %v2362 = vsub.s32 %v2359, %v2361
      %v2363 = vrot.slane %v2328, %v2362
      %v2364 = vcombine.high %v2363, %v2363
      %v2365 = vrot.slane %v2339, 7
      %v2366 = vrot.slane %v2365, 2
      %v2367 = vrot.slane %v2340, 7
      %v2368 = vsel %vm748, %v2366, %v2367
      %v2369 = vrot.slane %v2347, 7
      %v2370 = vrot.slane %v2369, 2
      %v2371 = vrot.slane %v2348, 7
      %v2372 = vsel %vm748, %v2370, %v2371
      %v2373 = vrot.slane %v2355, 7
      %v2374 = vrot.slane %v2373, 2
      %v2375 = vrot.slane %v2356, 7
      %v2376 = vsel %vm748, %v2374, %v2375
      %v2377 = vrot.slane %v2363, 7
      %v2378 = vrot.slane %v2377, 2
      %v2379 = vrot.slane %v2364, 7
      %v2380 = vsel %vm748, %v2378, %v2379
      %s2381 = scalar_lea.vmem %s3, 704
      %v2382 = vld [vmem:[%s2381] sm:$0xf]
      %v2383 = vld [vmem:[%s2381 + $0x4] sm:$0xf]
      %v2384 = vld [vmem:[%s2381 + $0x8] sm:$0xf]
      %v2385 = vld [vmem:[%s2381 + $0xc] sm:$0xf]
      %v2386 = vld [vmem:[%s2381 + $0x10] sm:$0xf]
      %v2387 = vld [vmem:[%s2381 + $0x14] sm:$0xf]
      %v2388 = vld [vmem:[%s2381 + $0x18] sm:$0xf]
      %v2389 = vld [vmem:[%s2381 + $0x1c] sm:$0xf]
      %v2390 = vld [vmem:[%s2381 + $0x20] sm:$0xf]
      %v2391 = vld [vmem:[%s2381 + $0x24] sm:$0xf]
      %v2392 = vld [vmem:[%s2381 + $0x28] sm:$0xf]
      %v2393 = vld [vmem:[%s2381 + $0x2c] sm:$0xf]
      %v2394 = vld [vmem:[%s2381 + $0x30] sm:$0xf]
      %v2395 = vld [vmem:[%s2381 + $0x34] sm:$0xf]
      %v2396 = vld [vmem:[%s2381 + $0x38] sm:$0xf]
      %v2397 = vld [vmem:[%s2381 + $0x3c] sm:$0xf]
      %v2398 = vcombine.low %v2368, %v2372
      %v2399 = vcombine.low %v2376, %v2380
      %v2401 = vunpack.c.l.s4 1983009808
      %v2402 = vunpack.c.0.s8 %v2401
      %v2403 = vlaneseq
      %v2404 = vshrl.u32 %v2403, 7
      %v2405 = vsub.s32 %v2402, %v2404
      %v2406 = vrot.slane %v2398, %v2405
      %v2408 = vunpack.c.l.s4 1983009808
      %v2409 = vunpack.c.0.s8 %v2408
      %v2410 = vlaneseq
      %v2411 = vshrl.u32 %v2410, 7
      %v2412 = vsub.s32 %v2409, %v2411
      %v2413 = vrot.slane %v2399, %v2412
      %v2414 = vcombine.low %v2406, %v2413
      %v2432 = vunpack.c.l.b16 %v2382
      %v2433 = vunpack.c.l.b16 %v2383
      %v2434 = vunpack.c.l.b16 %v2384
      %v2435 = vunpack.c.l.b16 %v2385
      %v2436 = vunpack.c.l.b16 %v2386
      %v2437 = vunpack.c.l.b16 %v2387
      %v2438 = vunpack.c.l.b16 %v2388
      %v2439 = vunpack.c.l.b16 %v2389
      %v2440 = vunpack.c.l.b16 %v2390
      %v2441 = vunpack.c.l.b16 %v2391
      %v2442 = vunpack.c.l.b16 %v2392
      %v2443 = vunpack.c.l.b16 %v2393
      %v2444 = vunpack.c.l.b16 %v2394
      %v2445 = vunpack.c.l.b16 %v2395
      %v2446 = vunpack.c.l.b16 %v2396
      %v2447 = vunpack.c.l.b16 %v2397
      %v2448 = vpack.c.b16 %v2433, %v2432
      %v2449 = vpack.c.b16 %v2435, %v2434
      %v2450 = vpack.c.b16 %v2437, %v2436
      %v2451 = vpack.c.b16 %v2439, %v2438
      %v2452 = vpack.c.b16 %v2441, %v2440
      %v2453 = vpack.c.b16 %v2443, %v2442
      %v2454 = vpack.c.b16 %v2445, %v2444
      %v2455 = vpack.c.b16 %v2447, %v2446
      %2464 = vmatprep.subr.bf16.mxu0 0
      %2465 = vmatpush1.bf16.msra.mxu0 %v2455
      %2466 = vmatprep.subr.bf16.mxu0 0
      %2467 = vmatpush1.bf16.msra.mxu0 %v2454
      %2468 = vmatprep.subr.bf16.mxu0 0
      %2469 = vmatpush1.bf16.msra.mxu0 %v2453
      %2470 = vmatprep.subr.bf16.mxu0 0
      %2471 = vmatpush1.bf16.msra.mxu0 %v2452
      %2472 = vmatprep.subr.bf16.mxu0 0
      %2473 = vmatpush1.bf16.msra.mxu0 %v2451
      %2474 = vmatprep.subr.bf16.mxu0 0
      %2475 = vmatpush1.bf16.msra.mxu0 %v2450
      %2476 = vmatprep.subr.bf16.mxu0 0
      %2477 = vmatpush1.bf16.msra.mxu0 %v2449
      %2478 = vmatprep.subr.bf16.mxu0 0
      %2479 = vmatpush1.bf16.msra.mxu0 %v2448
      %2480 = vmatprep.subr.bf16.mxu0 0
      %2481 = vmatpush2.bf16.msra.mxu0 0
      %2482 = vmatprep.subr.bf16.mxu0 0
      %2483 = vmatpush2.bf16.msra.mxu0 0
      %2484 = vmatprep.subr.bf16.mxu0 0
      %2485 = vmatpush2.bf16.msra.mxu0 0
      %2486 = vmatprep.subr.bf16.mxu0 0
      %2487 = vmatpush2.bf16.msra.mxu0 0
      %2488 = vmatprep.subr.bf16.mxu0 0
      %2489 = vmatpush2.bf16.msra.mxu0 0
      %2490 = vmatprep.subr.bf16.mxu0 0
      %2491 = vmatpush2.bf16.msra.mxu0 0
      %2492 = vmatprep.subr.bf16.mxu0 0
      %2493 = vmatpush2.bf16.msra.mxu0 0
      %2494 = vmatprep.subr.bf16.mxu0 0
      %2495 = vmatpush2.bf16.msra.mxu0 0
      %2496 = vmatprep.mubr.bf16.mxu0 0
      %2497 = vmatmul.mubr.bf16.gmra.mxu0 %v2414
      %v2498 = vpop.f32.mrf.mxu0
      %v2499 = vadd.f32 0.0, %v2498
      %v2500 = vpop.f32.mrf.mxu0
      %v2501 = vpop.f32.mrf.mxu0
      %v2502 = vadd.f32 0.0, %v2501
      %v2503 = vpop.f32.mrf.mxu0
      %2504 = vdwg.mxu0
      %v2505 = vadd.f32 %v2323, %v2499
      %v2506 = vadd.f32 %v2324, %v2502
      %s2507 = scalar_lea.vmem %s321, 4
      %v2508 = vld [vmem:[%s2507] sm:$0x3]
      %v2509 = vld [vmem:[%s2507 + $0x4] sm:$0x3]
      %v2510 = vld [vmem:[%s2507 + $0x8] sm:$0x3]
      %v2511 = vld [vmem:[%s2507 + $0xc] sm:$0x3]
      %s2512 = scalar_lea.vmem %s3, 768
      %v2513 = vld [vmem:[%s2512] sm:$0xf]
      %v2514 = vld [vmem:[%s2512 + $0x4] sm:$0xf]
      %v2515 = vld [vmem:[%s2512 + $0x8] sm:$0xf]
      %v2516 = vld [vmem:[%s2512 + $0xc] sm:$0xf]
      %v2517 = vld [vmem:[%s2512 + $0x10] sm:$0xf]
      %v2518 = vld [vmem:[%s2512 + $0x14] sm:$0xf]
      %v2519 = vld [vmem:[%s2512 + $0x18] sm:$0xf]
      %v2520 = vld [vmem:[%s2512 + $0x1c] sm:$0xf]
      %v2521 = vld [vmem:[%s2512 + $0x20] sm:$0xf]
      %v2522 = vld [vmem:[%s2512 + $0x24] sm:$0xf]
      %v2523 = vld [vmem:[%s2512 + $0x28] sm:$0xf]
      %v2524 = vld [vmem:[%s2512 + $0x2c] sm:$0xf]
      %v2525 = vld [vmem:[%s2512 + $0x30] sm:$0xf]
      %v2526 = vld [vmem:[%s2512 + $0x34] sm:$0xf]
      %v2527 = vld [vmem:[%s2512 + $0x38] sm:$0xf]
      %v2528 = vld [vmem:[%s2512 + $0x3c] sm:$0xf]
      %v2533 = vcombine.low %v2508, %v2509
      %v2534 = vcombine.low %v2510, %v2511
      %v2536 = vunpack.c.l.s4 1983009808
      %v2537 = vunpack.c.0.s8 %v2536
      %v2538 = vlaneseq
      %v2539 = vshrl.u32 %v2538, 7
      %v2540 = vsub.s32 %v2537, %v2539
      %v2541 = vrot.slane %v2533, %v2540
      %v2543 = vunpack.c.l.s4 1983009808
      %v2544 = vunpack.c.0.s8 %v2543
      %v2545 = vlaneseq
      %v2546 = vshrl.u32 %v2545, 7
      %v2547 = vsub.s32 %v2544, %v2546
      %v2548 = vrot.slane %v2534, %v2547
      %v2549 = vcombine.low %v2541, %v2548
      %v2567 = vunpack.c.l.b16 %v2513
      %v2568 = vunpack.c.l.b16 %v2514
      %v2569 = vunpack.c.l.b16 %v2515
      %v2570 = vunpack.c.l.b16 %v2516
      %v2571 = vunpack.c.l.b16 %v2517
      %v2572 = vunpack.c.l.b16 %v2518
      %v2573 = vunpack.c.l.b16 %v2519
      %v2574 = vunpack.c.l.b16 %v2520
      %v2575 = vunpack.c.l.b16 %v2521
      %v2576 = vunpack.c.l.b16 %v2522
      %v2577 = vunpack.c.l.b16 %v2523
      %v2578 = vunpack.c.l.b16 %v2524
      %v2579 = vunpack.c.l.b16 %v2525
      %v2580 = vunpack.c.l.b16 %v2526
      %v2581 = vunpack.c.l.b16 %v2527
      %v2582 = vunpack.c.l.b16 %v2528
      %v2583 = vpack.c.b16 %v2568, %v2567
      %v2584 = vpack.c.b16 %v2570, %v2569
      %v2585 = vpack.c.b16 %v2572, %v2571
      %v2586 = vpack.c.b16 %v2574, %v2573
      %v2587 = vpack.c.b16 %v2576, %v2575
      %v2588 = vpack.c.b16 %v2578, %v2577
      %v2589 = vpack.c.b16 %v2580, %v2579
      %v2590 = vpack.c.b16 %v2582, %v2581
      %2599 = vmatprep.subr.bf16.mxu0 0
      %2600 = vmatpush1.bf16.msra.mxu0 %v2590
      %2601 = vmatprep.subr.bf16.mxu0 0
      %2602 = vmatpush1.bf16.msra.mxu0 %v2589
      %2603 = vmatprep.subr.bf16.mxu0 0
      %2604 = vmatpush1.bf16.msra.mxu0 %v2588
      %2605 = vmatprep.subr.bf16.mxu0 0
      %2606 = vmatpush1.bf16.msra.mxu0 %v2587
      %2607 = vmatprep.subr.bf16.mxu0 0
      %2608 = vmatpush1.bf16.msra.mxu0 %v2586
      %2609 = vmatprep.subr.bf16.mxu0 0
      %2610 = vmatpush1.bf16.msra.mxu0 %v2585
      %2611 = vmatprep.subr.bf16.mxu0 0
      %2612 = vmatpush1.bf16.msra.mxu0 %v2584
      %2613 = vmatprep.subr.bf16.mxu0 0
      %2614 = vmatpush1.bf16.msra.mxu0 %v2583
      %2615 = vmatprep.subr.bf16.mxu0 0
      %2616 = vmatpush2.bf16.msra.mxu0 0
      %2617 = vmatprep.subr.bf16.mxu0 0
      %2618 = vmatpush2.bf16.msra.mxu0 0
      %2619 = vmatprep.subr.bf16.mxu0 0
      %2620 = vmatpush2.bf16.msra.mxu0 0
      %2621 = vmatprep.subr.bf16.mxu0 0
      %2622 = vmatpush2.bf16.msra.mxu0 0
      %2623 = vmatprep.subr.bf16.mxu0 0
      %2624 = vmatpush2.bf16.msra.mxu0 0
      %2625 = vmatprep.subr.bf16.mxu0 0
      %2626 = vmatpush2.bf16.msra.mxu0 0
      %2627 = vmatprep.subr.bf16.mxu0 0
      %2628 = vmatpush2.bf16.msra.mxu0 0
      %2629 = vmatprep.subr.bf16.mxu0 0
      %2630 = vmatpush2.bf16.msra.mxu0 0
      %2631 = vmatprep.mubr.bf16.mxu0 0
      %2632 = vmatmul.mubr.bf16.gmra.mxu0 %v2549
      %v2633 = vpop.f32.mrf.mxu0
      %v2634 = vadd.f32 0.0, %v2633
      %v2635 = vpop.f32.mrf.mxu0
      %v2636 = vpop.f32.mrf.mxu0
      %v2637 = vadd.f32 0.0, %v2636
      %v2638 = vpop.f32.mrf.mxu0
      %2639 = vdwg.mxu0
      %v2640 = vadd.f32 %v2505, %v2634
      %v2641 = vadd.f32 %v2506, %v2637
      %v2642 = vld [vmem:[%s2507] sm:$0x7]
      %v2643 = vld [vmem:[%s2507 + $0x4] sm:$0x7]
      %v2644 = vld [vmem:[%s2507 + $0x8] sm:$0x7]
      %v2645 = vld [vmem:[%s2507 + $0xc] sm:$0x7]
      %v2651 = vunpack.c.l.s4 1983009808
      %v2652 = vunpack.c.0.s8 %v2651
      %v2653 = vlaneseq
      %v2654 = vshrl.u32 %v2653, 7
      %v2655 = vsub.s32 %v2652, %v2654
      %v2656 = vrot.slane %v2642, %v2655
      %v2657 = vcombine.high %v2656, %v2656
      %v2659 = vunpack.c.l.s4 1983009808
      %v2660 = vunpack.c.0.s8 %v2659
      %v2661 = vlaneseq
      %v2662 = vshrl.u32 %v2661, 7
      %v2663 = vsub.s32 %v2660, %v2662
      %v2664 = vrot.slane %v2643, %v2663
      %v2665 = vcombine.high %v2664, %v2664
      %v2667 = vunpack.c.l.s4 1983009808
      %v2668 = vunpack.c.0.s8 %v2667
      %v2669 = vlaneseq
      %v2670 = vshrl.u32 %v2669, 7
      %v2671 = vsub.s32 %v2668, %v2670
      %v2672 = vrot.slane %v2644, %v2671
      %v2673 = vcombine.high %v2672, %v2672
      %v2675 = vunpack.c.l.s4 1983009808
      %v2676 = vunpack.c.0.s8 %v2675
      %v2677 = vlaneseq
      %v2678 = vshrl.u32 %v2677, 7
      %v2679 = vsub.s32 %v2676, %v2678
      %v2680 = vrot.slane %v2645, %v2679
      %v2681 = vcombine.high %v2680, %v2680
      %v2683 = vshrl.u32 %v2656, 16
      %v2685 = vrot.slane %v2683, 6
      %v2686 = vshll.u32 %v2656, 16
      %v2688 = vrot.slane %v2686, 7
      %v2689 = vor.u32 %v2685, %v2688
      %v2690 = vrot.slane %v2689, 2
      %v2692 = vshll.u32 %v2657, 16
      %v2694 = vrot.slane %v2692, 7
      %v2695 = vsel %vm410, %v2690, %v2694
      %v2697 = vshrl.u32 %v2664, 16
      %v2699 = vrot.slane %v2697, 6
      %v2700 = vshll.u32 %v2664, 16
      %v2702 = vrot.slane %v2700, 7
      %v2703 = vor.u32 %v2699, %v2702
      %v2704 = vrot.slane %v2703, 2
      %v2706 = vshll.u32 %v2665, 16
      %v2708 = vrot.slane %v2706, 7
      %v2709 = vsel %vm410, %v2704, %v2708
      %v2711 = vshrl.u32 %v2672, 16
      %v2713 = vrot.slane %v2711, 6
      %v2714 = vshll.u32 %v2672, 16
      %v2716 = vrot.slane %v2714, 7
      %v2717 = vor.u32 %v2713, %v2716
      %v2718 = vrot.slane %v2717, 2
      %v2720 = vshll.u32 %v2673, 16
      %v2722 = vrot.slane %v2720, 7
      %v2723 = vsel %vm410, %v2718, %v2722
      %v2725 = vshrl.u32 %v2680, 16
      %v2727 = vrot.slane %v2725, 6
      %v2728 = vshll.u32 %v2680, 16
      %v2730 = vrot.slane %v2728, 7
      %v2731 = vor.u32 %v2727, %v2730
      %v2732 = vrot.slane %v2731, 2
      %v2734 = vshll.u32 %v2681, 16
      %v2736 = vrot.slane %v2734, 7
      %v2737 = vsel %vm410, %v2732, %v2736
      %s2738 = scalar_lea.vmem %s3, 832
      %v2739 = vld [vmem:[%s2738] sm:$0xf]
      %v2740 = vld [vmem:[%s2738 + $0x4] sm:$0xf]
      %v2741 = vld [vmem:[%s2738 + $0x8] sm:$0xf]
      %v2742 = vld [vmem:[%s2738 + $0xc] sm:$0xf]
      %v2743 = vld [vmem:[%s2738 + $0x10] sm:$0xf]
      %v2744 = vld [vmem:[%s2738 + $0x14] sm:$0xf]
      %v2745 = vld [vmem:[%s2738 + $0x18] sm:$0xf]
      %v2746 = vld [vmem:[%s2738 + $0x1c] sm:$0xf]
      %v2747 = vld [vmem:[%s2738 + $0x20] sm:$0xf]
      %v2748 = vld [vmem:[%s2738 + $0x24] sm:$0xf]
      %v2749 = vld [vmem:[%s2738 + $0x28] sm:$0xf]
      %v2750 = vld [vmem:[%s2738 + $0x2c] sm:$0xf]
      %v2751 = vld [vmem:[%s2738 + $0x30] sm:$0xf]
      %v2752 = vld [vmem:[%s2738 + $0x34] sm:$0xf]
      %v2753 = vld [vmem:[%s2738 + $0x38] sm:$0xf]
      %v2754 = vld [vmem:[%s2738 + $0x3c] sm:$0xf]
      %v2755 = vcombine.low %v2695, %v2709
      %v2756 = vcombine.low %v2723, %v2737
      %v2758 = vunpack.c.l.s4 1983009808
      %v2759 = vunpack.c.0.s8 %v2758
      %v2760 = vlaneseq
      %v2761 = vshrl.u32 %v2760, 7
      %v2762 = vsub.s32 %v2759, %v2761
      %v2763 = vrot.slane %v2755, %v2762
      %v2765 = vunpack.c.l.s4 1983009808
      %v2766 = vunpack.c.0.s8 %v2765
      %v2767 = vlaneseq
      %v2768 = vshrl.u32 %v2767, 7
      %v2769 = vsub.s32 %v2766, %v2768
      %v2770 = vrot.slane %v2756, %v2769
      %v2771 = vcombine.low %v2763, %v2770
      %v2789 = vunpack.c.l.b16 %v2739
      %v2790 = vunpack.c.l.b16 %v2740
      %v2791 = vunpack.c.l.b16 %v2741
      %v2792 = vunpack.c.l.b16 %v2742
      %v2793 = vunpack.c.l.b16 %v2743
      %v2794 = vunpack.c.l.b16 %v2744
      %v2795 = vunpack.c.l.b16 %v2745
      %v2796 = vunpack.c.l.b16 %v2746
      %v2797 = vunpack.c.l.b16 %v2747
      %v2798 = vunpack.c.l.b16 %v2748
      %v2799 = vunpack.c.l.b16 %v2749
      %v2800 = vunpack.c.l.b16 %v2750
      %v2801 = vunpack.c.l.b16 %v2751
      %v2802 = vunpack.c.l.b16 %v2752
      %v2803 = vunpack.c.l.b16 %v2753
      %v2804 = vunpack.c.l.b16 %v2754
      %v2805 = vpack.c.b16 %v2790, %v2789
      %v2806 = vpack.c.b16 %v2792, %v2791
      %v2807 = vpack.c.b16 %v2794, %v2793
      %v2808 = vpack.c.b16 %v2796, %v2795
      %v2809 = vpack.c.b16 %v2798, %v2797
      %v2810 = vpack.c.b16 %v2800, %v2799
      %v2811 = vpack.c.b16 %v2802, %v2801
      %v2812 = vpack.c.b16 %v2804, %v2803
      %2821 = vmatprep.subr.bf16.mxu0 0
      %2822 = vmatpush1.bf16.msra.mxu0 %v2812
      %2823 = vmatprep.subr.bf16.mxu0 0
      %2824 = vmatpush1.bf16.msra.mxu0 %v2811
      %2825 = vmatprep.subr.bf16.mxu0 0
      %2826 = vmatpush1.bf16.msra.mxu0 %v2810
      %2827 = vmatprep.subr.bf16.mxu0 0
      %2828 = vmatpush1.bf16.msra.mxu0 %v2809
      %2829 = vmatprep.subr.bf16.mxu0 0
      %2830 = vmatpush1.bf16.msra.mxu0 %v2808
      %2831 = vmatprep.subr.bf16.mxu0 0
      %2832 = vmatpush1.bf16.msra.mxu0 %v2807
      %2833 = vmatprep.subr.bf16.mxu0 0
      %2834 = vmatpush1.bf16.msra.mxu0 %v2806
      %2835 = vmatprep.subr.bf16.mxu0 0
      %2836 = vmatpush1.bf16.msra.mxu0 %v2805
      %2837 = vmatprep.subr.bf16.mxu0 0
      %2838 = vmatpush2.bf16.msra.mxu0 0
      %2839 = vmatprep.subr.bf16.mxu0 0
      %2840 = vmatpush2.bf16.msra.mxu0 0
      %2841 = vmatprep.subr.bf16.mxu0 0
      %2842 = vmatpush2.bf16.msra.mxu0 0
      %2843 = vmatprep.subr.bf16.mxu0 0
      %2844 = vmatpush2.bf16.msra.mxu0 0
      %2845 = vmatprep.subr.bf16.mxu0 0
      %2846 = vmatpush2.bf16.msra.mxu0 0
      %2847 = vmatprep.subr.bf16.mxu0 0
      %2848 = vmatpush2.bf16.msra.mxu0 0
      %2849 = vmatprep.subr.bf16.mxu0 0
      %2850 = vmatpush2.bf16.msra.mxu0 0
      %2851 = vmatprep.subr.bf16.mxu0 0
      %2852 = vmatpush2.bf16.msra.mxu0 0
      %2853 = vmatprep.mubr.bf16.mxu0 0
      %2854 = vmatmul.mubr.bf16.gmra.mxu0 %v2771
      %v2855 = vpop.f32.mrf.mxu0
      %v2856 = vadd.f32 0.0, %v2855
      %v2857 = vpop.f32.mrf.mxu0
      %v2858 = vpop.f32.mrf.mxu0
      %v2859 = vadd.f32 0.0, %v2858
      %v2860 = vpop.f32.mrf.mxu0
      %2861 = vdwg.mxu0
      %v2862 = vadd.f32 %v2640, %v2856
      %v2863 = vadd.f32 %v2641, %v2859
      %v2864 = vld [vmem:[%s2507] sm:$0x6]
      %v2865 = vld [vmem:[%s2507 + $0x4] sm:$0x6]
      %v2866 = vld [vmem:[%s2507 + $0x8] sm:$0x6]
      %v2867 = vld [vmem:[%s2507 + $0xc] sm:$0x6]
      %v2873 = vunpack.c.l.s4 1983009808
      %v2874 = vunpack.c.0.s8 %v2873
      %v2875 = vlaneseq
      %v2876 = vshrl.u32 %v2875, 7
      %v2877 = vsub.s32 %v2874, %v2876
      %v2878 = vrot.slane %v2864, %v2877
      %v2879 = vcombine.high %v2878, %v2878
      %v2881 = vunpack.c.l.s4 1983009808
      %v2882 = vunpack.c.0.s8 %v2881
      %v2883 = vlaneseq
      %v2884 = vshrl.u32 %v2883, 7
      %v2885 = vsub.s32 %v2882, %v2884
      %v2886 = vrot.slane %v2865, %v2885
      %v2887 = vcombine.high %v2886, %v2886
      %v2889 = vunpack.c.l.s4 1983009808
      %v2890 = vunpack.c.0.s8 %v2889
      %v2891 = vlaneseq
      %v2892 = vshrl.u32 %v2891, 7
      %v2893 = vsub.s32 %v2890, %v2892
      %v2894 = vrot.slane %v2866, %v2893
      %v2895 = vcombine.high %v2894, %v2894
      %v2897 = vunpack.c.l.s4 1983009808
      %v2898 = vunpack.c.0.s8 %v2897
      %v2899 = vlaneseq
      %v2900 = vshrl.u32 %v2899, 7
      %v2901 = vsub.s32 %v2898, %v2900
      %v2902 = vrot.slane %v2867, %v2901
      %v2903 = vcombine.high %v2902, %v2902
      %v2904 = vrot.slane %v2878, 7
      %v2905 = vrot.slane %v2904, 2
      %v2906 = vrot.slane %v2879, 7
      %v2907 = vsel %vm748, %v2905, %v2906
      %v2908 = vrot.slane %v2886, 7
      %v2909 = vrot.slane %v2908, 2
      %v2910 = vrot.slane %v2887, 7
      %v2911 = vsel %vm748, %v2909, %v2910
      %v2912 = vrot.slane %v2894, 7
      %v2913 = vrot.slane %v2912, 2
      %v2914 = vrot.slane %v2895, 7
      %v2915 = vsel %vm748, %v2913, %v2914
      %v2916 = vrot.slane %v2902, 7
      %v2917 = vrot.slane %v2916, 2
      %v2918 = vrot.slane %v2903, 7
      %v2919 = vsel %vm748, %v2917, %v2918
      %s2920 = scalar_lea.vmem %s3, 896
      %v2921 = vld [vmem:[%s2920] sm:$0xf]
      %v2922 = vld [vmem:[%s2920 + $0x4] sm:$0xf]
      %v2923 = vld [vmem:[%s2920 + $0x8] sm:$0xf]
      %v2924 = vld [vmem:[%s2920 + $0xc] sm:$0xf]
      %v2925 = vld [vmem:[%s2920 + $0x10] sm:$0xf]
      %v2926 = vld [vmem:[%s2920 + $0x14] sm:$0xf]
      %v2927 = vld [vmem:[%s2920 + $0x18] sm:$0xf]
      %v2928 = vld [vmem:[%s2920 + $0x1c] sm:$0xf]
      %v2929 = vld [vmem:[%s2920 + $0x20] sm:$0xf]
      %v2930 = vld [vmem:[%s2920 + $0x24] sm:$0xf]
      %v2931 = vld [vmem:[%s2920 + $0x28] sm:$0xf]
      %v2932 = vld [vmem:[%s2920 + $0x2c] sm:$0xf]
      %v2933 = vld [vmem:[%s2920 + $0x30] sm:$0xf]
      %v2934 = vld [vmem:[%s2920 + $0x34] sm:$0xf]
      %v2935 = vld [vmem:[%s2920 + $0x38] sm:$0xf]
      %v2936 = vld [vmem:[%s2920 + $0x3c] sm:$0xf]
      %v2937 = vcombine.low %v2907, %v2911
      %v2938 = vcombine.low %v2915, %v2919
      %v2940 = vunpack.c.l.s4 1983009808
      %v2941 = vunpack.c.0.s8 %v2940
      %v2942 = vlaneseq
      %v2943 = vshrl.u32 %v2942, 7
      %v2944 = vsub.s32 %v2941, %v2943
      %v2945 = vrot.slane %v2937, %v2944
      %v2947 = vunpack.c.l.s4 1983009808
      %v2948 = vunpack.c.0.s8 %v2947
      %v2949 = vlaneseq
      %v2950 = vshrl.u32 %v2949, 7
      %v2951 = vsub.s32 %v2948, %v2950
      %v2952 = vrot.slane %v2938, %v2951
      %v2953 = vcombine.low %v2945, %v2952
      %v2971 = vunpack.c.l.b16 %v2921
      %v2972 = vunpack.c.l.b16 %v2922
      %v2973 = vunpack.c.l.b16 %v2923
      %v2974 = vunpack.c.l.b16 %v2924
      %v2975 = vunpack.c.l.b16 %v2925
      %v2976 = vunpack.c.l.b16 %v2926
      %v2977 = vunpack.c.l.b16 %v2927
      %v2978 = vunpack.c.l.b16 %v2928
      %v2979 = vunpack.c.l.b16 %v2929
      %v2980 = vunpack.c.l.b16 %v2930
      %v2981 = vunpack.c.l.b16 %v2931
      %v2982 = vunpack.c.l.b16 %v2932
      %v2983 = vunpack.c.l.b16 %v2933
      %v2984 = vunpack.c.l.b16 %v2934
      %v2985 = vunpack.c.l.b16 %v2935
      %v2986 = vunpack.c.l.b16 %v2936
      %v2987 = vpack.c.b16 %v2972, %v2971
      %v2988 = vpack.c.b16 %v2974, %v2973
      %v2989 = vpack.c.b16 %v2976, %v2975
      %v2990 = vpack.c.b16 %v2978, %v2977
      %v2991 = vpack.c.b16 %v2980, %v2979
      %v2992 = vpack.c.b16 %v2982, %v2981
      %v2993 = vpack.c.b16 %v2984, %v2983
      %v2994 = vpack.c.b16 %v2986, %v2985
      %3003 = vmatprep.subr.bf16.mxu0 0
      %3004 = vmatpush1.bf16.msra.mxu0 %v2994
      %3005 = vmatprep.subr.bf16.mxu0 0
      %3006 = vmatpush1.bf16.msra.mxu0 %v2993
      %3007 = vmatprep.subr.bf16.mxu0 0
      %3008 = vmatpush1.bf16.msra.mxu0 %v2992
      %3009 = vmatprep.subr.bf16.mxu0 0
      %3010 = vmatpush1.bf16.msra.mxu0 %v2991
      %3011 = vmatprep.subr.bf16.mxu0 0
      %3012 = vmatpush1.bf16.msra.mxu0 %v2990
      %3013 = vmatprep.subr.bf16.mxu0 0
      %3014 = vmatpush1.bf16.msra.mxu0 %v2989
      %3015 = vmatprep.subr.bf16.mxu0 0
      %3016 = vmatpush1.bf16.msra.mxu0 %v2988
      %3017 = vmatprep.subr.bf16.mxu0 0
      %3018 = vmatpush1.bf16.msra.mxu0 %v2987
      %3019 = vmatprep.subr.bf16.mxu0 0
      %3020 = vmatpush2.bf16.msra.mxu0 0
      %3021 = vmatprep.subr.bf16.mxu0 0
      %3022 = vmatpush2.bf16.msra.mxu0 0
      %3023 = vmatprep.subr.bf16.mxu0 0
      %3024 = vmatpush2.bf16.msra.mxu0 0
      %3025 = vmatprep.subr.bf16.mxu0 0
      %3026 = vmatpush2.bf16.msra.mxu0 0
      %3027 = vmatprep.subr.bf16.mxu0 0
      %3028 = vmatpush2.bf16.msra.mxu0 0
      %3029 = vmatprep.subr.bf16.mxu0 0
      %3030 = vmatpush2.bf16.msra.mxu0 0
      %3031 = vmatprep.subr.bf16.mxu0 0
      %3032 = vmatpush2.bf16.msra.mxu0 0
      %3033 = vmatprep.subr.bf16.mxu0 0
      %3034 = vmatpush2.bf16.msra.mxu0 0
      %3035 = vmatprep.mubr.bf16.mxu0 0
      %3036 = vmatmul.mubr.bf16.gmra.mxu0 %v2953
      %v3037 = vpop.f32.mrf.mxu0
      %v3038 = vadd.f32 0.0, %v3037
      %v3039 = vpop.f32.mrf.mxu0
      %v3040 = vpop.f32.mrf.mxu0
      %v3041 = vadd.f32 0.0, %v3040
      %v3042 = vpop.f32.mrf.mxu0
      %3043 = vdwg.mxu0
      %v3044 = vadd.f32 %v2862, %v3038
      %v3045 = vadd.f32 %v2863, %v3041
      %s3046 = scalar_lea.vmem %s321, 8
      %v3047 = vld [vmem:[%s3046] sm:$0x3]
      %v3048 = vld [vmem:[%s3046 + $0x4] sm:$0x3]
      %v3049 = vld [vmem:[%s3046 + $0x8] sm:$0x3]
      %v3050 = vld [vmem:[%s3046 + $0xc] sm:$0x3]
      %s3051 = scalar_lea.vmem %s3, 960
      %v3052 = vld [vmem:[%s3051] sm:$0xf]
      %v3053 = vld [vmem:[%s3051 + $0x4] sm:$0xf]
      %v3054 = vld [vmem:[%s3051 + $0x8] sm:$0xf]
      %v3055 = vld [vmem:[%s3051 + $0xc] sm:$0xf]
      %v3056 = vld [vmem:[%s3051 + $0x10] sm:$0xf]
      %v3057 = vld [vmem:[%s3051 + $0x14] sm:$0xf]
      %v3058 = vld [vmem:[%s3051 + $0x18] sm:$0xf]
      %v3059 = vld [vmem:[%s3051 + $0x1c] sm:$0xf]
      %v3060 = vld [vmem:[%s3051 + $0x20] sm:$0xf]
      %v3061 = vld [vmem:[%s3051 + $0x24] sm:$0xf]
      %v3062 = vld [vmem:[%s3051 + $0x28] sm:$0xf]
      %v3063 = vld [vmem:[%s3051 + $0x2c] sm:$0xf]
      %v3064 = vld [vmem:[%s3051 + $0x30] sm:$0xf]
      %v3065 = vld [vmem:[%s3051 + $0x34] sm:$0xf]
      %v3066 = vld [vmem:[%s3051 + $0x38] sm:$0xf]
      %v3067 = vld [vmem:[%s3051 + $0x3c] sm:$0xf]
      %v3072 = vcombine.low %v3047, %v3048
      %v3073 = vcombine.low %v3049, %v3050
      %v3075 = vunpack.c.l.s4 1983009808
      %v3076 = vunpack.c.0.s8 %v3075
      %v3077 = vlaneseq
      %v3078 = vshrl.u32 %v3077, 7
      %v3079 = vsub.s32 %v3076, %v3078
      %v3080 = vrot.slane %v3072, %v3079
      %v3082 = vunpack.c.l.s4 1983009808
      %v3083 = vunpack.c.0.s8 %v3082
      %v3084 = vlaneseq
      %v3085 = vshrl.u32 %v3084, 7
      %v3086 = vsub.s32 %v3083, %v3085
      %v3087 = vrot.slane %v3073, %v3086
      %v3088 = vcombine.low %v3080, %v3087
      %v3106 = vunpack.c.l.b16 %v3052
      %v3107 = vunpack.c.l.b16 %v3053
      %v3108 = vunpack.c.l.b16 %v3054
      %v3109 = vunpack.c.l.b16 %v3055
      %v3110 = vunpack.c.l.b16 %v3056
      %v3111 = vunpack.c.l.b16 %v3057
      %v3112 = vunpack.c.l.b16 %v3058
      %v3113 = vunpack.c.l.b16 %v3059
      %v3114 = vunpack.c.l.b16 %v3060
      %v3115 = vunpack.c.l.b16 %v3061
      %v3116 = vunpack.c.l.b16 %v3062
      %v3117 = vunpack.c.l.b16 %v3063
      %v3118 = vunpack.c.l.b16 %v3064
      %v3119 = vunpack.c.l.b16 %v3065
      %v3120 = vunpack.c.l.b16 %v3066
      %v3121 = vunpack.c.l.b16 %v3067
      %v3122 = vpack.c.b16 %v3107, %v3106
      %v3123 = vpack.c.b16 %v3109, %v3108
      %v3124 = vpack.c.b16 %v3111, %v3110
      %v3125 = vpack.c.b16 %v3113, %v3112
      %v3126 = vpack.c.b16 %v3115, %v3114
      %v3127 = vpack.c.b16 %v3117, %v3116
      %v3128 = vpack.c.b16 %v3119, %v3118
      %v3129 = vpack.c.b16 %v3121, %v3120
      %3138 = vmatprep.subr.bf16.mxu0 0
      %3139 = vmatpush1.bf16.msra.mxu0 %v3129
      %3140 = vmatprep.subr.bf16.mxu0 0
      %3141 = vmatpush1.bf16.msra.mxu0 %v3128
      %3142 = vmatprep.subr.bf16.mxu0 0
      %3143 = vmatpush1.bf16.msra.mxu0 %v3127
      %3144 = vmatprep.subr.bf16.mxu0 0
      %3145 = vmatpush1.bf16.msra.mxu0 %v3126
      %3146 = vmatprep.subr.bf16.mxu0 0
      %3147 = vmatpush1.bf16.msra.mxu0 %v3125
      %3148 = vmatprep.subr.bf16.mxu0 0
      %3149 = vmatpush1.bf16.msra.mxu0 %v3124
      %3150 = vmatprep.subr.bf16.mxu0 0
      %3151 = vmatpush1.bf16.msra.mxu0 %v3123
      %3152 = vmatprep.subr.bf16.mxu0 0
      %3153 = vmatpush1.bf16.msra.mxu0 %v3122
      %3154 = vmatprep.subr.bf16.mxu0 0
      %3155 = vmatpush2.bf16.msra.mxu0 0
      %3156 = vmatprep.subr.bf16.mxu0 0
      %3157 = vmatpush2.bf16.msra.mxu0 0
      %3158 = vmatprep.subr.bf16.mxu0 0
      %3159 = vmatpush2.bf16.msra.mxu0 0
      %3160 = vmatprep.subr.bf16.mxu0 0
      %3161 = vmatpush2.bf16.msra.mxu0 0
      %3162 = vmatprep.subr.bf16.mxu0 0
      %3163 = vmatpush2.bf16.msra.mxu0 0
      %3164 = vmatprep.subr.bf16.mxu0 0
      %3165 = vmatpush2.bf16.msra.mxu0 0
      %3166 = vmatprep.subr.bf16.mxu0 0
      %3167 = vmatpush2.bf16.msra.mxu0 0
      %3168 = vmatprep.subr.bf16.mxu0 0
      %3169 = vmatpush2.bf16.msra.mxu0 0
      %3170 = vmatprep.mubr.bf16.mxu0 0
      %3171 = vmatmul.mubr.bf16.gmra.mxu0 %v3088
      %v3172 = vpop.f32.mrf.mxu0
      %v3173 = vadd.f32 0.0, %v3172
      %v3174 = vpop.f32.mrf.mxu0
      %v3175 = vpop.f32.mrf.mxu0
      %v3176 = vadd.f32 0.0, %v3175
      %v3177 = vpop.f32.mrf.mxu0
      %3178 = vdwg.mxu0
      %v3179 = vadd.f32 %v3044, %v3173
      %v3180 = vadd.f32 %v3045, %v3176
      %v3181 = vld [vmem:[%s3046] sm:$0x7]
      %v3182 = vld [vmem:[%s3046 + $0x4] sm:$0x7]
      %v3183 = vld [vmem:[%s3046 + $0x8] sm:$0x7]
      %v3184 = vld [vmem:[%s3046 + $0xc] sm:$0x7]
      %v3190 = vunpack.c.l.s4 1983009808
      %v3191 = vunpack.c.0.s8 %v3190
      %v3192 = vlaneseq
      %v3193 = vshrl.u32 %v3192, 7
      %v3194 = vsub.s32 %v3191, %v3193
      %v3195 = vrot.slane %v3181, %v3194
      %v3196 = vcombine.high %v3195, %v3195
      %v3198 = vunpack.c.l.s4 1983009808
      %v3199 = vunpack.c.0.s8 %v3198
      %v3200 = vlaneseq
      %v3201 = vshrl.u32 %v3200, 7
      %v3202 = vsub.s32 %v3199, %v3201
      %v3203 = vrot.slane %v3182, %v3202
      %v3204 = vcombine.high %v3203, %v3203
      %v3206 = vunpack.c.l.s4 1983009808
      %v3207 = vunpack.c.0.s8 %v3206
      %v3208 = vlaneseq
      %v3209 = vshrl.u32 %v3208, 7
      %v3210 = vsub.s32 %v3207, %v3209
      %v3211 = vrot.slane %v3183, %v3210
      %v3212 = vcombine.high %v3211, %v3211
      %v3214 = vunpack.c.l.s4 1983009808
      %v3215 = vunpack.c.0.s8 %v3214
      %v3216 = vlaneseq
      %v3217 = vshrl.u32 %v3216, 7
      %v3218 = vsub.s32 %v3215, %v3217
      %v3219 = vrot.slane %v3184, %v3218
      %v3220 = vcombine.high %v3219, %v3219
      %v3222 = vshrl.u32 %v3195, 16
      %v3224 = vrot.slane %v3222, 6
      %v3225 = vshll.u32 %v3195, 16
      %v3227 = vrot.slane %v3225, 7
      %v3228 = vor.u32 %v3224, %v3227
      %v3229 = vrot.slane %v3228, 2
      %v3231 = vshll.u32 %v3196, 16
      %v3233 = vrot.slane %v3231, 7
      %v3234 = vsel %vm410, %v3229, %v3233
      %v3236 = vshrl.u32 %v3203, 16
      %v3238 = vrot.slane %v3236, 6
      %v3239 = vshll.u32 %v3203, 16
      %v3241 = vrot.slane %v3239, 7
      %v3242 = vor.u32 %v3238, %v3241
      %v3243 = vrot.slane %v3242, 2
      %v3245 = vshll.u32 %v3204, 16
      %v3247 = vrot.slane %v3245, 7
      %v3248 = vsel %vm410, %v3243, %v3247
      %v3250 = vshrl.u32 %v3211, 16
      %v3252 = vrot.slane %v3250, 6
      %v3253 = vshll.u32 %v3211, 16
      %v3255 = vrot.slane %v3253, 7
      %v3256 = vor.u32 %v3252, %v3255
      %v3257 = vrot.slane %v3256, 2
      %v3259 = vshll.u32 %v3212, 16
      %v3261 = vrot.slane %v3259, 7
      %v3262 = vsel %vm410, %v3257, %v3261
      %v3264 = vshrl.u32 %v3219, 16
      %v3266 = vrot.slane %v3264, 6
      %v3267 = vshll.u32 %v3219, 16
      %v3269 = vrot.slane %v3267, 7
      %v3270 = vor.u32 %v3266, %v3269
      %v3271 = vrot.slane %v3270, 2
      %v3273 = vshll.u32 %v3220, 16
      %v3275 = vrot.slane %v3273, 7
      %v3276 = vsel %vm410, %v3271, %v3275
      %s3277 = scalar_lea.vmem %s3, 1024
      %v3278 = vld [vmem:[%s3277] sm:$0xf]
      %v3279 = vld [vmem:[%s3277 + $0x4] sm:$0xf]
      %v3280 = vld [vmem:[%s3277 + $0x8] sm:$0xf]
      %v3281 = vld [vmem:[%s3277 + $0xc] sm:$0xf]
      %v3282 = vld [vmem:[%s3277 + $0x10] sm:$0xf]
      %v3283 = vld [vmem:[%s3277 + $0x14] sm:$0xf]
      %v3284 = vld [vmem:[%s3277 + $0x18] sm:$0xf]
      %v3285 = vld [vmem:[%s3277 + $0x1c] sm:$0xf]
      %v3286 = vld [vmem:[%s3277 + $0x20] sm:$0xf]
      %v3287 = vld [vmem:[%s3277 + $0x24] sm:$0xf]
      %v3288 = vld [vmem:[%s3277 + $0x28] sm:$0xf]
      %v3289 = vld [vmem:[%s3277 + $0x2c] sm:$0xf]
      %v3290 = vld [vmem:[%s3277 + $0x30] sm:$0xf]
      %v3291 = vld [vmem:[%s3277 + $0x34] sm:$0xf]
      %v3292 = vld [vmem:[%s3277 + $0x38] sm:$0xf]
      %v3293 = vld [vmem:[%s3277 + $0x3c] sm:$0xf]
      %v3294 = vcombine.low %v3234, %v3248
      %v3295 = vcombine.low %v3262, %v3276
      %v3297 = vunpack.c.l.s4 1983009808
      %v3298 = vunpack.c.0.s8 %v3297
      %v3299 = vlaneseq
      %v3300 = vshrl.u32 %v3299, 7
      %v3301 = vsub.s32 %v3298, %v3300
      %v3302 = vrot.slane %v3294, %v3301
      %v3304 = vunpack.c.l.s4 1983009808
      %v3305 = vunpack.c.0.s8 %v3304
      %v3306 = vlaneseq
      %v3307 = vshrl.u32 %v3306, 7
      %v3308 = vsub.s32 %v3305, %v3307
      %v3309 = vrot.slane %v3295, %v3308
      %v3310 = vcombine.low %v3302, %v3309
      %v3328 = vunpack.c.l.b16 %v3278
      %v3329 = vunpack.c.l.b16 %v3279
      %v3330 = vunpack.c.l.b16 %v3280
      %v3331 = vunpack.c.l.b16 %v3281
      %v3332 = vunpack.c.l.b16 %v3282
      %v3333 = vunpack.c.l.b16 %v3283
      %v3334 = vunpack.c.l.b16 %v3284
      %v3335 = vunpack.c.l.b16 %v3285
      %v3336 = vunpack.c.l.b16 %v3286
      %v3337 = vunpack.c.l.b16 %v3287
      %v3338 = vunpack.c.l.b16 %v3288
      %v3339 = vunpack.c.l.b16 %v3289
      %v3340 = vunpack.c.l.b16 %v3290
      %v3341 = vunpack.c.l.b16 %v3291
      %v3342 = vunpack.c.l.b16 %v3292
      %v3343 = vunpack.c.l.b16 %v3293
      %v3344 = vpack.c.b16 %v3329, %v3328
      %v3345 = vpack.c.b16 %v3331, %v3330
      %v3346 = vpack.c.b16 %v3333, %v3332
      %v3347 = vpack.c.b16 %v3335, %v3334
      %v3348 = vpack.c.b16 %v3337, %v3336
      %v3349 = vpack.c.b16 %v3339, %v3338
      %v3350 = vpack.c.b16 %v3341, %v3340
      %v3351 = vpack.c.b16 %v3343, %v3342
      %3360 = vmatprep.subr.bf16.mxu0 0
      %3361 = vmatpush1.bf16.msra.mxu0 %v3351
      %3362 = vmatprep.subr.bf16.mxu0 0
      %3363 = vmatpush1.bf16.msra.mxu0 %v3350
      %3364 = vmatprep.subr.bf16.mxu0 0
      %3365 = vmatpush1.bf16.msra.mxu0 %v3349
      %3366 = vmatprep.subr.bf16.mxu0 0
      %3367 = vmatpush1.bf16.msra.mxu0 %v3348
      %3368 = vmatprep.subr.bf16.mxu0 0
      %3369 = vmatpush1.bf16.msra.mxu0 %v3347
      %3370 = vmatprep.subr.bf16.mxu0 0
      %3371 = vmatpush1.bf16.msra.mxu0 %v3346
      %3372 = vmatprep.subr.bf16.mxu0 0
      %3373 = vmatpush1.bf16.msra.mxu0 %v3345
      %3374 = vmatprep.subr.bf16.mxu0 0
      %3375 = vmatpush1.bf16.msra.mxu0 %v3344
      %3376 = vmatprep.subr.bf16.mxu0 0
      %3377 = vmatpush2.bf16.msra.mxu0 0
      %3378 = vmatprep.subr.bf16.mxu0 0
      %3379 = vmatpush2.bf16.msra.mxu0 0
      %3380 = vmatprep.subr.bf16.mxu0 0
      %3381 = vmatpush2.bf16.msra.mxu0 0
      %3382 = vmatprep.subr.bf16.mxu0 0
      %3383 = vmatpush2.bf16.msra.mxu0 0
      %3384 = vmatprep.subr.bf16.mxu0 0
      %3385 = vmatpush2.bf16.msra.mxu0 0
      %3386 = vmatprep.subr.bf16.mxu0 0
      %3387 = vmatpush2.bf16.msra.mxu0 0
      %3388 = vmatprep.subr.bf16.mxu0 0
      %3389 = vmatpush2.bf16.msra.mxu0 0
      %3390 = vmatprep.subr.bf16.mxu0 0
      %3391 = vmatpush2.bf16.msra.mxu0 0
      %3392 = vmatprep.mubr.bf16.mxu0 0
      %3393 = vmatmul.mubr.bf16.gmra.mxu0 %v3310
      %v3394 = vpop.f32.mrf.mxu0
      %v3395 = vadd.f32 0.0, %v3394
      %v3396 = vpop.f32.mrf.mxu0
      %v3397 = vpop.f32.mrf.mxu0
      %v3398 = vadd.f32 0.0, %v3397
      %v3399 = vpop.f32.mrf.mxu0
      %3400 = vdwg.mxu0
      %v3401 = vadd.f32 %v3179, %v3395
      %v3402 = vadd.f32 %v3180, %v3398
      %v3403 = vld [vmem:[%s3046] sm:$0x6]
      %v3404 = vld [vmem:[%s3046 + $0x4] sm:$0x6]
      %v3405 = vld [vmem:[%s3046 + $0x8] sm:$0x6]
      %v3406 = vld [vmem:[%s3046 + $0xc] sm:$0x6]
      %v3412 = vunpack.c.l.s4 1983009808
      %v3413 = vunpack.c.0.s8 %v3412
      %v3414 = vlaneseq
      %v3415 = vshrl.u32 %v3414, 7
      %v3416 = vsub.s32 %v3413, %v3415
      %v3417 = vrot.slane %v3403, %v3416
      %v3418 = vcombine.high %v3417, %v3417
      %v3420 = vunpack.c.l.s4 1983009808
      %v3421 = vunpack.c.0.s8 %v3420
      %v3422 = vlaneseq
      %v3423 = vshrl.u32 %v3422, 7
      %v3424 = vsub.s32 %v3421, %v3423
      %v3425 = vrot.slane %v3404, %v3424
      %v3426 = vcombine.high %v3425, %v3425
      %v3428 = vunpack.c.l.s4 1983009808
      %v3429 = vunpack.c.0.s8 %v3428
      %v3430 = vlaneseq
      %v3431 = vshrl.u32 %v3430, 7
      %v3432 = vsub.s32 %v3429, %v3431
      %v3433 = vrot.slane %v3405, %v3432
      %v3434 = vcombine.high %v3433, %v3433
      %v3436 = vunpack.c.l.s4 1983009808
      %v3437 = vunpack.c.0.s8 %v3436
      %v3438 = vlaneseq
      %v3439 = vshrl.u32 %v3438, 7
      %v3440 = vsub.s32 %v3437, %v3439
      %v3441 = vrot.slane %v3406, %v3440
      %v3442 = vcombine.high %v3441, %v3441
      %v3443 = vrot.slane %v3417, 7
      %v3444 = vrot.slane %v3443, 2
      %v3445 = vrot.slane %v3418, 7
      %v3446 = vsel %vm748, %v3444, %v3445
      %v3447 = vrot.slane %v3425, 7
      %v3448 = vrot.slane %v3447, 2
      %v3449 = vrot.slane %v3426, 7
      %v3450 = vsel %vm748, %v3448, %v3449
      %v3451 = vrot.slane %v3433, 7
      %v3452 = vrot.slane %v3451, 2
      %v3453 = vrot.slane %v3434, 7
      %v3454 = vsel %vm748, %v3452, %v3453
      %v3455 = vrot.slane %v3441, 7
      %v3456 = vrot.slane %v3455, 2
      %v3457 = vrot.slane %v3442, 7
      %v3458 = vsel %vm748, %v3456, %v3457
      %s3459 = scalar_lea.vmem %s3, 1088
      %v3460 = vld [vmem:[%s3459] sm:$0xf]
      %v3461 = vld [vmem:[%s3459 + $0x4] sm:$0xf]
      %v3462 = vld [vmem:[%s3459 + $0x8] sm:$0xf]
      %v3463 = vld [vmem:[%s3459 + $0xc] sm:$0xf]
      %v3464 = vld [vmem:[%s3459 + $0x10] sm:$0xf]
      %v3465 = vld [vmem:[%s3459 + $0x14] sm:$0xf]
      %v3466 = vld [vmem:[%s3459 + $0x18] sm:$0xf]
      %v3467 = vld [vmem:[%s3459 + $0x1c] sm:$0xf]
      %v3468 = vld [vmem:[%s3459 + $0x20] sm:$0xf]
      %v3469 = vld [vmem:[%s3459 + $0x24] sm:$0xf]
      %v3470 = vld [vmem:[%s3459 + $0x28] sm:$0xf]
      %v3471 = vld [vmem:[%s3459 + $0x2c] sm:$0xf]
      %v3472 = vld [vmem:[%s3459 + $0x30] sm:$0xf]
      %v3473 = vld [vmem:[%s3459 + $0x34] sm:$0xf]
      %v3474 = vld [vmem:[%s3459 + $0x38] sm:$0xf]
      %v3475 = vld [vmem:[%s3459 + $0x3c] sm:$0xf]
      %v3476 = vcombine.low %v3446, %v3450
      %v3477 = vcombine.low %v3454, %v3458
      %v3479 = vunpack.c.l.s4 1983009808
      %v3480 = vunpack.c.0.s8 %v3479
      %v3481 = vlaneseq
      %v3482 = vshrl.u32 %v3481, 7
      %v3483 = vsub.s32 %v3480, %v3482
      %v3484 = vrot.slane %v3476, %v3483
      %v3486 = vunpack.c.l.s4 1983009808
      %v3487 = vunpack.c.0.s8 %v3486
      %v3488 = vlaneseq
      %v3489 = vshrl.u32 %v3488, 7
      %v3490 = vsub.s32 %v3487, %v3489
      %v3491 = vrot.slane %v3477, %v3490
      %v3492 = vcombine.low %v3484, %v3491
      %v3510 = vunpack.c.l.b16 %v3460
      %v3511 = vunpack.c.l.b16 %v3461
      %v3512 = vunpack.c.l.b16 %v3462
      %v3513 = vunpack.c.l.b16 %v3463
      %v3514 = vunpack.c.l.b16 %v3464
      %v3515 = vunpack.c.l.b16 %v3465
      %v3516 = vunpack.c.l.b16 %v3466
      %v3517 = vunpack.c.l.b16 %v3467
      %v3518 = vunpack.c.l.b16 %v3468
      %v3519 = vunpack.c.l.b16 %v3469
      %v3520 = vunpack.c.l.b16 %v3470
      %v3521 = vunpack.c.l.b16 %v3471
      %v3522 = vunpack.c.l.b16 %v3472
      %v3523 = vunpack.c.l.b16 %v3473
      %v3524 = vunpack.c.l.b16 %v3474
      %v3525 = vunpack.c.l.b16 %v3475
      %v3526 = vpack.c.b16 %v3511, %v3510
      %v3527 = vpack.c.b16 %v3513, %v3512
      %v3528 = vpack.c.b16 %v3515, %v3514
      %v3529 = vpack.c.b16 %v3517, %v3516
      %v3530 = vpack.c.b16 %v3519, %v3518
      %v3531 = vpack.c.b16 %v3521, %v3520
      %v3532 = vpack.c.b16 %v3523, %v3522
      %v3533 = vpack.c.b16 %v3525, %v3524
      %3542 = vmatprep.subr.bf16.mxu0 0
      %3543 = vmatpush1.bf16.msra.mxu0 %v3533
      %3544 = vmatprep.subr.bf16.mxu0 0
      %3545 = vmatpush1.bf16.msra.mxu0 %v3532
      %3546 = vmatprep.subr.bf16.mxu0 0
      %3547 = vmatpush1.bf16.msra.mxu0 %v3531
      %3548 = vmatprep.subr.bf16.mxu0 0
      %3549 = vmatpush1.bf16.msra.mxu0 %v3530
      %3550 = vmatprep.subr.bf16.mxu0 0
      %3551 = vmatpush1.bf16.msra.mxu0 %v3529
      %3552 = vmatprep.subr.bf16.mxu0 0
      %3553 = vmatpush1.bf16.msra.mxu0 %v3528
      %3554 = vmatprep.subr.bf16.mxu0 0
      %3555 = vmatpush1.bf16.msra.mxu0 %v3527
      %3556 = vmatprep.subr.bf16.mxu0 0
      %3557 = vmatpush1.bf16.msra.mxu0 %v3526
      %3558 = vmatprep.subr.bf16.mxu0 0
      %3559 = vmatpush2.bf16.msra.mxu0 0
      %3560 = vmatprep.subr.bf16.mxu0 0
      %3561 = vmatpush2.bf16.msra.mxu0 0
      %3562 = vmatprep.subr.bf16.mxu0 0
      %3563 = vmatpush2.bf16.msra.mxu0 0
      %3564 = vmatprep.subr.bf16.mxu0 0
      %3565 = vmatpush2.bf16.msra.mxu0 0
      %3566 = vmatprep.subr.bf16.mxu0 0
      %3567 = vmatpush2.bf16.msra.mxu0 0
      %3568 = vmatprep.subr.bf16.mxu0 0
      %3569 = vmatpush2.bf16.msra.mxu0 0
      %3570 = vmatprep.subr.bf16.mxu0 0
      %3571 = vmatpush2.bf16.msra.mxu0 0
      %3572 = vmatprep.subr.bf16.mxu0 0
      %3573 = vmatpush2.bf16.msra.mxu0 0
      %3574 = vmatprep.mubr.bf16.mxu0 0
      %3575 = vmatmul.mubr.bf16.gmra.mxu0 %v3492
      %v3576 = vpop.f32.mrf.mxu0
      %v3577 = vadd.f32 0.0, %v3576
      %v3578 = vpop.f32.mrf.mxu0
      %v3579 = vpop.f32.mrf.mxu0
      %v3580 = vadd.f32 0.0, %v3579
      %v3581 = vpop.f32.mrf.mxu0
      %3582 = vdwg.mxu0
      %v3583 = vadd.f32 %v3401, %v3577
      %v3584 = vadd.f32 %v3402, %v3580
      %v3585 = vld [vmem:[%s332] sm:$0x3]
      %v3586 = vld [vmem:[%s332 + $0x4] sm:$0x3]
      %v3587 = vld [vmem:[%s332 + $0x8] sm:$0x3]
      %v3588 = vld [vmem:[%s332 + $0xc] sm:$0x3]
      %s3589 = scalar_lea.vmem %s3, 1152
      %v3590 = vld [vmem:[%s3589] sm:$0xf]
      %v3591 = vld [vmem:[%s3589 + $0x4] sm:$0xf]
      %v3592 = vld [vmem:[%s3589 + $0x8] sm:$0xf]
      %v3593 = vld [vmem:[%s3589 + $0xc] sm:$0xf]
      %v3594 = vld [vmem:[%s3589 + $0x10] sm:$0xf]
      %v3595 = vld [vmem:[%s3589 + $0x14] sm:$0xf]
      %v3596 = vld [vmem:[%s3589 + $0x18] sm:$0xf]
      %v3597 = vld [vmem:[%s3589 + $0x1c] sm:$0xf]
      %v3598 = vld [vmem:[%s3589 + $0x20] sm:$0xf]
      %v3599 = vld [vmem:[%s3589 + $0x24] sm:$0xf]
      %v3600 = vld [vmem:[%s3589 + $0x28] sm:$0xf]
      %v3601 = vld [vmem:[%s3589 + $0x2c] sm:$0xf]
      %v3602 = vld [vmem:[%s3589 + $0x30] sm:$0xf]
      %v3603 = vld [vmem:[%s3589 + $0x34] sm:$0xf]
      %v3604 = vld [vmem:[%s3589 + $0x38] sm:$0xf]
      %v3605 = vld [vmem:[%s3589 + $0x3c] sm:$0xf]
      %v3610 = vcombine.low %v3585, %v3586
      %v3611 = vcombine.low %v3587, %v3588
      %v3613 = vunpack.c.l.s4 1983009808
      %v3614 = vunpack.c.0.s8 %v3613
      %v3615 = vlaneseq
      %v3616 = vshrl.u32 %v3615, 7
      %v3617 = vsub.s32 %v3614, %v3616
      %v3618 = vrot.slane %v3610, %v3617
      %v3620 = vunpack.c.l.s4 1983009808
      %v3621 = vunpack.c.0.s8 %v3620
      %v3622 = vlaneseq
      %v3623 = vshrl.u32 %v3622, 7
      %v3624 = vsub.s32 %v3621, %v3623
      %v3625 = vrot.slane %v3611, %v3624
      %v3626 = vcombine.low %v3618, %v3625
      %v3644 = vunpack.c.l.b16 %v3590
      %v3645 = vunpack.c.l.b16 %v3591
      %v3646 = vunpack.c.l.b16 %v3592
      %v3647 = vunpack.c.l.b16 %v3593
      %v3648 = vunpack.c.l.b16 %v3594
      %v3649 = vunpack.c.l.b16 %v3595
      %v3650 = vunpack.c.l.b16 %v3596
      %v3651 = vunpack.c.l.b16 %v3597
      %v3652 = vunpack.c.l.b16 %v3598
      %v3653 = vunpack.c.l.b16 %v3599
      %v3654 = vunpack.c.l.b16 %v3600
      %v3655 = vunpack.c.l.b16 %v3601
      %v3656 = vunpack.c.l.b16 %v3602
      %v3657 = vunpack.c.l.b16 %v3603
      %v3658 = vunpack.c.l.b16 %v3604
      %v3659 = vunpack.c.l.b16 %v3605
      %v3660 = vpack.c.b16 %v3645, %v3644
      %v3661 = vpack.c.b16 %v3647, %v3646
      %v3662 = vpack.c.b16 %v3649, %v3648
      %v3663 = vpack.c.b16 %v3651, %v3650
      %v3664 = vpack.c.b16 %v3653, %v3652
      %v3665 = vpack.c.b16 %v3655, %v3654
      %v3666 = vpack.c.b16 %v3657, %v3656
      %v3667 = vpack.c.b16 %v3659, %v3658
      %3676 = vmatprep.subr.bf16.mxu0 0
      %3677 = vmatpush1.bf16.msra.mxu0 %v3667
      %3678 = vmatprep.subr.bf16.mxu0 0
      %3679 = vmatpush1.bf16.msra.mxu0 %v3666
      %3680 = vmatprep.subr.bf16.mxu0 0
      %3681 = vmatpush1.bf16.msra.mxu0 %v3665
      %3682 = vmatprep.subr.bf16.mxu0 0
      %3683 = vmatpush1.bf16.msra.mxu0 %v3664
      %3684 = vmatprep.subr.bf16.mxu0 0
      %3685 = vmatpush1.bf16.msra.mxu0 %v3663
      %3686 = vmatprep.subr.bf16.mxu0 0
      %3687 = vmatpush1.bf16.msra.mxu0 %v3662
      %3688 = vmatprep.subr.bf16.mxu0 0
      %3689 = vmatpush1.bf16.msra.mxu0 %v3661
      %3690 = vmatprep.subr.bf16.mxu0 0
      %3691 = vmatpush1.bf16.msra.mxu0 %v3660
      %3692 = vmatprep.subr.bf16.mxu0 0
      %3693 = vmatpush2.bf16.msra.mxu0 0
      %3694 = vmatprep.subr.bf16.mxu0 0
      %3695 = vmatpush2.bf16.msra.mxu0 0
      %3696 = vmatprep.subr.bf16.mxu0 0
      %3697 = vmatpush2.bf16.msra.mxu0 0
      %3698 = vmatprep.subr.bf16.mxu0 0
      %3699 = vmatpush2.bf16.msra.mxu0 0
      %3700 = vmatprep.subr.bf16.mxu0 0
      %3701 = vmatpush2.bf16.msra.mxu0 0
      %3702 = vmatprep.subr.bf16.mxu0 0
      %3703 = vmatpush2.bf16.msra.mxu0 0
      %3704 = vmatprep.subr.bf16.mxu0 0
      %3705 = vmatpush2.bf16.msra.mxu0 0
      %3706 = vmatprep.subr.bf16.mxu0 0
      %3707 = vmatpush2.bf16.msra.mxu0 0
      %3708 = vmatprep.mubr.bf16.mxu0 0
      %3709 = vmatmul.mubr.bf16.gmra.mxu0 %v3626
      %v3710 = vpop.f32.mrf.mxu0
      %v3711 = vadd.f32 0.0, %v3710
      %v3712 = vpop.f32.mrf.mxu0
      %v3713 = vpop.f32.mrf.mxu0
      %v3714 = vadd.f32 0.0, %v3713
      %v3715 = vpop.f32.mrf.mxu0
      %3716 = vdwg.mxu0
      %v3717 = vadd.f32 %v3583, %v3711
      %v3718 = vadd.f32 %v3584, %v3714
      %v3719 = vld [vmem:[%s332] sm:$0x7]
      %v3720 = vld [vmem:[%s332 + $0x4] sm:$0x7]
      %v3721 = vld [vmem:[%s332 + $0x8] sm:$0x7]
      %v3722 = vld [vmem:[%s332 + $0xc] sm:$0x7]
      %v3728 = vunpack.c.l.s4 1983009808
      %v3729 = vunpack.c.0.s8 %v3728
      %v3730 = vlaneseq
      %v3731 = vshrl.u32 %v3730, 7
      %v3732 = vsub.s32 %v3729, %v3731
      %v3733 = vrot.slane %v3719, %v3732
      %v3734 = vcombine.high %v3733, %v3733
      %v3736 = vunpack.c.l.s4 1983009808
      %v3737 = vunpack.c.0.s8 %v3736
      %v3738 = vlaneseq
      %v3739 = vshrl.u32 %v3738, 7
      %v3740 = vsub.s32 %v3737, %v3739
      %v3741 = vrot.slane %v3720, %v3740
      %v3742 = vcombine.high %v3741, %v3741
      %v3744 = vunpack.c.l.s4 1983009808
      %v3745 = vunpack.c.0.s8 %v3744
      %v3746 = vlaneseq
      %v3747 = vshrl.u32 %v3746, 7
      %v3748 = vsub.s32 %v3745, %v3747
      %v3749 = vrot.slane %v3721, %v3748
      %v3750 = vcombine.high %v3749, %v3749
      %v3752 = vunpack.c.l.s4 1983009808
      %v3753 = vunpack.c.0.s8 %v3752
      %v3754 = vlaneseq
      %v3755 = vshrl.u32 %v3754, 7
      %v3756 = vsub.s32 %v3753, %v3755
      %v3757 = vrot.slane %v3722, %v3756
      %v3758 = vcombine.high %v3757, %v3757
      %v3760 = vshrl.u32 %v3733, 16
      %v3762 = vrot.slane %v3760, 6
      %v3763 = vshll.u32 %v3733, 16
      %v3765 = vrot.slane %v3763, 7
      %v3766 = vor.u32 %v3762, %v3765
      %v3767 = vrot.slane %v3766, 2
      %v3769 = vshll.u32 %v3734, 16
      %v3771 = vrot.slane %v3769, 7
      %v3772 = vsel %vm410, %v3767, %v3771
      %v3774 = vshrl.u32 %v3741, 16
      %v3776 = vrot.slane %v3774, 6
      %v3777 = vshll.u32 %v3741, 16
      %v3779 = vrot.slane %v3777, 7
      %v3780 = vor.u32 %v3776, %v3779
      %v3781 = vrot.slane %v3780, 2
      %v3783 = vshll.u32 %v3742, 16
      %v3785 = vrot.slane %v3783, 7
      %v3786 = vsel %vm410, %v3781, %v3785
      %v3788 = vshrl.u32 %v3749, 16
      %v3790 = vrot.slane %v3788, 6
      %v3791 = vshll.u32 %v3749, 16
      %v3793 = vrot.slane %v3791, 7
      %v3794 = vor.u32 %v3790, %v3793
      %v3795 = vrot.slane %v3794, 2
      %v3797 = vshll.u32 %v3750, 16
      %v3799 = vrot.slane %v3797, 7
      %v3800 = vsel %vm410, %v3795, %v3799
      %v3802 = vshrl.u32 %v3757, 16
      %v3804 = vrot.slane %v3802, 6
      %v3805 = vshll.u32 %v3757, 16
      %v3807 = vrot.slane %v3805, 7
      %v3808 = vor.u32 %v3804, %v3807
      %v3809 = vrot.slane %v3808, 2
      %v3811 = vshll.u32 %v3758, 16
      %v3813 = vrot.slane %v3811, 7
      %v3814 = vsel %vm410, %v3809, %v3813
      %s3815 = scalar_lea.vmem %s3, 1216
      %v3816 = vld [vmem:[%s3815] sm:$0xf]
      %v3817 = vld [vmem:[%s3815 + $0x4] sm:$0xf]
      %v3818 = vld [vmem:[%s3815 + $0x8] sm:$0xf]
      %v3819 = vld [vmem:[%s3815 + $0xc] sm:$0xf]
      %v3820 = vld [vmem:[%s3815 + $0x10] sm:$0xf]
      %v3821 = vld [vmem:[%s3815 + $0x14] sm:$0xf]
      %v3822 = vld [vmem:[%s3815 + $0x18] sm:$0xf]
      %v3823 = vld [vmem:[%s3815 + $0x1c] sm:$0xf]
      %v3824 = vld [vmem:[%s3815 + $0x20] sm:$0xf]
      %v3825 = vld [vmem:[%s3815 + $0x24] sm:$0xf]
      %v3826 = vld [vmem:[%s3815 + $0x28] sm:$0xf]
      %v3827 = vld [vmem:[%s3815 + $0x2c] sm:$0xf]
      %v3828 = vld [vmem:[%s3815 + $0x30] sm:$0xf]
      %v3829 = vld [vmem:[%s3815 + $0x34] sm:$0xf]
      %v3830 = vld [vmem:[%s3815 + $0x38] sm:$0xf]
      %v3831 = vld [vmem:[%s3815 + $0x3c] sm:$0xf]
      %v3832 = vcombine.low %v3772, %v3786
      %v3833 = vcombine.low %v3800, %v3814
      %v3835 = vunpack.c.l.s4 1983009808
      %v3836 = vunpack.c.0.s8 %v3835
      %v3837 = vlaneseq
      %v3838 = vshrl.u32 %v3837, 7
      %v3839 = vsub.s32 %v3836, %v3838
      %v3840 = vrot.slane %v3832, %v3839
      %v3842 = vunpack.c.l.s4 1983009808
      %v3843 = vunpack.c.0.s8 %v3842
      %v3844 = vlaneseq
      %v3845 = vshrl.u32 %v3844, 7
      %v3846 = vsub.s32 %v3843, %v3845
      %v3847 = vrot.slane %v3833, %v3846
      %v3848 = vcombine.low %v3840, %v3847
      %v3866 = vunpack.c.l.b16 %v3816
      %v3867 = vunpack.c.l.b16 %v3817
      %v3868 = vunpack.c.l.b16 %v3818
      %v3869 = vunpack.c.l.b16 %v3819
      %v3870 = vunpack.c.l.b16 %v3820
      %v3871 = vunpack.c.l.b16 %v3821
      %v3872 = vunpack.c.l.b16 %v3822
      %v3873 = vunpack.c.l.b16 %v3823
      %v3874 = vunpack.c.l.b16 %v3824
      %v3875 = vunpack.c.l.b16 %v3825
      %v3876 = vunpack.c.l.b16 %v3826
      %v3877 = vunpack.c.l.b16 %v3827
      %v3878 = vunpack.c.l.b16 %v3828
      %v3879 = vunpack.c.l.b16 %v3829
      %v3880 = vunpack.c.l.b16 %v3830
      %v3881 = vunpack.c.l.b16 %v3831
      %v3882 = vpack.c.b16 %v3867, %v3866
      %v3883 = vpack.c.b16 %v3869, %v3868
      %v3884 = vpack.c.b16 %v3871, %v3870
      %v3885 = vpack.c.b16 %v3873, %v3872
      %v3886 = vpack.c.b16 %v3875, %v3874
      %v3887 = vpack.c.b16 %v3877, %v3876
      %v3888 = vpack.c.b16 %v3879, %v3878
      %v3889 = vpack.c.b16 %v3881, %v3880
      %3898 = vmatprep.subr.bf16.mxu0 0
      %3899 = vmatpush1.bf16.msra.mxu0 %v3889
      %3900 = vmatprep.subr.bf16.mxu0 0
      %3901 = vmatpush1.bf16.msra.mxu0 %v3888
      %3902 = vmatprep.subr.bf16.mxu0 0
      %3903 = vmatpush1.bf16.msra.mxu0 %v3887
      %3904 = vmatprep.subr.bf16.mxu0 0
      %3905 = vmatpush1.bf16.msra.mxu0 %v3886
      %3906 = vmatprep.subr.bf16.mxu0 0
      %3907 = vmatpush1.bf16.msra.mxu0 %v3885
      %3908 = vmatprep.subr.bf16.mxu0 0
      %3909 = vmatpush1.bf16.msra.mxu0 %v3884
      %3910 = vmatprep.subr.bf16.mxu0 0
      %3911 = vmatpush1.bf16.msra.mxu0 %v3883
      %3912 = vmatprep.subr.bf16.mxu0 0
      %3913 = vmatpush1.bf16.msra.mxu0 %v3882
      %3914 = vmatprep.subr.bf16.mxu0 0
      %3915 = vmatpush2.bf16.msra.mxu0 0
      %3916 = vmatprep.subr.bf16.mxu0 0
      %3917 = vmatpush2.bf16.msra.mxu0 0
      %3918 = vmatprep.subr.bf16.mxu0 0
      %3919 = vmatpush2.bf16.msra.mxu0 0
      %3920 = vmatprep.subr.bf16.mxu0 0
      %3921 = vmatpush2.bf16.msra.mxu0 0
      %3922 = vmatprep.subr.bf16.mxu0 0
      %3923 = vmatpush2.bf16.msra.mxu0 0
      %3924 = vmatprep.subr.bf16.mxu0 0
      %3925 = vmatpush2.bf16.msra.mxu0 0
      %3926 = vmatprep.subr.bf16.mxu0 0
      %3927 = vmatpush2.bf16.msra.mxu0 0
      %3928 = vmatprep.subr.bf16.mxu0 0
      %3929 = vmatpush2.bf16.msra.mxu0 0
      %3930 = vmatprep.mubr.bf16.mxu0 0
      %3931 = vmatmul.mubr.bf16.gmra.mxu0 %v3848
      %v3932 = vpop.f32.mrf.mxu0
      %v3933 = vadd.f32 0.0, %v3932
      %v3934 = vpop.f32.mrf.mxu0
      %v3935 = vpop.f32.mrf.mxu0
      %v3936 = vadd.f32 0.0, %v3935
      %v3937 = vpop.f32.mrf.mxu0
      %3938 = vdwg.mxu0
      %v3939 = vadd.f32 %v3717, %v3933
      %v3940 = vadd.f32 %v3718, %v3936
      %v3941 = vld [vmem:[%s332] sm:$0x6]
      %v3942 = vld [vmem:[%s332 + $0x4] sm:$0x6]
      %v3943 = vld [vmem:[%s332 + $0x8] sm:$0x6]
      %v3944 = vld [vmem:[%s332 + $0xc] sm:$0x6]
      %v3950 = vunpack.c.l.s4 1983009808
      %v3951 = vunpack.c.0.s8 %v3950
      %v3952 = vlaneseq
      %v3953 = vshrl.u32 %v3952, 7
      %v3954 = vsub.s32 %v3951, %v3953
      %v3955 = vrot.slane %v3941, %v3954
      %v3956 = vcombine.high %v3955, %v3955
      %v3958 = vunpack.c.l.s4 1983009808
      %v3959 = vunpack.c.0.s8 %v3958
      %v3960 = vlaneseq
      %v3961 = vshrl.u32 %v3960, 7
      %v3962 = vsub.s32 %v3959, %v3961
      %v3963 = vrot.slane %v3942, %v3962
      %v3964 = vcombine.high %v3963, %v3963
      %v3966 = vunpack.c.l.s4 1983009808
      %v3967 = vunpack.c.0.s8 %v3966
      %v3968 = vlaneseq
      %v3969 = vshrl.u32 %v3968, 7
      %v3970 = vsub.s32 %v3967, %v3969
      %v3971 = vrot.slane %v3943, %v3970
      %v3972 = vcombine.high %v3971, %v3971
      %v3974 = vunpack.c.l.s4 1983009808
      %v3975 = vunpack.c.0.s8 %v3974
      %v3976 = vlaneseq
      %v3977 = vshrl.u32 %v3976, 7
      %v3978 = vsub.s32 %v3975, %v3977
      %v3979 = vrot.slane %v3944, %v3978
      %v3980 = vcombine.high %v3979, %v3979
      %v3981 = vrot.slane %v3955, 7
      %v3982 = vrot.slane %v3981, 2
      %v3983 = vrot.slane %v3956, 7
      %v3984 = vsel %vm748, %v3982, %v3983
      %v3985 = vrot.slane %v3963, 7
      %v3986 = vrot.slane %v3985, 2
      %v3987 = vrot.slane %v3964, 7
      %v3988 = vsel %vm748, %v3986, %v3987
      %v3989 = vrot.slane %v3971, 7
      %v3990 = vrot.slane %v3989, 2
      %v3991 = vrot.slane %v3972, 7
      %v3992 = vsel %vm748, %v3990, %v3991
      %v3993 = vrot.slane %v3979, 7
      %v3994 = vrot.slane %v3993, 2
      %v3995 = vrot.slane %v3980, 7
      %v3996 = vsel %vm748, %v3994, %v3995
      %s3997 = scalar_lea.vmem %s3, 1280
      %v3998 = vld [vmem:[%s3997] sm:$0xf]
      %v3999 = vld [vmem:[%s3997 + $0x4] sm:$0xf]
      %v4000 = vld [vmem:[%s3997 + $0x8] sm:$0xf]
      %v4001 = vld [vmem:[%s3997 + $0xc] sm:$0xf]
      %v4002 = vld [vmem:[%s3997 + $0x10] sm:$0xf]
      %v4003 = vld [vmem:[%s3997 + $0x14] sm:$0xf]
      %v4004 = vld [vmem:[%s3997 + $0x18] sm:$0xf]
      %v4005 = vld [vmem:[%s3997 + $0x1c] sm:$0xf]
      %v4006 = vld [vmem:[%s3997 + $0x20] sm:$0xf]
      %v4007 = vld [vmem:[%s3997 + $0x24] sm:$0xf]
      %v4008 = vld [vmem:[%s3997 + $0x28] sm:$0xf]
      %v4009 = vld [vmem:[%s3997 + $0x2c] sm:$0xf]
      %v4010 = vld [vmem:[%s3997 + $0x30] sm:$0xf]
      %v4011 = vld [vmem:[%s3997 + $0x34] sm:$0xf]
      %v4012 = vld [vmem:[%s3997 + $0x38] sm:$0xf]
      %v4013 = vld [vmem:[%s3997 + $0x3c] sm:$0xf]
      %v4014 = vcombine.low %v3984, %v3988
      %v4015 = vcombine.low %v3992, %v3996
      %v4017 = vunpack.c.l.s4 1983009808
      %v4018 = vunpack.c.0.s8 %v4017
      %v4019 = vlaneseq
      %v4020 = vshrl.u32 %v4019, 7
      %v4021 = vsub.s32 %v4018, %v4020
      %v4022 = vrot.slane %v4014, %v4021
      %v4024 = vunpack.c.l.s4 1983009808
      %v4025 = vunpack.c.0.s8 %v4024
      %v4026 = vlaneseq
      %v4027 = vshrl.u32 %v4026, 7
      %v4028 = vsub.s32 %v4025, %v4027
      %v4029 = vrot.slane %v4015, %v4028
      %v4030 = vcombine.low %v4022, %v4029
      %v4048 = vunpack.c.l.b16 %v3998
      %v4049 = vunpack.c.l.b16 %v3999
      %v4050 = vunpack.c.l.b16 %v4000
      %v4051 = vunpack.c.l.b16 %v4001
      %v4052 = vunpack.c.l.b16 %v4002
      %v4053 = vunpack.c.l.b16 %v4003
      %v4054 = vunpack.c.l.b16 %v4004
      %v4055 = vunpack.c.l.b16 %v4005
      %v4056 = vunpack.c.l.b16 %v4006
      %v4057 = vunpack.c.l.b16 %v4007
      %v4058 = vunpack.c.l.b16 %v4008
      %v4059 = vunpack.c.l.b16 %v4009
      %v4060 = vunpack.c.l.b16 %v4010
      %v4061 = vunpack.c.l.b16 %v4011
      %v4062 = vunpack.c.l.b16 %v4012
      %v4063 = vunpack.c.l.b16 %v4013
      %v4064 = vpack.c.b16 %v4049, %v4048
      %v4065 = vpack.c.b16 %v4051, %v4050
      %v4066 = vpack.c.b16 %v4053, %v4052
      %v4067 = vpack.c.b16 %v4055, %v4054
      %v4068 = vpack.c.b16 %v4057, %v4056
      %v4069 = vpack.c.b16 %v4059, %v4058
      %v4070 = vpack.c.b16 %v4061, %v4060
      %v4071 = vpack.c.b16 %v4063, %v4062
      %4080 = vmatprep.subr.bf16.mxu0 0
      %4081 = vmatpush1.bf16.msra.mxu0 %v4071
      %4082 = vmatprep.subr.bf16.mxu0 0
      %4083 = vmatpush1.bf16.msra.mxu0 %v4070
      %4084 = vmatprep.subr.bf16.mxu0 0
      %4085 = vmatpush1.bf16.msra.mxu0 %v4069
      %4086 = vmatprep.subr.bf16.mxu0 0
      %4087 = vmatpush1.bf16.msra.mxu0 %v4068
      %4088 = vmatprep.subr.bf16.mxu0 0
      %4089 = vmatpush1.bf16.msra.mxu0 %v4067
      %4090 = vmatprep.subr.bf16.mxu0 0
      %4091 = vmatpush1.bf16.msra.mxu0 %v4066
      %4092 = vmatprep.subr.bf16.mxu0 0
      %4093 = vmatpush1.bf16.msra.mxu0 %v4065
      %4094 = vmatprep.subr.bf16.mxu0 0
      %4095 = vmatpush1.bf16.msra.mxu0 %v4064
      %4096 = vmatprep.subr.bf16.mxu0 0
      %4097 = vmatpush2.bf16.msra.mxu0 0
      %4098 = vmatprep.subr.bf16.mxu0 0
      %4099 = vmatpush2.bf16.msra.mxu0 0
      %4100 = vmatprep.subr.bf16.mxu0 0
      %4101 = vmatpush2.bf16.msra.mxu0 0
      %4102 = vmatprep.subr.bf16.mxu0 0
      %4103 = vmatpush2.bf16.msra.mxu0 0
      %4104 = vmatprep.subr.bf16.mxu0 0
      %4105 = vmatpush2.bf16.msra.mxu0 0
      %4106 = vmatprep.subr.bf16.mxu0 0
      %4107 = vmatpush2.bf16.msra.mxu0 0
      %4108 = vmatprep.subr.bf16.mxu0 0
      %4109 = vmatpush2.bf16.msra.mxu0 0
      %4110 = vmatprep.subr.bf16.mxu0 0
      %4111 = vmatpush2.bf16.msra.mxu0 0
      %4112 = vmatprep.mubr.bf16.mxu0 0
      %4113 = vmatmul.mubr.bf16.gmra.mxu0 %v4030
      %v4114 = vpop.f32.mrf.mxu0
      %v4115 = vadd.f32 0.0, %v4114
      %v4116 = vpop.f32.mrf.mxu0
      %v4117 = vpop.f32.mrf.mxu0
      %v4118 = vadd.f32 0.0, %v4117
      %v4119 = vpop.f32.mrf.mxu0
      %4120 = vdwg.mxu0
      %v4121 = vadd.f32 %v3939, %v4115
      %v4122 = vadd.f32 %v3940, %v4118
      %s4123 = scalar_lea.vmem %s332, 4
      %v4124 = vld [vmem:[%s4123] sm:$0x3]
      %v4125 = vld [vmem:[%s4123 + $0x4] sm:$0x3]
      %v4126 = vld [vmem:[%s4123 + $0x8] sm:$0x3]
      %v4127 = vld [vmem:[%s4123 + $0xc] sm:$0x3]
      %s4128 = scalar_lea.vmem %s3, 1344
      %v4129 = vld [vmem:[%s4128] sm:$0xf]
      %v4130 = vld [vmem:[%s4128 + $0x4] sm:$0xf]
      %v4131 = vld [vmem:[%s4128 + $0x8] sm:$0xf]
      %v4132 = vld [vmem:[%s4128 + $0xc] sm:$0xf]
      %v4133 = vld [vmem:[%s4128 + $0x10] sm:$0xf]
      %v4134 = vld [vmem:[%s4128 + $0x14] sm:$0xf]
      %v4135 = vld [vmem:[%s4128 + $0x18] sm:$0xf]
      %v4136 = vld [vmem:[%s4128 + $0x1c] sm:$0xf]
      %v4137 = vld [vmem:[%s4128 + $0x20] sm:$0xf]
      %v4138 = vld [vmem:[%s4128 + $0x24] sm:$0xf]
      %v4139 = vld [vmem:[%s4128 + $0x28] sm:$0xf]
      %v4140 = vld [vmem:[%s4128 + $0x2c] sm:$0xf]
      %v4141 = vld [vmem:[%s4128 + $0x30] sm:$0xf]
      %v4142 = vld [vmem:[%s4128 + $0x34] sm:$0xf]
      %v4143 = vld [vmem:[%s4128 + $0x38] sm:$0xf]
      %v4144 = vld [vmem:[%s4128 + $0x3c] sm:$0xf]
      %v4149 = vcombine.low %v4124, %v4125
      %v4150 = vcombine.low %v4126, %v4127
      %v4152 = vunpack.c.l.s4 1983009808
      %v4153 = vunpack.c.0.s8 %v4152
      %v4154 = vlaneseq
      %v4155 = vshrl.u32 %v4154, 7
      %v4156 = vsub.s32 %v4153, %v4155
      %v4157 = vrot.slane %v4149, %v4156
      %v4159 = vunpack.c.l.s4 1983009808
      %v4160 = vunpack.c.0.s8 %v4159
      %v4161 = vlaneseq
      %v4162 = vshrl.u32 %v4161, 7
      %v4163 = vsub.s32 %v4160, %v4162
      %v4164 = vrot.slane %v4150, %v4163
      %v4165 = vcombine.low %v4157, %v4164
      %v4183 = vunpack.c.l.b16 %v4129
      %v4184 = vunpack.c.l.b16 %v4130
      %v4185 = vunpack.c.l.b16 %v4131
      %v4186 = vunpack.c.l.b16 %v4132
      %v4187 = vunpack.c.l.b16 %v4133
      %v4188 = vunpack.c.l.b16 %v4134
      %v4189 = vunpack.c.l.b16 %v4135
      %v4190 = vunpack.c.l.b16 %v4136
      %v4191 = vunpack.c.l.b16 %v4137
      %v4192 = vunpack.c.l.b16 %v4138
      %v4193 = vunpack.c.l.b16 %v4139
      %v4194 = vunpack.c.l.b16 %v4140
      %v4195 = vunpack.c.l.b16 %v4141
      %v4196 = vunpack.c.l.b16 %v4142
      %v4197 = vunpack.c.l.b16 %v4143
      %v4198 = vunpack.c.l.b16 %v4144
      %v4199 = vpack.c.b16 %v4184, %v4183
      %v4200 = vpack.c.b16 %v4186, %v4185
      %v4201 = vpack.c.b16 %v4188, %v4187
      %v4202 = vpack.c.b16 %v4190, %v4189
      %v4203 = vpack.c.b16 %v4192, %v4191
      %v4204 = vpack.c.b16 %v4194, %v4193
      %v4205 = vpack.c.b16 %v4196, %v4195
      %v4206 = vpack.c.b16 %v4198, %v4197
      %4215 = vmatprep.subr.bf16.mxu0 0
      %4216 = vmatpush1.bf16.msra.mxu0 %v4206
      %4217 = vmatprep.subr.bf16.mxu0 0
      %4218 = vmatpush1.bf16.msra.mxu0 %v4205
      %4219 = vmatprep.subr.bf16.mxu0 0
      %4220 = vmatpush1.bf16.msra.mxu0 %v4204
      %4221 = vmatprep.subr.bf16.mxu0 0
      %4222 = vmatpush1.bf16.msra.mxu0 %v4203
      %4223 = vmatprep.subr.bf16.mxu0 0
      %4224 = vmatpush1.bf16.msra.mxu0 %v4202
      %4225 = vmatprep.subr.bf16.mxu0 0
      %4226 = vmatpush1.bf16.msra.mxu0 %v4201
      %4227 = vmatprep.subr.bf16.mxu0 0
      %4228 = vmatpush1.bf16.msra.mxu0 %v4200
      %4229 = vmatprep.subr.bf16.mxu0 0
      %4230 = vmatpush1.bf16.msra.mxu0 %v4199
      %4231 = vmatprep.subr.bf16.mxu0 0
      %4232 = vmatpush2.bf16.msra.mxu0 0
      %4233 = vmatprep.subr.bf16.mxu0 0
      %4234 = vmatpush2.bf16.msra.mxu0 0
      %4235 = vmatprep.subr.bf16.mxu0 0
      %4236 = vmatpush2.bf16.msra.mxu0 0
      %4237 = vmatprep.subr.bf16.mxu0 0
      %4238 = vmatpush2.bf16.msra.mxu0 0
      %4239 = vmatprep.subr.bf16.mxu0 0
      %4240 = vmatpush2.bf16.msra.mxu0 0
      %4241 = vmatprep.subr.bf16.mxu0 0
      %4242 = vmatpush2.bf16.msra.mxu0 0
      %4243 = vmatprep.subr.bf16.mxu0 0
      %4244 = vmatpush2.bf16.msra.mxu0 0
      %4245 = vmatprep.subr.bf16.mxu0 0
      %4246 = vmatpush2.bf16.msra.mxu0 0
      %4247 = vmatprep.mubr.bf16.mxu0 0
      %4248 = vmatmul.mubr.bf16.gmra.mxu0 %v4165
      %v4249 = vpop.f32.mrf.mxu0
      %v4250 = vadd.f32 0.0, %v4249
      %v4251 = vpop.f32.mrf.mxu0
      %v4252 = vpop.f32.mrf.mxu0
      %v4253 = vadd.f32 0.0, %v4252
      %v4254 = vpop.f32.mrf.mxu0
      %4255 = vdwg.mxu0
      %v4256 = vadd.f32 %v4121, %v4250
      %v4257 = vadd.f32 %v4122, %v4253
      %v4258 = vld [vmem:[%s4123] sm:$0x7]
      %v4259 = vld [vmem:[%s4123 + $0x4] sm:$0x7]
      %v4260 = vld [vmem:[%s4123 + $0x8] sm:$0x7]
      %v4261 = vld [vmem:[%s4123 + $0xc] sm:$0x7]
      %v4267 = vunpack.c.l.s4 1983009808
      %v4268 = vunpack.c.0.s8 %v4267
      %v4269 = vlaneseq
      %v4270 = vshrl.u32 %v4269, 7
      %v4271 = vsub.s32 %v4268, %v4270
      %v4272 = vrot.slane %v4258, %v4271
      %v4273 = vcombine.high %v4272, %v4272
      %v4275 = vunpack.c.l.s4 1983009808
      %v4276 = vunpack.c.0.s8 %v4275
      %v4277 = vlaneseq
      %v4278 = vshrl.u32 %v4277, 7
      %v4279 = vsub.s32 %v4276, %v4278
      %v4280 = vrot.slane %v4259, %v4279
      %v4281 = vcombine.high %v4280, %v4280
      %v4283 = vunpack.c.l.s4 1983009808
      %v4284 = vunpack.c.0.s8 %v4283
      %v4285 = vlaneseq
      %v4286 = vshrl.u32 %v4285, 7
      %v4287 = vsub.s32 %v4284, %v4286
      %v4288 = vrot.slane %v4260, %v4287
      %v4289 = vcombine.high %v4288, %v4288
      %v4291 = vunpack.c.l.s4 1983009808
      %v4292 = vunpack.c.0.s8 %v4291
      %v4293 = vlaneseq
      %v4294 = vshrl.u32 %v4293, 7
      %v4295 = vsub.s32 %v4292, %v4294
      %v4296 = vrot.slane %v4261, %v4295
      %v4297 = vcombine.high %v4296, %v4296
      %v4299 = vshrl.u32 %v4272, 16
      %v4301 = vrot.slane %v4299, 6
      %v4302 = vshll.u32 %v4272, 16
      %v4304 = vrot.slane %v4302, 7
      %v4305 = vor.u32 %v4301, %v4304
      %v4306 = vrot.slane %v4305, 2
      %v4308 = vshll.u32 %v4273, 16
      %v4310 = vrot.slane %v4308, 7
      %v4311 = vsel %vm410, %v4306, %v4310
      %v4313 = vshrl.u32 %v4280, 16
      %v4315 = vrot.slane %v4313, 6
      %v4316 = vshll.u32 %v4280, 16
      %v4318 = vrot.slane %v4316, 7
      %v4319 = vor.u32 %v4315, %v4318
      %v4320 = vrot.slane %v4319, 2
      %v4322 = vshll.u32 %v4281, 16
      %v4324 = vrot.slane %v4322, 7
      %v4325 = vsel %vm410, %v4320, %v4324
      %v4327 = vshrl.u32 %v4288, 16
      %v4329 = vrot.slane %v4327, 6
      %v4330 = vshll.u32 %v4288, 16
      %v4332 = vrot.slane %v4330, 7
      %v4333 = vor.u32 %v4329, %v4332
      %v4334 = vrot.slane %v4333, 2
      %v4336 = vshll.u32 %v4289, 16
      %v4338 = vrot.slane %v4336, 7
      %v4339 = vsel %vm410, %v4334, %v4338
      %v4341 = vshrl.u32 %v4296, 16
      %v4343 = vrot.slane %v4341, 6
      %v4344 = vshll.u32 %v4296, 16
      %v4346 = vrot.slane %v4344, 7
      %v4347 = vor.u32 %v4343, %v4346
      %v4348 = vrot.slane %v4347, 2
      %v4350 = vshll.u32 %v4297, 16
      %v4352 = vrot.slane %v4350, 7
      %v4353 = vsel %vm410, %v4348, %v4352
      %s4354 = scalar_lea.vmem %s3, 1408
      %v4355 = vld [vmem:[%s4354] sm:$0xf]
      %v4356 = vld [vmem:[%s4354 + $0x4] sm:$0xf]
      %v4357 = vld [vmem:[%s4354 + $0x8] sm:$0xf]
      %v4358 = vld [vmem:[%s4354 + $0xc] sm:$0xf]
      %v4359 = vld [vmem:[%s4354 + $0x10] sm:$0xf]
      %v4360 = vld [vmem:[%s4354 + $0x14] sm:$0xf]
      %v4361 = vld [vmem:[%s4354 + $0x18] sm:$0xf]
      %v4362 = vld [vmem:[%s4354 + $0x1c] sm:$0xf]
      %v4363 = vld [vmem:[%s4354 + $0x20] sm:$0xf]
      %v4364 = vld [vmem:[%s4354 + $0x24] sm:$0xf]
      %v4365 = vld [vmem:[%s4354 + $0x28] sm:$0xf]
      %v4366 = vld [vmem:[%s4354 + $0x2c] sm:$0xf]
      %v4367 = vld [vmem:[%s4354 + $0x30] sm:$0xf]
      %v4368 = vld [vmem:[%s4354 + $0x34] sm:$0xf]
      %v4369 = vld [vmem:[%s4354 + $0x38] sm:$0xf]
      %v4370 = vld [vmem:[%s4354 + $0x3c] sm:$0xf]
      %v4371 = vcombine.low %v4311, %v4325
      %v4372 = vcombine.low %v4339, %v4353
      %v4374 = vunpack.c.l.s4 1983009808
      %v4375 = vunpack.c.0.s8 %v4374
      %v4376 = vlaneseq
      %v4377 = vshrl.u32 %v4376, 7
      %v4378 = vsub.s32 %v4375, %v4377
      %v4379 = vrot.slane %v4371, %v4378
      %v4381 = vunpack.c.l.s4 1983009808
      %v4382 = vunpack.c.0.s8 %v4381
      %v4383 = vlaneseq
      %v4384 = vshrl.u32 %v4383, 7
      %v4385 = vsub.s32 %v4382, %v4384
      %v4386 = vrot.slane %v4372, %v4385
      %v4387 = vcombine.low %v4379, %v4386
      %v4405 = vunpack.c.l.b16 %v4355
      %v4406 = vunpack.c.l.b16 %v4356
      %v4407 = vunpack.c.l.b16 %v4357
      %v4408 = vunpack.c.l.b16 %v4358
      %v4409 = vunpack.c.l.b16 %v4359
      %v4410 = vunpack.c.l.b16 %v4360
      %v4411 = vunpack.c.l.b16 %v4361
      %v4412 = vunpack.c.l.b16 %v4362
      %v4413 = vunpack.c.l.b16 %v4363
      %v4414 = vunpack.c.l.b16 %v4364
      %v4415 = vunpack.c.l.b16 %v4365
      %v4416 = vunpack.c.l.b16 %v4366
      %v4417 = vunpack.c.l.b16 %v4367
      %v4418 = vunpack.c.l.b16 %v4368
      %v4419 = vunpack.c.l.b16 %v4369
      %v4420 = vunpack.c.l.b16 %v4370
      %v4421 = vpack.c.b16 %v4406, %v4405
      %v4422 = vpack.c.b16 %v4408, %v4407
      %v4423 = vpack.c.b16 %v4410, %v4409
      %v4424 = vpack.c.b16 %v4412, %v4411
      %v4425 = vpack.c.b16 %v4414, %v4413
      %v4426 = vpack.c.b16 %v4416, %v4415
      %v4427 = vpack.c.b16 %v4418, %v4417
      %v4428 = vpack.c.b16 %v4420, %v4419
      %4437 = vmatprep.subr.bf16.mxu0 0
      %4438 = vmatpush1.bf16.msra.mxu0 %v4428
      %4439 = vmatprep.subr.bf16.mxu0 0
      %4440 = vmatpush1.bf16.msra.mxu0 %v4427
      %4441 = vmatprep.subr.bf16.mxu0 0
      %4442 = vmatpush1.bf16.msra.mxu0 %v4426
      %4443 = vmatprep.subr.bf16.mxu0 0
      %4444 = vmatpush1.bf16.msra.mxu0 %v4425
      %4445 = vmatprep.subr.bf16.mxu0 0
      %4446 = vmatpush1.bf16.msra.mxu0 %v4424
      %4447 = vmatprep.subr.bf16.mxu0 0
      %4448 = vmatpush1.bf16.msra.mxu0 %v4423
      %4449 = vmatprep.subr.bf16.mxu0 0
      %4450 = vmatpush1.bf16.msra.mxu0 %v4422
      %4451 = vmatprep.subr.bf16.mxu0 0
      %4452 = vmatpush1.bf16.msra.mxu0 %v4421
      %4453 = vmatprep.subr.bf16.mxu0 0
      %4454 = vmatpush2.bf16.msra.mxu0 0
      %4455 = vmatprep.subr.bf16.mxu0 0
      %4456 = vmatpush2.bf16.msra.mxu0 0
      %4457 = vmatprep.subr.bf16.mxu0 0
      %4458 = vmatpush2.bf16.msra.mxu0 0
      %4459 = vmatprep.subr.bf16.mxu0 0
      %4460 = vmatpush2.bf16.msra.mxu0 0
      %4461 = vmatprep.subr.bf16.mxu0 0
      %4462 = vmatpush2.bf16.msra.mxu0 0
      %4463 = vmatprep.subr.bf16.mxu0 0
      %4464 = vmatpush2.bf16.msra.mxu0 0
      %4465 = vmatprep.subr.bf16.mxu0 0
      %4466 = vmatpush2.bf16.msra.mxu0 0
      %4467 = vmatprep.subr.bf16.mxu0 0
      %4468 = vmatpush2.bf16.msra.mxu0 0
      %4469 = vmatprep.mubr.bf16.mxu0 0
      %4470 = vmatmul.mubr.bf16.gmra.mxu0 %v4387
      %v4471 = vpop.f32.mrf.mxu0
      %v4472 = vadd.f32 0.0, %v4471
      %v4473 = vpop.f32.mrf.mxu0
      %v4474 = vpop.f32.mrf.mxu0
      %v4475 = vadd.f32 0.0, %v4474
      %v4476 = vpop.f32.mrf.mxu0
      %4477 = vdwg.mxu0
      %v4478 = vadd.f32 %v4256, %v4472
      %v4479 = vadd.f32 %v4257, %v4475
      %v4480 = vld [vmem:[%s4123] sm:$0x6]
      %v4481 = vld [vmem:[%s4123 + $0x4] sm:$0x6]
      %v4482 = vld [vmem:[%s4123 + $0x8] sm:$0x6]
      %v4483 = vld [vmem:[%s4123 + $0xc] sm:$0x6]
      %v4489 = vunpack.c.l.s4 1983009808
      %v4490 = vunpack.c.0.s8 %v4489
      %v4491 = vlaneseq
      %v4492 = vshrl.u32 %v4491, 7
      %v4493 = vsub.s32 %v4490, %v4492
      %v4494 = vrot.slane %v4480, %v4493
      %v4495 = vcombine.high %v4494, %v4494
      %v4497 = vunpack.c.l.s4 1983009808
      %v4498 = vunpack.c.0.s8 %v4497
      %v4499 = vlaneseq
      %v4500 = vshrl.u32 %v4499, 7
      %v4501 = vsub.s32 %v4498, %v4500
      %v4502 = vrot.slane %v4481, %v4501
      %v4503 = vcombine.high %v4502, %v4502
      %v4505 = vunpack.c.l.s4 1983009808
      %v4506 = vunpack.c.0.s8 %v4505
      %v4507 = vlaneseq
      %v4508 = vshrl.u32 %v4507, 7
      %v4509 = vsub.s32 %v4506, %v4508
      %v4510 = vrot.slane %v4482, %v4509
      %v4511 = vcombine.high %v4510, %v4510
      %v4513 = vunpack.c.l.s4 1983009808
      %v4514 = vunpack.c.0.s8 %v4513
      %v4515 = vlaneseq
      %v4516 = vshrl.u32 %v4515, 7
      %v4517 = vsub.s32 %v4514, %v4516
      %v4518 = vrot.slane %v4483, %v4517
      %v4519 = vcombine.high %v4518, %v4518
      %v4520 = vrot.slane %v4494, 7
      %v4521 = vrot.slane %v4520, 2
      %v4522 = vrot.slane %v4495, 7
      %v4523 = vsel %vm748, %v4521, %v4522
      %v4524 = vrot.slane %v4502, 7
      %v4525 = vrot.slane %v4524, 2
      %v4526 = vrot.slane %v4503, 7
      %v4527 = vsel %vm748, %v4525, %v4526
      %v4528 = vrot.slane %v4510, 7
      %v4529 = vrot.slane %v4528, 2
      %v4530 = vrot.slane %v4511, 7
      %v4531 = vsel %vm748, %v4529, %v4530
      %v4532 = vrot.slane %v4518, 7
      %v4533 = vrot.slane %v4532, 2
      %v4534 = vrot.slane %v4519, 7
      %v4535 = vsel %vm748, %v4533, %v4534
      %s4536 = scalar_lea.vmem %s3, 1472
      %v4537 = vld [vmem:[%s4536] sm:$0xf]
      %v4538 = vld [vmem:[%s4536 + $0x4] sm:$0xf]
      %v4539 = vld [vmem:[%s4536 + $0x8] sm:$0xf]
      %v4540 = vld [vmem:[%s4536 + $0xc] sm:$0xf]
      %v4541 = vld [vmem:[%s4536 + $0x10] sm:$0xf]
      %v4542 = vld [vmem:[%s4536 + $0x14] sm:$0xf]
      %v4543 = vld [vmem:[%s4536 + $0x18] sm:$0xf]
      %v4544 = vld [vmem:[%s4536 + $0x1c] sm:$0xf]
      %v4545 = vld [vmem:[%s4536 + $0x20] sm:$0xf]
      %v4546 = vld [vmem:[%s4536 + $0x24] sm:$0xf]
      %v4547 = vld [vmem:[%s4536 + $0x28] sm:$0xf]
      %v4548 = vld [vmem:[%s4536 + $0x2c] sm:$0xf]
      %v4549 = vld [vmem:[%s4536 + $0x30] sm:$0xf]
      %v4550 = vld [vmem:[%s4536 + $0x34] sm:$0xf]
      %v4551 = vld [vmem:[%s4536 + $0x38] sm:$0xf]
      %v4552 = vld [vmem:[%s4536 + $0x3c] sm:$0xf]
      %v4553 = vcombine.low %v4523, %v4527
      %v4554 = vcombine.low %v4531, %v4535
      %v4556 = vunpack.c.l.s4 1983009808
      %v4557 = vunpack.c.0.s8 %v4556
      %v4558 = vlaneseq
      %v4559 = vshrl.u32 %v4558, 7
      %v4560 = vsub.s32 %v4557, %v4559
      %v4561 = vrot.slane %v4553, %v4560
      %v4563 = vunpack.c.l.s4 1983009808
      %v4564 = vunpack.c.0.s8 %v4563
      %v4565 = vlaneseq
      %v4566 = vshrl.u32 %v4565, 7
      %v4567 = vsub.s32 %v4564, %v4566
      %v4568 = vrot.slane %v4554, %v4567
      %v4569 = vcombine.low %v4561, %v4568
      %v4587 = vunpack.c.l.b16 %v4537
      %v4588 = vunpack.c.l.b16 %v4538
      %v4589 = vunpack.c.l.b16 %v4539
      %v4590 = vunpack.c.l.b16 %v4540
      %v4591 = vunpack.c.l.b16 %v4541
      %v4592 = vunpack.c.l.b16 %v4542
      %v4593 = vunpack.c.l.b16 %v4543
      %v4594 = vunpack.c.l.b16 %v4544
      %v4595 = vunpack.c.l.b16 %v4545
      %v4596 = vunpack.c.l.b16 %v4546
      %v4597 = vunpack.c.l.b16 %v4547
      %v4598 = vunpack.c.l.b16 %v4548
      %v4599 = vunpack.c.l.b16 %v4549
      %v4600 = vunpack.c.l.b16 %v4550
      %v4601 = vunpack.c.l.b16 %v4551
      %v4602 = vunpack.c.l.b16 %v4552
      %v4603 = vpack.c.b16 %v4588, %v4587
      %v4604 = vpack.c.b16 %v4590, %v4589
      %v4605 = vpack.c.b16 %v4592, %v4591
      %v4606 = vpack.c.b16 %v4594, %v4593
      %v4607 = vpack.c.b16 %v4596, %v4595
      %v4608 = vpack.c.b16 %v4598, %v4597
      %v4609 = vpack.c.b16 %v4600, %v4599
      %v4610 = vpack.c.b16 %v4602, %v4601
      %4619 = vmatprep.subr.bf16.mxu0 0
      %4620 = vmatpush1.bf16.msra.mxu0 %v4610
      %4621 = vmatprep.subr.bf16.mxu0 0
      %4622 = vmatpush1.bf16.msra.mxu0 %v4609
      %4623 = vmatprep.subr.bf16.mxu0 0
      %4624 = vmatpush1.bf16.msra.mxu0 %v4608
      %4625 = vmatprep.subr.bf16.mxu0 0
      %4626 = vmatpush1.bf16.msra.mxu0 %v4607
      %4627 = vmatprep.subr.bf16.mxu0 0
      %4628 = vmatpush1.bf16.msra.mxu0 %v4606
      %4629 = vmatprep.subr.bf16.mxu0 0
      %4630 = vmatpush1.bf16.msra.mxu0 %v4605
      %4631 = vmatprep.subr.bf16.mxu0 0
      %4632 = vmatpush1.bf16.msra.mxu0 %v4604
      %4633 = vmatprep.subr.bf16.mxu0 0
      %4634 = vmatpush1.bf16.msra.mxu0 %v4603
      %4635 = vmatprep.subr.bf16.mxu0 0
      %4636 = vmatpush2.bf16.msra.mxu0 0
      %4637 = vmatprep.subr.bf16.mxu0 0
      %4638 = vmatpush2.bf16.msra.mxu0 0
      %4639 = vmatprep.subr.bf16.mxu0 0
      %4640 = vmatpush2.bf16.msra.mxu0 0
      %4641 = vmatprep.subr.bf16.mxu0 0
      %4642 = vmatpush2.bf16.msra.mxu0 0
      %4643 = vmatprep.subr.bf16.mxu0 0
      %4644 = vmatpush2.bf16.msra.mxu0 0
      %4645 = vmatprep.subr.bf16.mxu0 0
      %4646 = vmatpush2.bf16.msra.mxu0 0
      %4647 = vmatprep.subr.bf16.mxu0 0
      %4648 = vmatpush2.bf16.msra.mxu0 0
      %4649 = vmatprep.subr.bf16.mxu0 0
      %4650 = vmatpush2.bf16.msra.mxu0 0
      %4651 = vmatprep.mubr.bf16.mxu0 0
      %4652 = vmatmul.mubr.bf16.gmra.mxu0 %v4569
      %v4653 = vpop.f32.mrf.mxu0
      %v4654 = vadd.f32 0.0, %v4653
      %v4655 = vpop.f32.mrf.mxu0
      %v4656 = vpop.f32.mrf.mxu0
      %v4657 = vadd.f32 0.0, %v4656
      %v4658 = vpop.f32.mrf.mxu0
      %4659 = vdwg.mxu0
      %v4660 = vadd.f32 %v4478, %v4654
      %v4661 = vadd.f32 %v4479, %v4657
      %s4662 = scalar_lea.vmem %s332, 8
      %v4663 = vld [vmem:[%s4662] sm:$0x3]
      %v4664 = vld [vmem:[%s4662 + $0x4] sm:$0x3]
      %v4665 = vld [vmem:[%s4662 + $0x8] sm:$0x3]
      %v4666 = vld [vmem:[%s4662 + $0xc] sm:$0x3]
      %s4667 = scalar_lea.vmem %s3, 1536
      %v4668 = vld [vmem:[%s4667] sm:$0xf]
      %v4669 = vld [vmem:[%s4667 + $0x4] sm:$0xf]
      %v4670 = vld [vmem:[%s4667 + $0x8] sm:$0xf]
      %v4671 = vld [vmem:[%s4667 + $0xc] sm:$0xf]
      %v4672 = vld [vmem:[%s4667 + $0x10] sm:$0xf]
      %v4673 = vld [vmem:[%s4667 + $0x14] sm:$0xf]
      %v4674 = vld [vmem:[%s4667 + $0x18] sm:$0xf]
      %v4675 = vld [vmem:[%s4667 + $0x1c] sm:$0xf]
      %v4676 = vld [vmem:[%s4667 + $0x20] sm:$0xf]
      %v4677 = vld [vmem:[%s4667 + $0x24] sm:$0xf]
      %v4678 = vld [vmem:[%s4667 + $0x28] sm:$0xf]
      %v4679 = vld [vmem:[%s4667 + $0x2c] sm:$0xf]
      %v4680 = vld [vmem:[%s4667 + $0x30] sm:$0xf]
      %v4681 = vld [vmem:[%s4667 + $0x34] sm:$0xf]
      %v4682 = vld [vmem:[%s4667 + $0x38] sm:$0xf]
      %v4683 = vld [vmem:[%s4667 + $0x3c] sm:$0xf]
      %v4688 = vcombine.low %v4663, %v4664
      %v4689 = vcombine.low %v4665, %v4666
      %v4691 = vunpack.c.l.s4 1983009808
      %v4692 = vunpack.c.0.s8 %v4691
      %v4693 = vlaneseq
      %v4694 = vshrl.u32 %v4693, 7
      %v4695 = vsub.s32 %v4692, %v4694
      %v4696 = vrot.slane %v4688, %v4695
      %v4698 = vunpack.c.l.s4 1983009808
      %v4699 = vunpack.c.0.s8 %v4698
      %v4700 = vlaneseq
      %v4701 = vshrl.u32 %v4700, 7
      %v4702 = vsub.s32 %v4699, %v4701
      %v4703 = vrot.slane %v4689, %v4702
      %v4704 = vcombine.low %v4696, %v4703
      %v4722 = vunpack.c.l.b16 %v4668
      %v4723 = vunpack.c.l.b16 %v4669
      %v4724 = vunpack.c.l.b16 %v4670
      %v4725 = vunpack.c.l.b16 %v4671
      %v4726 = vunpack.c.l.b16 %v4672
      %v4727 = vunpack.c.l.b16 %v4673
      %v4728 = vunpack.c.l.b16 %v4674
      %v4729 = vunpack.c.l.b16 %v4675
      %v4730 = vunpack.c.l.b16 %v4676
      %v4731 = vunpack.c.l.b16 %v4677
      %v4732 = vunpack.c.l.b16 %v4678
      %v4733 = vunpack.c.l.b16 %v4679
      %v4734 = vunpack.c.l.b16 %v4680
      %v4735 = vunpack.c.l.b16 %v4681
      %v4736 = vunpack.c.l.b16 %v4682
      %v4737 = vunpack.c.l.b16 %v4683
      %v4738 = vpack.c.b16 %v4723, %v4722
      %v4739 = vpack.c.b16 %v4725, %v4724
      %v4740 = vpack.c.b16 %v4727, %v4726
      %v4741 = vpack.c.b16 %v4729, %v4728
      %v4742 = vpack.c.b16 %v4731, %v4730
      %v4743 = vpack.c.b16 %v4733, %v4732
      %v4744 = vpack.c.b16 %v4735, %v4734
      %v4745 = vpack.c.b16 %v4737, %v4736
      %4754 = vmatprep.subr.bf16.mxu0 0
      %4755 = vmatpush1.bf16.msra.mxu0 %v4745
      %4756 = vmatprep.subr.bf16.mxu0 0
      %4757 = vmatpush1.bf16.msra.mxu0 %v4744
      %4758 = vmatprep.subr.bf16.mxu0 0
      %4759 = vmatpush1.bf16.msra.mxu0 %v4743
      %4760 = vmatprep.subr.bf16.mxu0 0
      %4761 = vmatpush1.bf16.msra.mxu0 %v4742
      %4762 = vmatprep.subr.bf16.mxu0 0
      %4763 = vmatpush1.bf16.msra.mxu0 %v4741
      %4764 = vmatprep.subr.bf16.mxu0 0
      %4765 = vmatpush1.bf16.msra.mxu0 %v4740
      %4766 = vmatprep.subr.bf16.mxu0 0
      %4767 = vmatpush1.bf16.msra.mxu0 %v4739
      %4768 = vmatprep.subr.bf16.mxu0 0
      %4769 = vmatpush1.bf16.msra.mxu0 %v4738
      %4770 = vmatprep.subr.bf16.mxu0 0
      %4771 = vmatpush2.bf16.msra.mxu0 0
      %4772 = vmatprep.subr.bf16.mxu0 0
      %4773 = vmatpush2.bf16.msra.mxu0 0
      %4774 = vmatprep.subr.bf16.mxu0 0
      %4775 = vmatpush2.bf16.msra.mxu0 0
      %4776 = vmatprep.subr.bf16.mxu0 0
      %4777 = vmatpush2.bf16.msra.mxu0 0
      %4778 = vmatprep.subr.bf16.mxu0 0
      %4779 = vmatpush2.bf16.msra.mxu0 0
      %4780 = vmatprep.subr.bf16.mxu0 0
      %4781 = vmatpush2.bf16.msra.mxu0 0
      %4782 = vmatprep.subr.bf16.mxu0 0
      %4783 = vmatpush2.bf16.msra.mxu0 0
      %4784 = vmatprep.subr.bf16.mxu0 0
      %4785 = vmatpush2.bf16.msra.mxu0 0
      %4786 = vmatprep.mubr.bf16.mxu0 0
      %4787 = vmatmul.mubr.bf16.gmra.mxu0 %v4704
      %v4788 = vpop.f32.mrf.mxu0
      %v4789 = vadd.f32 0.0, %v4788
      %v4790 = vpop.f32.mrf.mxu0
      %v4791 = vpop.f32.mrf.mxu0
      %v4792 = vadd.f32 0.0, %v4791
      %v4793 = vpop.f32.mrf.mxu0
      %4794 = vdwg.mxu0
      %v4795 = vadd.f32 %v4660, %v4789
      %v4796 = vadd.f32 %v4661, %v4792
      %v4797 = vld [vmem:[%s4662] sm:$0x7]
      %v4798 = vld [vmem:[%s4662 + $0x4] sm:$0x7]
      %v4799 = vld [vmem:[%s4662 + $0x8] sm:$0x7]
      %v4800 = vld [vmem:[%s4662 + $0xc] sm:$0x7]
      %v4806 = vunpack.c.l.s4 1983009808
      %v4807 = vunpack.c.0.s8 %v4806
      %v4808 = vlaneseq
      %v4809 = vshrl.u32 %v4808, 7
      %v4810 = vsub.s32 %v4807, %v4809
      %v4811 = vrot.slane %v4797, %v4810
      %v4812 = vcombine.high %v4811, %v4811
      %v4814 = vunpack.c.l.s4 1983009808
      %v4815 = vunpack.c.0.s8 %v4814
      %v4816 = vlaneseq
      %v4817 = vshrl.u32 %v4816, 7
      %v4818 = vsub.s32 %v4815, %v4817
      %v4819 = vrot.slane %v4798, %v4818
      %v4820 = vcombine.high %v4819, %v4819
      %v4822 = vunpack.c.l.s4 1983009808
      %v4823 = vunpack.c.0.s8 %v4822
      %v4824 = vlaneseq
      %v4825 = vshrl.u32 %v4824, 7
      %v4826 = vsub.s32 %v4823, %v4825
      %v4827 = vrot.slane %v4799, %v4826
      %v4828 = vcombine.high %v4827, %v4827
      %v4830 = vunpack.c.l.s4 1983009808
      %v4831 = vunpack.c.0.s8 %v4830
      %v4832 = vlaneseq
      %v4833 = vshrl.u32 %v4832, 7
      %v4834 = vsub.s32 %v4831, %v4833
      %v4835 = vrot.slane %v4800, %v4834
      %v4836 = vcombine.high %v4835, %v4835
      %v4838 = vshrl.u32 %v4811, 16
      %v4840 = vrot.slane %v4838, 6
      %v4841 = vshll.u32 %v4811, 16
      %v4843 = vrot.slane %v4841, 7
      %v4844 = vor.u32 %v4840, %v4843
      %v4845 = vrot.slane %v4844, 2
      %v4847 = vshll.u32 %v4812, 16
      %v4849 = vrot.slane %v4847, 7
      %v4850 = vsel %vm410, %v4845, %v4849
      %v4852 = vshrl.u32 %v4819, 16
      %v4854 = vrot.slane %v4852, 6
      %v4855 = vshll.u32 %v4819, 16
      %v4857 = vrot.slane %v4855, 7
      %v4858 = vor.u32 %v4854, %v4857
      %v4859 = vrot.slane %v4858, 2
      %v4861 = vshll.u32 %v4820, 16
      %v4863 = vrot.slane %v4861, 7
      %v4864 = vsel %vm410, %v4859, %v4863
      %v4866 = vshrl.u32 %v4827, 16
      %v4868 = vrot.slane %v4866, 6
      %v4869 = vshll.u32 %v4827, 16
      %v4871 = vrot.slane %v4869, 7
      %v4872 = vor.u32 %v4868, %v4871
      %v4873 = vrot.slane %v4872, 2
      %v4875 = vshll.u32 %v4828, 16
      %v4877 = vrot.slane %v4875, 7
      %v4878 = vsel %vm410, %v4873, %v4877
      %v4880 = vshrl.u32 %v4835, 16
      %v4882 = vrot.slane %v4880, 6
      %v4883 = vshll.u32 %v4835, 16
      %v4885 = vrot.slane %v4883, 7
      %v4886 = vor.u32 %v4882, %v4885
      %v4887 = vrot.slane %v4886, 2
      %v4889 = vshll.u32 %v4836, 16
      %v4891 = vrot.slane %v4889, 7
      %v4892 = vsel %vm410, %v4887, %v4891
      %s4893 = scalar_lea.vmem %s3, 1600
      %v4894 = vld [vmem:[%s4893] sm:$0xf]
      %v4895 = vld [vmem:[%s4893 + $0x4] sm:$0xf]
      %v4896 = vld [vmem:[%s4893 + $0x8] sm:$0xf]
      %v4897 = vld [vmem:[%s4893 + $0xc] sm:$0xf]
      %v4898 = vld [vmem:[%s4893 + $0x10] sm:$0xf]
      %v4899 = vld [vmem:[%s4893 + $0x14] sm:$0xf]
      %v4900 = vld [vmem:[%s4893 + $0x18] sm:$0xf]
      %v4901 = vld [vmem:[%s4893 + $0x1c] sm:$0xf]
      %v4902 = vld [vmem:[%s4893 + $0x20] sm:$0xf]
      %v4903 = vld [vmem:[%s4893 + $0x24] sm:$0xf]
      %v4904 = vld [vmem:[%s4893 + $0x28] sm:$0xf]
      %v4905 = vld [vmem:[%s4893 + $0x2c] sm:$0xf]
      %v4906 = vld [vmem:[%s4893 + $0x30] sm:$0xf]
      %v4907 = vld [vmem:[%s4893 + $0x34] sm:$0xf]
      %v4908 = vld [vmem:[%s4893 + $0x38] sm:$0xf]
      %v4909 = vld [vmem:[%s4893 + $0x3c] sm:$0xf]
      %v4910 = vcombine.low %v4850, %v4864
      %v4911 = vcombine.low %v4878, %v4892
      %v4913 = vunpack.c.l.s4 1983009808
      %v4914 = vunpack.c.0.s8 %v4913
      %v4915 = vlaneseq
      %v4916 = vshrl.u32 %v4915, 7
      %v4917 = vsub.s32 %v4914, %v4916
      %v4918 = vrot.slane %v4910, %v4917
      %v4920 = vunpack.c.l.s4 1983009808
      %v4921 = vunpack.c.0.s8 %v4920
      %v4922 = vlaneseq
      %v4923 = vshrl.u32 %v4922, 7
      %v4924 = vsub.s32 %v4921, %v4923
      %v4925 = vrot.slane %v4911, %v4924
      %v4926 = vcombine.low %v4918, %v4925
      %v4944 = vunpack.c.l.b16 %v4894
      %v4945 = vunpack.c.l.b16 %v4895
      %v4946 = vunpack.c.l.b16 %v4896
      %v4947 = vunpack.c.l.b16 %v4897
      %v4948 = vunpack.c.l.b16 %v4898
      %v4949 = vunpack.c.l.b16 %v4899
      %v4950 = vunpack.c.l.b16 %v4900
      %v4951 = vunpack.c.l.b16 %v4901
      %v4952 = vunpack.c.l.b16 %v4902
      %v4953 = vunpack.c.l.b16 %v4903
      %v4954 = vunpack.c.l.b16 %v4904
      %v4955 = vunpack.c.l.b16 %v4905
      %v4956 = vunpack.c.l.b16 %v4906
      %v4957 = vunpack.c.l.b16 %v4907
      %v4958 = vunpack.c.l.b16 %v4908
      %v4959 = vunpack.c.l.b16 %v4909
      %v4960 = vpack.c.b16 %v4945, %v4944
      %v4961 = vpack.c.b16 %v4947, %v4946
      %v4962 = vpack.c.b16 %v4949, %v4948
      %v4963 = vpack.c.b16 %v4951, %v4950
      %v4964 = vpack.c.b16 %v4953, %v4952
      %v4965 = vpack.c.b16 %v4955, %v4954
      %v4966 = vpack.c.b16 %v4957, %v4956
      %v4967 = vpack.c.b16 %v4959, %v4958
      %4976 = vmatprep.subr.bf16.mxu0 0
      %4977 = vmatpush1.bf16.msra.mxu0 %v4967
      %4978 = vmatprep.subr.bf16.mxu0 0
      %4979 = vmatpush1.bf16.msra.mxu0 %v4966
      %4980 = vmatprep.subr.bf16.mxu0 0
      %4981 = vmatpush1.bf16.msra.mxu0 %v4965
      %4982 = vmatprep.subr.bf16.mxu0 0
      %4983 = vmatpush1.bf16.msra.mxu0 %v4964
      %4984 = vmatprep.subr.bf16.mxu0 0
      %4985 = vmatpush1.bf16.msra.mxu0 %v4963
      %4986 = vmatprep.subr.bf16.mxu0 0
      %4987 = vmatpush1.bf16.msra.mxu0 %v4962
      %4988 = vmatprep.subr.bf16.mxu0 0
      %4989 = vmatpush1.bf16.msra.mxu0 %v4961
      %4990 = vmatprep.subr.bf16.mxu0 0
      %4991 = vmatpush1.bf16.msra.mxu0 %v4960
      %4992 = vmatprep.subr.bf16.mxu0 0
      %4993 = vmatpush2.bf16.msra.mxu0 0
      %4994 = vmatprep.subr.bf16.mxu0 0
      %4995 = vmatpush2.bf16.msra.mxu0 0
      %4996 = vmatprep.subr.bf16.mxu0 0
      %4997 = vmatpush2.bf16.msra.mxu0 0
      %4998 = vmatprep.subr.bf16.mxu0 0
      %4999 = vmatpush2.bf16.msra.mxu0 0
      %5000 = vmatprep.subr.bf16.mxu0 0
      %5001 = vmatpush2.bf16.msra.mxu0 0
      %5002 = vmatprep.subr.bf16.mxu0 0
      %5003 = vmatpush2.bf16.msra.mxu0 0
      %5004 = vmatprep.subr.bf16.mxu0 0
      %5005 = vmatpush2.bf16.msra.mxu0 0
      %5006 = vmatprep.subr.bf16.mxu0 0
      %5007 = vmatpush2.bf16.msra.mxu0 0
      %5008 = vmatprep.mubr.bf16.mxu0 0
      %5009 = vmatmul.mubr.bf16.gmra.mxu0 %v4926
      %v5010 = vpop.f32.mrf.mxu0
      %v5011 = vadd.f32 0.0, %v5010
      %v5012 = vpop.f32.mrf.mxu0
      %v5013 = vpop.f32.mrf.mxu0
      %v5014 = vadd.f32 0.0, %v5013
      %v5015 = vpop.f32.mrf.mxu0
      %5016 = vdwg.mxu0
      %v5017 = vadd.f32 %v4795, %v5011
      %v5018 = vadd.f32 %v4796, %v5014
      %v5019 = vld [vmem:[%s4662] sm:$0x6]
      %v5020 = vld [vmem:[%s4662 + $0x4] sm:$0x6]
      %v5021 = vld [vmem:[%s4662 + $0x8] sm:$0x6]
      %v5022 = vld [vmem:[%s4662 + $0xc] sm:$0x6]
      %v5028 = vunpack.c.l.s4 1983009808
      %v5029 = vunpack.c.0.s8 %v5028
      %v5030 = vlaneseq
      %v5031 = vshrl.u32 %v5030, 7
      %v5032 = vsub.s32 %v5029, %v5031
      %v5033 = vrot.slane %v5019, %v5032
      %v5034 = vcombine.high %v5033, %v5033
      %v5036 = vunpack.c.l.s4 1983009808
      %v5037 = vunpack.c.0.s8 %v5036
      %v5038 = vlaneseq
      %v5039 = vshrl.u32 %v5038, 7
      %v5040 = vsub.s32 %v5037, %v5039
      %v5041 = vrot.slane %v5020, %v5040
      %v5042 = vcombine.high %v5041, %v5041
      %v5044 = vunpack.c.l.s4 1983009808
      %v5045 = vunpack.c.0.s8 %v5044
      %v5046 = vlaneseq
      %v5047 = vshrl.u32 %v5046, 7
      %v5048 = vsub.s32 %v5045, %v5047
      %v5049 = vrot.slane %v5021, %v5048
      %v5050 = vcombine.high %v5049, %v5049
      %v5052 = vunpack.c.l.s4 1983009808
      %v5053 = vunpack.c.0.s8 %v5052
      %v5054 = vlaneseq
      %v5055 = vshrl.u32 %v5054, 7
      %v5056 = vsub.s32 %v5053, %v5055
      %v5057 = vrot.slane %v5022, %v5056
      %v5058 = vcombine.high %v5057, %v5057
      %v5059 = vrot.slane %v5033, 7
      %v5060 = vrot.slane %v5059, 2
      %v5061 = vrot.slane %v5034, 7
      %v5062 = vsel %vm748, %v5060, %v5061
      %v5063 = vrot.slane %v5041, 7
      %v5064 = vrot.slane %v5063, 2
      %v5065 = vrot.slane %v5042, 7
      %v5066 = vsel %vm748, %v5064, %v5065
      %v5067 = vrot.slane %v5049, 7
      %v5068 = vrot.slane %v5067, 2
      %v5069 = vrot.slane %v5050, 7
      %v5070 = vsel %vm748, %v5068, %v5069
      %v5071 = vrot.slane %v5057, 7
      %v5072 = vrot.slane %v5071, 2
      %v5073 = vrot.slane %v5058, 7
      %v5074 = vsel %vm748, %v5072, %v5073
      %s5075 = scalar_lea.vmem %s3, 1664
      %v5076 = vld [vmem:[%s5075] sm:$0xf]
      %v5077 = vld [vmem:[%s5075 + $0x4] sm:$0xf]
      %v5078 = vld [vmem:[%s5075 + $0x8] sm:$0xf]
      %v5079 = vld [vmem:[%s5075 + $0xc] sm:$0xf]
      %v5080 = vld [vmem:[%s5075 + $0x10] sm:$0xf]
      %v5081 = vld [vmem:[%s5075 + $0x14] sm:$0xf]
      %v5082 = vld [vmem:[%s5075 + $0x18] sm:$0xf]
      %v5083 = vld [vmem:[%s5075 + $0x1c] sm:$0xf]
      %v5084 = vld [vmem:[%s5075 + $0x20] sm:$0xf]
      %v5085 = vld [vmem:[%s5075 + $0x24] sm:$0xf]
      %v5086 = vld [vmem:[%s5075 + $0x28] sm:$0xf]
      %v5087 = vld [vmem:[%s5075 + $0x2c] sm:$0xf]
      %v5088 = vld [vmem:[%s5075 + $0x30] sm:$0xf]
      %v5089 = vld [vmem:[%s5075 + $0x34] sm:$0xf]
      %v5090 = vld [vmem:[%s5075 + $0x38] sm:$0xf]
      %v5091 = vld [vmem:[%s5075 + $0x3c] sm:$0xf]
      %v5092 = vcombine.low %v5062, %v5066
      %v5093 = vcombine.low %v5070, %v5074
      %v5095 = vunpack.c.l.s4 1983009808
      %v5096 = vunpack.c.0.s8 %v5095
      %v5097 = vlaneseq
      %v5098 = vshrl.u32 %v5097, 7
      %v5099 = vsub.s32 %v5096, %v5098
      %v5100 = vrot.slane %v5092, %v5099
      %v5102 = vunpack.c.l.s4 1983009808
      %v5103 = vunpack.c.0.s8 %v5102
      %v5104 = vlaneseq
      %v5105 = vshrl.u32 %v5104, 7
      %v5106 = vsub.s32 %v5103, %v5105
      %v5107 = vrot.slane %v5093, %v5106
      %v5108 = vcombine.low %v5100, %v5107
      %v5126 = vunpack.c.l.b16 %v5076
      %v5127 = vunpack.c.l.b16 %v5077
      %v5128 = vunpack.c.l.b16 %v5078
      %v5129 = vunpack.c.l.b16 %v5079
      %v5130 = vunpack.c.l.b16 %v5080
      %v5131 = vunpack.c.l.b16 %v5081
      %v5132 = vunpack.c.l.b16 %v5082
      %v5133 = vunpack.c.l.b16 %v5083
      %v5134 = vunpack.c.l.b16 %v5084
      %v5135 = vunpack.c.l.b16 %v5085
      %v5136 = vunpack.c.l.b16 %v5086
      %v5137 = vunpack.c.l.b16 %v5087
      %v5138 = vunpack.c.l.b16 %v5088
      %v5139 = vunpack.c.l.b16 %v5089
      %v5140 = vunpack.c.l.b16 %v5090
      %v5141 = vunpack.c.l.b16 %v5091
      %v5142 = vpack.c.b16 %v5127, %v5126
      %v5143 = vpack.c.b16 %v5129, %v5128
      %v5144 = vpack.c.b16 %v5131, %v5130
      %v5145 = vpack.c.b16 %v5133, %v5132
      %v5146 = vpack.c.b16 %v5135, %v5134
      %v5147 = vpack.c.b16 %v5137, %v5136
      %v5148 = vpack.c.b16 %v5139, %v5138
      %v5149 = vpack.c.b16 %v5141, %v5140
      %5158 = vmatprep.subr.bf16.mxu0 0
      %5159 = vmatpush1.bf16.msra.mxu0 %v5149
      %5160 = vmatprep.subr.bf16.mxu0 0
      %5161 = vmatpush1.bf16.msra.mxu0 %v5148
      %5162 = vmatprep.subr.bf16.mxu0 0
      %5163 = vmatpush1.bf16.msra.mxu0 %v5147
      %5164 = vmatprep.subr.bf16.mxu0 0
      %5165 = vmatpush1.bf16.msra.mxu0 %v5146
      %5166 = vmatprep.subr.bf16.mxu0 0
      %5167 = vmatpush1.bf16.msra.mxu0 %v5145
      %5168 = vmatprep.subr.bf16.mxu0 0
      %5169 = vmatpush1.bf16.msra.mxu0 %v5144
      %5170 = vmatprep.subr.bf16.mxu0 0
      %5171 = vmatpush1.bf16.msra.mxu0 %v5143
      %5172 = vmatprep.subr.bf16.mxu0 0
      %5173 = vmatpush1.bf16.msra.mxu0 %v5142
      %5174 = vmatprep.subr.bf16.mxu0 0
      %5175 = vmatpush2.bf16.msra.mxu0 0
      %5176 = vmatprep.subr.bf16.mxu0 0
      %5177 = vmatpush2.bf16.msra.mxu0 0
      %5178 = vmatprep.subr.bf16.mxu0 0
      %5179 = vmatpush2.bf16.msra.mxu0 0
      %5180 = vmatprep.subr.bf16.mxu0 0
      %5181 = vmatpush2.bf16.msra.mxu0 0
      %5182 = vmatprep.subr.bf16.mxu0 0
      %5183 = vmatpush2.bf16.msra.mxu0 0
      %5184 = vmatprep.subr.bf16.mxu0 0
      %5185 = vmatpush2.bf16.msra.mxu0 0
      %5186 = vmatprep.subr.bf16.mxu0 0
      %5187 = vmatpush2.bf16.msra.mxu0 0
      %5188 = vmatprep.subr.bf16.mxu0 0
      %5189 = vmatpush2.bf16.msra.mxu0 0
      %5190 = vmatprep.mubr.bf16.mxu0 0
      %5191 = vmatmul.mubr.bf16.gmra.mxu0 %v5108
      %v5192 = vpop.f32.mrf.mxu0
      %v5193 = vadd.f32 0.0, %v5192
      %v5194 = vpop.f32.mrf.mxu0
      %v5195 = vpop.f32.mrf.mxu0
      %v5196 = vadd.f32 0.0, %v5195
      %v5197 = vpop.f32.mrf.mxu0
      %5198 = vdwg.mxu0
      %v5199 = vadd.f32 %v5017, %v5193
      %v5200 = vadd.f32 %v5018, %v5196
      %v5201 = vld [vmem:[%s4] sm:$0x1]
      %v5203 = vlaneseq
      %v5204 = vshrl.u32 %v5203, 7
      %v5205 = vsub.s32 0, %v5204
      %v5206 = vrot.slane %v5201, %v5205
      %v5208 = vadd.f32 %v5199, %v5206
      %v5209 = vadd.f32 %v5200, %v5206
      %v5210 = vmax.f32 %v5208, 0.0
      %v5211 = vmax.f32 %v5209, 0.0
      %v5214 = vcombine.high %v5210, %v5210
      %v5215 = vcombine.high %v5211, %v5211
      %v5218 = vpack.c.bf16 %v5210, %v5210
      %v5219 = vpack.c.bf16 %v5214, %v5214
      %v5220 = vpack.c.bf16 %v5211, %v5211
      %v5221 = vpack.c.bf16 %v5215, %v5215
      %5222 = vst [vmem:[%s342] sm:$0x3] %v5218
      %5223 = vst [vmem:[%s342 + $0x2] sm:$0x3] %v5219
      %5224 = vst [vmem:[%s342 + $0x4] sm:$0x3] %v5220
      %5225 = vst [vmem:[%s342 + $0x6] sm:$0x3] %v5221
      %p5226 = scmp.lt.s32.totalorder %s20, 1
      %s5227 = scalar_select %p5226, %s20, 1
      %p5228 = scmp.lt.s32.totalorder %s21, 3
      %s5229 = scalar_select %p5228, %s21, 3
      %s5230 = smul.addr %s5229, 4
      %s5231 = smul.addr %s5227, 16
      %s5232 = sadd.s32 %s5230, %s5231
      %s5233 = smul.addr %s5232, 2
      %s5234 = scalar_lea.vmem %s5, %s5233
      // Predicated region
      $region41: #{eeg3dcnn_forward.8} parent=39 // pred_check
        %p5235 = pneg %p178
      $region42: #{eeg3dcnn_forward.8} parent=39 // pred_check_branch
        %5237 = sbr.rel (%p5235) target = $region44
      $region43: #{eeg3dcnn_forward.8} parent=39 // pred_region
        _
      $region44: #{eeg3dcnn_forward.8} parent=39 // pred_fallthru
        _
    $region40: #{eeg3dcnn_forward.8} parent=5 // pred_fallthru
      _
    %p5238 = scmp.le.s32.totalorder 2, %s11
    // Predicated region
    $region45: #{eeg3dcnn_forward.8} parent=5 // pred_check
      %p5239 = pneg %p5238
    $region46: #{eeg3dcnn_forward.8} parent=5 // pred_check_branch
      %5241 = sbr.rel (%p5239) target = $region48
    $region47: #{eeg3dcnn_forward.8} parent=5 // pred_region
      %s5242 = ssub.s32 %s11, 2
      // Predicated region
      $region49: #{eeg3dcnn_forward.8} parent=47 // pred_check
        %p5243 = pneg %p184
      $region50: #{eeg3dcnn_forward.8} parent=47 // pred_check_branch
        %5245 = sbr.rel (%p5243) target = $region52
      $region51: #{eeg3dcnn_forward.8} parent=47 // pred_region
        %p5246 = scmp.lt.s32.totalorder %s22, 1
        %s5247 = scalar_select %p5246, %s22, 1
        %p5248 = scmp.lt.s32.totalorder %s23, 3
        %s5249 = scalar_select %p5248, %s23, 3
        %s5250 = smul.addr %s5249, 4
        %s5251 = smul.addr %s5247, 16
        %s5252 = sadd.s32 %s5250, %s5251
        %s5253 = smul.addr %s5252, 2
        %s5254 = scalar_lea.vmem %s5, %s5253
      $region52: #{eeg3dcnn_forward.8} parent=47 // pred_fallthru
        _
    $region48: #{eeg3dcnn_forward.8} parent=5 // pred_fallthru
      _
  $region6: #{eeg3dcnn_forward.8} parent=0 // loop_footer
    %s15 = sadd.s32 1, %s11
  $region7: #{eeg3dcnn_forward.8} parent=0 // loop_footer_branch
    %10 = sbr.rel target = $region3
  $region8: #{eeg3dcnn_forward.8} parent=0 // loop_exit
    _

</llo_original>
